<compile_context>
chip_gen: v6e
topology: v6e:2x2x1
jax: 0.10.0
libtpu: 0.0.40
codegen_flags: <defaults>
</compile_context>

<pallas_src>
import functools

import jax
import jax.numpy as jnp
from jax.experimental import pallas as pl
from jax.experimental.pallas import tpu as pltpu


def _round_up(x, m):
    return ((x + m - 1) // m) * m


# ---------------------------------------------------------------------------
# Pallas kernels
#   y = W' @ X + b        (+ ReLU)                       -> BasicConv
#   y = relu((W' @ X + b) * res_scale + short)           -> ConvLinear + residual
# W' already has the BN scale folded in; b is the BN shift.
# Shapes: W' (Cout, Kd), X (Kd, Npix), b (Cout, 1), out (Cout, Npix).
# ---------------------------------------------------------------------------
def _conv_bn_kernel(w_ref, b_ref, x_ref, o_ref, *, relu):
    acc = jnp.dot(
        w_ref[...], x_ref[...],
        preferred_element_type=jnp.float32,
        precision=jax.lax.Precision.HIGHEST,
    )
    y = acc + b_ref[...]                 # (Cout,1) lane-broadcast: free VPU filler
    if relu:
        y = jnp.maximum(y, 0.0)
    o_ref[...] = y


def _conv_bn_residual_kernel(w_ref, b_ref, x_ref, s_ref, o_ref, *, res_scale):
    acc = jnp.dot(
        w_ref[...], x_ref[...],
        preferred_element_type=jnp.float32,
        precision=jax.lax.Precision.HIGHEST,
    )
    y = (acc + b_ref[...]) * res_scale + s_ref[...]
    o_ref[...] = jnp.maximum(y, 0.0)


# ---------------------------------------------------------------------------
# im2col on the internal (C, B, H, W) layout.
# Returns cols (Cin*KH*KW, B*OH*OW) with rows ordered (cin, kh, kw) to match
# weight.reshape(Cout, Cin*KH*KW).
# ---------------------------------------------------------------------------
def _im2col(x_cbhw, kh, kw, stride, padding, dilation):
    C, B, H, W = x_cbhw.shape
    ph, pw = padding
    dh, dw = dilation
    s = stride
    OH = (H + 2 * ph - dh * (kh - 1) - 1) // s + 1
    OW = (W + 2 * pw - dw * (kw - 1) - 1) // s + 1
    xp = jnp.pad(x_cbhw, ((0, 0), (0, 0), (ph, ph), (pw, pw)))
    taps = []
    for i in range(kh):
        for j in range(kw):
            taps.append(
                xp[:, :,
                   i * dh: i * dh + (OH - 1) * s + 1: s,
                   j * dw: j * dw + (OW - 1) * s + 1: s]
            )
    cols = jnp.stack(taps, axis=0)                       # (kh*kw, C, B, OH, OW)
    cols = jnp.transpose(cols, (1, 0, 2, 3, 4))          # (C, kh*kw, B, OH, OW)
    cols = cols.reshape(C * kh * kw, B * OH * OW)
    return cols, OH, OW


# ---------------------------------------------------------------------------
# One fused BasicConv (Conv2d + folded BN [+ ReLU] [+ residual scale/add/ReLU]).
# x_cbhw: (Cin, B, H, W).  Returns (Cout, B, OH, OW).
# ---------------------------------------------------------------------------
def conv_bn_pallas(x_cbhw, params, *, stride=1, padding=(0, 0), dilation=(1, 1),
                   relu=True, short=None, res_scale=None):
    w = params["weight"]                                 # (Cout, Cin, KH, KW)
    Cout, Cin, KH, KW = w.shape
    _, B, _, _ = x_cbhw.shape
    eps = 1e-5
    bn_scale = params["gamma"] / jnp.sqrt(params["var"] + eps)
    bn_shift = params["beta"] - params["mean"] * bn_scale

    cols, OH, OW = _im2col(x_cbhw, KH, KW, stride, padding, dilation)
    Kd = Cin * KH * KW
    Npix = cols.shape[1]

    # Fold BN scale into the weight matrix; the shift becomes an in-kernel bias.
    w_mat = w.reshape(Cout, Kd) * bn_scale[:, None]

    # Pad to sublane/lane-friendly sizes (zero rows/cols contribute nothing).
    Cout_p = _round_up(Cout, 8)
    Kd_p = _round_up(Kd, 8)
    Np_p = _round_up(Npix, 128)
    if Np_p > 4096:                                      # keep VMEM bounded for big inputs
        tn = 2048
        Np_p = _round_up(Npix, tn)
    else:                                                # single grid step: no per-step overhead
        tn = Np_p

    w_mat = jnp.pad(w_mat, ((0, Cout_p - Cout), (0, Kd_p - Kd)))
    bias = jnp.pad(bn_shift, (0, Cout_p - Cout)).reshape(Cout_p, 1)
    cols = jnp.pad(cols, ((0, Kd_p - Kd), (0, Np_p - Npix)))

    w_spec = pl.BlockSpec((Cout_p, Kd_p), lambda j: (0, 0))
    b_spec = pl.BlockSpec((Cout_p, 1), lambda j: (0, 0))
    x_spec = pl.BlockSpec((Kd_p, tn), lambda j: (0, j))
    o_spec = pl.BlockSpec((Cout_p, tn), lambda j: (0, j))

    if short is None:
        kernel = functools.partial(_conv_bn_kernel, relu=relu)
        in_specs = [w_spec, b_spec, x_spec]
        args = (w_mat, bias, cols)
    else:
        s_flat = short.reshape(Cout, -1)
        s_flat = jnp.pad(s_flat, ((0, Cout_p - Cout), (0, Np_p - s_flat.shape[1])))
        s_spec = pl.BlockSpec((Cout_p, tn), lambda j: (0, j))
        kernel = functools.partial(_conv_bn_residual_kernel, res_scale=float(res_scale))
        in_specs = [w_spec, b_spec, x_spec, s_spec]
        args = (w_mat, bias, cols, s_flat)

    out = pl.pallas_call(
        kernel,
        out_shape=jax.ShapeDtypeStruct((Cout_p, Np_p), jnp.float32),
        grid_spec=pltpu.PrefetchScalarGridSpec(
            num_scalar_prefetch=0,
            grid=(Np_p // tn,),
            in_specs=in_specs,
            out_specs=o_spec,
        ),
        compiler_params=pltpu.CompilerParams(dimension_semantics=("parallel",)),
    )(*args)

    return out[:Cout, :Npix].reshape(Cout, B, OH, OW)


# ---------------------------------------------------------------------------
# BasicRFB_a forward (inference semantics), x in NCHW.
# ---------------------------------------------------------------------------
def basic_rfb_a_forward(x_nchw, params, scale=0.1):
    x = jnp.transpose(x_nchw, (1, 0, 2, 3))              # internal (C, B, H, W)

    b0 = conv_bn_pallas(x, params["b0_0"], relu=True)
    b0 = conv_bn_pallas(b0, params["b0_1"], padding=(1, 1), relu=False)

    b1 = conv_bn_pallas(x, params["b1_0"], relu=True)
    b1 = conv_bn_pallas(b1, params["b1_1"], padding=(1, 0), relu=True)
    b1 = conv_bn_pallas(b1, params["b1_2"], padding=(3, 3), dilation=(3, 3), relu=False)

    b2 = conv_bn_pallas(x, params["b2_0"], relu=True)
    b2 = conv_bn_pallas(b2, params["b2_1"], padding=(0, 1), relu=True)
    b2 = conv_bn_pallas(b2, params["b2_2"], padding=(3, 3), dilation=(3, 3), relu=False)

    b3 = conv_bn_pallas(x, params["b3_0"], relu=True)
    b3 = conv_bn_pallas(b3, params["b3_1"], padding=(0, 1), relu=True)
    b3 = conv_bn_pallas(b3, params["b3_2"], padding=(1, 0), relu=True)
    b3 = conv_bn_pallas(b3, params["b3_3"], padding=(5, 5), dilation=(5, 5), relu=False)

    cat = jnp.concatenate([b0, b1, b2, b3], axis=0)      # channel axis is 0 internally

    short = conv_bn_pallas(x, params["shortcut"], padding=(1, 1), relu=False)
    # ConvLinear fused with  out*scale + short  and the final ReLU.
    out = conv_bn_pallas(cat, params["conv_linear"], padding=(1, 1), relu=False,
                         short=short, res_scale=scale)
    return jnp.transpose(out, (1, 0, 2, 3))              # back to NCHW


# ---------------------------------------------------------------------------
# Deterministic synthetic parameters (conv weight OIHW, BN gamma/beta/mean/var).
# ---------------------------------------------------------------------------
def make_params(key, in_planes, out_planes):
    inter = in_planes // 4
    layer_shapes = {
        "b0_0": (in_planes, inter, 1, 1),
        "b0_1": (inter, inter, 3, 3),
        "b1_0": (in_planes, inter, 1, 1),
        "b1_1": (inter, inter, 3, 1),
        "b1_2": (inter, inter, 3, 3),
        "b2_0": (in_planes, inter, 1, 1),
        "b2_1": (inter, inter, 1, 3),
        "b2_2": (inter, inter, 3, 3),
        "b3_0": (in_planes, inter // 2, 1, 1),
        "b3_1": (inter // 2, (inter // 4) * 3, 1, 3),
        "b3_2": ((inter // 4) * 3, inter, 3, 1),
        "b3_3": (inter, inter, 3, 3),
        "conv_linear": (4 * inter, out_planes, 3, 3),
        "shortcut": (in_planes, out_planes, 3, 3),
    }
    params = {}
    keys = jax.random.split(key, len(layer_shapes))
    for k, (name, (cin, cout, kh, kw)) in zip(keys, layer_shapes.items()):
        k1, k2, k3, k4, k5 = jax.random.split(k, 5)
        params[name] = dict(
            weight=0.1 * jax.random.normal(k1, (cout, cin, kh, kw), jnp.float32),
            gamma=1.0 + 0.1 * jax.random.normal(k2, (cout,), jnp.float32),
            beta=0.1 * jax.random.normal(k3, (cout,), jnp.float32),
            mean=0.1 * jax.random.normal(k4, (cout,), jnp.float32),
            var=0.9 + 0.2 * jax.random.uniform(k5, (cout,), jnp.float32),
        )
    return params


# ---------------------------------------------------------------------------
# Pure-JAX reference (lax.conv_general_dilated), same inference-mode BN fold.
# ---------------------------------------------------------------------------
def _ref_conv_bn(x, p, *, stride=1, padding=(0, 0), dilation=(1, 1), relu=True):
    y = jax.lax.conv_general_dilated(
        x, p["weight"],
        window_strides=(stride, stride),
        padding=[(padding[0], padding[0]), (padding[1], padding[1])],
        rhs_dilation=dilation,
        dimension_numbers=("NCHW", "OIHW", "NCHW"),
        precision=jax.lax.Precision.HIGHEST,
    )
    eps = 1e-5
    s = p["gamma"] / jnp.sqrt(p["var"] + eps)
    b = p["beta"] - p["mean"] * s
    y = y * s[None, :, None, None] + b[None, :, None, None]
    return jnp.maximum(y, 0.0) if relu else y


def basic_rfb_a_reference(x, params, scale=0.1):
    b0 = _ref_conv_bn(x, params["b0_0"])
    b0 = _ref_conv_bn(b0, params["b0_1"], padding=(1, 1), relu=False)
    b1 = _ref_conv_bn(x, params["b1_0"])
    b1 = _ref_conv_bn(b1, params["b1_1"], padding=(1, 0))
    b1 = _ref_conv_bn(b1, params["b1_2"], padding=(3, 3), dilation=(3, 3), relu=False)
    b2 = _ref_conv_bn(x, params["b2_0"])
    b2 = _ref_conv_bn(b2, params["b2_1"], padding=(0, 1))
    b2 = _ref_conv_bn(b2, params["b2_2"], padding=(3, 3), dilation=(3, 3), relu=False)
    b3 = _ref_conv_bn(x, params["b3_0"])
    b3 = _ref_conv_bn(b3, params["b3_1"], padding=(0, 1))
    b3 = _ref_conv_bn(b3, params["b3_2"], padding=(1, 0))
    b3 = _ref_conv_bn(b3, params["b3_3"], padding=(5, 5), dilation=(5, 5), relu=False)
    cat = jnp.concatenate([b0, b1, b2, b3], axis=1)
    out = _ref_conv_bn(cat, params["conv_linear"], padding=(1, 1), relu=False)
    short = _ref_conv_bn(x, params["shortcut"], padding=(1, 1), relu=False)
    return jnp.maximum(out * scale + short, 0.0)


if __name__ == "__main__":
    # BasicRFB_a(in_planes=16, out_planes=16, stride=1, scale=0.1); small input.
    B, Cin, H, W = 2, 16, 16, 16
    out_planes = 16

    key = jax.random.PRNGKey(0)
    kx, kp = jax.random.split(key)
    x = jax.random.normal(kx, (B, Cin, H, W), jnp.float32)
    params = make_params(kp, Cin, out_planes)

    fwd = jax.jit(basic_rfb_a_forward)
    out = jax.block_until_ready(fwd(x, params))

    ref = basic_rfb_a_reference(x, params)
    assert out.shape == (B, out_planes, H, W), out.shape
    assert jnp.allclose(out, ref, atol=2e-3, rtol=2e-3), (
        "mismatch vs reference, max abs err = %g" % float(jnp.max(jnp.abs(out - ref)))
    )

    print("KERNEL_OK")
</pallas_src>

<mosaic_0001>
module attributes {stable_mosaic.version = 11 : i64} {
  func.func @_conv_bn_kernel(%arg0: i32, %arg1: memref<8x16xf32, #tpu.memory_space<vmem>>, %arg2: memref<8x1xf32, #tpu.memory_space<vmem>>, %arg3: memref<16x512xf32, #tpu.memory_space<vmem>>, %arg4: memref<8x512xf32, #tpu.memory_space<vmem>>) attributes {dimension_semantics = [#tpu.dimension_semantics<parallel>], iteration_bounds = array<i64: 1>, scalar_prefetch = 0 : i64, scratch_operands = 0 : i64, tpu.core_type = #tpu.core_type<tc>, window_params = [{pipeline_mode = #tpu.pipeline_mode<synchronous>, transform_indices = @transform_0, window_bounds = array<i64: 8, 16>}, {pipeline_mode = #tpu.pipeline_mode<synchronous>, transform_indices = @transform_1, window_bounds = array<i64: 8, 1>}, {transform_indices = @transform_2, window_bounds = array<i64: 16, 512>}, {transform_indices = @transform_3, window_bounds = array<i64: 8, 512>}]} {
    %c0 = arith.constant 0 : index
    %c0_0 = arith.constant 0 : index
    %0 = vector.load %arg1[%c0, %c0_0] : memref<8x16xf32, #tpu.memory_space<vmem>>, vector<8x16xf32>
    %c0_1 = arith.constant 0 : index
    %c0_2 = arith.constant 0 : index
    %1 = vector.load %arg3[%c0_1, %c0_2] : memref<16x512xf32, #tpu.memory_space<vmem>>, vector<16x512xf32>
    %cst = arith.constant dense<0.000000e+00> : vector<8x512xf32>
    %2 = tpu.matmul %0, %1, %cst {dimension_numbers = #tpu.dot_dimension_numbers<[1], [0], [0], [1], [0, 0, 1, 1], [], []>, precision = #tpu.contract_precision<fp32>} : vector<8x16xf32>, vector<16x512xf32>, vector<8x512xf32> -> vector<8x512xf32>
    %c0_3 = arith.constant 0 : index
    %c0_4 = arith.constant 0 : index
    %3 = vector.load %arg2[%c0_3, %c0_4] : memref<8x1xf32, #tpu.memory_space<vmem>>, vector<8x1xf32>
    %4 = vector.broadcast %3 : vector<8x1xf32> to vector<8x512xf32>
    %5 = arith.addf %2, %4 : vector<8x512xf32>
    %cst_5 = arith.constant 0.000000e+00 : f32
    %6 = vector.broadcast %cst_5 : f32 to vector<8x512xf32>
    %7 = arith.maximumf %5, %6 : vector<8x512xf32>
    %c0_6 = arith.constant 0 : index
    %c0_7 = arith.constant 0 : index
    %8 = vector.load %arg4[%c0_6, %c0_7] : memref<8x512xf32, #tpu.memory_space<vmem>>, vector<8x512xf32>
    tpu.vector_store %arg4[%c0_6, %c0_7], %7 {strides = array<i32>} : memref<8x512xf32, #tpu.memory_space<vmem>>, vector<8x512xf32>,
    return
  }
  func.func @transform_0(%arg0: i32) -> (i32, i32) {
    %c0_i32 = arith.constant 0 : i32
    %c0_i32_0 = arith.constant 0 : i32
    %c0_i32_1 = arith.constant 0 : i32
    return %c0_i32, %c0_i32_0 : i32, i32
  }
  func.func @transform_1(%arg0: i32) -> (i32, i32) {
    %c0_i32 = arith.constant 0 : i32
    %c0_i32_0 = arith.constant 0 : i32
    %c0_i32_1 = arith.constant 0 : i32
    return %c0_i32, %c0_i32_0 : i32, i32
  }
  func.func @transform_2(%arg0: i32) -> (i32, i32) {
    %c0_i32 = arith.constant 0 : i32
    %c0_i32_0 = arith.constant 0 : i32
    return %c0_i32, %arg0 : i32, i32
  }
  func.func @transform_3(%arg0: i32) -> (i32, i32) {
    %c0_i32 = arith.constant 0 : i32
    %c0_i32_0 = arith.constant 0 : i32
    return %c0_i32, %arg0 : i32, i32
  }
}

module attributes {stable_mosaic.version = 11 : i64} {
  func.func @_conv_bn_kernel(%arg0: i32, %arg1: memref<8x8xf32, #tpu.memory_space<vmem>>, %arg2: memref<8x1xf32, #tpu.memory_space<vmem>>, %arg3: memref<8x512xf32, #tpu.memory_space<vmem>>, %arg4: memref<8x512xf32, #tpu.memory_space<vmem>>) attributes {dimension_semantics = [#tpu.dimension_semantics<parallel>], iteration_bounds = array<i64: 1>, scalar_prefetch = 0 : i64, scratch_operands = 0 : i64, tpu.core_type = #tpu.core_type<tc>, window_params = [{pipeline_mode = #tpu.pipeline_mode<synchronous>, transform_indices = @transform_0, window_bounds = array<i64: 8, 8>}, {pipeline_mode = #tpu.pipeline_mode<synchronous>, transform_indices = @transform_1, window_bounds = array<i64: 8, 1>}, {transform_indices = @transform_2, window_bounds = array<i64: 8, 512>}, {transform_indices = @transform_3, window_bounds = array<i64: 8, 512>}]} {
    %c0 = arith.constant 0 : index
    %c0_0 = arith.constant 0 : index
    %0 = vector.load %arg1[%c0, %c0_0] : memref<8x8xf32, #tpu.memory_space<vmem>>, vector<8x8xf32>
    %c0_1 = arith.constant 0 : index
    %c0_2 = arith.constant 0 : index
    %1 = vector.load %arg3[%c0_1, %c0_2] : memref<8x512xf32, #tpu.memory_space<vmem>>, vector<8x512xf32>
    %cst = arith.constant dense<0.000000e+00> : vector<8x512xf32>
    %2 = tpu.matmul %0, %1, %cst {dimension_numbers = #tpu.dot_dimension_numbers<[1], [0], [0], [1], [0, 0, 1, 1], [], []>, precision = #tpu.contract_precision<fp32>} : vector<8x8xf32>, vector<8x512xf32>, vector<8x512xf32> -> vector<8x512xf32>
    %c0_3 = arith.constant 0 : index
    %c0_4 = arith.constant 0 : index
    %3 = vector.load %arg2[%c0_3, %c0_4] : memref<8x1xf32, #tpu.memory_space<vmem>>, vector<8x1xf32>
    %4 = vector.broadcast %3 : vector<8x1xf32> to vector<8x512xf32>
    %5 = arith.addf %2, %4 : vector<8x512xf32>
    %cst_5 = arith.constant 0.000000e+00 : f32
    %6 = vector.broadcast %cst_5 : f32 to vector<8x512xf32>
    %7 = arith.maximumf %5, %6 : vector<8x512xf32>
    %c0_6 = arith.constant 0 : index
    %c0_7 = arith.constant 0 : index
    %8 = vector.load %arg4[%c0_6, %c0_7] : memref<8x512xf32, #tpu.memory_space<vmem>>, vector<8x512xf32>
    tpu.vector_store %arg4[%c0_6, %c0_7], %7 {strides = array<i32>} : memref<8x512xf32, #tpu.memory_space<vmem>>, vector<8x512xf32>,
    return
  }
  func.func @transform_0(%arg0: i32) -> (i32, i32) {
    %c0_i32 = arith.constant 0 : i32
    %c0_i32_0 = arith.constant 0 : i32
    %c0_i32_1 = arith.constant 0 : i32
    return %c0_i32, %c0_i32_0 : i32, i32
  }
  func.func @transform_1(%arg0: i32) -> (i32, i32) {
    %c0_i32 = arith.constant 0 : i32
    %c0_i32_0 = arith.constant 0 : i32
    %c0_i32_1 = arith.constant 0 : i32
    return %c0_i32, %c0_i32_0 : i32, i32
  }
  func.func @transform_2(%arg0: i32) -> (i32, i32) {
    %c0_i32 = arith.constant 0 : i32
    %c0_i32_0 = arith.constant 0 : i32
    return %c0_i32, %arg0 : i32, i32
  }
  func.func @transform_3(%arg0: i32) -> (i32, i32) {
    %c0_i32 = arith.constant 0 : i32
    %c0_i32_0 = arith.constant 0 : i32
    return %c0_i32, %arg0 : i32, i32
  }
}

module attributes {stable_mosaic.version = 11 : i64} {
  func.func @_conv_bn_kernel(%arg0: i32, %arg1: memref<8x40xf32, #tpu.memory_space<vmem>>, %arg2: memref<8x1xf32, #tpu.memory_space<vmem>>, %arg3: memref<40x512xf32, #tpu.memory_space<vmem>>, %arg4: memref<8x512xf32, #tpu.memory_space<vmem>>) attributes {dimension_semantics = [#tpu.dimension_semantics<parallel>], iteration_bounds = array<i64: 1>, scalar_prefetch = 0 : i64, scratch_operands = 0 : i64, tpu.core_type = #tpu.core_type<tc>, window_params = [{pipeline_mode = #tpu.pipeline_mode<synchronous>, transform_indices = @transform_0, window_bounds = array<i64: 8, 40>}, {pipeline_mode = #tpu.pipeline_mode<synchronous>, transform_indices = @transform_1, window_bounds = array<i64: 8, 1>}, {transform_indices = @transform_2, window_bounds = array<i64: 40, 512>}, {transform_indices = @transform_3, window_bounds = array<i64: 8, 512>}]} {
    %c0 = arith.constant 0 : index
    %c0_0 = arith.constant 0 : index
    %0 = vector.load %arg1[%c0, %c0_0] : memref<8x40xf32, #tpu.memory_space<vmem>>, vector<8x40xf32>
    %c0_1 = arith.constant 0 : index
    %c0_2 = arith.constant 0 : index
    %1 = vector.load %arg3[%c0_1, %c0_2] : memref<40x512xf32, #tpu.memory_space<vmem>>, vector<40x512xf32>
    %cst = arith.constant dense<0.000000e+00> : vector<8x512xf32>
    %2 = tpu.matmul %0, %1, %cst {dimension_numbers = #tpu.dot_dimension_numbers<[1], [0], [0], [1], [0, 0, 1, 1], [], []>, precision = #tpu.contract_precision<fp32>} : vector<8x40xf32>, vector<40x512xf32>, vector<8x512xf32> -> vector<8x512xf32>
    %c0_3 = arith.constant 0 : index
    %c0_4 = arith.constant 0 : index
    %3 = vector.load %arg2[%c0_3, %c0_4] : memref<8x1xf32, #tpu.memory_space<vmem>>, vector<8x1xf32>
    %4 = vector.broadcast %3 : vector<8x1xf32> to vector<8x512xf32>
    %5 = arith.addf %2, %4 : vector<8x512xf32>
    %c0_5 = arith.constant 0 : index
    %c0_6 = arith.constant 0 : index
    %6 = vector.load %arg4[%c0_5, %c0_6] : memref<8x512xf32, #tpu.memory_space<vmem>>, vector<8x512xf32>
    tpu.vector_store %arg4[%c0_5, %c0_6], %5 {strides = array<i32>} : memref<8x512xf32, #tpu.memory_space<vmem>>, vector<8x512xf32>,
    return
  }
  func.func @transform_0(%arg0: i32) -> (i32, i32) {
    %c0_i32 = arith.constant 0 : i32
    %c0_i32_0 = arith.constant 0 : i32
    %c0_i32_1 = arith.constant 0 : i32
    return %c0_i32, %c0_i32_0 : i32, i32
  }
  func.func @transform_1(%arg0: i32) -> (i32, i32) {
    %c0_i32 = arith.constant 0 : i32
    %c0_i32_0 = arith.constant 0 : i32
    %c0_i32_1 = arith.constant 0 : i32
    return %c0_i32, %c0_i32_0 : i32, i32
  }
  func.func @transform_2(%arg0: i32) -> (i32, i32) {
    %c0_i32 = arith.constant 0 : i32
    %c0_i32_0 = arith.constant 0 : i32
    return %c0_i32, %arg0 : i32, i32
  }
  func.func @transform_3(%arg0: i32) -> (i32, i32) {
    %c0_i32 = arith.constant 0 : i32
    %c0_i32_0 = arith.constant 0 : i32
    return %c0_i32, %arg0 : i32, i32
  }
}

module attributes {stable_mosaic.version = 11 : i64} {
  func.func @_conv_bn_kernel(%arg0: i32, %arg1: memref<16x144xf32, #tpu.memory_space<vmem>>, %arg2: memref<16x1xf32, #tpu.memory_space<vmem>>, %arg3: memref<144x512xf32, #tpu.memory_space<vmem>>, %arg4: memref<16x512xf32, #tpu.memory_space<vmem>>) attributes {dimension_semantics = [#tpu.dimension_semantics<parallel>], iteration_bounds = array<i64: 1>, scalar_prefetch = 0 : i64, scratch_operands = 0 : i64, tpu.core_type = #tpu.core_type<tc>, window_params = [{pipeline_mode = #tpu.pipeline_mode<synchronous>, transform_indices = @transform_0, window_bounds = array<i64: 16, 144>}, {pipeline_mode = #tpu.pipeline_mode<synchronous>, transform_indices = @transform_1, window_bounds = array<i64: 16, 1>}, {transform_indices = @transform_2, window_bounds = array<i64: 144, 512>}, {transform_indices = @transform_3, window_bounds = array<i64: 16, 512>}]} {
    %c0 = arith.constant 0 : index
    %c0_0 = arith.constant 0 : index
    %0 = vector.load %arg1[%c0, %c0_0] : memref<16x144xf32, #tpu.memory_space<vmem>>, vector<16x144xf32>
    %c0_1 = arith.constant 0 : index
    %c0_2 = arith.constant 0 : index
    %1 = vector.load %arg3[%c0_1, %c0_2] : memref<144x512xf32, #tpu.memory_space<vmem>>, vector<144x512xf32>
    %cst = arith.constant dense<0.000000e+00> : vector<16x512xf32>
    %2 = tpu.matmul %0, %1, %cst {dimension_numbers = #tpu.dot_dimension_numbers<[1], [0], [0], [1], [0, 0, 1, 1], [], []>, precision = #tpu.contract_precision<fp32>} : vector<16x144xf32>, vector<144x512xf32>, vector<16x512xf32> -> vector<16x512xf32>
    %c0_3 = arith.constant 0 : index
    %c0_4 = arith.constant 0 : index
    %3 = vector.load %arg2[%c0_3, %c0_4] : memref<16x1xf32, #tpu.memory_space<vmem>>, vector<16x1xf32>
    %4 = vector.broadcast %3 : vector<16x1xf32> to vector<16x512xf32>
    %5 = arith.addf %2, %4 : vector<16x512xf32>
    %c0_5 = arith.constant 0 : index
    %c0_6 = arith.constant 0 : index
    %6 = vector.load %arg4[%c0_5, %c0_6] : memref<16x512xf32, #tpu.memory_space<vmem>>, vector<16x512xf32>
    tpu.vector_store %arg4[%c0_5, %c0_6], %5 {strides = array<i32>} : memref<16x512xf32, #tpu.memory_space<vmem>>, vector<16x512xf32>,
    return
  }
  func.func @transform_0(%arg0: i32) -> (i32, i32) {
    %c0_i32 = arith.constant 0 : i32
    %c0_i32_0 = arith.constant 0 : i32
    %c0_i32_1 = arith.constant 0 : i32
    return %c0_i32, %c0_i32_0 : i32, i32
  }
  func.func @transform_1(%arg0: i32) -> (i32, i32) {
    %c0_i32 = arith.constant 0 : i32
    %c0_i32_0 = arith.constant 0 : i32
    %c0_i32_1 = arith.constant 0 : i32
    return %c0_i32, %c0_i32_0 : i32, i32
  }
  func.func @transform_2(%arg0: i32) -> (i32, i32) {
    %c0_i32 = arith.constant 0 : i32
    %c0_i32_0 = arith.constant 0 : i32
    return %c0_i32, %arg0 : i32, i32
  }
  func.func @transform_3(%arg0: i32) -> (i32, i32) {
    %c0_i32 = arith.constant 0 : i32
    %c0_i32_0 = arith.constant 0 : i32
    return %c0_i32, %arg0 : i32, i32
  }
}

module attributes {stable_mosaic.version = 11 : i64} {
  func.func @_conv_bn_residual_kernel(%arg0: i32, %arg1: memref<16x144xf32, #tpu.memory_space<vmem>>, %arg2: memref<16x1xf32, #tpu.memory_space<vmem>>, %arg3: memref<144x512xf32, #tpu.memory_space<vmem>>, %arg4: memref<16x512xf32, #tpu.memory_space<vmem>>, %arg5: memref<16x512xf32, #tpu.memory_space<vmem>>) attributes {dimension_semantics = [#tpu.dimension_semantics<parallel>], iteration_bounds = array<i64: 1>, scalar_prefetch = 0 : i64, scratch_operands = 0 : i64, tpu.core_type = #tpu.core_type<tc>, window_params = [{pipeline_mode = #tpu.pipeline_mode<synchronous>, transform_indices = @transform_0, window_bounds = array<i64: 16, 144>}, {pipeline_mode = #tpu.pipeline_mode<synchronous>, transform_indices = @transform_1, window_bounds = array<i64: 16, 1>}, {transform_indices = @transform_2, window_bounds = array<i64: 144, 512>}, {transform_indices = @transform_3, window_bounds = array<i64: 16, 512>}, {transform_indices = @transform_4, window_bounds = array<i64: 16, 512>}]} {
    %c0 = arith.constant 0 : index
    %c0_0 = arith.constant 0 : index
    %0 = vector.load %arg1[%c0, %c0_0] : memref<16x144xf32, #tpu.memory_space<vmem>>, vector<16x144xf32>
    %c0_1 = arith.constant 0 : index
    %c0_2 = arith.constant 0 : index
    %1 = vector.load %arg3[%c0_1, %c0_2] : memref<144x512xf32, #tpu.memory_space<vmem>>, vector<144x512xf32>
    %cst = arith.constant dense<0.000000e+00> : vector<16x512xf32>
    %2 = tpu.matmul %0, %1, %cst {dimension_numbers = #tpu.dot_dimension_numbers<[1], [0], [0], [1], [0, 0, 1, 1], [], []>, precision = #tpu.contract_precision<fp32>} : vector<16x144xf32>, vector<144x512xf32>, vector<16x512xf32> -> vector<16x512xf32>
    %c0_3 = arith.constant 0 : index
    %c0_4 = arith.constant 0 : index
    %3 = vector.load %arg2[%c0_3, %c0_4] : memref<16x1xf32, #tpu.memory_space<vmem>>, vector<16x1xf32>
    %4 = vector.broadcast %3 : vector<16x1xf32> to vector<16x512xf32>
    %5 = arith.addf %2, %4 : vector<16x512xf32>
    %cst_5 = arith.constant 1.000000e-01 : f32
    %6 = vector.broadcast %cst_5 : f32 to vector<16x512xf32>
    %7 = arith.mulf %5, %6 : vector<16x512xf32>
    %c0_6 = arith.constant 0 : index
    %c0_7 = arith.constant 0 : index
    %8 = vector.load %arg4[%c0_6, %c0_7] : memref<16x512xf32, #tpu.memory_space<vmem>>, vector<16x512xf32>
    %9 = arith.addf %7, %8 : vector<16x512xf32>
    %cst_8 = arith.constant 0.000000e+00 : f32
    %10 = vector.broadcast %cst_8 : f32 to vector<16x512xf32>
    %11 = arith.maximumf %9, %10 : vector<16x512xf32>
    %c0_9 = arith.constant 0 : index
    %c0_10 = arith.constant 0 : index
    %12 = vector.load %arg5[%c0_9, %c0_10] : memref<16x512xf32, #tpu.memory_space<vmem>>, vector<16x512xf32>
    tpu.vector_store %arg5[%c0_9, %c0_10], %11 {strides = array<i32>} : memref<16x512xf32, #tpu.memory_space<vmem>>, vector<16x512xf32>,
    return
  }
  func.func @transform_0(%arg0: i32) -> (i32, i32) {
    %c0_i32 = arith.constant 0 : i32
    %c0_i32_0 = arith.constant 0 : i32
    %c0_i32_1 = arith.constant 0 : i32
    return %c0_i32, %c0_i32_0 : i32, i32
  }
  func.func @transform_1(%arg0: i32) -> (i32, i32) {
    %c0_i32 = arith.constant 0 : i32
    %c0_i32_0 = arith.constant 0 : i32
    %c0_i32_1 = arith.constant 0 : i32
    return %c0_i32, %c0_i32_0 : i32, i32
  }
  func.func @transform_2(%arg0: i32) -> (i32, i32) {
    %c0_i32 = arith.constant 0 : i32
    %c0_i32_0 = arith.constant 0 : i32
    return %c0_i32, %arg0 : i32, i32
  }
  func.func @transform_3(%arg0: i32) -> (i32, i32) {
    %c0_i32 = arith.constant 0 : i32
    %c0_i32_0 = arith.constant 0 : i32
    return %c0_i32, %arg0 : i32, i32
  }
  func.func @transform_4(%arg0: i32) -> (i32, i32) {
    %c0_i32 = arith.constant 0 : i32
    %c0_i32_0 = arith.constant 0 : i32
    return %c0_i32, %arg0 : i32, i32
  }
}

</mosaic_0001>

<llo_original>
// kernel: basic_rfb_a_forward.23
$region0: #{basic_rfb_a_forward.23}
  #allocation0 [shape = 'u32[]', space=smem, size = 0x4, offset = 0x4, fixed_abs, tag = 'smem constant byte address 0x4 - core index']
  #allocation1 [shape = 'u32[144,128]{1,0:T(1,128)}', space=vmem, size = 0x12000, scoped, tag = 'internal scratch']
  %s0 = inlined_call_operand.vmem [shape: f32[8,8], index: 0, kind: input, shape index: {}]
  %s1 = inlined_call_operand.vmem [shape: f32[8,1], index: 1, kind: input, shape index: {}]
  %s2 = inlined_call_operand.vmem [shape: f32[8,512], index: 2, kind: input, shape index: {}]
  %s3 = inlined_call_operand.vmem [shape: f32[8,512], index: 3, kind: output, shape index: {}]
  %s4 = sld [smem:[#allocation0]]
  $region22: #{basic_rfb_a_forward.23} parent=0
    _
  %s6 = ssub.s32 1, %s4
  %s7 = scalar_select 0, %s6, %s4
  // Predicated region
  $region2: #{basic_rfb_a_forward.23} parent=0 // pred_check
    _
  $region3: #{basic_rfb_a_forward.23} parent=0 // pred_check_branch
    %9 = sbr.rel (0) target = $region5
  $region4: #{basic_rfb_a_forward.23} parent=0 // pred_region
    _
  $region5: #{basic_rfb_a_forward.23} parent=0 // pred_fallthru
    _
  // Predicated region
  $region6: #{basic_rfb_a_forward.23} parent=0 // pred_check
    _
  $region7: #{basic_rfb_a_forward.23} parent=0 // pred_check_branch
    %11 = sbr.rel (0) target = $region9
  $region8: #{basic_rfb_a_forward.23} parent=0 // pred_region
    _
  $region9: #{basic_rfb_a_forward.23} parent=0 // pred_fallthru
    _
  // Predicated region
  $region10: #{basic_rfb_a_forward.23} parent=0 // pred_check
    _
  $region11: #{basic_rfb_a_forward.23} parent=0 // pred_check_branch
    %13 = sbr.rel (0) target = $region13
  $region12: #{basic_rfb_a_forward.23} parent=0 // pred_region
    _
  $region13: #{basic_rfb_a_forward.23} parent=0 // pred_fallthru
    _
  %v14 = vld [vmem:[%s0] sm:$0xff]
  %v15 = vld [vmem:[%s2] sm:$0xff]
  %v16 = vld [vmem:[%s2 + $0x8] sm:$0xff]
  %v17 = vld [vmem:[%s2 + $0x10] sm:$0xff]
  %v18 = vld [vmem:[%s2 + $0x18] sm:$0xff]
  %v19 = vld [vmem:[%s1] sm:$0xff]
  %21 = vset.pattern.permute.xlu0 0
  %22 = vperm.xlu0 %21, %v19
  %v23 = vpop.permute.xlu0 %22
  %vm25 = vcmask 64512
  %v27 = vsel %vm25, %v14, 0
  %29 = vmatprep.subr.mxu0 0.0
  %30 = vmatpush1.msra.mxu0 0.0
  %31 = vmatprep.subr.mxu0 0.0
  %32 = vmatpush1.msra.mxu0 0.0
  %33 = vmatprep.subr.mxu0 0.0
  %34 = vmatpush1.msra.mxu0 0.0
  %35 = vmatprep.subr.mxu0 0.0
  %36 = vmatpush1.msra.mxu0 0.0
  %37 = vmatprep.subr.mxu0 0.0
  %38 = vmatpush1.msra.mxu0 0.0
  %39 = vmatprep.subr.mxu0 0.0
  %40 = vmatpush1.msra.mxu0 0.0
  %41 = vmatprep.subr.mxu0 0.0
  %42 = vmatpush1.msra.mxu0 0.0
  %43 = vmatprep.subr.mxu0 0.0
  %44 = vmatpush1.msra.mxu0 0.0
  %45 = vmatprep.subr.mxu0 0.0
  %46 = vmatpush1.msra.mxu0 0.0
  %47 = vmatprep.subr.mxu0 0.0
  %48 = vmatpush1.msra.mxu0 0.0
  %49 = vmatprep.subr.mxu0 0.0
  %50 = vmatpush1.msra.mxu0 0.0
  %51 = vmatprep.subr.mxu0 0.0
  %52 = vmatpush1.msra.mxu0 0.0
  %53 = vmatprep.subr.mxu0 0.0
  %54 = vmatpush1.msra.mxu0 0.0
  %55 = vmatprep.subr.mxu0 0.0
  %56 = vmatpush1.msra.mxu0 0.0
  %57 = vmatprep.subr.mxu0 0.0
  %58 = vmatpush1.msra.mxu0 0.0
  %v59 = vand.u32 %v16, 4294901760
  %60 = vmatprep.subr.mxu0 %v59
  %v61 = vand.u32 %v15, 4294901760
  %62 = vmatpush1.msra.mxu0 %v61
  %63 = vmatprep.subr.mxu0 0.0
  %64 = vmatpush2.msra.mxu0 0.0
  %65 = vmatprep.subr.mxu0 0.0
  %66 = vmatpush2.msra.mxu0 0.0
  %67 = vmatprep.subr.mxu0 0.0
  %68 = vmatpush2.msra.mxu0 0.0
  %69 = vmatprep.subr.mxu0 0.0
  %70 = vmatpush2.msra.mxu0 0.0
  %71 = vmatprep.subr.mxu0 0.0
  %72 = vmatpush2.msra.mxu0 0.0
  %73 = vmatprep.subr.mxu0 0.0
  %74 = vmatpush2.msra.mxu0 0.0
  %75 = vmatprep.subr.mxu0 0.0
  %76 = vmatpush2.msra.mxu0 0.0
  %77 = vmatprep.subr.mxu0 0.0
  %78 = vmatpush2.msra.mxu0 0.0
  %79 = vmatprep.subr.mxu0 0.0
  %80 = vmatpush2.msra.mxu0 0.0
  %81 = vmatprep.subr.mxu0 0.0
  %82 = vmatpush2.msra.mxu0 0.0
  %83 = vmatprep.subr.mxu0 0.0
  %84 = vmatpush2.msra.mxu0 0.0
  %85 = vmatprep.subr.mxu0 0.0
  %86 = vmatpush2.msra.mxu0 0.0
  %87 = vmatprep.subr.mxu0 0.0
  %88 = vmatpush2.msra.mxu0 0.0
  %89 = vmatprep.subr.mxu0 0.0
  %90 = vmatpush2.msra.mxu0 0.0
  %91 = vmatprep.subr.mxu0 0.0
  %92 = vmatpush2.msra.mxu0 0.0
  %93 = vmatprep.subr.mxu0 0.0
  %94 = vmatpush2.msra.mxu0 0.0
  %95 = vmatprep.mubr.f32.mxu0 0.0
  %v96 = vand.u32 %v27, 4294901760
  %v97 = vsub.f32 %v27, %v96
  %v98 = vand.u32 %v97, 4294901760
  %v99 = vsub.f32 %v97, %v98
  %v100 = vand.u32 %v99, 4294901760
  %101 = vmatmul.mubr.f32.gmra.mxu0 %v100
  %v102 = vpop.f32.mrf.mxu0
  %v103 = vadd.f32 %v23, %v102
  %v104 = vpop.f32.mrf.mxu0
  %v105 = vadd.f32 %v23, %v104
  %106 = vdwg.mxu0
  %107 = vmatprep.subr.mxu0 0.0
  %108 = vmatpush1.msra.mxu0 0.0
  %109 = vmatprep.subr.mxu0 0.0
  %110 = vmatpush1.msra.mxu0 0.0
  %111 = vmatprep.subr.mxu0 0.0
  %112 = vmatpush1.msra.mxu0 0.0
  %113 = vmatprep.subr.mxu0 0.0
  %114 = vmatpush1.msra.mxu0 0.0
  %115 = vmatprep.subr.mxu0 0.0
  %116 = vmatpush1.msra.mxu0 0.0
  %117 = vmatprep.subr.mxu0 0.0
  %118 = vmatpush1.msra.mxu0 0.0
  %119 = vmatprep.subr.mxu0 0.0
  %120 = vmatpush1.msra.mxu0 0.0
  %121 = vmatprep.subr.mxu0 0.0
  %122 = vmatpush1.msra.mxu0 0.0
  %123 = vmatprep.subr.mxu0 0.0
  %124 = vmatpush1.msra.mxu0 0.0
  %125 = vmatprep.subr.mxu0 0.0
  %126 = vmatpush1.msra.mxu0 0.0
  %127 = vmatprep.subr.mxu0 0.0
  %128 = vmatpush1.msra.mxu0 0.0
  %129 = vmatprep.subr.mxu0 0.0
  %130 = vmatpush1.msra.mxu0 0.0
  %131 = vmatprep.subr.mxu0 0.0
  %132 = vmatpush1.msra.mxu0 0.0
  %133 = vmatprep.subr.mxu0 0.0
  %134 = vmatpush1.msra.mxu0 0.0
  %135 = vmatprep.subr.mxu0 0.0
  %136 = vmatpush1.msra.mxu0 0.0
  %v137 = vand.u32 %v16, 4294901760
  %v138 = vsub.f32 %v16, %v137
  %v139 = vand.u32 %v138, 4294901760
  %v140 = vsub.f32 %v138, %v139
  %v141 = vand.u32 %v140, 4294901760
  %142 = vmatprep.subr.mxu0 %v141
  %v143 = vand.u32 %v15, 4294901760
  %v144 = vsub.f32 %v15, %v143
  %v145 = vand.u32 %v144, 4294901760
  %v146 = vsub.f32 %v144, %v145
  %v147 = vand.u32 %v146, 4294901760
  %148 = vmatpush1.msra.mxu0 %v147
  %149 = vmatprep.subr.mxu0 0.0
  %150 = vmatpush2.msra.mxu0 0.0
  %151 = vmatprep.subr.mxu0 0.0
  %152 = vmatpush2.msra.mxu0 0.0
  %153 = vmatprep.subr.mxu0 0.0
  %154 = vmatpush2.msra.mxu0 0.0
  %155 = vmatprep.subr.mxu0 0.0
  %156 = vmatpush2.msra.mxu0 0.0
  %157 = vmatprep.subr.mxu0 0.0
  %158 = vmatpush2.msra.mxu0 0.0
  %159 = vmatprep.subr.mxu0 0.0
  %160 = vmatpush2.msra.mxu0 0.0
  %161 = vmatprep.subr.mxu0 0.0
  %162 = vmatpush2.msra.mxu0 0.0
  %163 = vmatprep.subr.mxu0 0.0
  %164 = vmatpush2.msra.mxu0 0.0
  %165 = vmatprep.subr.mxu0 0.0
  %166 = vmatpush2.msra.mxu0 0.0
  %167 = vmatprep.subr.mxu0 0.0
  %168 = vmatpush2.msra.mxu0 0.0
  %169 = vmatprep.subr.mxu0 0.0
  %170 = vmatpush2.msra.mxu0 0.0
  %171 = vmatprep.subr.mxu0 0.0
  %172 = vmatpush2.msra.mxu0 0.0
  %173 = vmatprep.subr.mxu0 0.0
  %174 = vmatpush2.msra.mxu0 0.0
  %175 = vmatprep.subr.mxu0 0.0
  %176 = vmatpush2.msra.mxu0 0.0
  %177 = vmatprep.subr.mxu0 0.0
  %178 = vmatpush2.msra.mxu0 0.0
  %179 = vmatprep.subr.mxu0 0.0
  %180 = vmatpush2.msra.mxu0 0.0
  %181 = vmatprep.mubr.f32.mxu0 0.0
  %v182 = vand.u32 %v27, 4294901760
  %183 = vmatmul.mubr.f32.gmra.mxu0 %v182
  %v184 = vpop.f32.mrf.mxu0
  %v185 = vadd.f32 %v103, %v184
  %v186 = vpop.f32.mrf.mxu0
  %v187 = vadd.f32 %v105, %v186
  %188 = vdwg.mxu0
  %189 = vmatprep.subr.mxu0 0.0
  %190 = vmatpush1.msra.mxu0 0.0
  %191 = vmatprep.subr.mxu0 0.0
  %192 = vmatpush1.msra.mxu0 0.0
  %193 = vmatprep.subr.mxu0 0.0
  %194 = vmatpush1.msra.mxu0 0.0
  %195 = vmatprep.subr.mxu0 0.0
  %196 = vmatpush1.msra.mxu0 0.0
  %197 = vmatprep.subr.mxu0 0.0
  %198 = vmatpush1.msra.mxu0 0.0
  %199 = vmatprep.subr.mxu0 0.0
  %200 = vmatpush1.msra.mxu0 0.0
  %201 = vmatprep.subr.mxu0 0.0
  %202 = vmatpush1.msra.mxu0 0.0
  %203 = vmatprep.subr.mxu0 0.0
  %204 = vmatpush1.msra.mxu0 0.0
  %205 = vmatprep.subr.mxu0 0.0
  %206 = vmatpush1.msra.mxu0 0.0
  %207 = vmatprep.subr.mxu0 0.0
  %208 = vmatpush1.msra.mxu0 0.0
  %209 = vmatprep.subr.mxu0 0.0
  %210 = vmatpush1.msra.mxu0 0.0
  %211 = vmatprep.subr.mxu0 0.0
  %212 = vmatpush1.msra.mxu0 0.0
  %213 = vmatprep.subr.mxu0 0.0
  %214 = vmatpush1.msra.mxu0 0.0
  %215 = vmatprep.subr.mxu0 0.0
  %216 = vmatpush1.msra.mxu0 0.0
  %217 = vmatprep.subr.mxu0 0.0
  %218 = vmatpush1.msra.mxu0 0.0
  %v219 = vand.u32 %v16, 4294901760
  %v220 = vsub.f32 %v16, %v219
  %221 = vmatprep.subr.mxu0 %v220
  %v222 = vand.u32 %v15, 4294901760
  %v223 = vsub.f32 %v15, %v222
  %224 = vmatpush1.msra.mxu0 %v223
  %225 = vmatprep.subr.mxu0 0.0
  %226 = vmatpush2.msra.mxu0 0.0
  %227 = vmatprep.subr.mxu0 0.0
  %228 = vmatpush2.msra.mxu0 0.0
  %229 = vmatprep.subr.mxu0 0.0
  %230 = vmatpush2.msra.mxu0 0.0
  %231 = vmatprep.subr.mxu0 0.0
  %232 = vmatpush2.msra.mxu0 0.0
  %233 = vmatprep.subr.mxu0 0.0
  %234 = vmatpush2.msra.mxu0 0.0
  %235 = vmatprep.subr.mxu0 0.0
  %236 = vmatpush2.msra.mxu0 0.0
  %237 = vmatprep.subr.mxu0 0.0
  %238 = vmatpush2.msra.mxu0 0.0
  %239 = vmatprep.subr.mxu0 0.0
  %240 = vmatpush2.msra.mxu0 0.0
  %241 = vmatprep.subr.mxu0 0.0
  %242 = vmatpush2.msra.mxu0 0.0
  %243 = vmatprep.subr.mxu0 0.0
  %244 = vmatpush2.msra.mxu0 0.0
  %245 = vmatprep.subr.mxu0 0.0
  %246 = vmatpush2.msra.mxu0 0.0
  %247 = vmatprep.subr.mxu0 0.0
  %248 = vmatpush2.msra.mxu0 0.0
  %249 = vmatprep.subr.mxu0 0.0
  %250 = vmatpush2.msra.mxu0 0.0
  %251 = vmatprep.subr.mxu0 0.0
  %252 = vmatpush2.msra.mxu0 0.0
  %253 = vmatprep.subr.mxu0 0.0
  %254 = vmatpush2.msra.mxu0 0.0
  %255 = vmatprep.subr.mxu0 0.0
  %256 = vmatpush2.msra.mxu0 0.0
  %257 = vmatprep.mubr.f32.mxu0 0.0
  %v258 = vand.u32 %v27, 4294901760
  %v259 = vsub.f32 %v27, %v258
  %260 = vmatmul.mubr.f32.gmra.mxu0 %v259
  %v261 = vpop.f32.mrf.mxu0
  %v262 = vadd.f32 %v185, %v261
  %v263 = vpop.f32.mrf.mxu0
  %v264 = vadd.f32 %v187, %v263
  %265 = vdwg.mxu0
  %266 = vmatprep.subr.mxu0 0.0
  %267 = vmatpush1.msra.mxu0 0.0
  %268 = vmatprep.subr.mxu0 0.0
  %269 = vmatpush1.msra.mxu0 0.0
  %270 = vmatprep.subr.mxu0 0.0
  %271 = vmatpush1.msra.mxu0 0.0
  %272 = vmatprep.subr.mxu0 0.0
  %273 = vmatpush1.msra.mxu0 0.0
  %274 = vmatprep.subr.mxu0 0.0
  %275 = vmatpush1.msra.mxu0 0.0
  %276 = vmatprep.subr.mxu0 0.0
  %277 = vmatpush1.msra.mxu0 0.0
  %278 = vmatprep.subr.mxu0 0.0
  %279 = vmatpush1.msra.mxu0 0.0
  %280 = vmatprep.subr.mxu0 0.0
  %281 = vmatpush1.msra.mxu0 0.0
  %282 = vmatprep.subr.mxu0 0.0
  %283 = vmatpush1.msra.mxu0 0.0
  %284 = vmatprep.subr.mxu0 0.0
  %285 = vmatpush1.msra.mxu0 0.0
  %286 = vmatprep.subr.mxu0 0.0
  %287 = vmatpush1.msra.mxu0 0.0
  %288 = vmatprep.subr.mxu0 0.0
  %289 = vmatpush1.msra.mxu0 0.0
  %290 = vmatprep.subr.mxu0 0.0
  %291 = vmatpush1.msra.mxu0 0.0
  %292 = vmatprep.subr.mxu0 0.0
  %293 = vmatpush1.msra.mxu0 0.0
  %294 = vmatprep.subr.mxu0 0.0
  %295 = vmatpush1.msra.mxu0 0.0
  %v296 = vand.u32 %v16, 4294901760
  %297 = vmatprep.subr.mxu0 %v296
  %v298 = vand.u32 %v15, 4294901760
  %299 = vmatpush1.msra.mxu0 %v298
  %300 = vmatprep.subr.mxu0 0.0
  %301 = vmatpush2.msra.mxu0 0.0
  %302 = vmatprep.subr.mxu0 0.0
  %303 = vmatpush2.msra.mxu0 0.0
  %304 = vmatprep.subr.mxu0 0.0
  %305 = vmatpush2.msra.mxu0 0.0
  %306 = vmatprep.subr.mxu0 0.0
  %307 = vmatpush2.msra.mxu0 0.0
  %308 = vmatprep.subr.mxu0 0.0
  %309 = vmatpush2.msra.mxu0 0.0
  %310 = vmatprep.subr.mxu0 0.0
  %311 = vmatpush2.msra.mxu0 0.0
  %312 = vmatprep.subr.mxu0 0.0
  %313 = vmatpush2.msra.mxu0 0.0
  %314 = vmatprep.subr.mxu0 0.0
  %315 = vmatpush2.msra.mxu0 0.0
  %316 = vmatprep.subr.mxu0 0.0
  %317 = vmatpush2.msra.mxu0 0.0
  %318 = vmatprep.subr.mxu0 0.0
  %319 = vmatpush2.msra.mxu0 0.0
  %320 = vmatprep.subr.mxu0 0.0
  %321 = vmatpush2.msra.mxu0 0.0
  %322 = vmatprep.subr.mxu0 0.0
  %323 = vmatpush2.msra.mxu0 0.0
  %324 = vmatprep.subr.mxu0 0.0
  %325 = vmatpush2.msra.mxu0 0.0
  %326 = vmatprep.subr.mxu0 0.0
  %327 = vmatpush2.msra.mxu0 0.0
  %328 = vmatprep.subr.mxu0 0.0
  %329 = vmatpush2.msra.mxu0 0.0
  %330 = vmatprep.subr.mxu0 0.0
  %331 = vmatpush2.msra.mxu0 0.0
  %332 = vmatprep.mubr.f32.mxu0 0.0
  %v333 = vand.u32 %v27, 4294901760
  %v334 = vsub.f32 %v27, %v333
  %v335 = vand.u32 %v334, 4294901760
  %336 = vmatmul.mubr.f32.gmra.mxu0 %v335
  %v337 = vpop.f32.mrf.mxu0
  %v338 = vadd.f32 %v262, %v337
  %v339 = vpop.f32.mrf.mxu0
  %v340 = vadd.f32 %v264, %v339
  %341 = vdwg.mxu0
  %342 = vmatprep.subr.mxu0 0.0
  %343 = vmatpush1.msra.mxu0 0.0
  %344 = vmatprep.subr.mxu0 0.0
  %345 = vmatpush1.msra.mxu0 0.0
  %346 = vmatprep.subr.mxu0 0.0
  %347 = vmatpush1.msra.mxu0 0.0
  %348 = vmatprep.subr.mxu0 0.0
  %349 = vmatpush1.msra.mxu0 0.0
  %350 = vmatprep.subr.mxu0 0.0
  %351 = vmatpush1.msra.mxu0 0.0
  %352 = vmatprep.subr.mxu0 0.0
  %353 = vmatpush1.msra.mxu0 0.0
  %354 = vmatprep.subr.mxu0 0.0
  %355 = vmatpush1.msra.mxu0 0.0
  %356 = vmatprep.subr.mxu0 0.0
  %357 = vmatpush1.msra.mxu0 0.0
  %358 = vmatprep.subr.mxu0 0.0
  %359 = vmatpush1.msra.mxu0 0.0
  %360 = vmatprep.subr.mxu0 0.0
  %361 = vmatpush1.msra.mxu0 0.0
  %362 = vmatprep.subr.mxu0 0.0
  %363 = vmatpush1.msra.mxu0 0.0
  %364 = vmatprep.subr.mxu0 0.0
  %365 = vmatpush1.msra.mxu0 0.0
  %366 = vmatprep.subr.mxu0 0.0
  %367 = vmatpush1.msra.mxu0 0.0
  %368 = vmatprep.subr.mxu0 0.0
  %369 = vmatpush1.msra.mxu0 0.0
  %370 = vmatprep.subr.mxu0 0.0
  %371 = vmatpush1.msra.mxu0 0.0
  %v372 = vand.u32 %v16, 4294901760
  %v373 = vsub.f32 %v16, %v372
  %v374 = vand.u32 %v373, 4294901760
  %375 = vmatprep.subr.mxu0 %v374
  %v376 = vand.u32 %v15, 4294901760
  %v377 = vsub.f32 %v15, %v376
  %v378 = vand.u32 %v377, 4294901760
  %379 = vmatpush1.msra.mxu0 %v378
  %380 = vmatprep.subr.mxu0 0.0
  %381 = vmatpush2.msra.mxu0 0.0
  %382 = vmatprep.subr.mxu0 0.0
  %383 = vmatpush2.msra.mxu0 0.0
  %384 = vmatprep.subr.mxu0 0.0
  %385 = vmatpush2.msra.mxu0 0.0
  %386 = vmatprep.subr.mxu0 0.0
  %387 = vmatpush2.msra.mxu0 0.0
  %388 = vmatprep.subr.mxu0 0.0
  %389 = vmatpush2.msra.mxu0 0.0
  %390 = vmatprep.subr.mxu0 0.0
  %391 = vmatpush2.msra.mxu0 0.0
  %392 = vmatprep.subr.mxu0 0.0
  %393 = vmatpush2.msra.mxu0 0.0
  %394 = vmatprep.subr.mxu0 0.0
  %395 = vmatpush2.msra.mxu0 0.0
  %396 = vmatprep.subr.mxu0 0.0
  %397 = vmatpush2.msra.mxu0 0.0
  %398 = vmatprep.subr.mxu0 0.0
  %399 = vmatpush2.msra.mxu0 0.0
  %400 = vmatprep.subr.mxu0 0.0
  %401 = vmatpush2.msra.mxu0 0.0
  %402 = vmatprep.subr.mxu0 0.0
  %403 = vmatpush2.msra.mxu0 0.0
  %404 = vmatprep.subr.mxu0 0.0
  %405 = vmatpush2.msra.mxu0 0.0
  %406 = vmatprep.subr.mxu0 0.0
  %407 = vmatpush2.msra.mxu0 0.0
  %408 = vmatprep.subr.mxu0 0.0
  %409 = vmatpush2.msra.mxu0 0.0
  %410 = vmatprep.subr.mxu0 0.0
  %411 = vmatpush2.msra.mxu0 0.0
  %412 = vmatprep.mubr.f32.mxu0 0.0
  %v413 = vand.u32 %v27, 4294901760
  %414 = vmatmul.mubr.f32.gmra.mxu0 %v413
  %v415 = vpop.f32.mrf.mxu0
  %v416 = vadd.f32 %v338, %v415
  %v417 = vpop.f32.mrf.mxu0
  %v418 = vadd.f32 %v340, %v417
  %419 = vdwg.mxu0
  %420 = vmatprep.subr.mxu0 0.0
  %421 = vmatpush1.msra.mxu0 0.0
  %422 = vmatprep.subr.mxu0 0.0
  %423 = vmatpush1.msra.mxu0 0.0
  %424 = vmatprep.subr.mxu0 0.0
  %425 = vmatpush1.msra.mxu0 0.0
  %426 = vmatprep.subr.mxu0 0.0
  %427 = vmatpush1.msra.mxu0 0.0
  %428 = vmatprep.subr.mxu0 0.0
  %429 = vmatpush1.msra.mxu0 0.0
  %430 = vmatprep.subr.mxu0 0.0
  %431 = vmatpush1.msra.mxu0 0.0
  %432 = vmatprep.subr.mxu0 0.0
  %433 = vmatpush1.msra.mxu0 0.0
  %434 = vmatprep.subr.mxu0 0.0
  %435 = vmatpush1.msra.mxu0 0.0
  %436 = vmatprep.subr.mxu0 0.0
  %437 = vmatpush1.msra.mxu0 0.0
  %438 = vmatprep.subr.mxu0 0.0
  %439 = vmatpush1.msra.mxu0 0.0
  %440 = vmatprep.subr.mxu0 0.0
  %441 = vmatpush1.msra.mxu0 0.0
  %442 = vmatprep.subr.mxu0 0.0
  %443 = vmatpush1.msra.mxu0 0.0
  %444 = vmatprep.subr.mxu0 0.0
  %445 = vmatpush1.msra.mxu0 0.0
  %446 = vmatprep.subr.mxu0 0.0
  %447 = vmatpush1.msra.mxu0 0.0
  %448 = vmatprep.subr.mxu0 0.0
  %449 = vmatpush1.msra.mxu0 0.0
  %v450 = vand.u32 %v16, 4294901760
  %451 = vmatprep.subr.mxu0 %v450
  %v452 = vand.u32 %v15, 4294901760
  %453 = vmatpush1.msra.mxu0 %v452
  %454 = vmatprep.subr.mxu0 0.0
  %455 = vmatpush2.msra.mxu0 0.0
  %456 = vmatprep.subr.mxu0 0.0
  %457 = vmatpush2.msra.mxu0 0.0
  %458 = vmatprep.subr.mxu0 0.0
  %459 = vmatpush2.msra.mxu0 0.0
  %460 = vmatprep.subr.mxu0 0.0
  %461 = vmatpush2.msra.mxu0 0.0
  %462 = vmatprep.subr.mxu0 0.0
  %463 = vmatpush2.msra.mxu0 0.0
  %464 = vmatprep.subr.mxu0 0.0
  %465 = vmatpush2.msra.mxu0 0.0
  %466 = vmatprep.subr.mxu0 0.0
  %467 = vmatpush2.msra.mxu0 0.0
  %468 = vmatprep.subr.mxu0 0.0
  %469 = vmatpush2.msra.mxu0 0.0
  %470 = vmatprep.subr.mxu0 0.0
  %471 = vmatpush2.msra.mxu0 0.0
  %472 = vmatprep.subr.mxu0 0.0
  %473 = vmatpush2.msra.mxu0 0.0
  %474 = vmatprep.subr.mxu0 0.0
  %475 = vmatpush2.msra.mxu0 0.0
  %476 = vmatprep.subr.mxu0 0.0
  %477 = vmatpush2.msra.mxu0 0.0
  %478 = vmatprep.subr.mxu0 0.0
  %479 = vmatpush2.msra.mxu0 0.0
  %480 = vmatprep.subr.mxu0 0.0
  %481 = vmatpush2.msra.mxu0 0.0
  %482 = vmatprep.subr.mxu0 0.0
  %483 = vmatpush2.msra.mxu0 0.0
  %484 = vmatprep.subr.mxu0 0.0
  %485 = vmatpush2.msra.mxu0 0.0
  %486 = vmatprep.mubr.f32.mxu0 0.0
  %v487 = vand.u32 %v27, 4294901760
  %488 = vmatmul.mubr.f32.gmra.mxu0 %v487
  %v489 = vpop.f32.mrf.mxu0
  %v490 = vadd.f32 %v416, %v489
  %v491 = vpop.f32.mrf.mxu0
  %v492 = vadd.f32 %v418, %v491
  %493 = vdwg.mxu0
  %494 = vmatprep.subr.mxu0 0.0
  %495 = vmatpush1.msra.mxu0 0.0
  %496 = vmatprep.subr.mxu0 0.0
  %497 = vmatpush1.msra.mxu0 0.0
  %498 = vmatprep.subr.mxu0 0.0
  %499 = vmatpush1.msra.mxu0 0.0
  %500 = vmatprep.subr.mxu0 0.0
  %501 = vmatpush1.msra.mxu0 0.0
  %502 = vmatprep.subr.mxu0 0.0
  %503 = vmatpush1.msra.mxu0 0.0
  %504 = vmatprep.subr.mxu0 0.0
  %505 = vmatpush1.msra.mxu0 0.0
  %506 = vmatprep.subr.mxu0 0.0
  %507 = vmatpush1.msra.mxu0 0.0
  %508 = vmatprep.subr.mxu0 0.0
  %509 = vmatpush1.msra.mxu0 0.0
  %510 = vmatprep.subr.mxu0 0.0
  %511 = vmatpush1.msra.mxu0 0.0
  %512 = vmatprep.subr.mxu0 0.0
  %513 = vmatpush1.msra.mxu0 0.0
  %514 = vmatprep.subr.mxu0 0.0
  %515 = vmatpush1.msra.mxu0 0.0
  %516 = vmatprep.subr.mxu0 0.0
  %517 = vmatpush1.msra.mxu0 0.0
  %518 = vmatprep.subr.mxu0 0.0
  %519 = vmatpush1.msra.mxu0 0.0
  %520 = vmatprep.subr.mxu0 0.0
  %521 = vmatpush1.msra.mxu0 0.0
  %522 = vmatprep.subr.mxu0 0.0
  %523 = vmatpush1.msra.mxu0 0.0
  %v524 = vand.u32 %v18, 4294901760
  %525 = vmatprep.subr.mxu0 %v524
  %v526 = vand.u32 %v17, 4294901760
  %527 = vmatpush1.msra.mxu0 %v526
  %528 = vmatprep.subr.mxu0 0.0
  %529 = vmatpush2.msra.mxu0 0.0
  %530 = vmatprep.subr.mxu0 0.0
  %531 = vmatpush2.msra.mxu0 0.0
  %532 = vmatprep.subr.mxu0 0.0
  %533 = vmatpush2.msra.mxu0 0.0
  %534 = vmatprep.subr.mxu0 0.0
  %535 = vmatpush2.msra.mxu0 0.0
  %536 = vmatprep.subr.mxu0 0.0
  %537 = vmatpush2.msra.mxu0 0.0
  %538 = vmatprep.subr.mxu0 0.0
  %539 = vmatpush2.msra.mxu0 0.0
  %540 = vmatprep.subr.mxu0 0.0
  %541 = vmatpush2.msra.mxu0 0.0
  %542 = vmatprep.subr.mxu0 0.0
  %543 = vmatpush2.msra.mxu0 0.0
  %544 = vmatprep.subr.mxu0 0.0
  %545 = vmatpush2.msra.mxu0 0.0
  %546 = vmatprep.subr.mxu0 0.0
  %547 = vmatpush2.msra.mxu0 0.0
  %548 = vmatprep.subr.mxu0 0.0
  %549 = vmatpush2.msra.mxu0 0.0
  %550 = vmatprep.subr.mxu0 0.0
  %551 = vmatpush2.msra.mxu0 0.0
  %552 = vmatprep.subr.mxu0 0.0
  %553 = vmatpush2.msra.mxu0 0.0
  %554 = vmatprep.subr.mxu0 0.0
  %555 = vmatpush2.msra.mxu0 0.0
  %556 = vmatprep.subr.mxu0 0.0
  %557 = vmatpush2.msra.mxu0 0.0
  %558 = vmatprep.subr.mxu0 0.0
  %559 = vmatpush2.msra.mxu0 0.0
  %560 = vmatprep.mubr.f32.mxu0 0.0
  %v561 = vand.u32 %v27, 4294901760
  %v562 = vsub.f32 %v27, %v561
  %v563 = vand.u32 %v562, 4294901760
  %v564 = vsub.f32 %v562, %v563
  %v565 = vand.u32 %v564, 4294901760
  %566 = vmatmul.mubr.f32.gmra.mxu0 %v565
  %v567 = vpop.f32.mrf.mxu0
  %v568 = vadd.f32 %v23, %v567
  %v569 = vpop.f32.mrf.mxu0
  %v570 = vadd.f32 %v23, %v569
  %571 = vdwg.mxu0
  %572 = vmatprep.subr.mxu0 0.0
  %573 = vmatpush1.msra.mxu0 0.0
  %574 = vmatprep.subr.mxu0 0.0
  %575 = vmatpush1.msra.mxu0 0.0
  %576 = vmatprep.subr.mxu0 0.0
  %577 = vmatpush1.msra.mxu0 0.0
  %578 = vmatprep.subr.mxu0 0.0
  %579 = vmatpush1.msra.mxu0 0.0
  %580 = vmatprep.subr.mxu0 0.0
  %581 = vmatpush1.msra.mxu0 0.0
  %582 = vmatprep.subr.mxu0 0.0
  %583 = vmatpush1.msra.mxu0 0.0
  %584 = vmatprep.subr.mxu0 0.0
  %585 = vmatpush1.msra.mxu0 0.0
  %586 = vmatprep.subr.mxu0 0.0
  %587 = vmatpush1.msra.mxu0 0.0
  %588 = vmatprep.subr.mxu0 0.0
  %589 = vmatpush1.msra.mxu0 0.0
  %590 = vmatprep.subr.mxu0 0.0
  %591 = vmatpush1.msra.mxu0 0.0
  %592 = vmatprep.subr.mxu0 0.0
  %593 = vmatpush1.msra.mxu0 0.0
  %594 = vmatprep.subr.mxu0 0.0
  %595 = vmatpush1.msra.mxu0 0.0
  %596 = vmatprep.subr.mxu0 0.0
  %597 = vmatpush1.msra.mxu0 0.0
  %598 = vmatprep.subr.mxu0 0.0
  %599 = vmatpush1.msra.mxu0 0.0
  %600 = vmatprep.subr.mxu0 0.0
  %601 = vmatpush1.msra.mxu0 0.0
  %v602 = vand.u32 %v18, 4294901760
  %v603 = vsub.f32 %v18, %v602
  %v604 = vand.u32 %v603, 4294901760
  %v605 = vsub.f32 %v603, %v604
  %v606 = vand.u32 %v605, 4294901760
  %607 = vmatprep.subr.mxu0 %v606
  %v608 = vand.u32 %v17, 4294901760
  %v609 = vsub.f32 %v17, %v608
  %v610 = vand.u32 %v609, 4294901760
  %v611 = vsub.f32 %v609, %v610
  %v612 = vand.u32 %v611, 4294901760
  %613 = vmatpush1.msra.mxu0 %v612
  %614 = vmatprep.subr.mxu0 0.0
  %615 = vmatpush2.msra.mxu0 0.0
  %616 = vmatprep.subr.mxu0 0.0
  %617 = vmatpush2.msra.mxu0 0.0
  %618 = vmatprep.subr.mxu0 0.0
  %619 = vmatpush2.msra.mxu0 0.0
  %620 = vmatprep.subr.mxu0 0.0
  %621 = vmatpush2.msra.mxu0 0.0
  %622 = vmatprep.subr.mxu0 0.0
  %623 = vmatpush2.msra.mxu0 0.0
  %624 = vmatprep.subr.mxu0 0.0
  %625 = vmatpush2.msra.mxu0 0.0
  %626 = vmatprep.subr.mxu0 0.0
  %627 = vmatpush2.msra.mxu0 0.0
  %628 = vmatprep.subr.mxu0 0.0
  %629 = vmatpush2.msra.mxu0 0.0
  %630 = vmatprep.subr.mxu0 0.0
  %631 = vmatpush2.msra.mxu0 0.0
  %632 = vmatprep.subr.mxu0 0.0
  %633 = vmatpush2.msra.mxu0 0.0
  %634 = vmatprep.subr.mxu0 0.0
  %635 = vmatpush2.msra.mxu0 0.0
  %636 = vmatprep.subr.mxu0 0.0
  %637 = vmatpush2.msra.mxu0 0.0
  %638 = vmatprep.subr.mxu0 0.0
  %639 = vmatpush2.msra.mxu0 0.0
  %640 = vmatprep.subr.mxu0 0.0
  %641 = vmatpush2.msra.mxu0 0.0
  %642 = vmatprep.subr.mxu0 0.0
  %643 = vmatpush2.msra.mxu0 0.0
  %644 = vmatprep.subr.mxu0 0.0
  %645 = vmatpush2.msra.mxu0 0.0
  %646 = vmatprep.mubr.f32.mxu0 0.0
  %v647 = vand.u32 %v27, 4294901760
  %648 = vmatmul.mubr.f32.gmra.mxu0 %v647
  %v649 = vpop.f32.mrf.mxu0
  %v650 = vadd.f32 %v568, %v649
  %v651 = vpop.f32.mrf.mxu0
  %v652 = vadd.f32 %v570, %v651
  %653 = vdwg.mxu0
  %654 = vmatprep.subr.mxu0 0.0
  %655 = vmatpush1.msra.mxu0 0.0
  %656 = vmatprep.subr.mxu0 0.0
  %657 = vmatpush1.msra.mxu0 0.0
  %658 = vmatprep.subr.mxu0 0.0
  %659 = vmatpush1.msra.mxu0 0.0
  %660 = vmatprep.subr.mxu0 0.0
  %661 = vmatpush1.msra.mxu0 0.0
  %662 = vmatprep.subr.mxu0 0.0
  %663 = vmatpush1.msra.mxu0 0.0
  %664 = vmatprep.subr.mxu0 0.0
  %665 = vmatpush1.msra.mxu0 0.0
  %666 = vmatprep.subr.mxu0 0.0
  %667 = vmatpush1.msra.mxu0 0.0
  %668 = vmatprep.subr.mxu0 0.0
  %669 = vmatpush1.msra.mxu0 0.0
  %670 = vmatprep.subr.mxu0 0.0
  %671 = vmatpush1.msra.mxu0 0.0
  %672 = vmatprep.subr.mxu0 0.0
  %673 = vmatpush1.msra.mxu0 0.0
  %674 = vmatprep.subr.mxu0 0.0
  %675 = vmatpush1.msra.mxu0 0.0
  %676 = vmatprep.subr.mxu0 0.0
  %677 = vmatpush1.msra.mxu0 0.0
  %678 = vmatprep.subr.mxu0 0.0
  %679 = vmatpush1.msra.mxu0 0.0
  %680 = vmatprep.subr.mxu0 0.0
  %681 = vmatpush1.msra.mxu0 0.0
  %682 = vmatprep.subr.mxu0 0.0
  %683 = vmatpush1.msra.mxu0 0.0
  %v684 = vand.u32 %v18, 4294901760
  %v685 = vsub.f32 %v18, %v684
  %686 = vmatprep.subr.mxu0 %v685
  %v687 = vand.u32 %v17, 4294901760
  %v688 = vsub.f32 %v17, %v687
  %689 = vmatpush1.msra.mxu0 %v688
  %690 = vmatprep.subr.mxu0 0.0
  %691 = vmatpush2.msra.mxu0 0.0
  %692 = vmatprep.subr.mxu0 0.0
  %693 = vmatpush2.msra.mxu0 0.0
  %694 = vmatprep.subr.mxu0 0.0
  %695 = vmatpush2.msra.mxu0 0.0
  %696 = vmatprep.subr.mxu0 0.0
  %697 = vmatpush2.msra.mxu0 0.0
  %698 = vmatprep.subr.mxu0 0.0
  %699 = vmatpush2.msra.mxu0 0.0
  %700 = vmatprep.subr.mxu0 0.0
  %701 = vmatpush2.msra.mxu0 0.0
  %702 = vmatprep.subr.mxu0 0.0
  %703 = vmatpush2.msra.mxu0 0.0
  %704 = vmatprep.subr.mxu0 0.0
  %705 = vmatpush2.msra.mxu0 0.0
  %706 = vmatprep.subr.mxu0 0.0
  %707 = vmatpush2.msra.mxu0 0.0
  %708 = vmatprep.subr.mxu0 0.0
  %709 = vmatpush2.msra.mxu0 0.0
  %710 = vmatprep.subr.mxu0 0.0
  %711 = vmatpush2.msra.mxu0 0.0
  %712 = vmatprep.subr.mxu0 0.0
  %713 = vmatpush2.msra.mxu0 0.0
  %714 = vmatprep.subr.mxu0 0.0
  %715 = vmatpush2.msra.mxu0 0.0
  %716 = vmatprep.subr.mxu0 0.0
  %717 = vmatpush2.msra.mxu0 0.0
  %718 = vmatprep.subr.mxu0 0.0
  %719 = vmatpush2.msra.mxu0 0.0
  %720 = vmatprep.subr.mxu0 0.0
  %721 = vmatpush2.msra.mxu0 0.0
  %722 = vmatprep.mubr.f32.mxu0 0.0
  %v723 = vand.u32 %v27, 4294901760
  %v724 = vsub.f32 %v27, %v723
  %725 = vmatmul.mubr.f32.gmra.mxu0 %v724
  %v726 = vpop.f32.mrf.mxu0
  %v727 = vadd.f32 %v650, %v726
  %v728 = vpop.f32.mrf.mxu0
  %v729 = vadd.f32 %v652, %v728
  %730 = vdwg.mxu0
  %731 = vmatprep.subr.mxu0 0.0
  %732 = vmatpush1.msra.mxu0 0.0
  %733 = vmatprep.subr.mxu0 0.0
  %734 = vmatpush1.msra.mxu0 0.0
  %735 = vmatprep.subr.mxu0 0.0
  %736 = vmatpush1.msra.mxu0 0.0
  %737 = vmatprep.subr.mxu0 0.0
  %738 = vmatpush1.msra.mxu0 0.0
  %739 = vmatprep.subr.mxu0 0.0
  %740 = vmatpush1.msra.mxu0 0.0
  %741 = vmatprep.subr.mxu0 0.0
  %742 = vmatpush1.msra.mxu0 0.0
  %743 = vmatprep.subr.mxu0 0.0
  %744 = vmatpush1.msra.mxu0 0.0
  %745 = vmatprep.subr.mxu0 0.0
  %746 = vmatpush1.msra.mxu0 0.0
  %747 = vmatprep.subr.mxu0 0.0
  %748 = vmatpush1.msra.mxu0 0.0
  %749 = vmatprep.subr.mxu0 0.0
  %750 = vmatpush1.msra.mxu0 0.0
  %751 = vmatprep.subr.mxu0 0.0
  %752 = vmatpush1.msra.mxu0 0.0
  %753 = vmatprep.subr.mxu0 0.0
  %754 = vmatpush1.msra.mxu0 0.0
  %755 = vmatprep.subr.mxu0 0.0
  %756 = vmatpush1.msra.mxu0 0.0
  %757 = vmatprep.subr.mxu0 0.0
  %758 = vmatpush1.msra.mxu0 0.0
  %759 = vmatprep.subr.mxu0 0.0
  %760 = vmatpush1.msra.mxu0 0.0
  %v761 = vand.u32 %v18, 4294901760
  %762 = vmatprep.subr.mxu0 %v761
  %v763 = vand.u32 %v17, 4294901760
  %764 = vmatpush1.msra.mxu0 %v763
  %765 = vmatprep.subr.mxu0 0.0
  %766 = vmatpush2.msra.mxu0 0.0
  %767 = vmatprep.subr.mxu0 0.0
  %768 = vmatpush2.msra.mxu0 0.0
  %769 = vmatprep.subr.mxu0 0.0
  %770 = vmatpush2.msra.mxu0 0.0
  %771 = vmatprep.subr.mxu0 0.0
  %772 = vmatpush2.msra.mxu0 0.0
  %773 = vmatprep.subr.mxu0 0.0
  %774 = vmatpush2.msra.mxu0 0.0
  %775 = vmatprep.subr.mxu0 0.0
  %776 = vmatpush2.msra.mxu0 0.0
  %777 = vmatprep.subr.mxu0 0.0
  %778 = vmatpush2.msra.mxu0 0.0
  %779 = vmatprep.subr.mxu0 0.0
  %780 = vmatpush2.msra.mxu0 0.0
  %781 = vmatprep.subr.mxu0 0.0
  %782 = vmatpush2.msra.mxu0 0.0
  %783 = vmatprep.subr.mxu0 0.0
  %784 = vmatpush2.msra.mxu0 0.0
  %785 = vmatprep.subr.mxu0 0.0
  %786 = vmatpush2.msra.mxu0 0.0
  %787 = vmatprep.subr.mxu0 0.0
  %788 = vmatpush2.msra.mxu0 0.0
  %789 = vmatprep.subr.mxu0 0.0
  %790 = vmatpush2.msra.mxu0 0.0
  %791 = vmatprep.subr.mxu0 0.0
  %792 = vmatpush2.msra.mxu0 0.0
  %793 = vmatprep.subr.mxu0 0.0
  %794 = vmatpush2.msra.mxu0 0.0
  %795 = vmatprep.subr.mxu0 0.0
  %796 = vmatpush2.msra.mxu0 0.0
  %797 = vmatprep.mubr.f32.mxu0 0.0
  %v798 = vand.u32 %v27, 4294901760
  %v799 = vsub.f32 %v27, %v798
  %v800 = vand.u32 %v799, 4294901760
  %801 = vmatmul.mubr.f32.gmra.mxu0 %v800
  %v802 = vpop.f32.mrf.mxu0
  %v803 = vadd.f32 %v727, %v802
  %v804 = vpop.f32.mrf.mxu0
  %v805 = vadd.f32 %v729, %v804
  %806 = vdwg.mxu0
  %807 = vmatprep.subr.mxu0 0.0
  %808 = vmatpush1.msra.mxu0 0.0
  %809 = vmatprep.subr.mxu0 0.0
  %810 = vmatpush1.msra.mxu0 0.0
  %811 = vmatprep.subr.mxu0 0.0
  %812 = vmatpush1.msra.mxu0 0.0
  %813 = vmatprep.subr.mxu0 0.0
  %814 = vmatpush1.msra.mxu0 0.0
  %815 = vmatprep.subr.mxu0 0.0
  %816 = vmatpush1.msra.mxu0 0.0
  %817 = vmatprep.subr.mxu0 0.0
  %818 = vmatpush1.msra.mxu0 0.0
  %819 = vmatprep.subr.mxu0 0.0
  %820 = vmatpush1.msra.mxu0 0.0
  %821 = vmatprep.subr.mxu0 0.0
  %822 = vmatpush1.msra.mxu0 0.0
  %823 = vmatprep.subr.mxu0 0.0
  %824 = vmatpush1.msra.mxu0 0.0
  %825 = vmatprep.subr.mxu0 0.0
  %826 = vmatpush1.msra.mxu0 0.0
  %827 = vmatprep.subr.mxu0 0.0
  %828 = vmatpush1.msra.mxu0 0.0
  %829 = vmatprep.subr.mxu0 0.0
  %830 = vmatpush1.msra.mxu0 0.0
  %831 = vmatprep.subr.mxu0 0.0
  %832 = vmatpush1.msra.mxu0 0.0
  %833 = vmatprep.subr.mxu0 0.0
  %834 = vmatpush1.msra.mxu0 0.0
  %835 = vmatprep.subr.mxu0 0.0
  %836 = vmatpush1.msra.mxu0 0.0
  %v837 = vand.u32 %v18, 4294901760
  %v838 = vsub.f32 %v18, %v837
  %v839 = vand.u32 %v838, 4294901760
  %840 = vmatprep.subr.mxu0 %v839
  %v841 = vand.u32 %v17, 4294901760
  %v842 = vsub.f32 %v17, %v841
  %v843 = vand.u32 %v842, 4294901760
  %844 = vmatpush1.msra.mxu0 %v843
  %845 = vmatprep.subr.mxu0 0.0
  %846 = vmatpush2.msra.mxu0 0.0
  %847 = vmatprep.subr.mxu0 0.0
  %848 = vmatpush2.msra.mxu0 0.0
  %849 = vmatprep.subr.mxu0 0.0
  %850 = vmatpush2.msra.mxu0 0.0
  %851 = vmatprep.subr.mxu0 0.0
  %852 = vmatpush2.msra.mxu0 0.0
  %853 = vmatprep.subr.mxu0 0.0
  %854 = vmatpush2.msra.mxu0 0.0
  %855 = vmatprep.subr.mxu0 0.0
  %856 = vmatpush2.msra.mxu0 0.0
  %857 = vmatprep.subr.mxu0 0.0
  %858 = vmatpush2.msra.mxu0 0.0
  %859 = vmatprep.subr.mxu0 0.0
  %860 = vmatpush2.msra.mxu0 0.0
  %861 = vmatprep.subr.mxu0 0.0
  %862 = vmatpush2.msra.mxu0 0.0
  %863 = vmatprep.subr.mxu0 0.0
  %864 = vmatpush2.msra.mxu0 0.0
  %865 = vmatprep.subr.mxu0 0.0
  %866 = vmatpush2.msra.mxu0 0.0
  %867 = vmatprep.subr.mxu0 0.0
  %868 = vmatpush2.msra.mxu0 0.0
  %869 = vmatprep.subr.mxu0 0.0
  %870 = vmatpush2.msra.mxu0 0.0
  %871 = vmatprep.subr.mxu0 0.0
  %872 = vmatpush2.msra.mxu0 0.0
  %873 = vmatprep.subr.mxu0 0.0
  %874 = vmatpush2.msra.mxu0 0.0
  %875 = vmatprep.subr.mxu0 0.0
  %876 = vmatpush2.msra.mxu0 0.0
  %877 = vmatprep.mubr.f32.mxu0 0.0
  %v878 = vand.u32 %v27, 4294901760
  %879 = vmatmul.mubr.f32.gmra.mxu0 %v878
  %v880 = vpop.f32.mrf.mxu0
  %v881 = vadd.f32 %v803, %v880
  %v882 = vpop.f32.mrf.mxu0
  %v883 = vadd.f32 %v805, %v882
  %884 = vdwg.mxu0
  %885 = vmatprep.subr.mxu0 0.0
  %886 = vmatpush1.msra.mxu0 0.0
  %887 = vmatprep.subr.mxu0 0.0
  %888 = vmatpush1.msra.mxu0 0.0
  %889 = vmatprep.subr.mxu0 0.0
  %890 = vmatpush1.msra.mxu0 0.0
  %891 = vmatprep.subr.mxu0 0.0
  %892 = vmatpush1.msra.mxu0 0.0
  %893 = vmatprep.subr.mxu0 0.0
  %894 = vmatpush1.msra.mxu0 0.0
  %895 = vmatprep.subr.mxu0 0.0
  %896 = vmatpush1.msra.mxu0 0.0
  %897 = vmatprep.subr.mxu0 0.0
  %898 = vmatpush1.msra.mxu0 0.0
  %899 = vmatprep.subr.mxu0 0.0
  %900 = vmatpush1.msra.mxu0 0.0
  %901 = vmatprep.subr.mxu0 0.0
  %902 = vmatpush1.msra.mxu0 0.0
  %903 = vmatprep.subr.mxu0 0.0
  %904 = vmatpush1.msra.mxu0 0.0
  %905 = vmatprep.subr.mxu0 0.0
  %906 = vmatpush1.msra.mxu0 0.0
  %907 = vmatprep.subr.mxu0 0.0
  %908 = vmatpush1.msra.mxu0 0.0
  %909 = vmatprep.subr.mxu0 0.0
  %910 = vmatpush1.msra.mxu0 0.0
  %911 = vmatprep.subr.mxu0 0.0
  %912 = vmatpush1.msra.mxu0 0.0
  %913 = vmatprep.subr.mxu0 0.0
  %914 = vmatpush1.msra.mxu0 0.0
  %v915 = vand.u32 %v18, 4294901760
  %916 = vmatprep.subr.mxu0 %v915
  %v917 = vand.u32 %v17, 4294901760
  %918 = vmatpush1.msra.mxu0 %v917
  %919 = vmatprep.subr.mxu0 0.0
  %920 = vmatpush2.msra.mxu0 0.0
  %921 = vmatprep.subr.mxu0 0.0
  %922 = vmatpush2.msra.mxu0 0.0
  %923 = vmatprep.subr.mxu0 0.0
  %924 = vmatpush2.msra.mxu0 0.0
  %925 = vmatprep.subr.mxu0 0.0
  %926 = vmatpush2.msra.mxu0 0.0
  %927 = vmatprep.subr.mxu0 0.0
  %928 = vmatpush2.msra.mxu0 0.0
  %929 = vmatprep.subr.mxu0 0.0
  %930 = vmatpush2.msra.mxu0 0.0
  %931 = vmatprep.subr.mxu0 0.0
  %932 = vmatpush2.msra.mxu0 0.0
  %933 = vmatprep.subr.mxu0 0.0
  %934 = vmatpush2.msra.mxu0 0.0
  %935 = vmatprep.subr.mxu0 0.0
  %936 = vmatpush2.msra.mxu0 0.0
  %937 = vmatprep.subr.mxu0 0.0
  %938 = vmatpush2.msra.mxu0 0.0
  %939 = vmatprep.subr.mxu0 0.0
  %940 = vmatpush2.msra.mxu0 0.0
  %941 = vmatprep.subr.mxu0 0.0
  %942 = vmatpush2.msra.mxu0 0.0
  %943 = vmatprep.subr.mxu0 0.0
  %944 = vmatpush2.msra.mxu0 0.0
  %945 = vmatprep.subr.mxu0 0.0
  %946 = vmatpush2.msra.mxu0 0.0
  %947 = vmatprep.subr.mxu0 0.0
  %948 = vmatpush2.msra.mxu0 0.0
  %949 = vmatprep.subr.mxu0 0.0
  %950 = vmatpush2.msra.mxu0 0.0
  %951 = vmatprep.mubr.f32.mxu0 0.0
  %v952 = vand.u32 %v27, 4294901760
  %953 = vmatmul.mubr.f32.gmra.mxu0 %v952
  %v954 = vpop.f32.mrf.mxu0
  %v955 = vadd.f32 %v881, %v954
  %v956 = vpop.f32.mrf.mxu0
  %v957 = vadd.f32 %v883, %v956
  %958 = vdwg.mxu0
  %v959 = vmax.f32 %v490, 0.0
  %v960 = vmax.f32 %v492, 0.0
  %v961 = vmax.f32 %v955, 0.0
  %v962 = vmax.f32 %v957, 0.0
  %963 = vst [vmem:[%s3] sm:$0xff] %v959
  %964 = vst [vmem:[%s3 + $0x8] sm:$0xff] %v960
  %965 = vst [vmem:[%s3 + $0x10] sm:$0xff] %v961
  %966 = vst [vmem:[%s3 + $0x18] sm:$0xff] %v962
  // Predicated region
  $region14: #{basic_rfb_a_forward.23} parent=0 // pred_check
    _
  $region15: #{basic_rfb_a_forward.23} parent=0 // pred_check_branch
    %968 = sbr.rel (0) target = $region17
  $region16: #{basic_rfb_a_forward.23} parent=0 // pred_region
    _
  $region17: #{basic_rfb_a_forward.23} parent=0 // pred_fallthru
    _
  // Predicated region
  $region18: #{basic_rfb_a_forward.23} parent=0 // pred_check
    _
  $region19: #{basic_rfb_a_forward.23} parent=0 // pred_check_branch
    %970 = sbr.rel (0) target = $region21
  $region20: #{basic_rfb_a_forward.23} parent=0 // pred_region
    _
  $region21: #{basic_rfb_a_forward.23} parent=0 // pred_fallthru
    _

// kernel: basic_rfb_a_forward.22
$region0: #{basic_rfb_a_forward.22}
  #allocation0 [shape = 'u32[]', space=smem, size = 0x4, offset = 0x4, fixed_abs, tag = 'smem constant byte address 0x4 - core index']
  #allocation1 [shape = 'u32[144,128]{1,0:T(1,128)}', space=vmem, size = 0x12000, scoped, tag = 'internal scratch']
  %s0 = inlined_call_operand.vmem [shape: f32[8,16], index: 0, kind: input, shape index: {}]
  %s1 = inlined_call_operand.vmem [shape: f32[8,1], index: 1, kind: input, shape index: {}]
  %s2 = inlined_call_operand.vmem [shape: f32[16,512], index: 2, kind: input, shape index: {}]
  %s3 = inlined_call_operand.vmem [shape: f32[8,512], index: 3, kind: output, shape index: {}]
  %s4 = sld [smem:[#allocation0]]
  $region22: #{basic_rfb_a_forward.22} parent=0
    _
  %s6 = ssub.s32 1, %s4
  %s7 = scalar_select 0, %s6, %s4
  // Predicated region
  $region2: #{basic_rfb_a_forward.22} parent=0 // pred_check
    _
  $region3: #{basic_rfb_a_forward.22} parent=0 // pred_check_branch
    %9 = sbr.rel (0) target = $region5
  $region4: #{basic_rfb_a_forward.22} parent=0 // pred_region
    _
  $region5: #{basic_rfb_a_forward.22} parent=0 // pred_fallthru
    _
  // Predicated region
  $region6: #{basic_rfb_a_forward.22} parent=0 // pred_check
    _
  $region7: #{basic_rfb_a_forward.22} parent=0 // pred_check_branch
    %11 = sbr.rel (0) target = $region9
  $region8: #{basic_rfb_a_forward.22} parent=0 // pred_region
    _
  $region9: #{basic_rfb_a_forward.22} parent=0 // pred_fallthru
    _
  // Predicated region
  $region10: #{basic_rfb_a_forward.22} parent=0 // pred_check
    _
  $region11: #{basic_rfb_a_forward.22} parent=0 // pred_check_branch
    %13 = sbr.rel (0) target = $region13
  $region12: #{basic_rfb_a_forward.22} parent=0 // pred_region
    _
  $region13: #{basic_rfb_a_forward.22} parent=0 // pred_fallthru
    _
  %v14 = vld [vmem:[%s0] sm:$0xff]
  %v15 = vld [vmem:[%s2] sm:$0xff]
  %v16 = vld [vmem:[%s2 + $0x8] sm:$0xff]
  %v17 = vld [vmem:[%s2 + $0x10] sm:$0xff]
  %v18 = vld [vmem:[%s2 + $0x18] sm:$0xff]
  %v19 = vld [vmem:[%s2 + $0x20] sm:$0xff]
  %v20 = vld [vmem:[%s2 + $0x28] sm:$0xff]
  %v21 = vld [vmem:[%s2 + $0x30] sm:$0xff]
  %v22 = vld [vmem:[%s2 + $0x38] sm:$0xff]
  %v23 = vld [vmem:[%s1] sm:$0xff]
  %25 = vset.pattern.permute.xlu0 0
  %26 = vperm.xlu0 %25, %v23
  %v27 = vpop.permute.xlu0 %26
  %vm29 = vcmask 130048
  %v31 = vsel %vm29, %v14, 0
  %33 = vmatprep.subr.mxu0 0.0
  %34 = vmatpush1.msra.mxu0 0.0
  %35 = vmatprep.subr.mxu0 0.0
  %36 = vmatpush1.msra.mxu0 0.0
  %37 = vmatprep.subr.mxu0 0.0
  %38 = vmatpush1.msra.mxu0 0.0
  %39 = vmatprep.subr.mxu0 0.0
  %40 = vmatpush1.msra.mxu0 0.0
  %41 = vmatprep.subr.mxu0 0.0
  %42 = vmatpush1.msra.mxu0 0.0
  %43 = vmatprep.subr.mxu0 0.0
  %44 = vmatpush1.msra.mxu0 0.0
  %45 = vmatprep.subr.mxu0 0.0
  %46 = vmatpush1.msra.mxu0 0.0
  %47 = vmatprep.subr.mxu0 0.0
  %48 = vmatpush1.msra.mxu0 0.0
  %49 = vmatprep.subr.mxu0 0.0
  %50 = vmatpush1.msra.mxu0 0.0
  %51 = vmatprep.subr.mxu0 0.0
  %52 = vmatpush1.msra.mxu0 0.0
  %53 = vmatprep.subr.mxu0 0.0
  %54 = vmatpush1.msra.mxu0 0.0
  %55 = vmatprep.subr.mxu0 0.0
  %56 = vmatpush1.msra.mxu0 0.0
  %57 = vmatprep.subr.mxu0 0.0
  %58 = vmatpush1.msra.mxu0 0.0
  %59 = vmatprep.subr.mxu0 0.0
  %60 = vmatpush1.msra.mxu0 0.0
  %v61 = vand.u32 %v20, 4294901760
  %62 = vmatprep.subr.mxu0 %v61
  %v63 = vand.u32 %v19, 4294901760
  %64 = vmatpush1.msra.mxu0 %v63
  %v65 = vand.u32 %v16, 4294901760
  %66 = vmatprep.subr.mxu0 %v65
  %v67 = vand.u32 %v15, 4294901760
  %68 = vmatpush1.msra.mxu0 %v67
  %69 = vmatprep.subr.mxu0 0.0
  %70 = vmatpush2.msra.mxu0 0.0
  %71 = vmatprep.subr.mxu0 0.0
  %72 = vmatpush2.msra.mxu0 0.0
  %73 = vmatprep.subr.mxu0 0.0
  %74 = vmatpush2.msra.mxu0 0.0
  %75 = vmatprep.subr.mxu0 0.0
  %76 = vmatpush2.msra.mxu0 0.0
  %77 = vmatprep.subr.mxu0 0.0
  %78 = vmatpush2.msra.mxu0 0.0
  %79 = vmatprep.subr.mxu0 0.0
  %80 = vmatpush2.msra.mxu0 0.0
  %81 = vmatprep.subr.mxu0 0.0
  %82 = vmatpush2.msra.mxu0 0.0
  %83 = vmatprep.subr.mxu0 0.0
  %84 = vmatpush2.msra.mxu0 0.0
  %85 = vmatprep.subr.mxu0 0.0
  %86 = vmatpush2.msra.mxu0 0.0
  %87 = vmatprep.subr.mxu0 0.0
  %88 = vmatpush2.msra.mxu0 0.0
  %89 = vmatprep.subr.mxu0 0.0
  %90 = vmatpush2.msra.mxu0 0.0
  %91 = vmatprep.subr.mxu0 0.0
  %92 = vmatpush2.msra.mxu0 0.0
  %93 = vmatprep.subr.mxu0 0.0
  %94 = vmatpush2.msra.mxu0 0.0
  %95 = vmatprep.subr.mxu0 0.0
  %96 = vmatpush2.msra.mxu0 0.0
  %97 = vmatprep.subr.mxu0 0.0
  %98 = vmatpush2.msra.mxu0 0.0
  %99 = vmatprep.subr.mxu0 0.0
  %100 = vmatpush2.msra.mxu0 0.0
  %101 = vmatprep.mubr.f32.mxu0 0.0
  %v102 = vand.u32 %v31, 4294901760
  %v103 = vsub.f32 %v31, %v102
  %v104 = vand.u32 %v103, 4294901760
  %v105 = vsub.f32 %v103, %v104
  %v106 = vand.u32 %v105, 4294901760
  %107 = vmatmul.mubr.f32.gmra.mxu0 %v106
  %v108 = vpop.f32.mrf.mxu0
  %v109 = vadd.f32 %v27, %v108
  %v110 = vpop.f32.mrf.mxu0
  %v111 = vadd.f32 %v27, %v110
  %112 = vdwg.mxu0
  %113 = vmatprep.subr.mxu0 0.0
  %114 = vmatpush1.msra.mxu0 0.0
  %115 = vmatprep.subr.mxu0 0.0
  %116 = vmatpush1.msra.mxu0 0.0
  %117 = vmatprep.subr.mxu0 0.0
  %118 = vmatpush1.msra.mxu0 0.0
  %119 = vmatprep.subr.mxu0 0.0
  %120 = vmatpush1.msra.mxu0 0.0
  %121 = vmatprep.subr.mxu0 0.0
  %122 = vmatpush1.msra.mxu0 0.0
  %123 = vmatprep.subr.mxu0 0.0
  %124 = vmatpush1.msra.mxu0 0.0
  %125 = vmatprep.subr.mxu0 0.0
  %126 = vmatpush1.msra.mxu0 0.0
  %127 = vmatprep.subr.mxu0 0.0
  %128 = vmatpush1.msra.mxu0 0.0
  %129 = vmatprep.subr.mxu0 0.0
  %130 = vmatpush1.msra.mxu0 0.0
  %131 = vmatprep.subr.mxu0 0.0
  %132 = vmatpush1.msra.mxu0 0.0
  %133 = vmatprep.subr.mxu0 0.0
  %134 = vmatpush1.msra.mxu0 0.0
  %135 = vmatprep.subr.mxu0 0.0
  %136 = vmatpush1.msra.mxu0 0.0
  %137 = vmatprep.subr.mxu0 0.0
  %138 = vmatpush1.msra.mxu0 0.0
  %139 = vmatprep.subr.mxu0 0.0
  %140 = vmatpush1.msra.mxu0 0.0
  %v141 = vand.u32 %v20, 4294901760
  %v142 = vsub.f32 %v20, %v141
  %v143 = vand.u32 %v142, 4294901760
  %v144 = vsub.f32 %v142, %v143
  %v145 = vand.u32 %v144, 4294901760
  %146 = vmatprep.subr.mxu0 %v145
  %v147 = vand.u32 %v19, 4294901760
  %v148 = vsub.f32 %v19, %v147
  %v149 = vand.u32 %v148, 4294901760
  %v150 = vsub.f32 %v148, %v149
  %v151 = vand.u32 %v150, 4294901760
  %152 = vmatpush1.msra.mxu0 %v151
  %v153 = vand.u32 %v16, 4294901760
  %v154 = vsub.f32 %v16, %v153
  %v155 = vand.u32 %v154, 4294901760
  %v156 = vsub.f32 %v154, %v155
  %v157 = vand.u32 %v156, 4294901760
  %158 = vmatprep.subr.mxu0 %v157
  %v159 = vand.u32 %v15, 4294901760
  %v160 = vsub.f32 %v15, %v159
  %v161 = vand.u32 %v160, 4294901760
  %v162 = vsub.f32 %v160, %v161
  %v163 = vand.u32 %v162, 4294901760
  %164 = vmatpush1.msra.mxu0 %v163
  %165 = vmatprep.subr.mxu0 0.0
  %166 = vmatpush2.msra.mxu0 0.0
  %167 = vmatprep.subr.mxu0 0.0
  %168 = vmatpush2.msra.mxu0 0.0
  %169 = vmatprep.subr.mxu0 0.0
  %170 = vmatpush2.msra.mxu0 0.0
  %171 = vmatprep.subr.mxu0 0.0
  %172 = vmatpush2.msra.mxu0 0.0
  %173 = vmatprep.subr.mxu0 0.0
  %174 = vmatpush2.msra.mxu0 0.0
  %175 = vmatprep.subr.mxu0 0.0
  %176 = vmatpush2.msra.mxu0 0.0
  %177 = vmatprep.subr.mxu0 0.0
  %178 = vmatpush2.msra.mxu0 0.0
  %179 = vmatprep.subr.mxu0 0.0
  %180 = vmatpush2.msra.mxu0 0.0
  %181 = vmatprep.subr.mxu0 0.0
  %182 = vmatpush2.msra.mxu0 0.0
  %183 = vmatprep.subr.mxu0 0.0
  %184 = vmatpush2.msra.mxu0 0.0
  %185 = vmatprep.subr.mxu0 0.0
  %186 = vmatpush2.msra.mxu0 0.0
  %187 = vmatprep.subr.mxu0 0.0
  %188 = vmatpush2.msra.mxu0 0.0
  %189 = vmatprep.subr.mxu0 0.0
  %190 = vmatpush2.msra.mxu0 0.0
  %191 = vmatprep.subr.mxu0 0.0
  %192 = vmatpush2.msra.mxu0 0.0
  %193 = vmatprep.subr.mxu0 0.0
  %194 = vmatpush2.msra.mxu0 0.0
  %195 = vmatprep.subr.mxu0 0.0
  %196 = vmatpush2.msra.mxu0 0.0
  %197 = vmatprep.mubr.f32.mxu0 0.0
  %v198 = vand.u32 %v31, 4294901760
  %199 = vmatmul.mubr.f32.gmra.mxu0 %v198
  %v200 = vpop.f32.mrf.mxu0
  %v201 = vadd.f32 %v109, %v200
  %v202 = vpop.f32.mrf.mxu0
  %v203 = vadd.f32 %v111, %v202
  %204 = vdwg.mxu0
  %205 = vmatprep.subr.mxu0 0.0
  %206 = vmatpush1.msra.mxu0 0.0
  %207 = vmatprep.subr.mxu0 0.0
  %208 = vmatpush1.msra.mxu0 0.0
  %209 = vmatprep.subr.mxu0 0.0
  %210 = vmatpush1.msra.mxu0 0.0
  %211 = vmatprep.subr.mxu0 0.0
  %212 = vmatpush1.msra.mxu0 0.0
  %213 = vmatprep.subr.mxu0 0.0
  %214 = vmatpush1.msra.mxu0 0.0
  %215 = vmatprep.subr.mxu0 0.0
  %216 = vmatpush1.msra.mxu0 0.0
  %217 = vmatprep.subr.mxu0 0.0
  %218 = vmatpush1.msra.mxu0 0.0
  %219 = vmatprep.subr.mxu0 0.0
  %220 = vmatpush1.msra.mxu0 0.0
  %221 = vmatprep.subr.mxu0 0.0
  %222 = vmatpush1.msra.mxu0 0.0
  %223 = vmatprep.subr.mxu0 0.0
  %224 = vmatpush1.msra.mxu0 0.0
  %225 = vmatprep.subr.mxu0 0.0
  %226 = vmatpush1.msra.mxu0 0.0
  %227 = vmatprep.subr.mxu0 0.0
  %228 = vmatpush1.msra.mxu0 0.0
  %229 = vmatprep.subr.mxu0 0.0
  %230 = vmatpush1.msra.mxu0 0.0
  %231 = vmatprep.subr.mxu0 0.0
  %232 = vmatpush1.msra.mxu0 0.0
  %v233 = vand.u32 %v20, 4294901760
  %v234 = vsub.f32 %v20, %v233
  %235 = vmatprep.subr.mxu0 %v234
  %v236 = vand.u32 %v19, 4294901760
  %v237 = vsub.f32 %v19, %v236
  %238 = vmatpush1.msra.mxu0 %v237
  %v239 = vand.u32 %v16, 4294901760
  %v240 = vsub.f32 %v16, %v239
  %241 = vmatprep.subr.mxu0 %v240
  %v242 = vand.u32 %v15, 4294901760
  %v243 = vsub.f32 %v15, %v242
  %244 = vmatpush1.msra.mxu0 %v243
  %245 = vmatprep.subr.mxu0 0.0
  %246 = vmatpush2.msra.mxu0 0.0
  %247 = vmatprep.subr.mxu0 0.0
  %248 = vmatpush2.msra.mxu0 0.0
  %249 = vmatprep.subr.mxu0 0.0
  %250 = vmatpush2.msra.mxu0 0.0
  %251 = vmatprep.subr.mxu0 0.0
  %252 = vmatpush2.msra.mxu0 0.0
  %253 = vmatprep.subr.mxu0 0.0
  %254 = vmatpush2.msra.mxu0 0.0
  %255 = vmatprep.subr.mxu0 0.0
  %256 = vmatpush2.msra.mxu0 0.0
  %257 = vmatprep.subr.mxu0 0.0
  %258 = vmatpush2.msra.mxu0 0.0
  %259 = vmatprep.subr.mxu0 0.0
  %260 = vmatpush2.msra.mxu0 0.0
  %261 = vmatprep.subr.mxu0 0.0
  %262 = vmatpush2.msra.mxu0 0.0
  %263 = vmatprep.subr.mxu0 0.0
  %264 = vmatpush2.msra.mxu0 0.0
  %265 = vmatprep.subr.mxu0 0.0
  %266 = vmatpush2.msra.mxu0 0.0
  %267 = vmatprep.subr.mxu0 0.0
  %268 = vmatpush2.msra.mxu0 0.0
  %269 = vmatprep.subr.mxu0 0.0
  %270 = vmatpush2.msra.mxu0 0.0
  %271 = vmatprep.subr.mxu0 0.0
  %272 = vmatpush2.msra.mxu0 0.0
  %273 = vmatprep.subr.mxu0 0.0
  %274 = vmatpush2.msra.mxu0 0.0
  %275 = vmatprep.subr.mxu0 0.0
  %276 = vmatpush2.msra.mxu0 0.0
  %277 = vmatprep.mubr.f32.mxu0 0.0
  %v278 = vand.u32 %v31, 4294901760
  %v279 = vsub.f32 %v31, %v278
  %280 = vmatmul.mubr.f32.gmra.mxu0 %v279
  %v281 = vpop.f32.mrf.mxu0
  %v282 = vadd.f32 %v201, %v281
  %v283 = vpop.f32.mrf.mxu0
  %v284 = vadd.f32 %v203, %v283
  %285 = vdwg.mxu0
  %286 = vmatprep.subr.mxu0 0.0
  %287 = vmatpush1.msra.mxu0 0.0
  %288 = vmatprep.subr.mxu0 0.0
  %289 = vmatpush1.msra.mxu0 0.0
  %290 = vmatprep.subr.mxu0 0.0
  %291 = vmatpush1.msra.mxu0 0.0
  %292 = vmatprep.subr.mxu0 0.0
  %293 = vmatpush1.msra.mxu0 0.0
  %294 = vmatprep.subr.mxu0 0.0
  %295 = vmatpush1.msra.mxu0 0.0
  %296 = vmatprep.subr.mxu0 0.0
  %297 = vmatpush1.msra.mxu0 0.0
  %298 = vmatprep.subr.mxu0 0.0
  %299 = vmatpush1.msra.mxu0 0.0
  %300 = vmatprep.subr.mxu0 0.0
  %301 = vmatpush1.msra.mxu0 0.0
  %302 = vmatprep.subr.mxu0 0.0
  %303 = vmatpush1.msra.mxu0 0.0
  %304 = vmatprep.subr.mxu0 0.0
  %305 = vmatpush1.msra.mxu0 0.0
  %306 = vmatprep.subr.mxu0 0.0
  %307 = vmatpush1.msra.mxu0 0.0
  %308 = vmatprep.subr.mxu0 0.0
  %309 = vmatpush1.msra.mxu0 0.0
  %310 = vmatprep.subr.mxu0 0.0
  %311 = vmatpush1.msra.mxu0 0.0
  %312 = vmatprep.subr.mxu0 0.0
  %313 = vmatpush1.msra.mxu0 0.0
  %v314 = vand.u32 %v20, 4294901760
  %315 = vmatprep.subr.mxu0 %v314
  %v316 = vand.u32 %v19, 4294901760
  %317 = vmatpush1.msra.mxu0 %v316
  %v318 = vand.u32 %v16, 4294901760
  %319 = vmatprep.subr.mxu0 %v318
  %v320 = vand.u32 %v15, 4294901760
  %321 = vmatpush1.msra.mxu0 %v320
  %322 = vmatprep.subr.mxu0 0.0
  %323 = vmatpush2.msra.mxu0 0.0
  %324 = vmatprep.subr.mxu0 0.0
  %325 = vmatpush2.msra.mxu0 0.0
  %326 = vmatprep.subr.mxu0 0.0
  %327 = vmatpush2.msra.mxu0 0.0
  %328 = vmatprep.subr.mxu0 0.0
  %329 = vmatpush2.msra.mxu0 0.0
  %330 = vmatprep.subr.mxu0 0.0
  %331 = vmatpush2.msra.mxu0 0.0
  %332 = vmatprep.subr.mxu0 0.0
  %333 = vmatpush2.msra.mxu0 0.0
  %334 = vmatprep.subr.mxu0 0.0
  %335 = vmatpush2.msra.mxu0 0.0
  %336 = vmatprep.subr.mxu0 0.0
  %337 = vmatpush2.msra.mxu0 0.0
  %338 = vmatprep.subr.mxu0 0.0
  %339 = vmatpush2.msra.mxu0 0.0
  %340 = vmatprep.subr.mxu0 0.0
  %341 = vmatpush2.msra.mxu0 0.0
  %342 = vmatprep.subr.mxu0 0.0
  %343 = vmatpush2.msra.mxu0 0.0
  %344 = vmatprep.subr.mxu0 0.0
  %345 = vmatpush2.msra.mxu0 0.0
  %346 = vmatprep.subr.mxu0 0.0
  %347 = vmatpush2.msra.mxu0 0.0
  %348 = vmatprep.subr.mxu0 0.0
  %349 = vmatpush2.msra.mxu0 0.0
  %350 = vmatprep.subr.mxu0 0.0
  %351 = vmatpush2.msra.mxu0 0.0
  %352 = vmatprep.subr.mxu0 0.0
  %353 = vmatpush2.msra.mxu0 0.0
  %354 = vmatprep.mubr.f32.mxu0 0.0
  %v355 = vand.u32 %v31, 4294901760
  %v356 = vsub.f32 %v31, %v355
  %v357 = vand.u32 %v356, 4294901760
  %358 = vmatmul.mubr.f32.gmra.mxu0 %v357
  %v359 = vpop.f32.mrf.mxu0
  %v360 = vadd.f32 %v282, %v359
  %v361 = vpop.f32.mrf.mxu0
  %v362 = vadd.f32 %v284, %v361
  %363 = vdwg.mxu0
  %364 = vmatprep.subr.mxu0 0.0
  %365 = vmatpush1.msra.mxu0 0.0
  %366 = vmatprep.subr.mxu0 0.0
  %367 = vmatpush1.msra.mxu0 0.0
  %368 = vmatprep.subr.mxu0 0.0
  %369 = vmatpush1.msra.mxu0 0.0
  %370 = vmatprep.subr.mxu0 0.0
  %371 = vmatpush1.msra.mxu0 0.0
  %372 = vmatprep.subr.mxu0 0.0
  %373 = vmatpush1.msra.mxu0 0.0
  %374 = vmatprep.subr.mxu0 0.0
  %375 = vmatpush1.msra.mxu0 0.0
  %376 = vmatprep.subr.mxu0 0.0
  %377 = vmatpush1.msra.mxu0 0.0
  %378 = vmatprep.subr.mxu0 0.0
  %379 = vmatpush1.msra.mxu0 0.0
  %380 = vmatprep.subr.mxu0 0.0
  %381 = vmatpush1.msra.mxu0 0.0
  %382 = vmatprep.subr.mxu0 0.0
  %383 = vmatpush1.msra.mxu0 0.0
  %384 = vmatprep.subr.mxu0 0.0
  %385 = vmatpush1.msra.mxu0 0.0
  %386 = vmatprep.subr.mxu0 0.0
  %387 = vmatpush1.msra.mxu0 0.0
  %388 = vmatprep.subr.mxu0 0.0
  %389 = vmatpush1.msra.mxu0 0.0
  %390 = vmatprep.subr.mxu0 0.0
  %391 = vmatpush1.msra.mxu0 0.0
  %v392 = vand.u32 %v20, 4294901760
  %v393 = vsub.f32 %v20, %v392
  %v394 = vand.u32 %v393, 4294901760
  %395 = vmatprep.subr.mxu0 %v394
  %v396 = vand.u32 %v19, 4294901760
  %v397 = vsub.f32 %v19, %v396
  %v398 = vand.u32 %v397, 4294901760
  %399 = vmatpush1.msra.mxu0 %v398
  %v400 = vand.u32 %v16, 4294901760
  %v401 = vsub.f32 %v16, %v400
  %v402 = vand.u32 %v401, 4294901760
  %403 = vmatprep.subr.mxu0 %v402
  %v404 = vand.u32 %v15, 4294901760
  %v405 = vsub.f32 %v15, %v404
  %v406 = vand.u32 %v405, 4294901760
  %407 = vmatpush1.msra.mxu0 %v406
  %408 = vmatprep.subr.mxu0 0.0
  %409 = vmatpush2.msra.mxu0 0.0
  %410 = vmatprep.subr.mxu0 0.0
  %411 = vmatpush2.msra.mxu0 0.0
  %412 = vmatprep.subr.mxu0 0.0
  %413 = vmatpush2.msra.mxu0 0.0
  %414 = vmatprep.subr.mxu0 0.0
  %415 = vmatpush2.msra.mxu0 0.0
  %416 = vmatprep.subr.mxu0 0.0
  %417 = vmatpush2.msra.mxu0 0.0
  %418 = vmatprep.subr.mxu0 0.0
  %419 = vmatpush2.msra.mxu0 0.0
  %420 = vmatprep.subr.mxu0 0.0
  %421 = vmatpush2.msra.mxu0 0.0
  %422 = vmatprep.subr.mxu0 0.0
  %423 = vmatpush2.msra.mxu0 0.0
  %424 = vmatprep.subr.mxu0 0.0
  %425 = vmatpush2.msra.mxu0 0.0
  %426 = vmatprep.subr.mxu0 0.0
  %427 = vmatpush2.msra.mxu0 0.0
  %428 = vmatprep.subr.mxu0 0.0
  %429 = vmatpush2.msra.mxu0 0.0
  %430 = vmatprep.subr.mxu0 0.0
  %431 = vmatpush2.msra.mxu0 0.0
  %432 = vmatprep.subr.mxu0 0.0
  %433 = vmatpush2.msra.mxu0 0.0
  %434 = vmatprep.subr.mxu0 0.0
  %435 = vmatpush2.msra.mxu0 0.0
  %436 = vmatprep.subr.mxu0 0.0
  %437 = vmatpush2.msra.mxu0 0.0
  %438 = vmatprep.subr.mxu0 0.0
  %439 = vmatpush2.msra.mxu0 0.0
  %440 = vmatprep.mubr.f32.mxu0 0.0
  %v441 = vand.u32 %v31, 4294901760
  %442 = vmatmul.mubr.f32.gmra.mxu0 %v441
  %v443 = vpop.f32.mrf.mxu0
  %v444 = vadd.f32 %v360, %v443
  %v445 = vpop.f32.mrf.mxu0
  %v446 = vadd.f32 %v362, %v445
  %447 = vdwg.mxu0
  %448 = vmatprep.subr.mxu0 0.0
  %449 = vmatpush1.msra.mxu0 0.0
  %450 = vmatprep.subr.mxu0 0.0
  %451 = vmatpush1.msra.mxu0 0.0
  %452 = vmatprep.subr.mxu0 0.0
  %453 = vmatpush1.msra.mxu0 0.0
  %454 = vmatprep.subr.mxu0 0.0
  %455 = vmatpush1.msra.mxu0 0.0
  %456 = vmatprep.subr.mxu0 0.0
  %457 = vmatpush1.msra.mxu0 0.0
  %458 = vmatprep.subr.mxu0 0.0
  %459 = vmatpush1.msra.mxu0 0.0
  %460 = vmatprep.subr.mxu0 0.0
  %461 = vmatpush1.msra.mxu0 0.0
  %462 = vmatprep.subr.mxu0 0.0
  %463 = vmatpush1.msra.mxu0 0.0
  %464 = vmatprep.subr.mxu0 0.0
  %465 = vmatpush1.msra.mxu0 0.0
  %466 = vmatprep.subr.mxu0 0.0
  %467 = vmatpush1.msra.mxu0 0.0
  %468 = vmatprep.subr.mxu0 0.0
  %469 = vmatpush1.msra.mxu0 0.0
  %470 = vmatprep.subr.mxu0 0.0
  %471 = vmatpush1.msra.mxu0 0.0
  %472 = vmatprep.subr.mxu0 0.0
  %473 = vmatpush1.msra.mxu0 0.0
  %474 = vmatprep.subr.mxu0 0.0
  %475 = vmatpush1.msra.mxu0 0.0
  %v476 = vand.u32 %v20, 4294901760
  %477 = vmatprep.subr.mxu0 %v476
  %v478 = vand.u32 %v19, 4294901760
  %479 = vmatpush1.msra.mxu0 %v478
  %v480 = vand.u32 %v16, 4294901760
  %481 = vmatprep.subr.mxu0 %v480
  %v482 = vand.u32 %v15, 4294901760
  %483 = vmatpush1.msra.mxu0 %v482
  %484 = vmatprep.subr.mxu0 0.0
  %485 = vmatpush2.msra.mxu0 0.0
  %486 = vmatprep.subr.mxu0 0.0
  %487 = vmatpush2.msra.mxu0 0.0
  %488 = vmatprep.subr.mxu0 0.0
  %489 = vmatpush2.msra.mxu0 0.0
  %490 = vmatprep.subr.mxu0 0.0
  %491 = vmatpush2.msra.mxu0 0.0
  %492 = vmatprep.subr.mxu0 0.0
  %493 = vmatpush2.msra.mxu0 0.0
  %494 = vmatprep.subr.mxu0 0.0
  %495 = vmatpush2.msra.mxu0 0.0
  %496 = vmatprep.subr.mxu0 0.0
  %497 = vmatpush2.msra.mxu0 0.0
  %498 = vmatprep.subr.mxu0 0.0
  %499 = vmatpush2.msra.mxu0 0.0
  %500 = vmatprep.subr.mxu0 0.0
  %501 = vmatpush2.msra.mxu0 0.0
  %502 = vmatprep.subr.mxu0 0.0
  %503 = vmatpush2.msra.mxu0 0.0
  %504 = vmatprep.subr.mxu0 0.0
  %505 = vmatpush2.msra.mxu0 0.0
  %506 = vmatprep.subr.mxu0 0.0
  %507 = vmatpush2.msra.mxu0 0.0
  %508 = vmatprep.subr.mxu0 0.0
  %509 = vmatpush2.msra.mxu0 0.0
  %510 = vmatprep.subr.mxu0 0.0
  %511 = vmatpush2.msra.mxu0 0.0
  %512 = vmatprep.subr.mxu0 0.0
  %513 = vmatpush2.msra.mxu0 0.0
  %514 = vmatprep.subr.mxu0 0.0
  %515 = vmatpush2.msra.mxu0 0.0
  %516 = vmatprep.mubr.f32.mxu0 0.0
  %v517 = vand.u32 %v31, 4294901760
  %518 = vmatmul.mubr.f32.gmra.mxu0 %v517
  %v519 = vpop.f32.mrf.mxu0
  %v520 = vadd.f32 %v444, %v519
  %v521 = vpop.f32.mrf.mxu0
  %v522 = vadd.f32 %v446, %v521
  %523 = vdwg.mxu0
  %524 = vmatprep.subr.mxu0 0.0
  %525 = vmatpush1.msra.mxu0 0.0
  %526 = vmatprep.subr.mxu0 0.0
  %527 = vmatpush1.msra.mxu0 0.0
  %528 = vmatprep.subr.mxu0 0.0
  %529 = vmatpush1.msra.mxu0 0.0
  %530 = vmatprep.subr.mxu0 0.0
  %531 = vmatpush1.msra.mxu0 0.0
  %532 = vmatprep.subr.mxu0 0.0
  %533 = vmatpush1.msra.mxu0 0.0
  %534 = vmatprep.subr.mxu0 0.0
  %535 = vmatpush1.msra.mxu0 0.0
  %536 = vmatprep.subr.mxu0 0.0
  %537 = vmatpush1.msra.mxu0 0.0
  %538 = vmatprep.subr.mxu0 0.0
  %539 = vmatpush1.msra.mxu0 0.0
  %540 = vmatprep.subr.mxu0 0.0
  %541 = vmatpush1.msra.mxu0 0.0
  %542 = vmatprep.subr.mxu0 0.0
  %543 = vmatpush1.msra.mxu0 0.0
  %544 = vmatprep.subr.mxu0 0.0
  %545 = vmatpush1.msra.mxu0 0.0
  %546 = vmatprep.subr.mxu0 0.0
  %547 = vmatpush1.msra.mxu0 0.0
  %548 = vmatprep.subr.mxu0 0.0
  %549 = vmatpush1.msra.mxu0 0.0
  %550 = vmatprep.subr.mxu0 0.0
  %551 = vmatpush1.msra.mxu0 0.0
  %v552 = vand.u32 %v22, 4294901760
  %553 = vmatprep.subr.mxu0 %v552
  %v554 = vand.u32 %v21, 4294901760
  %555 = vmatpush1.msra.mxu0 %v554
  %v556 = vand.u32 %v18, 4294901760
  %557 = vmatprep.subr.mxu0 %v556
  %v558 = vand.u32 %v17, 4294901760
  %559 = vmatpush1.msra.mxu0 %v558
  %560 = vmatprep.subr.mxu0 0.0
  %561 = vmatpush2.msra.mxu0 0.0
  %562 = vmatprep.subr.mxu0 0.0
  %563 = vmatpush2.msra.mxu0 0.0
  %564 = vmatprep.subr.mxu0 0.0
  %565 = vmatpush2.msra.mxu0 0.0
  %566 = vmatprep.subr.mxu0 0.0
  %567 = vmatpush2.msra.mxu0 0.0
  %568 = vmatprep.subr.mxu0 0.0
  %569 = vmatpush2.msra.mxu0 0.0
  %570 = vmatprep.subr.mxu0 0.0
  %571 = vmatpush2.msra.mxu0 0.0
  %572 = vmatprep.subr.mxu0 0.0
  %573 = vmatpush2.msra.mxu0 0.0
  %574 = vmatprep.subr.mxu0 0.0
  %575 = vmatpush2.msra.mxu0 0.0
  %576 = vmatprep.subr.mxu0 0.0
  %577 = vmatpush2.msra.mxu0 0.0
  %578 = vmatprep.subr.mxu0 0.0
  %579 = vmatpush2.msra.mxu0 0.0
  %580 = vmatprep.subr.mxu0 0.0
  %581 = vmatpush2.msra.mxu0 0.0
  %582 = vmatprep.subr.mxu0 0.0
  %583 = vmatpush2.msra.mxu0 0.0
  %584 = vmatprep.subr.mxu0 0.0
  %585 = vmatpush2.msra.mxu0 0.0
  %586 = vmatprep.subr.mxu0 0.0
  %587 = vmatpush2.msra.mxu0 0.0
  %588 = vmatprep.subr.mxu0 0.0
  %589 = vmatpush2.msra.mxu0 0.0
  %590 = vmatprep.subr.mxu0 0.0
  %591 = vmatpush2.msra.mxu0 0.0
  %592 = vmatprep.mubr.f32.mxu0 0.0
  %v593 = vand.u32 %v31, 4294901760
  %v594 = vsub.f32 %v31, %v593
  %v595 = vand.u32 %v594, 4294901760
  %v596 = vsub.f32 %v594, %v595
  %v597 = vand.u32 %v596, 4294901760
  %598 = vmatmul.mubr.f32.gmra.mxu0 %v597
  %v599 = vpop.f32.mrf.mxu0
  %v600 = vadd.f32 %v27, %v599
  %v601 = vpop.f32.mrf.mxu0
  %v602 = vadd.f32 %v27, %v601
  %603 = vdwg.mxu0
  %604 = vmatprep.subr.mxu0 0.0
  %605 = vmatpush1.msra.mxu0 0.0
  %606 = vmatprep.subr.mxu0 0.0
  %607 = vmatpush1.msra.mxu0 0.0
  %608 = vmatprep.subr.mxu0 0.0
  %609 = vmatpush1.msra.mxu0 0.0
  %610 = vmatprep.subr.mxu0 0.0
  %611 = vmatpush1.msra.mxu0 0.0
  %612 = vmatprep.subr.mxu0 0.0
  %613 = vmatpush1.msra.mxu0 0.0
  %614 = vmatprep.subr.mxu0 0.0
  %615 = vmatpush1.msra.mxu0 0.0
  %616 = vmatprep.subr.mxu0 0.0
  %617 = vmatpush1.msra.mxu0 0.0
  %618 = vmatprep.subr.mxu0 0.0
  %619 = vmatpush1.msra.mxu0 0.0
  %620 = vmatprep.subr.mxu0 0.0
  %621 = vmatpush1.msra.mxu0 0.0
  %622 = vmatprep.subr.mxu0 0.0
  %623 = vmatpush1.msra.mxu0 0.0
  %624 = vmatprep.subr.mxu0 0.0
  %625 = vmatpush1.msra.mxu0 0.0
  %626 = vmatprep.subr.mxu0 0.0
  %627 = vmatpush1.msra.mxu0 0.0
  %628 = vmatprep.subr.mxu0 0.0
  %629 = vmatpush1.msra.mxu0 0.0
  %630 = vmatprep.subr.mxu0 0.0
  %631 = vmatpush1.msra.mxu0 0.0
  %v632 = vand.u32 %v22, 4294901760
  %v633 = vsub.f32 %v22, %v632
  %v634 = vand.u32 %v633, 4294901760
  %v635 = vsub.f32 %v633, %v634
  %v636 = vand.u32 %v635, 4294901760
  %637 = vmatprep.subr.mxu0 %v636
  %v638 = vand.u32 %v21, 4294901760
  %v639 = vsub.f32 %v21, %v638
  %v640 = vand.u32 %v639, 4294901760
  %v641 = vsub.f32 %v639, %v640
  %v642 = vand.u32 %v641, 4294901760
  %643 = vmatpush1.msra.mxu0 %v642
  %v644 = vand.u32 %v18, 4294901760
  %v645 = vsub.f32 %v18, %v644
  %v646 = vand.u32 %v645, 4294901760
  %v647 = vsub.f32 %v645, %v646
  %v648 = vand.u32 %v647, 4294901760
  %649 = vmatprep.subr.mxu0 %v648
  %v650 = vand.u32 %v17, 4294901760
  %v651 = vsub.f32 %v17, %v650
  %v652 = vand.u32 %v651, 4294901760
  %v653 = vsub.f32 %v651, %v652
  %v654 = vand.u32 %v653, 4294901760
  %655 = vmatpush1.msra.mxu0 %v654
  %656 = vmatprep.subr.mxu0 0.0
  %657 = vmatpush2.msra.mxu0 0.0
  %658 = vmatprep.subr.mxu0 0.0
  %659 = vmatpush2.msra.mxu0 0.0
  %660 = vmatprep.subr.mxu0 0.0
  %661 = vmatpush2.msra.mxu0 0.0
  %662 = vmatprep.subr.mxu0 0.0
  %663 = vmatpush2.msra.mxu0 0.0
  %664 = vmatprep.subr.mxu0 0.0
  %665 = vmatpush2.msra.mxu0 0.0
  %666 = vmatprep.subr.mxu0 0.0
  %667 = vmatpush2.msra.mxu0 0.0
  %668 = vmatprep.subr.mxu0 0.0
  %669 = vmatpush2.msra.mxu0 0.0
  %670 = vmatprep.subr.mxu0 0.0
  %671 = vmatpush2.msra.mxu0 0.0
  %672 = vmatprep.subr.mxu0 0.0
  %673 = vmatpush2.msra.mxu0 0.0
  %674 = vmatprep.subr.mxu0 0.0
  %675 = vmatpush2.msra.mxu0 0.0
  %676 = vmatprep.subr.mxu0 0.0
  %677 = vmatpush2.msra.mxu0 0.0
  %678 = vmatprep.subr.mxu0 0.0
  %679 = vmatpush2.msra.mxu0 0.0
  %680 = vmatprep.subr.mxu0 0.0
  %681 = vmatpush2.msra.mxu0 0.0
  %682 = vmatprep.subr.mxu0 0.0
  %683 = vmatpush2.msra.mxu0 0.0
  %684 = vmatprep.subr.mxu0 0.0
  %685 = vmatpush2.msra.mxu0 0.0
  %686 = vmatprep.subr.mxu0 0.0
  %687 = vmatpush2.msra.mxu0 0.0
  %688 = vmatprep.mubr.f32.mxu0 0.0
  %v689 = vand.u32 %v31, 4294901760
  %690 = vmatmul.mubr.f32.gmra.mxu0 %v689
  %v691 = vpop.f32.mrf.mxu0
  %v692 = vadd.f32 %v600, %v691
  %v693 = vpop.f32.mrf.mxu0
  %v694 = vadd.f32 %v602, %v693
  %695 = vdwg.mxu0
  %696 = vmatprep.subr.mxu0 0.0
  %697 = vmatpush1.msra.mxu0 0.0
  %698 = vmatprep.subr.mxu0 0.0
  %699 = vmatpush1.msra.mxu0 0.0
  %700 = vmatprep.subr.mxu0 0.0
  %701 = vmatpush1.msra.mxu0 0.0
  %702 = vmatprep.subr.mxu0 0.0
  %703 = vmatpush1.msra.mxu0 0.0
  %704 = vmatprep.subr.mxu0 0.0
  %705 = vmatpush1.msra.mxu0 0.0
  %706 = vmatprep.subr.mxu0 0.0
  %707 = vmatpush1.msra.mxu0 0.0
  %708 = vmatprep.subr.mxu0 0.0
  %709 = vmatpush1.msra.mxu0 0.0
  %710 = vmatprep.subr.mxu0 0.0
  %711 = vmatpush1.msra.mxu0 0.0
  %712 = vmatprep.subr.mxu0 0.0
  %713 = vmatpush1.msra.mxu0 0.0
  %714 = vmatprep.subr.mxu0 0.0
  %715 = vmatpush1.msra.mxu0 0.0
  %716 = vmatprep.subr.mxu0 0.0
  %717 = vmatpush1.msra.mxu0 0.0
  %718 = vmatprep.subr.mxu0 0.0
  %719 = vmatpush1.msra.mxu0 0.0
  %720 = vmatprep.subr.mxu0 0.0
  %721 = vmatpush1.msra.mxu0 0.0
  %722 = vmatprep.subr.mxu0 0.0
  %723 = vmatpush1.msra.mxu0 0.0
  %v724 = vand.u32 %v22, 4294901760
  %v725 = vsub.f32 %v22, %v724
  %726 = vmatprep.subr.mxu0 %v725
  %v727 = vand.u32 %v21, 4294901760
  %v728 = vsub.f32 %v21, %v727
  %729 = vmatpush1.msra.mxu0 %v728
  %v730 = vand.u32 %v18, 4294901760
  %v731 = vsub.f32 %v18, %v730
  %732 = vmatprep.subr.mxu0 %v731
  %v733 = vand.u32 %v17, 4294901760
  %v734 = vsub.f32 %v17, %v733
  %735 = vmatpush1.msra.mxu0 %v734
  %736 = vmatprep.subr.mxu0 0.0
  %737 = vmatpush2.msra.mxu0 0.0
  %738 = vmatprep.subr.mxu0 0.0
  %739 = vmatpush2.msra.mxu0 0.0
  %740 = vmatprep.subr.mxu0 0.0
  %741 = vmatpush2.msra.mxu0 0.0
  %742 = vmatprep.subr.mxu0 0.0
  %743 = vmatpush2.msra.mxu0 0.0
  %744 = vmatprep.subr.mxu0 0.0
  %745 = vmatpush2.msra.mxu0 0.0
  %746 = vmatprep.subr.mxu0 0.0
  %747 = vmatpush2.msra.mxu0 0.0
  %748 = vmatprep.subr.mxu0 0.0
  %749 = vmatpush2.msra.mxu0 0.0
  %750 = vmatprep.subr.mxu0 0.0
  %751 = vmatpush2.msra.mxu0 0.0
  %752 = vmatprep.subr.mxu0 0.0
  %753 = vmatpush2.msra.mxu0 0.0
  %754 = vmatprep.subr.mxu0 0.0
  %755 = vmatpush2.msra.mxu0 0.0
  %756 = vmatprep.subr.mxu0 0.0
  %757 = vmatpush2.msra.mxu0 0.0
  %758 = vmatprep.subr.mxu0 0.0
  %759 = vmatpush2.msra.mxu0 0.0
  %760 = vmatprep.subr.mxu0 0.0
  %761 = vmatpush2.msra.mxu0 0.0
  %762 = vmatprep.subr.mxu0 0.0
  %763 = vmatpush2.msra.mxu0 0.0
  %764 = vmatprep.subr.mxu0 0.0
  %765 = vmatpush2.msra.mxu0 0.0
  %766 = vmatprep.subr.mxu0 0.0
  %767 = vmatpush2.msra.mxu0 0.0
  %768 = vmatprep.mubr.f32.mxu0 0.0
  %v769 = vand.u32 %v31, 4294901760
  %v770 = vsub.f32 %v31, %v769
  %771 = vmatmul.mubr.f32.gmra.mxu0 %v770
  %v772 = vpop.f32.mrf.mxu0
  %v773 = vadd.f32 %v692, %v772
  %v774 = vpop.f32.mrf.mxu0
  %v775 = vadd.f32 %v694, %v774
  %776 = vdwg.mxu0
  %777 = vmatprep.subr.mxu0 0.0
  %778 = vmatpush1.msra.mxu0 0.0
  %779 = vmatprep.subr.mxu0 0.0
  %780 = vmatpush1.msra.mxu0 0.0
  %781 = vmatprep.subr.mxu0 0.0
  %782 = vmatpush1.msra.mxu0 0.0
  %783 = vmatprep.subr.mxu0 0.0
  %784 = vmatpush1.msra.mxu0 0.0
  %785 = vmatprep.subr.mxu0 0.0
  %786 = vmatpush1.msra.mxu0 0.0
  %787 = vmatprep.subr.mxu0 0.0
  %788 = vmatpush1.msra.mxu0 0.0
  %789 = vmatprep.subr.mxu0 0.0
  %790 = vmatpush1.msra.mxu0 0.0
  %791 = vmatprep.subr.mxu0 0.0
  %792 = vmatpush1.msra.mxu0 0.0
  %793 = vmatprep.subr.mxu0 0.0
  %794 = vmatpush1.msra.mxu0 0.0
  %795 = vmatprep.subr.mxu0 0.0
  %796 = vmatpush1.msra.mxu0 0.0
  %797 = vmatprep.subr.mxu0 0.0
  %798 = vmatpush1.msra.mxu0 0.0
  %799 = vmatprep.subr.mxu0 0.0
  %800 = vmatpush1.msra.mxu0 0.0
  %801 = vmatprep.subr.mxu0 0.0
  %802 = vmatpush1.msra.mxu0 0.0
  %803 = vmatprep.subr.mxu0 0.0
  %804 = vmatpush1.msra.mxu0 0.0
  %v805 = vand.u32 %v22, 4294901760
  %806 = vmatprep.subr.mxu0 %v805
  %v807 = vand.u32 %v21, 4294901760
  %808 = vmatpush1.msra.mxu0 %v807
  %v809 = vand.u32 %v18, 4294901760
  %810 = vmatprep.subr.mxu0 %v809
  %v811 = vand.u32 %v17, 4294901760
  %812 = vmatpush1.msra.mxu0 %v811
  %813 = vmatprep.subr.mxu0 0.0
  %814 = vmatpush2.msra.mxu0 0.0
  %815 = vmatprep.subr.mxu0 0.0
  %816 = vmatpush2.msra.mxu0 0.0
  %817 = vmatprep.subr.mxu0 0.0
  %818 = vmatpush2.msra.mxu0 0.0
  %819 = vmatprep.subr.mxu0 0.0
  %820 = vmatpush2.msra.mxu0 0.0
  %821 = vmatprep.subr.mxu0 0.0
  %822 = vmatpush2.msra.mxu0 0.0
  %823 = vmatprep.subr.mxu0 0.0
  %824 = vmatpush2.msra.mxu0 0.0
  %825 = vmatprep.subr.mxu0 0.0
  %826 = vmatpush2.msra.mxu0 0.0
  %827 = vmatprep.subr.mxu0 0.0
  %828 = vmatpush2.msra.mxu0 0.0
  %829 = vmatprep.subr.mxu0 0.0
  %830 = vmatpush2.msra.mxu0 0.0
  %831 = vmatprep.subr.mxu0 0.0
  %832 = vmatpush2.msra.mxu0 0.0
  %833 = vmatprep.subr.mxu0 0.0
  %834 = vmatpush2.msra.mxu0 0.0
  %835 = vmatprep.subr.mxu0 0.0
  %836 = vmatpush2.msra.mxu0 0.0
  %837 = vmatprep.subr.mxu0 0.0
  %838 = vmatpush2.msra.mxu0 0.0
  %839 = vmatprep.subr.mxu0 0.0
  %840 = vmatpush2.msra.mxu0 0.0
  %841 = vmatprep.subr.mxu0 0.0
  %842 = vmatpush2.msra.mxu0 0.0
  %843 = vmatprep.subr.mxu0 0.0
  %844 = vmatpush2.msra.mxu0 0.0
  %845 = vmatprep.mubr.f32.mxu0 0.0
  %v846 = vand.u32 %v31, 4294901760
  %v847 = vsub.f32 %v31, %v846
  %v848 = vand.u32 %v847, 4294901760
  %849 = vmatmul.mubr.f32.gmra.mxu0 %v848
  %v850 = vpop.f32.mrf.mxu0
  %v851 = vadd.f32 %v773, %v850
  %v852 = vpop.f32.mrf.mxu0
  %v853 = vadd.f32 %v775, %v852
  %854 = vdwg.mxu0
  %855 = vmatprep.subr.mxu0 0.0
  %856 = vmatpush1.msra.mxu0 0.0
  %857 = vmatprep.subr.mxu0 0.0
  %858 = vmatpush1.msra.mxu0 0.0
  %859 = vmatprep.subr.mxu0 0.0
  %860 = vmatpush1.msra.mxu0 0.0
  %861 = vmatprep.subr.mxu0 0.0
  %862 = vmatpush1.msra.mxu0 0.0
  %863 = vmatprep.subr.mxu0 0.0
  %864 = vmatpush1.msra.mxu0 0.0
  %865 = vmatprep.subr.mxu0 0.0
  %866 = vmatpush1.msra.mxu0 0.0
  %867 = vmatprep.subr.mxu0 0.0
  %868 = vmatpush1.msra.mxu0 0.0
  %869 = vmatprep.subr.mxu0 0.0
  %870 = vmatpush1.msra.mxu0 0.0
  %871 = vmatprep.subr.mxu0 0.0
  %872 = vmatpush1.msra.mxu0 0.0
  %873 = vmatprep.subr.mxu0 0.0
  %874 = vmatpush1.msra.mxu0 0.0
  %875 = vmatprep.subr.mxu0 0.0
  %876 = vmatpush1.msra.mxu0 0.0
  %877 = vmatprep.subr.mxu0 0.0
  %878 = vmatpush1.msra.mxu0 0.0
  %879 = vmatprep.subr.mxu0 0.0
  %880 = vmatpush1.msra.mxu0 0.0
  %881 = vmatprep.subr.mxu0 0.0
  %882 = vmatpush1.msra.mxu0 0.0
  %v883 = vand.u32 %v22, 4294901760
  %v884 = vsub.f32 %v22, %v883
  %v885 = vand.u32 %v884, 4294901760
  %886 = vmatprep.subr.mxu0 %v885
  %v887 = vand.u32 %v21, 4294901760
  %v888 = vsub.f32 %v21, %v887
  %v889 = vand.u32 %v888, 4294901760
  %890 = vmatpush1.msra.mxu0 %v889
  %v891 = vand.u32 %v18, 4294901760
  %v892 = vsub.f32 %v18, %v891
  %v893 = vand.u32 %v892, 4294901760
  %894 = vmatprep.subr.mxu0 %v893
  %v895 = vand.u32 %v17, 4294901760
  %v896 = vsub.f32 %v17, %v895
  %v897 = vand.u32 %v896, 4294901760
  %898 = vmatpush1.msra.mxu0 %v897
  %899 = vmatprep.subr.mxu0 0.0
  %900 = vmatpush2.msra.mxu0 0.0
  %901 = vmatprep.subr.mxu0 0.0
  %902 = vmatpush2.msra.mxu0 0.0
  %903 = vmatprep.subr.mxu0 0.0
  %904 = vmatpush2.msra.mxu0 0.0
  %905 = vmatprep.subr.mxu0 0.0
  %906 = vmatpush2.msra.mxu0 0.0
  %907 = vmatprep.subr.mxu0 0.0
  %908 = vmatpush2.msra.mxu0 0.0
  %909 = vmatprep.subr.mxu0 0.0
  %910 = vmatpush2.msra.mxu0 0.0
  %911 = vmatprep.subr.mxu0 0.0
  %912 = vmatpush2.msra.mxu0 0.0
  %913 = vmatprep.subr.mxu0 0.0
  %914 = vmatpush2.msra.mxu0 0.0
  %915 = vmatprep.subr.mxu0 0.0
  %916 = vmatpush2.msra.mxu0 0.0
  %917 = vmatprep.subr.mxu0 0.0
  %918 = vmatpush2.msra.mxu0 0.0
  %919 = vmatprep.subr.mxu0 0.0
  %920 = vmatpush2.msra.mxu0 0.0
  %921 = vmatprep.subr.mxu0 0.0
  %922 = vmatpush2.msra.mxu0 0.0
  %923 = vmatprep.subr.mxu0 0.0
  %924 = vmatpush2.msra.mxu0 0.0
  %925 = vmatprep.subr.mxu0 0.0
  %926 = vmatpush2.msra.mxu0 0.0
  %927 = vmatprep.subr.mxu0 0.0
  %928 = vmatpush2.msra.mxu0 0.0
  %929 = vmatprep.subr.mxu0 0.0
  %930 = vmatpush2.msra.mxu0 0.0
  %931 = vmatprep.mubr.f32.mxu0 0.0
  %v932 = vand.u32 %v31, 4294901760
  %933 = vmatmul.mubr.f32.gmra.mxu0 %v932
  %v934 = vpop.f32.mrf.mxu0
  %v935 = vadd.f32 %v851, %v934
  %v936 = vpop.f32.mrf.mxu0
  %v937 = vadd.f32 %v853, %v936
  %938 = vdwg.mxu0
  %939 = vmatprep.subr.mxu0 0.0
  %940 = vmatpush1.msra.mxu0 0.0
  %941 = vmatprep.subr.mxu0 0.0
  %942 = vmatpush1.msra.mxu0 0.0
  %943 = vmatprep.subr.mxu0 0.0
  %944 = vmatpush1.msra.mxu0 0.0
  %945 = vmatprep.subr.mxu0 0.0
  %946 = vmatpush1.msra.mxu0 0.0
  %947 = vmatprep.subr.mxu0 0.0
  %948 = vmatpush1.msra.mxu0 0.0
  %949 = vmatprep.subr.mxu0 0.0
  %950 = vmatpush1.msra.mxu0 0.0
  %951 = vmatprep.subr.mxu0 0.0
  %952 = vmatpush1.msra.mxu0 0.0
  %953 = vmatprep.subr.mxu0 0.0
  %954 = vmatpush1.msra.mxu0 0.0
  %955 = vmatprep.subr.mxu0 0.0
  %956 = vmatpush1.msra.mxu0 0.0
  %957 = vmatprep.subr.mxu0 0.0
  %958 = vmatpush1.msra.mxu0 0.0
  %959 = vmatprep.subr.mxu0 0.0
  %960 = vmatpush1.msra.mxu0 0.0
  %961 = vmatprep.subr.mxu0 0.0
  %962 = vmatpush1.msra.mxu0 0.0
  %963 = vmatprep.subr.mxu0 0.0
  %964 = vmatpush1.msra.mxu0 0.0
  %965 = vmatprep.subr.mxu0 0.0
  %966 = vmatpush1.msra.mxu0 0.0
  %v967 = vand.u32 %v22, 4294901760
  %968 = vmatprep.subr.mxu0 %v967
  %v969 = vand.u32 %v21, 4294901760
  %970 = vmatpush1.msra.mxu0 %v969
  %v971 = vand.u32 %v18, 4294901760
  %972 = vmatprep.subr.mxu0 %v971
  %v973 = vand.u32 %v17, 4294901760
  %974 = vmatpush1.msra.mxu0 %v973
  %975 = vmatprep.subr.mxu0 0.0
  %976 = vmatpush2.msra.mxu0 0.0
  %977 = vmatprep.subr.mxu0 0.0
  %978 = vmatpush2.msra.mxu0 0.0
  %979 = vmatprep.subr.mxu0 0.0
  %980 = vmatpush2.msra.mxu0 0.0
  %981 = vmatprep.subr.mxu0 0.0
  %982 = vmatpush2.msra.mxu0 0.0
  %983 = vmatprep.subr.mxu0 0.0
  %984 = vmatpush2.msra.mxu0 0.0
  %985 = vmatprep.subr.mxu0 0.0
  %986 = vmatpush2.msra.mxu0 0.0
  %987 = vmatprep.subr.mxu0 0.0
  %988 = vmatpush2.msra.mxu0 0.0
  %989 = vmatprep.subr.mxu0 0.0
  %990 = vmatpush2.msra.mxu0 0.0
  %991 = vmatprep.subr.mxu0 0.0
  %992 = vmatpush2.msra.mxu0 0.0
  %993 = vmatprep.subr.mxu0 0.0
  %994 = vmatpush2.msra.mxu0 0.0
  %995 = vmatprep.subr.mxu0 0.0
  %996 = vmatpush2.msra.mxu0 0.0
  %997 = vmatprep.subr.mxu0 0.0
  %998 = vmatpush2.msra.mxu0 0.0
  %999 = vmatprep.subr.mxu0 0.0
  %1000 = vmatpush2.msra.mxu0 0.0
  %1001 = vmatprep.subr.mxu0 0.0
  %1002 = vmatpush2.msra.mxu0 0.0
  %1003 = vmatprep.subr.mxu0 0.0
  %1004 = vmatpush2.msra.mxu0 0.0
  %1005 = vmatprep.subr.mxu0 0.0
  %1006 = vmatpush2.msra.mxu0 0.0
  %1007 = vmatprep.mubr.f32.mxu0 0.0
  %v1008 = vand.u32 %v31, 4294901760
  %1009 = vmatmul.mubr.f32.gmra.mxu0 %v1008
  %v1010 = vpop.f32.mrf.mxu0
  %v1011 = vadd.f32 %v935, %v1010
  %v1012 = vpop.f32.mrf.mxu0
  %v1013 = vadd.f32 %v937, %v1012
  %1014 = vdwg.mxu0
  %v1015 = vmax.f32 %v520, 0.0
  %v1016 = vmax.f32 %v522, 0.0
  %v1017 = vmax.f32 %v1011, 0.0
  %v1018 = vmax.f32 %v1013, 0.0
  %1019 = vst [vmem:[%s3] sm:$0xff] %v1015
  %1020 = vst [vmem:[%s3 + $0x8] sm:$0xff] %v1016
  %1021 = vst [vmem:[%s3 + $0x10] sm:$0xff] %v1017
  %1022 = vst [vmem:[%s3 + $0x18] sm:$0xff] %v1018
  // Predicated region
  $region14: #{basic_rfb_a_forward.22} parent=0 // pred_check
    _
  $region15: #{basic_rfb_a_forward.22} parent=0 // pred_check_branch
    %1024 = sbr.rel (0) target = $region17
  $region16: #{basic_rfb_a_forward.22} parent=0 // pred_region
    _
  $region17: #{basic_rfb_a_forward.22} parent=0 // pred_fallthru
    _
  // Predicated region
  $region18: #{basic_rfb_a_forward.22} parent=0 // pred_check
    _
  $region19: #{basic_rfb_a_forward.22} parent=0 // pred_check_branch
    %1026 = sbr.rel (0) target = $region21
  $region20: #{basic_rfb_a_forward.22} parent=0 // pred_region
    _
  $region21: #{basic_rfb_a_forward.22} parent=0 // pred_fallthru
    _

// kernel: basic_rfb_a_forward.25
$region0: #{basic_rfb_a_forward.25}
  #allocation0 [shape = 'u32[]', space=smem, size = 0x4, offset = 0x4, fixed_abs, tag = 'smem constant byte address 0x4 - core index']
  #allocation1 [shape = 'u32[144,128]{1,0:T(1,128)}', space=vmem, size = 0x12000, scoped, tag = 'internal scratch']
  %s0 = inlined_call_operand.vmem [shape: f32[8,40], index: 0, kind: input, shape index: {}]
  %s1 = inlined_call_operand.vmem [shape: f32[8,1], index: 1, kind: input, shape index: {}]
  %s2 = inlined_call_operand.vmem [shape: f32[40,512], index: 2, kind: input, shape index: {}]
  %s3 = inlined_call_operand.vmem [shape: f32[8,512], index: 3, kind: output, shape index: {}]
  %s4 = sld [smem:[#allocation0]]
  $region22: #{basic_rfb_a_forward.25} parent=0
    _
  %s6 = ssub.s32 1, %s4
  %s7 = scalar_select 0, %s6, %s4
  // Predicated region
  $region2: #{basic_rfb_a_forward.25} parent=0 // pred_check
    _
  $region3: #{basic_rfb_a_forward.25} parent=0 // pred_check_branch
    %9 = sbr.rel (0) target = $region5
  $region4: #{basic_rfb_a_forward.25} parent=0 // pred_region
    _
  $region5: #{basic_rfb_a_forward.25} parent=0 // pred_fallthru
    _
  // Predicated region
  $region6: #{basic_rfb_a_forward.25} parent=0 // pred_check
    _
  $region7: #{basic_rfb_a_forward.25} parent=0 // pred_check_branch
    %11 = sbr.rel (0) target = $region9
  $region8: #{basic_rfb_a_forward.25} parent=0 // pred_region
    _
  $region9: #{basic_rfb_a_forward.25} parent=0 // pred_fallthru
    _
  // Predicated region
  $region10: #{basic_rfb_a_forward.25} parent=0 // pred_check
    _
  $region11: #{basic_rfb_a_forward.25} parent=0 // pred_check_branch
    %13 = sbr.rel (0) target = $region13
  $region12: #{basic_rfb_a_forward.25} parent=0 // pred_region
    _
  $region13: #{basic_rfb_a_forward.25} parent=0 // pred_fallthru
    _
  %v14 = vld [vmem:[%s0] sm:$0xff]
  %v15 = vld [vmem:[%s2] sm:$0xff]
  %v16 = vld [vmem:[%s2 + $0x8] sm:$0xff]
  %v17 = vld [vmem:[%s2 + $0x10] sm:$0xff]
  %v18 = vld [vmem:[%s2 + $0x18] sm:$0xff]
  %v19 = vld [vmem:[%s2 + $0x20] sm:$0xff]
  %v20 = vld [vmem:[%s2 + $0x28] sm:$0xff]
  %v21 = vld [vmem:[%s2 + $0x30] sm:$0xff]
  %v22 = vld [vmem:[%s2 + $0x38] sm:$0xff]
  %v23 = vld [vmem:[%s2 + $0x40] sm:$0xff]
  %v24 = vld [vmem:[%s2 + $0x48] sm:$0xff]
  %v25 = vld [vmem:[%s2 + $0x50] sm:$0xff]
  %v26 = vld [vmem:[%s2 + $0x58] sm:$0xff]
  %v27 = vld [vmem:[%s2 + $0x60] sm:$0xff]
  %v28 = vld [vmem:[%s2 + $0x68] sm:$0xff]
  %v29 = vld [vmem:[%s2 + $0x70] sm:$0xff]
  %v30 = vld [vmem:[%s2 + $0x78] sm:$0xff]
  %v31 = vld [vmem:[%s2 + $0x80] sm:$0xff]
  %v32 = vld [vmem:[%s2 + $0x88] sm:$0xff]
  %v33 = vld [vmem:[%s2 + $0x90] sm:$0xff]
  %v34 = vld [vmem:[%s2 + $0x98] sm:$0xff]
  %v35 = vld [vmem:[%s1] sm:$0xff]
  %37 = vset.pattern.permute.xlu0 0
  %38 = vperm.xlu0 %37, %v35
  %v39 = vpop.permute.xlu0 %38
  %vm41 = vcmask 326656
  %v43 = vsel %vm41, %v14, 0
  %45 = vmatprep.subr.mxu0 0.0
  %46 = vmatpush1.msra.mxu0 0.0
  %47 = vmatprep.subr.mxu0 0.0
  %48 = vmatpush1.msra.mxu0 0.0
  %49 = vmatprep.subr.mxu0 0.0
  %50 = vmatpush1.msra.mxu0 0.0
  %51 = vmatprep.subr.mxu0 0.0
  %52 = vmatpush1.msra.mxu0 0.0
  %53 = vmatprep.subr.mxu0 0.0
  %54 = vmatpush1.msra.mxu0 0.0
  %55 = vmatprep.subr.mxu0 0.0
  %56 = vmatpush1.msra.mxu0 0.0
  %57 = vmatprep.subr.mxu0 0.0
  %58 = vmatpush1.msra.mxu0 0.0
  %59 = vmatprep.subr.mxu0 0.0
  %60 = vmatpush1.msra.mxu0 0.0
  %61 = vmatprep.subr.mxu0 0.0
  %62 = vmatpush1.msra.mxu0 0.0
  %63 = vmatprep.subr.mxu0 0.0
  %64 = vmatpush1.msra.mxu0 0.0
  %65 = vmatprep.subr.mxu0 0.0
  %66 = vmatpush1.msra.mxu0 0.0
  %v67 = vand.u32 %v32, 4294901760
  %68 = vmatprep.subr.mxu0 %v67
  %v69 = vand.u32 %v31, 4294901760
  %70 = vmatpush1.msra.mxu0 %v69
  %v71 = vand.u32 %v28, 4294901760
  %72 = vmatprep.subr.mxu0 %v71
  %v73 = vand.u32 %v27, 4294901760
  %74 = vmatpush1.msra.mxu0 %v73
  %v75 = vand.u32 %v24, 4294901760
  %76 = vmatprep.subr.mxu0 %v75
  %v77 = vand.u32 %v23, 4294901760
  %78 = vmatpush1.msra.mxu0 %v77
  %v79 = vand.u32 %v20, 4294901760
  %80 = vmatprep.subr.mxu0 %v79
  %v81 = vand.u32 %v19, 4294901760
  %82 = vmatpush1.msra.mxu0 %v81
  %v83 = vand.u32 %v16, 4294901760
  %84 = vmatprep.subr.mxu0 %v83
  %v85 = vand.u32 %v15, 4294901760
  %86 = vmatpush1.msra.mxu0 %v85
  %87 = vmatprep.subr.mxu0 0.0
  %88 = vmatpush2.msra.mxu0 0.0
  %89 = vmatprep.subr.mxu0 0.0
  %90 = vmatpush2.msra.mxu0 0.0
  %91 = vmatprep.subr.mxu0 0.0
  %92 = vmatpush2.msra.mxu0 0.0
  %93 = vmatprep.subr.mxu0 0.0
  %94 = vmatpush2.msra.mxu0 0.0
  %95 = vmatprep.subr.mxu0 0.0
  %96 = vmatpush2.msra.mxu0 0.0
  %97 = vmatprep.subr.mxu0 0.0
  %98 = vmatpush2.msra.mxu0 0.0
  %99 = vmatprep.subr.mxu0 0.0
  %100 = vmatpush2.msra.mxu0 0.0
  %101 = vmatprep.subr.mxu0 0.0
  %102 = vmatpush2.msra.mxu0 0.0
  %103 = vmatprep.subr.mxu0 0.0
  %104 = vmatpush2.msra.mxu0 0.0
  %105 = vmatprep.subr.mxu0 0.0
  %106 = vmatpush2.msra.mxu0 0.0
  %107 = vmatprep.subr.mxu0 0.0
  %108 = vmatpush2.msra.mxu0 0.0
  %109 = vmatprep.subr.mxu0 0.0
  %110 = vmatpush2.msra.mxu0 0.0
  %111 = vmatprep.subr.mxu0 0.0
  %112 = vmatpush2.msra.mxu0 0.0
  %113 = vmatprep.subr.mxu0 0.0
  %114 = vmatpush2.msra.mxu0 0.0
  %115 = vmatprep.subr.mxu0 0.0
  %116 = vmatpush2.msra.mxu0 0.0
  %117 = vmatprep.subr.mxu0 0.0
  %118 = vmatpush2.msra.mxu0 0.0
  %119 = vmatprep.mubr.f32.mxu0 0.0
  %v120 = vand.u32 %v43, 4294901760
  %v121 = vsub.f32 %v43, %v120
  %v122 = vand.u32 %v121, 4294901760
  %v123 = vsub.f32 %v121, %v122
  %v124 = vand.u32 %v123, 4294901760
  %125 = vmatmul.mubr.f32.gmra.mxu0 %v124
  %v126 = vpop.f32.mrf.mxu0
  %v127 = vadd.f32 %v39, %v126
  %v128 = vpop.f32.mrf.mxu0
  %v129 = vadd.f32 %v39, %v128
  %130 = vdwg.mxu0
  %131 = vmatprep.subr.mxu0 0.0
  %132 = vmatpush1.msra.mxu0 0.0
  %133 = vmatprep.subr.mxu0 0.0
  %134 = vmatpush1.msra.mxu0 0.0
  %135 = vmatprep.subr.mxu0 0.0
  %136 = vmatpush1.msra.mxu0 0.0
  %137 = vmatprep.subr.mxu0 0.0
  %138 = vmatpush1.msra.mxu0 0.0
  %139 = vmatprep.subr.mxu0 0.0
  %140 = vmatpush1.msra.mxu0 0.0
  %141 = vmatprep.subr.mxu0 0.0
  %142 = vmatpush1.msra.mxu0 0.0
  %143 = vmatprep.subr.mxu0 0.0
  %144 = vmatpush1.msra.mxu0 0.0
  %145 = vmatprep.subr.mxu0 0.0
  %146 = vmatpush1.msra.mxu0 0.0
  %147 = vmatprep.subr.mxu0 0.0
  %148 = vmatpush1.msra.mxu0 0.0
  %149 = vmatprep.subr.mxu0 0.0
  %150 = vmatpush1.msra.mxu0 0.0
  %151 = vmatprep.subr.mxu0 0.0
  %152 = vmatpush1.msra.mxu0 0.0
  %v153 = vand.u32 %v32, 4294901760
  %v154 = vsub.f32 %v32, %v153
  %v155 = vand.u32 %v154, 4294901760
  %v156 = vsub.f32 %v154, %v155
  %v157 = vand.u32 %v156, 4294901760
  %158 = vmatprep.subr.mxu0 %v157
  %v159 = vand.u32 %v31, 4294901760
  %v160 = vsub.f32 %v31, %v159
  %v161 = vand.u32 %v160, 4294901760
  %v162 = vsub.f32 %v160, %v161
  %v163 = vand.u32 %v162, 4294901760
  %164 = vmatpush1.msra.mxu0 %v163
  %v165 = vand.u32 %v28, 4294901760
  %v166 = vsub.f32 %v28, %v165
  %v167 = vand.u32 %v166, 4294901760
  %v168 = vsub.f32 %v166, %v167
  %v169 = vand.u32 %v168, 4294901760
  %170 = vmatprep.subr.mxu0 %v169
  %v171 = vand.u32 %v27, 4294901760
  %v172 = vsub.f32 %v27, %v171
  %v173 = vand.u32 %v172, 4294901760
  %v174 = vsub.f32 %v172, %v173
  %v175 = vand.u32 %v174, 4294901760
  %176 = vmatpush1.msra.mxu0 %v175
  %v177 = vand.u32 %v24, 4294901760
  %v178 = vsub.f32 %v24, %v177
  %v179 = vand.u32 %v178, 4294901760
  %v180 = vsub.f32 %v178, %v179
  %v181 = vand.u32 %v180, 4294901760
  %182 = vmatprep.subr.mxu0 %v181
  %v183 = vand.u32 %v23, 4294901760
  %v184 = vsub.f32 %v23, %v183
  %v185 = vand.u32 %v184, 4294901760
  %v186 = vsub.f32 %v184, %v185
  %v187 = vand.u32 %v186, 4294901760
  %188 = vmatpush1.msra.mxu0 %v187
  %v189 = vand.u32 %v20, 4294901760
  %v190 = vsub.f32 %v20, %v189
  %v191 = vand.u32 %v190, 4294901760
  %v192 = vsub.f32 %v190, %v191
  %v193 = vand.u32 %v192, 4294901760
  %194 = vmatprep.subr.mxu0 %v193
  %v195 = vand.u32 %v19, 4294901760
  %v196 = vsub.f32 %v19, %v195
  %v197 = vand.u32 %v196, 4294901760
  %v198 = vsub.f32 %v196, %v197
  %v199 = vand.u32 %v198, 4294901760
  %200 = vmatpush1.msra.mxu0 %v199
  %v201 = vand.u32 %v16, 4294901760
  %v202 = vsub.f32 %v16, %v201
  %v203 = vand.u32 %v202, 4294901760
  %v204 = vsub.f32 %v202, %v203
  %v205 = vand.u32 %v204, 4294901760
  %206 = vmatprep.subr.mxu0 %v205
  %v207 = vand.u32 %v15, 4294901760
  %v208 = vsub.f32 %v15, %v207
  %v209 = vand.u32 %v208, 4294901760
  %v210 = vsub.f32 %v208, %v209
  %v211 = vand.u32 %v210, 4294901760
  %212 = vmatpush1.msra.mxu0 %v211
  %213 = vmatprep.subr.mxu0 0.0
  %214 = vmatpush2.msra.mxu0 0.0
  %215 = vmatprep.subr.mxu0 0.0
  %216 = vmatpush2.msra.mxu0 0.0
  %217 = vmatprep.subr.mxu0 0.0
  %218 = vmatpush2.msra.mxu0 0.0
  %219 = vmatprep.subr.mxu0 0.0
  %220 = vmatpush2.msra.mxu0 0.0
  %221 = vmatprep.subr.mxu0 0.0
  %222 = vmatpush2.msra.mxu0 0.0
  %223 = vmatprep.subr.mxu0 0.0
  %224 = vmatpush2.msra.mxu0 0.0
  %225 = vmatprep.subr.mxu0 0.0
  %226 = vmatpush2.msra.mxu0 0.0
  %227 = vmatprep.subr.mxu0 0.0
  %228 = vmatpush2.msra.mxu0 0.0
  %229 = vmatprep.subr.mxu0 0.0
  %230 = vmatpush2.msra.mxu0 0.0
  %231 = vmatprep.subr.mxu0 0.0
  %232 = vmatpush2.msra.mxu0 0.0
  %233 = vmatprep.subr.mxu0 0.0
  %234 = vmatpush2.msra.mxu0 0.0
  %235 = vmatprep.subr.mxu0 0.0
  %236 = vmatpush2.msra.mxu0 0.0
  %237 = vmatprep.subr.mxu0 0.0
  %238 = vmatpush2.msra.mxu0 0.0
  %239 = vmatprep.subr.mxu0 0.0
  %240 = vmatpush2.msra.mxu0 0.0
  %241 = vmatprep.subr.mxu0 0.0
  %242 = vmatpush2.msra.mxu0 0.0
  %243 = vmatprep.subr.mxu0 0.0
  %244 = vmatpush2.msra.mxu0 0.0
  %245 = vmatprep.mubr.f32.mxu0 0.0
  %v246 = vand.u32 %v43, 4294901760
  %247 = vmatmul.mubr.f32.gmra.mxu0 %v246
  %v248 = vpop.f32.mrf.mxu0
  %v249 = vadd.f32 %v127, %v248
  %v250 = vpop.f32.mrf.mxu0
  %v251 = vadd.f32 %v129, %v250
  %252 = vdwg.mxu0
  %253 = vmatprep.subr.mxu0 0.0
  %254 = vmatpush1.msra.mxu0 0.0
  %255 = vmatprep.subr.mxu0 0.0
  %256 = vmatpush1.msra.mxu0 0.0
  %257 = vmatprep.subr.mxu0 0.0
  %258 = vmatpush1.msra.mxu0 0.0
  %259 = vmatprep.subr.mxu0 0.0
  %260 = vmatpush1.msra.mxu0 0.0
  %261 = vmatprep.subr.mxu0 0.0
  %262 = vmatpush1.msra.mxu0 0.0
  %263 = vmatprep.subr.mxu0 0.0
  %264 = vmatpush1.msra.mxu0 0.0
  %265 = vmatprep.subr.mxu0 0.0
  %266 = vmatpush1.msra.mxu0 0.0
  %267 = vmatprep.subr.mxu0 0.0
  %268 = vmatpush1.msra.mxu0 0.0
  %269 = vmatprep.subr.mxu0 0.0
  %270 = vmatpush1.msra.mxu0 0.0
  %271 = vmatprep.subr.mxu0 0.0
  %272 = vmatpush1.msra.mxu0 0.0
  %273 = vmatprep.subr.mxu0 0.0
  %274 = vmatpush1.msra.mxu0 0.0
  %v275 = vand.u32 %v32, 4294901760
  %v276 = vsub.f32 %v32, %v275
  %277 = vmatprep.subr.mxu0 %v276
  %v278 = vand.u32 %v31, 4294901760
  %v279 = vsub.f32 %v31, %v278
  %280 = vmatpush1.msra.mxu0 %v279
  %v281 = vand.u32 %v28, 4294901760
  %v282 = vsub.f32 %v28, %v281
  %283 = vmatprep.subr.mxu0 %v282
  %v284 = vand.u32 %v27, 4294901760
  %v285 = vsub.f32 %v27, %v284
  %286 = vmatpush1.msra.mxu0 %v285
  %v287 = vand.u32 %v24, 4294901760
  %v288 = vsub.f32 %v24, %v287
  %289 = vmatprep.subr.mxu0 %v288
  %v290 = vand.u32 %v23, 4294901760
  %v291 = vsub.f32 %v23, %v290
  %292 = vmatpush1.msra.mxu0 %v291
  %v293 = vand.u32 %v20, 4294901760
  %v294 = vsub.f32 %v20, %v293
  %295 = vmatprep.subr.mxu0 %v294
  %v296 = vand.u32 %v19, 4294901760
  %v297 = vsub.f32 %v19, %v296
  %298 = vmatpush1.msra.mxu0 %v297
  %v299 = vand.u32 %v16, 4294901760
  %v300 = vsub.f32 %v16, %v299
  %301 = vmatprep.subr.mxu0 %v300
  %v302 = vand.u32 %v15, 4294901760
  %v303 = vsub.f32 %v15, %v302
  %304 = vmatpush1.msra.mxu0 %v303
  %305 = vmatprep.subr.mxu0 0.0
  %306 = vmatpush2.msra.mxu0 0.0
  %307 = vmatprep.subr.mxu0 0.0
  %308 = vmatpush2.msra.mxu0 0.0
  %309 = vmatprep.subr.mxu0 0.0
  %310 = vmatpush2.msra.mxu0 0.0
  %311 = vmatprep.subr.mxu0 0.0
  %312 = vmatpush2.msra.mxu0 0.0
  %313 = vmatprep.subr.mxu0 0.0
  %314 = vmatpush2.msra.mxu0 0.0
  %315 = vmatprep.subr.mxu0 0.0
  %316 = vmatpush2.msra.mxu0 0.0
  %317 = vmatprep.subr.mxu0 0.0
  %318 = vmatpush2.msra.mxu0 0.0
  %319 = vmatprep.subr.mxu0 0.0
  %320 = vmatpush2.msra.mxu0 0.0
  %321 = vmatprep.subr.mxu0 0.0
  %322 = vmatpush2.msra.mxu0 0.0
  %323 = vmatprep.subr.mxu0 0.0
  %324 = vmatpush2.msra.mxu0 0.0
  %325 = vmatprep.subr.mxu0 0.0
  %326 = vmatpush2.msra.mxu0 0.0
  %327 = vmatprep.subr.mxu0 0.0
  %328 = vmatpush2.msra.mxu0 0.0
  %329 = vmatprep.subr.mxu0 0.0
  %330 = vmatpush2.msra.mxu0 0.0
  %331 = vmatprep.subr.mxu0 0.0
  %332 = vmatpush2.msra.mxu0 0.0
  %333 = vmatprep.subr.mxu0 0.0
  %334 = vmatpush2.msra.mxu0 0.0
  %335 = vmatprep.subr.mxu0 0.0
  %336 = vmatpush2.msra.mxu0 0.0
  %337 = vmatprep.mubr.f32.mxu0 0.0
  %v338 = vand.u32 %v43, 4294901760
  %v339 = vsub.f32 %v43, %v338
  %340 = vmatmul.mubr.f32.gmra.mxu0 %v339
  %v341 = vpop.f32.mrf.mxu0
  %v342 = vadd.f32 %v249, %v341
  %v343 = vpop.f32.mrf.mxu0
  %v344 = vadd.f32 %v251, %v343
  %345 = vdwg.mxu0
  %346 = vmatprep.subr.mxu0 0.0
  %347 = vmatpush1.msra.mxu0 0.0
  %348 = vmatprep.subr.mxu0 0.0
  %349 = vmatpush1.msra.mxu0 0.0
  %350 = vmatprep.subr.mxu0 0.0
  %351 = vmatpush1.msra.mxu0 0.0
  %352 = vmatprep.subr.mxu0 0.0
  %353 = vmatpush1.msra.mxu0 0.0
  %354 = vmatprep.subr.mxu0 0.0
  %355 = vmatpush1.msra.mxu0 0.0
  %356 = vmatprep.subr.mxu0 0.0
  %357 = vmatpush1.msra.mxu0 0.0
  %358 = vmatprep.subr.mxu0 0.0
  %359 = vmatpush1.msra.mxu0 0.0
  %360 = vmatprep.subr.mxu0 0.0
  %361 = vmatpush1.msra.mxu0 0.0
  %362 = vmatprep.subr.mxu0 0.0
  %363 = vmatpush1.msra.mxu0 0.0
  %364 = vmatprep.subr.mxu0 0.0
  %365 = vmatpush1.msra.mxu0 0.0
  %366 = vmatprep.subr.mxu0 0.0
  %367 = vmatpush1.msra.mxu0 0.0
  %v368 = vand.u32 %v32, 4294901760
  %369 = vmatprep.subr.mxu0 %v368
  %v370 = vand.u32 %v31, 4294901760
  %371 = vmatpush1.msra.mxu0 %v370
  %v372 = vand.u32 %v28, 4294901760
  %373 = vmatprep.subr.mxu0 %v372
  %v374 = vand.u32 %v27, 4294901760
  %375 = vmatpush1.msra.mxu0 %v374
  %v376 = vand.u32 %v24, 4294901760
  %377 = vmatprep.subr.mxu0 %v376
  %v378 = vand.u32 %v23, 4294901760
  %379 = vmatpush1.msra.mxu0 %v378
  %v380 = vand.u32 %v20, 4294901760
  %381 = vmatprep.subr.mxu0 %v380
  %v382 = vand.u32 %v19, 4294901760
  %383 = vmatpush1.msra.mxu0 %v382
  %v384 = vand.u32 %v16, 4294901760
  %385 = vmatprep.subr.mxu0 %v384
  %v386 = vand.u32 %v15, 4294901760
  %387 = vmatpush1.msra.mxu0 %v386
  %388 = vmatprep.subr.mxu0 0.0
  %389 = vmatpush2.msra.mxu0 0.0
  %390 = vmatprep.subr.mxu0 0.0
  %391 = vmatpush2.msra.mxu0 0.0
  %392 = vmatprep.subr.mxu0 0.0
  %393 = vmatpush2.msra.mxu0 0.0
  %394 = vmatprep.subr.mxu0 0.0
  %395 = vmatpush2.msra.mxu0 0.0
  %396 = vmatprep.subr.mxu0 0.0
  %397 = vmatpush2.msra.mxu0 0.0
  %398 = vmatprep.subr.mxu0 0.0
  %399 = vmatpush2.msra.mxu0 0.0
  %400 = vmatprep.subr.mxu0 0.0
  %401 = vmatpush2.msra.mxu0 0.0
  %402 = vmatprep.subr.mxu0 0.0
  %403 = vmatpush2.msra.mxu0 0.0
  %404 = vmatprep.subr.mxu0 0.0
  %405 = vmatpush2.msra.mxu0 0.0
  %406 = vmatprep.subr.mxu0 0.0
  %407 = vmatpush2.msra.mxu0 0.0
  %408 = vmatprep.subr.mxu0 0.0
  %409 = vmatpush2.msra.mxu0 0.0
  %410 = vmatprep.subr.mxu0 0.0
  %411 = vmatpush2.msra.mxu0 0.0
  %412 = vmatprep.subr.mxu0 0.0
  %413 = vmatpush2.msra.mxu0 0.0
  %414 = vmatprep.subr.mxu0 0.0
  %415 = vmatpush2.msra.mxu0 0.0
  %416 = vmatprep.subr.mxu0 0.0
  %417 = vmatpush2.msra.mxu0 0.0
  %418 = vmatprep.subr.mxu0 0.0
  %419 = vmatpush2.msra.mxu0 0.0
  %420 = vmatprep.mubr.f32.mxu0 0.0
  %v421 = vand.u32 %v43, 4294901760
  %v422 = vsub.f32 %v43, %v421
  %v423 = vand.u32 %v422, 4294901760
  %424 = vmatmul.mubr.f32.gmra.mxu0 %v423
  %v425 = vpop.f32.mrf.mxu0
  %v426 = vadd.f32 %v342, %v425
  %v427 = vpop.f32.mrf.mxu0
  %v428 = vadd.f32 %v344, %v427
  %429 = vdwg.mxu0
  %430 = vmatprep.subr.mxu0 0.0
  %431 = vmatpush1.msra.mxu0 0.0
  %432 = vmatprep.subr.mxu0 0.0
  %433 = vmatpush1.msra.mxu0 0.0
  %434 = vmatprep.subr.mxu0 0.0
  %435 = vmatpush1.msra.mxu0 0.0
  %436 = vmatprep.subr.mxu0 0.0
  %437 = vmatpush1.msra.mxu0 0.0
  %438 = vmatprep.subr.mxu0 0.0
  %439 = vmatpush1.msra.mxu0 0.0
  %440 = vmatprep.subr.mxu0 0.0
  %441 = vmatpush1.msra.mxu0 0.0
  %442 = vmatprep.subr.mxu0 0.0
  %443 = vmatpush1.msra.mxu0 0.0
  %444 = vmatprep.subr.mxu0 0.0
  %445 = vmatpush1.msra.mxu0 0.0
  %446 = vmatprep.subr.mxu0 0.0
  %447 = vmatpush1.msra.mxu0 0.0
  %448 = vmatprep.subr.mxu0 0.0
  %449 = vmatpush1.msra.mxu0 0.0
  %450 = vmatprep.subr.mxu0 0.0
  %451 = vmatpush1.msra.mxu0 0.0
  %v452 = vand.u32 %v32, 4294901760
  %v453 = vsub.f32 %v32, %v452
  %v454 = vand.u32 %v453, 4294901760
  %455 = vmatprep.subr.mxu0 %v454
  %v456 = vand.u32 %v31, 4294901760
  %v457 = vsub.f32 %v31, %v456
  %v458 = vand.u32 %v457, 4294901760
  %459 = vmatpush1.msra.mxu0 %v458
  %v460 = vand.u32 %v28, 4294901760
  %v461 = vsub.f32 %v28, %v460
  %v462 = vand.u32 %v461, 4294901760
  %463 = vmatprep.subr.mxu0 %v462
  %v464 = vand.u32 %v27, 4294901760
  %v465 = vsub.f32 %v27, %v464
  %v466 = vand.u32 %v465, 4294901760
  %467 = vmatpush1.msra.mxu0 %v466
  %v468 = vand.u32 %v24, 4294901760
  %v469 = vsub.f32 %v24, %v468
  %v470 = vand.u32 %v469, 4294901760
  %471 = vmatprep.subr.mxu0 %v470
  %v472 = vand.u32 %v23, 4294901760
  %v473 = vsub.f32 %v23, %v472
  %v474 = vand.u32 %v473, 4294901760
  %475 = vmatpush1.msra.mxu0 %v474
  %v476 = vand.u32 %v20, 4294901760
  %v477 = vsub.f32 %v20, %v476
  %v478 = vand.u32 %v477, 4294901760
  %479 = vmatprep.subr.mxu0 %v478
  %v480 = vand.u32 %v19, 4294901760
  %v481 = vsub.f32 %v19, %v480
  %v482 = vand.u32 %v481, 4294901760
  %483 = vmatpush1.msra.mxu0 %v482
  %v484 = vand.u32 %v16, 4294901760
  %v485 = vsub.f32 %v16, %v484
  %v486 = vand.u32 %v485, 4294901760
  %487 = vmatprep.subr.mxu0 %v486
  %v488 = vand.u32 %v15, 4294901760
  %v489 = vsub.f32 %v15, %v488
  %v490 = vand.u32 %v489, 4294901760
  %491 = vmatpush1.msra.mxu0 %v490
  %492 = vmatprep.subr.mxu0 0.0
  %493 = vmatpush2.msra.mxu0 0.0
  %494 = vmatprep.subr.mxu0 0.0
  %495 = vmatpush2.msra.mxu0 0.0
  %496 = vmatprep.subr.mxu0 0.0
  %497 = vmatpush2.msra.mxu0 0.0
  %498 = vmatprep.subr.mxu0 0.0
  %499 = vmatpush2.msra.mxu0 0.0
  %500 = vmatprep.subr.mxu0 0.0
  %501 = vmatpush2.msra.mxu0 0.0
  %502 = vmatprep.subr.mxu0 0.0
  %503 = vmatpush2.msra.mxu0 0.0
  %504 = vmatprep.subr.mxu0 0.0
  %505 = vmatpush2.msra.mxu0 0.0
  %506 = vmatprep.subr.mxu0 0.0
  %507 = vmatpush2.msra.mxu0 0.0
  %508 = vmatprep.subr.mxu0 0.0
  %509 = vmatpush2.msra.mxu0 0.0
  %510 = vmatprep.subr.mxu0 0.0
  %511 = vmatpush2.msra.mxu0 0.0
  %512 = vmatprep.subr.mxu0 0.0
  %513 = vmatpush2.msra.mxu0 0.0
  %514 = vmatprep.subr.mxu0 0.0
  %515 = vmatpush2.msra.mxu0 0.0
  %516 = vmatprep.subr.mxu0 0.0
  %517 = vmatpush2.msra.mxu0 0.0
  %518 = vmatprep.subr.mxu0 0.0
  %519 = vmatpush2.msra.mxu0 0.0
  %520 = vmatprep.subr.mxu0 0.0
  %521 = vmatpush2.msra.mxu0 0.0
  %522 = vmatprep.subr.mxu0 0.0
  %523 = vmatpush2.msra.mxu0 0.0
  %524 = vmatprep.mubr.f32.mxu0 0.0
  %v525 = vand.u32 %v43, 4294901760
  %526 = vmatmul.mubr.f32.gmra.mxu0 %v525
  %v527 = vpop.f32.mrf.mxu0
  %v528 = vadd.f32 %v426, %v527
  %v529 = vpop.f32.mrf.mxu0
  %v530 = vadd.f32 %v428, %v529
  %531 = vdwg.mxu0
  %532 = vmatprep.subr.mxu0 0.0
  %533 = vmatpush1.msra.mxu0 0.0
  %534 = vmatprep.subr.mxu0 0.0
  %535 = vmatpush1.msra.mxu0 0.0
  %536 = vmatprep.subr.mxu0 0.0
  %537 = vmatpush1.msra.mxu0 0.0
  %538 = vmatprep.subr.mxu0 0.0
  %539 = vmatpush1.msra.mxu0 0.0
  %540 = vmatprep.subr.mxu0 0.0
  %541 = vmatpush1.msra.mxu0 0.0
  %542 = vmatprep.subr.mxu0 0.0
  %543 = vmatpush1.msra.mxu0 0.0
  %544 = vmatprep.subr.mxu0 0.0
  %545 = vmatpush1.msra.mxu0 0.0
  %546 = vmatprep.subr.mxu0 0.0
  %547 = vmatpush1.msra.mxu0 0.0
  %548 = vmatprep.subr.mxu0 0.0
  %549 = vmatpush1.msra.mxu0 0.0
  %550 = vmatprep.subr.mxu0 0.0
  %551 = vmatpush1.msra.mxu0 0.0
  %552 = vmatprep.subr.mxu0 0.0
  %553 = vmatpush1.msra.mxu0 0.0
  %v554 = vand.u32 %v32, 4294901760
  %555 = vmatprep.subr.mxu0 %v554
  %v556 = vand.u32 %v31, 4294901760
  %557 = vmatpush1.msra.mxu0 %v556
  %v558 = vand.u32 %v28, 4294901760
  %559 = vmatprep.subr.mxu0 %v558
  %v560 = vand.u32 %v27, 4294901760
  %561 = vmatpush1.msra.mxu0 %v560
  %v562 = vand.u32 %v24, 4294901760
  %563 = vmatprep.subr.mxu0 %v562
  %v564 = vand.u32 %v23, 4294901760
  %565 = vmatpush1.msra.mxu0 %v564
  %v566 = vand.u32 %v20, 4294901760
  %567 = vmatprep.subr.mxu0 %v566
  %v568 = vand.u32 %v19, 4294901760
  %569 = vmatpush1.msra.mxu0 %v568
  %v570 = vand.u32 %v16, 4294901760
  %571 = vmatprep.subr.mxu0 %v570
  %v572 = vand.u32 %v15, 4294901760
  %573 = vmatpush1.msra.mxu0 %v572
  %574 = vmatprep.subr.mxu0 0.0
  %575 = vmatpush2.msra.mxu0 0.0
  %576 = vmatprep.subr.mxu0 0.0
  %577 = vmatpush2.msra.mxu0 0.0
  %578 = vmatprep.subr.mxu0 0.0
  %579 = vmatpush2.msra.mxu0 0.0
  %580 = vmatprep.subr.mxu0 0.0
  %581 = vmatpush2.msra.mxu0 0.0
  %582 = vmatprep.subr.mxu0 0.0
  %583 = vmatpush2.msra.mxu0 0.0
  %584 = vmatprep.subr.mxu0 0.0
  %585 = vmatpush2.msra.mxu0 0.0
  %586 = vmatprep.subr.mxu0 0.0
  %587 = vmatpush2.msra.mxu0 0.0
  %588 = vmatprep.subr.mxu0 0.0
  %589 = vmatpush2.msra.mxu0 0.0
  %590 = vmatprep.subr.mxu0 0.0
  %591 = vmatpush2.msra.mxu0 0.0
  %592 = vmatprep.subr.mxu0 0.0
  %593 = vmatpush2.msra.mxu0 0.0
  %594 = vmatprep.subr.mxu0 0.0
  %595 = vmatpush2.msra.mxu0 0.0
  %596 = vmatprep.subr.mxu0 0.0
  %597 = vmatpush2.msra.mxu0 0.0
  %598 = vmatprep.subr.mxu0 0.0
  %599 = vmatpush2.msra.mxu0 0.0
  %600 = vmatprep.subr.mxu0 0.0
  %601 = vmatpush2.msra.mxu0 0.0
  %602 = vmatprep.subr.mxu0 0.0
  %603 = vmatpush2.msra.mxu0 0.0
  %604 = vmatprep.subr.mxu0 0.0
  %605 = vmatpush2.msra.mxu0 0.0
  %606 = vmatprep.mubr.f32.mxu0 0.0
  %v607 = vand.u32 %v43, 4294901760
  %608 = vmatmul.mubr.f32.gmra.mxu0 %v607
  %v609 = vpop.f32.mrf.mxu0
  %v610 = vadd.f32 %v528, %v609
  %v611 = vpop.f32.mrf.mxu0
  %v612 = vadd.f32 %v530, %v611
  %613 = vdwg.mxu0
  %614 = vmatprep.subr.mxu0 0.0
  %615 = vmatpush1.msra.mxu0 0.0
  %616 = vmatprep.subr.mxu0 0.0
  %617 = vmatpush1.msra.mxu0 0.0
  %618 = vmatprep.subr.mxu0 0.0
  %619 = vmatpush1.msra.mxu0 0.0
  %620 = vmatprep.subr.mxu0 0.0
  %621 = vmatpush1.msra.mxu0 0.0
  %622 = vmatprep.subr.mxu0 0.0
  %623 = vmatpush1.msra.mxu0 0.0
  %624 = vmatprep.subr.mxu0 0.0
  %625 = vmatpush1.msra.mxu0 0.0
  %626 = vmatprep.subr.mxu0 0.0
  %627 = vmatpush1.msra.mxu0 0.0
  %628 = vmatprep.subr.mxu0 0.0
  %629 = vmatpush1.msra.mxu0 0.0
  %630 = vmatprep.subr.mxu0 0.0
  %631 = vmatpush1.msra.mxu0 0.0
  %632 = vmatprep.subr.mxu0 0.0
  %633 = vmatpush1.msra.mxu0 0.0
  %634 = vmatprep.subr.mxu0 0.0
  %635 = vmatpush1.msra.mxu0 0.0
  %v636 = vand.u32 %v34, 4294901760
  %637 = vmatprep.subr.mxu0 %v636
  %v638 = vand.u32 %v33, 4294901760
  %639 = vmatpush1.msra.mxu0 %v638
  %v640 = vand.u32 %v30, 4294901760
  %641 = vmatprep.subr.mxu0 %v640
  %v642 = vand.u32 %v29, 4294901760
  %643 = vmatpush1.msra.mxu0 %v642
  %v644 = vand.u32 %v26, 4294901760
  %645 = vmatprep.subr.mxu0 %v644
  %v646 = vand.u32 %v25, 4294901760
  %647 = vmatpush1.msra.mxu0 %v646
  %v648 = vand.u32 %v22, 4294901760
  %649 = vmatprep.subr.mxu0 %v648
  %v650 = vand.u32 %v21, 4294901760
  %651 = vmatpush1.msra.mxu0 %v650
  %v652 = vand.u32 %v18, 4294901760
  %653 = vmatprep.subr.mxu0 %v652
  %v654 = vand.u32 %v17, 4294901760
  %655 = vmatpush1.msra.mxu0 %v654
  %656 = vmatprep.subr.mxu0 0.0
  %657 = vmatpush2.msra.mxu0 0.0
  %658 = vmatprep.subr.mxu0 0.0
  %659 = vmatpush2.msra.mxu0 0.0
  %660 = vmatprep.subr.mxu0 0.0
  %661 = vmatpush2.msra.mxu0 0.0
  %662 = vmatprep.subr.mxu0 0.0
  %663 = vmatpush2.msra.mxu0 0.0
  %664 = vmatprep.subr.mxu0 0.0
  %665 = vmatpush2.msra.mxu0 0.0
  %666 = vmatprep.subr.mxu0 0.0
  %667 = vmatpush2.msra.mxu0 0.0
  %668 = vmatprep.subr.mxu0 0.0
  %669 = vmatpush2.msra.mxu0 0.0
  %670 = vmatprep.subr.mxu0 0.0
  %671 = vmatpush2.msra.mxu0 0.0
  %672 = vmatprep.subr.mxu0 0.0
  %673 = vmatpush2.msra.mxu0 0.0
  %674 = vmatprep.subr.mxu0 0.0
  %675 = vmatpush2.msra.mxu0 0.0
  %676 = vmatprep.subr.mxu0 0.0
  %677 = vmatpush2.msra.mxu0 0.0
  %678 = vmatprep.subr.mxu0 0.0
  %679 = vmatpush2.msra.mxu0 0.0
  %680 = vmatprep.subr.mxu0 0.0
  %681 = vmatpush2.msra.mxu0 0.0
  %682 = vmatprep.subr.mxu0 0.0
  %683 = vmatpush2.msra.mxu0 0.0
  %684 = vmatprep.subr.mxu0 0.0
  %685 = vmatpush2.msra.mxu0 0.0
  %686 = vmatprep.subr.mxu0 0.0
  %687 = vmatpush2.msra.mxu0 0.0
  %688 = vmatprep.mubr.f32.mxu0 0.0
  %v689 = vand.u32 %v43, 4294901760
  %v690 = vsub.f32 %v43, %v689
  %v691 = vand.u32 %v690, 4294901760
  %v692 = vsub.f32 %v690, %v691
  %v693 = vand.u32 %v692, 4294901760
  %694 = vmatmul.mubr.f32.gmra.mxu0 %v693
  %v695 = vpop.f32.mrf.mxu0
  %v696 = vadd.f32 %v39, %v695
  %v697 = vpop.f32.mrf.mxu0
  %v698 = vadd.f32 %v39, %v697
  %699 = vdwg.mxu0
  %700 = vmatprep.subr.mxu0 0.0
  %701 = vmatpush1.msra.mxu0 0.0
  %702 = vmatprep.subr.mxu0 0.0
  %703 = vmatpush1.msra.mxu0 0.0
  %704 = vmatprep.subr.mxu0 0.0
  %705 = vmatpush1.msra.mxu0 0.0
  %706 = vmatprep.subr.mxu0 0.0
  %707 = vmatpush1.msra.mxu0 0.0
  %708 = vmatprep.subr.mxu0 0.0
  %709 = vmatpush1.msra.mxu0 0.0
  %710 = vmatprep.subr.mxu0 0.0
  %711 = vmatpush1.msra.mxu0 0.0
  %712 = vmatprep.subr.mxu0 0.0
  %713 = vmatpush1.msra.mxu0 0.0
  %714 = vmatprep.subr.mxu0 0.0
  %715 = vmatpush1.msra.mxu0 0.0
  %716 = vmatprep.subr.mxu0 0.0
  %717 = vmatpush1.msra.mxu0 0.0
  %718 = vmatprep.subr.mxu0 0.0
  %719 = vmatpush1.msra.mxu0 0.0
  %720 = vmatprep.subr.mxu0 0.0
  %721 = vmatpush1.msra.mxu0 0.0
  %v722 = vand.u32 %v34, 4294901760
  %v723 = vsub.f32 %v34, %v722
  %v724 = vand.u32 %v723, 4294901760
  %v725 = vsub.f32 %v723, %v724
  %v726 = vand.u32 %v725, 4294901760
  %727 = vmatprep.subr.mxu0 %v726
  %v728 = vand.u32 %v33, 4294901760
  %v729 = vsub.f32 %v33, %v728
  %v730 = vand.u32 %v729, 4294901760
  %v731 = vsub.f32 %v729, %v730
  %v732 = vand.u32 %v731, 4294901760
  %733 = vmatpush1.msra.mxu0 %v732
  %v734 = vand.u32 %v30, 4294901760
  %v735 = vsub.f32 %v30, %v734
  %v736 = vand.u32 %v735, 4294901760
  %v737 = vsub.f32 %v735, %v736
  %v738 = vand.u32 %v737, 4294901760
  %739 = vmatprep.subr.mxu0 %v738
  %v740 = vand.u32 %v29, 4294901760
  %v741 = vsub.f32 %v29, %v740
  %v742 = vand.u32 %v741, 4294901760
  %v743 = vsub.f32 %v741, %v742
  %v744 = vand.u32 %v743, 4294901760
  %745 = vmatpush1.msra.mxu0 %v744
  %v746 = vand.u32 %v26, 4294901760
  %v747 = vsub.f32 %v26, %v746
  %v748 = vand.u32 %v747, 4294901760
  %v749 = vsub.f32 %v747, %v748
  %v750 = vand.u32 %v749, 4294901760
  %751 = vmatprep.subr.mxu0 %v750
  %v752 = vand.u32 %v25, 4294901760
  %v753 = vsub.f32 %v25, %v752
  %v754 = vand.u32 %v753, 4294901760
  %v755 = vsub.f32 %v753, %v754
  %v756 = vand.u32 %v755, 4294901760
  %757 = vmatpush1.msra.mxu0 %v756
  %v758 = vand.u32 %v22, 4294901760
  %v759 = vsub.f32 %v22, %v758
  %v760 = vand.u32 %v759, 4294901760
  %v761 = vsub.f32 %v759, %v760
  %v762 = vand.u32 %v761, 4294901760
  %763 = vmatprep.subr.mxu0 %v762
  %v764 = vand.u32 %v21, 4294901760
  %v765 = vsub.f32 %v21, %v764
  %v766 = vand.u32 %v765, 4294901760
  %v767 = vsub.f32 %v765, %v766
  %v768 = vand.u32 %v767, 4294901760
  %769 = vmatpush1.msra.mxu0 %v768
  %v770 = vand.u32 %v18, 4294901760
  %v771 = vsub.f32 %v18, %v770
  %v772 = vand.u32 %v771, 4294901760
  %v773 = vsub.f32 %v771, %v772
  %v774 = vand.u32 %v773, 4294901760
  %775 = vmatprep.subr.mxu0 %v774
  %v776 = vand.u32 %v17, 4294901760
  %v777 = vsub.f32 %v17, %v776
  %v778 = vand.u32 %v777, 4294901760
  %v779 = vsub.f32 %v777, %v778
  %v780 = vand.u32 %v779, 4294901760
  %781 = vmatpush1.msra.mxu0 %v780
  %782 = vmatprep.subr.mxu0 0.0
  %783 = vmatpush2.msra.mxu0 0.0
  %784 = vmatprep.subr.mxu0 0.0
  %785 = vmatpush2.msra.mxu0 0.0
  %786 = vmatprep.subr.mxu0 0.0
  %787 = vmatpush2.msra.mxu0 0.0
  %788 = vmatprep.subr.mxu0 0.0
  %789 = vmatpush2.msra.mxu0 0.0
  %790 = vmatprep.subr.mxu0 0.0
  %791 = vmatpush2.msra.mxu0 0.0
  %792 = vmatprep.subr.mxu0 0.0
  %793 = vmatpush2.msra.mxu0 0.0
  %794 = vmatprep.subr.mxu0 0.0
  %795 = vmatpush2.msra.mxu0 0.0
  %796 = vmatprep.subr.mxu0 0.0
  %797 = vmatpush2.msra.mxu0 0.0
  %798 = vmatprep.subr.mxu0 0.0
  %799 = vmatpush2.msra.mxu0 0.0
  %800 = vmatprep.subr.mxu0 0.0
  %801 = vmatpush2.msra.mxu0 0.0
  %802 = vmatprep.subr.mxu0 0.0
  %803 = vmatpush2.msra.mxu0 0.0
  %804 = vmatprep.subr.mxu0 0.0
  %805 = vmatpush2.msra.mxu0 0.0
  %806 = vmatprep.subr.mxu0 0.0
  %807 = vmatpush2.msra.mxu0 0.0
  %808 = vmatprep.subr.mxu0 0.0
  %809 = vmatpush2.msra.mxu0 0.0
  %810 = vmatprep.subr.mxu0 0.0
  %811 = vmatpush2.msra.mxu0 0.0
  %812 = vmatprep.subr.mxu0 0.0
  %813 = vmatpush2.msra.mxu0 0.0
  %814 = vmatprep.mubr.f32.mxu0 0.0
  %v815 = vand.u32 %v43, 4294901760
  %816 = vmatmul.mubr.f32.gmra.mxu0 %v815
  %v817 = vpop.f32.mrf.mxu0
  %v818 = vadd.f32 %v696, %v817
  %v819 = vpop.f32.mrf.mxu0
  %v820 = vadd.f32 %v698, %v819
  %821 = vdwg.mxu0
  %822 = vmatprep.subr.mxu0 0.0
  %823 = vmatpush1.msra.mxu0 0.0
  %824 = vmatprep.subr.mxu0 0.0
  %825 = vmatpush1.msra.mxu0 0.0
  %826 = vmatprep.subr.mxu0 0.0
  %827 = vmatpush1.msra.mxu0 0.0
  %828 = vmatprep.subr.mxu0 0.0
  %829 = vmatpush1.msra.mxu0 0.0
  %830 = vmatprep.subr.mxu0 0.0
  %831 = vmatpush1.msra.mxu0 0.0
  %832 = vmatprep.subr.mxu0 0.0
  %833 = vmatpush1.msra.mxu0 0.0
  %834 = vmatprep.subr.mxu0 0.0
  %835 = vmatpush1.msra.mxu0 0.0
  %836 = vmatprep.subr.mxu0 0.0
  %837 = vmatpush1.msra.mxu0 0.0
  %838 = vmatprep.subr.mxu0 0.0
  %839 = vmatpush1.msra.mxu0 0.0
  %840 = vmatprep.subr.mxu0 0.0
  %841 = vmatpush1.msra.mxu0 0.0
  %842 = vmatprep.subr.mxu0 0.0
  %843 = vmatpush1.msra.mxu0 0.0
  %v844 = vand.u32 %v34, 4294901760
  %v845 = vsub.f32 %v34, %v844
  %846 = vmatprep.subr.mxu0 %v845
  %v847 = vand.u32 %v33, 4294901760
  %v848 = vsub.f32 %v33, %v847
  %849 = vmatpush1.msra.mxu0 %v848
  %v850 = vand.u32 %v30, 4294901760
  %v851 = vsub.f32 %v30, %v850
  %852 = vmatprep.subr.mxu0 %v851
  %v853 = vand.u32 %v29, 4294901760
  %v854 = vsub.f32 %v29, %v853
  %855 = vmatpush1.msra.mxu0 %v854
  %v856 = vand.u32 %v26, 4294901760
  %v857 = vsub.f32 %v26, %v856
  %858 = vmatprep.subr.mxu0 %v857
  %v859 = vand.u32 %v25, 4294901760
  %v860 = vsub.f32 %v25, %v859
  %861 = vmatpush1.msra.mxu0 %v860
  %v862 = vand.u32 %v22, 4294901760
  %v863 = vsub.f32 %v22, %v862
  %864 = vmatprep.subr.mxu0 %v863
  %v865 = vand.u32 %v21, 4294901760
  %v866 = vsub.f32 %v21, %v865
  %867 = vmatpush1.msra.mxu0 %v866
  %v868 = vand.u32 %v18, 4294901760
  %v869 = vsub.f32 %v18, %v868
  %870 = vmatprep.subr.mxu0 %v869
  %v871 = vand.u32 %v17, 4294901760
  %v872 = vsub.f32 %v17, %v871
  %873 = vmatpush1.msra.mxu0 %v872
  %874 = vmatprep.subr.mxu0 0.0
  %875 = vmatpush2.msra.mxu0 0.0
  %876 = vmatprep.subr.mxu0 0.0
  %877 = vmatpush2.msra.mxu0 0.0
  %878 = vmatprep.subr.mxu0 0.0
  %879 = vmatpush2.msra.mxu0 0.0
  %880 = vmatprep.subr.mxu0 0.0
  %881 = vmatpush2.msra.mxu0 0.0
  %882 = vmatprep.subr.mxu0 0.0
  %883 = vmatpush2.msra.mxu0 0.0
  %884 = vmatprep.subr.mxu0 0.0
  %885 = vmatpush2.msra.mxu0 0.0
  %886 = vmatprep.subr.mxu0 0.0
  %887 = vmatpush2.msra.mxu0 0.0
  %888 = vmatprep.subr.mxu0 0.0
  %889 = vmatpush2.msra.mxu0 0.0
  %890 = vmatprep.subr.mxu0 0.0
  %891 = vmatpush2.msra.mxu0 0.0
  %892 = vmatprep.subr.mxu0 0.0
  %893 = vmatpush2.msra.mxu0 0.0
  %894 = vmatprep.subr.mxu0 0.0
  %895 = vmatpush2.msra.mxu0 0.0
  %896 = vmatprep.subr.mxu0 0.0
  %897 = vmatpush2.msra.mxu0 0.0
  %898 = vmatprep.subr.mxu0 0.0
  %899 = vmatpush2.msra.mxu0 0.0
  %900 = vmatprep.subr.mxu0 0.0
  %901 = vmatpush2.msra.mxu0 0.0
  %902 = vmatprep.subr.mxu0 0.0
  %903 = vmatpush2.msra.mxu0 0.0
  %904 = vmatprep.subr.mxu0 0.0
  %905 = vmatpush2.msra.mxu0 0.0
  %906 = vmatprep.mubr.f32.mxu0 0.0
  %v907 = vand.u32 %v43, 4294901760
  %v908 = vsub.f32 %v43, %v907
  %909 = vmatmul.mubr.f32.gmra.mxu0 %v908
  %v910 = vpop.f32.mrf.mxu0
  %v911 = vadd.f32 %v818, %v910
  %v912 = vpop.f32.mrf.mxu0
  %v913 = vadd.f32 %v820, %v912
  %914 = vdwg.mxu0
  %915 = vmatprep.subr.mxu0 0.0
  %916 = vmatpush1.msra.mxu0 0.0
  %917 = vmatprep.subr.mxu0 0.0
  %918 = vmatpush1.msra.mxu0 0.0
  %919 = vmatprep.subr.mxu0 0.0
  %920 = vmatpush1.msra.mxu0 0.0
  %921 = vmatprep.subr.mxu0 0.0
  %922 = vmatpush1.msra.mxu0 0.0
  %923 = vmatprep.subr.mxu0 0.0
  %924 = vmatpush1.msra.mxu0 0.0
  %925 = vmatprep.subr.mxu0 0.0
  %926 = vmatpush1.msra.mxu0 0.0
  %927 = vmatprep.subr.mxu0 0.0
  %928 = vmatpush1.msra.mxu0 0.0
  %929 = vmatprep.subr.mxu0 0.0
  %930 = vmatpush1.msra.mxu0 0.0
  %931 = vmatprep.subr.mxu0 0.0
  %932 = vmatpush1.msra.mxu0 0.0
  %933 = vmatprep.subr.mxu0 0.0
  %934 = vmatpush1.msra.mxu0 0.0
  %935 = vmatprep.subr.mxu0 0.0
  %936 = vmatpush1.msra.mxu0 0.0
  %v937 = vand.u32 %v34, 4294901760
  %938 = vmatprep.subr.mxu0 %v937
  %v939 = vand.u32 %v33, 4294901760
  %940 = vmatpush1.msra.mxu0 %v939
  %v941 = vand.u32 %v30, 4294901760
  %942 = vmatprep.subr.mxu0 %v941
  %v943 = vand.u32 %v29, 4294901760
  %944 = vmatpush1.msra.mxu0 %v943
  %v945 = vand.u32 %v26, 4294901760
  %946 = vmatprep.subr.mxu0 %v945
  %v947 = vand.u32 %v25, 4294901760
  %948 = vmatpush1.msra.mxu0 %v947
  %v949 = vand.u32 %v22, 4294901760
  %950 = vmatprep.subr.mxu0 %v949
  %v951 = vand.u32 %v21, 4294901760
  %952 = vmatpush1.msra.mxu0 %v951
  %v953 = vand.u32 %v18, 4294901760
  %954 = vmatprep.subr.mxu0 %v953
  %v955 = vand.u32 %v17, 4294901760
  %956 = vmatpush1.msra.mxu0 %v955
  %957 = vmatprep.subr.mxu0 0.0
  %958 = vmatpush2.msra.mxu0 0.0
  %959 = vmatprep.subr.mxu0 0.0
  %960 = vmatpush2.msra.mxu0 0.0
  %961 = vmatprep.subr.mxu0 0.0
  %962 = vmatpush2.msra.mxu0 0.0
  %963 = vmatprep.subr.mxu0 0.0
  %964 = vmatpush2.msra.mxu0 0.0
  %965 = vmatprep.subr.mxu0 0.0
  %966 = vmatpush2.msra.mxu0 0.0
  %967 = vmatprep.subr.mxu0 0.0
  %968 = vmatpush2.msra.mxu0 0.0
  %969 = vmatprep.subr.mxu0 0.0
  %970 = vmatpush2.msra.mxu0 0.0
  %971 = vmatprep.subr.mxu0 0.0
  %972 = vmatpush2.msra.mxu0 0.0
  %973 = vmatprep.subr.mxu0 0.0
  %974 = vmatpush2.msra.mxu0 0.0
  %975 = vmatprep.subr.mxu0 0.0
  %976 = vmatpush2.msra.mxu0 0.0
  %977 = vmatprep.subr.mxu0 0.0
  %978 = vmatpush2.msra.mxu0 0.0
  %979 = vmatprep.subr.mxu0 0.0
  %980 = vmatpush2.msra.mxu0 0.0
  %981 = vmatprep.subr.mxu0 0.0
  %982 = vmatpush2.msra.mxu0 0.0
  %983 = vmatprep.subr.mxu0 0.0
  %984 = vmatpush2.msra.mxu0 0.0
  %985 = vmatprep.subr.mxu0 0.0
  %986 = vmatpush2.msra.mxu0 0.0
  %987 = vmatprep.subr.mxu0 0.0
  %988 = vmatpush2.msra.mxu0 0.0
  %989 = vmatprep.mubr.f32.mxu0 0.0
  %v990 = vand.u32 %v43, 4294901760
  %v991 = vsub.f32 %v43, %v990
  %v992 = vand.u32 %v991, 4294901760
  %993 = vmatmul.mubr.f32.gmra.mxu0 %v992
  %v994 = vpop.f32.mrf.mxu0
  %v995 = vadd.f32 %v911, %v994
  %v996 = vpop.f32.mrf.mxu0
  %v997 = vadd.f32 %v913, %v996
  %998 = vdwg.mxu0
  %999 = vmatprep.subr.mxu0 0.0
  %1000 = vmatpush1.msra.mxu0 0.0
  %1001 = vmatprep.subr.mxu0 0.0
  %1002 = vmatpush1.msra.mxu0 0.0
  %1003 = vmatprep.subr.mxu0 0.0
  %1004 = vmatpush1.msra.mxu0 0.0
  %1005 = vmatprep.subr.mxu0 0.0
  %1006 = vmatpush1.msra.mxu0 0.0
  %1007 = vmatprep.subr.mxu0 0.0
  %1008 = vmatpush1.msra.mxu0 0.0
  %1009 = vmatprep.subr.mxu0 0.0
  %1010 = vmatpush1.msra.mxu0 0.0
  %1011 = vmatprep.subr.mxu0 0.0
  %1012 = vmatpush1.msra.mxu0 0.0
  %1013 = vmatprep.subr.mxu0 0.0
  %1014 = vmatpush1.msra.mxu0 0.0
  %1015 = vmatprep.subr.mxu0 0.0
  %1016 = vmatpush1.msra.mxu0 0.0
  %1017 = vmatprep.subr.mxu0 0.0
  %1018 = vmatpush1.msra.mxu0 0.0
  %1019 = vmatprep.subr.mxu0 0.0
  %1020 = vmatpush1.msra.mxu0 0.0
  %v1021 = vand.u32 %v34, 4294901760
  %v1022 = vsub.f32 %v34, %v1021
  %v1023 = vand.u32 %v1022, 4294901760
  %1024 = vmatprep.subr.mxu0 %v1023
  %v1025 = vand.u32 %v33, 4294901760
  %v1026 = vsub.f32 %v33, %v1025
  %v1027 = vand.u32 %v1026, 4294901760
  %1028 = vmatpush1.msra.mxu0 %v1027
  %v1029 = vand.u32 %v30, 4294901760
  %v1030 = vsub.f32 %v30, %v1029
  %v1031 = vand.u32 %v1030, 4294901760
  %1032 = vmatprep.subr.mxu0 %v1031
  %v1033 = vand.u32 %v29, 4294901760
  %v1034 = vsub.f32 %v29, %v1033
  %v1035 = vand.u32 %v1034, 4294901760
  %1036 = vmatpush1.msra.mxu0 %v1035
  %v1037 = vand.u32 %v26, 4294901760
  %v1038 = vsub.f32 %v26, %v1037
  %v1039 = vand.u32 %v1038, 4294901760
  %1040 = vmatprep.subr.mxu0 %v1039
  %v1041 = vand.u32 %v25, 4294901760
  %v1042 = vsub.f32 %v25, %v1041
  %v1043 = vand.u32 %v1042, 4294901760
  %1044 = vmatpush1.msra.mxu0 %v1043
  %v1045 = vand.u32 %v22, 4294901760
  %v1046 = vsub.f32 %v22, %v1045
  %v1047 = vand.u32 %v1046, 4294901760
  %1048 = vmatprep.subr.mxu0 %v1047
  %v1049 = vand.u32 %v21, 4294901760
  %v1050 = vsub.f32 %v21, %v1049
  %v1051 = vand.u32 %v1050, 4294901760
  %1052 = vmatpush1.msra.mxu0 %v1051
  %v1053 = vand.u32 %v18, 4294901760
  %v1054 = vsub.f32 %v18, %v1053
  %v1055 = vand.u32 %v1054, 4294901760
  %1056 = vmatprep.subr.mxu0 %v1055
  %v1057 = vand.u32 %v17, 4294901760
  %v1058 = vsub.f32 %v17, %v1057
  %v1059 = vand.u32 %v1058, 4294901760
  %1060 = vmatpush1.msra.mxu0 %v1059
  %1061 = vmatprep.subr.mxu0 0.0
  %1062 = vmatpush2.msra.mxu0 0.0
  %1063 = vmatprep.subr.mxu0 0.0
  %1064 = vmatpush2.msra.mxu0 0.0
  %1065 = vmatprep.subr.mxu0 0.0
  %1066 = vmatpush2.msra.mxu0 0.0
  %1067 = vmatprep.subr.mxu0 0.0
  %1068 = vmatpush2.msra.mxu0 0.0
  %1069 = vmatprep.subr.mxu0 0.0
  %1070 = vmatpush2.msra.mxu0 0.0
  %1071 = vmatprep.subr.mxu0 0.0
  %1072 = vmatpush2.msra.mxu0 0.0
  %1073 = vmatprep.subr.mxu0 0.0
  %1074 = vmatpush2.msra.mxu0 0.0
  %1075 = vmatprep.subr.mxu0 0.0
  %1076 = vmatpush2.msra.mxu0 0.0
  %1077 = vmatprep.subr.mxu0 0.0
  %1078 = vmatpush2.msra.mxu0 0.0
  %1079 = vmatprep.subr.mxu0 0.0
  %1080 = vmatpush2.msra.mxu0 0.0
  %1081 = vmatprep.subr.mxu0 0.0
  %1082 = vmatpush2.msra.mxu0 0.0
  %1083 = vmatprep.subr.mxu0 0.0
  %1084 = vmatpush2.msra.mxu0 0.0
  %1085 = vmatprep.subr.mxu0 0.0
  %1086 = vmatpush2.msra.mxu0 0.0
  %1087 = vmatprep.subr.mxu0 0.0
  %1088 = vmatpush2.msra.mxu0 0.0
  %1089 = vmatprep.subr.mxu0 0.0
  %1090 = vmatpush2.msra.mxu0 0.0
  %1091 = vmatprep.subr.mxu0 0.0
  %1092 = vmatpush2.msra.mxu0 0.0
  %1093 = vmatprep.mubr.f32.mxu0 0.0
  %v1094 = vand.u32 %v43, 4294901760
  %1095 = vmatmul.mubr.f32.gmra.mxu0 %v1094
  %v1096 = vpop.f32.mrf.mxu0
  %v1097 = vadd.f32 %v995, %v1096
  %v1098 = vpop.f32.mrf.mxu0
  %v1099 = vadd.f32 %v997, %v1098
  %1100 = vdwg.mxu0
  %1101 = vmatprep.subr.mxu0 0.0
  %1102 = vmatpush1.msra.mxu0 0.0
  %1103 = vmatprep.subr.mxu0 0.0
  %1104 = vmatpush1.msra.mxu0 0.0
  %1105 = vmatprep.subr.mxu0 0.0
  %1106 = vmatpush1.msra.mxu0 0.0
  %1107 = vmatprep.subr.mxu0 0.0
  %1108 = vmatpush1.msra.mxu0 0.0
  %1109 = vmatprep.subr.mxu0 0.0
  %1110 = vmatpush1.msra.mxu0 0.0
  %1111 = vmatprep.subr.mxu0 0.0
  %1112 = vmatpush1.msra.mxu0 0.0
  %1113 = vmatprep.subr.mxu0 0.0
  %1114 = vmatpush1.msra.mxu0 0.0
  %1115 = vmatprep.subr.mxu0 0.0
  %1116 = vmatpush1.msra.mxu0 0.0
  %1117 = vmatprep.subr.mxu0 0.0
  %1118 = vmatpush1.msra.mxu0 0.0
  %1119 = vmatprep.subr.mxu0 0.0
  %1120 = vmatpush1.msra.mxu0 0.0
  %1121 = vmatprep.subr.mxu0 0.0
  %1122 = vmatpush1.msra.mxu0 0.0
  %v1123 = vand.u32 %v34, 4294901760
  %1124 = vmatprep.subr.mxu0 %v1123
  %v1125 = vand.u32 %v33, 4294901760
  %1126 = vmatpush1.msra.mxu0 %v1125
  %v1127 = vand.u32 %v30, 4294901760
  %1128 = vmatprep.subr.mxu0 %v1127
  %v1129 = vand.u32 %v29, 4294901760
  %1130 = vmatpush1.msra.mxu0 %v1129
  %v1131 = vand.u32 %v26, 4294901760
  %1132 = vmatprep.subr.mxu0 %v1131
  %v1133 = vand.u32 %v25, 4294901760
  %1134 = vmatpush1.msra.mxu0 %v1133
  %v1135 = vand.u32 %v22, 4294901760
  %1136 = vmatprep.subr.mxu0 %v1135
  %v1137 = vand.u32 %v21, 4294901760
  %1138 = vmatpush1.msra.mxu0 %v1137
  %v1139 = vand.u32 %v18, 4294901760
  %1140 = vmatprep.subr.mxu0 %v1139
  %v1141 = vand.u32 %v17, 4294901760
  %1142 = vmatpush1.msra.mxu0 %v1141
  %1143 = vmatprep.subr.mxu0 0.0
  %1144 = vmatpush2.msra.mxu0 0.0
  %1145 = vmatprep.subr.mxu0 0.0
  %1146 = vmatpush2.msra.mxu0 0.0
  %1147 = vmatprep.subr.mxu0 0.0
  %1148 = vmatpush2.msra.mxu0 0.0
  %1149 = vmatprep.subr.mxu0 0.0
  %1150 = vmatpush2.msra.mxu0 0.0
  %1151 = vmatprep.subr.mxu0 0.0
  %1152 = vmatpush2.msra.mxu0 0.0
  %1153 = vmatprep.subr.mxu0 0.0
  %1154 = vmatpush2.msra.mxu0 0.0
  %1155 = vmatprep.subr.mxu0 0.0
  %1156 = vmatpush2.msra.mxu0 0.0
  %1157 = vmatprep.subr.mxu0 0.0
  %1158 = vmatpush2.msra.mxu0 0.0
  %1159 = vmatprep.subr.mxu0 0.0
  %1160 = vmatpush2.msra.mxu0 0.0
  %1161 = vmatprep.subr.mxu0 0.0
  %1162 = vmatpush2.msra.mxu0 0.0
  %1163 = vmatprep.subr.mxu0 0.0
  %1164 = vmatpush2.msra.mxu0 0.0
  %1165 = vmatprep.subr.mxu0 0.0
  %1166 = vmatpush2.msra.mxu0 0.0
  %1167 = vmatprep.subr.mxu0 0.0
  %1168 = vmatpush2.msra.mxu0 0.0
  %1169 = vmatprep.subr.mxu0 0.0
  %1170 = vmatpush2.msra.mxu0 0.0
  %1171 = vmatprep.subr.mxu0 0.0
  %1172 = vmatpush2.msra.mxu0 0.0
  %1173 = vmatprep.subr.mxu0 0.0
  %1174 = vmatpush2.msra.mxu0 0.0
  %1175 = vmatprep.mubr.f32.mxu0 0.0
  %v1176 = vand.u32 %v43, 4294901760
  %1177 = vmatmul.mubr.f32.gmra.mxu0 %v1176
  %v1178 = vpop.f32.mrf.mxu0
  %v1179 = vadd.f32 %v1097, %v1178
  %v1180 = vpop.f32.mrf.mxu0
  %v1181 = vadd.f32 %v1099, %v1180
  %1182 = vdwg.mxu0
  %1183 = vst [vmem:[%s3] sm:$0xff] %v610
  %1184 = vst [vmem:[%s3 + $0x8] sm:$0xff] %v612
  %1185 = vst [vmem:[%s3 + $0x10] sm:$0xff] %v1179
  %1186 = vst [vmem:[%s3 + $0x18] sm:$0xff] %v1181
  // Predicated region
  $region14: #{basic_rfb_a_forward.25} parent=0 // pred_check
    _
  $region15: #{basic_rfb_a_forward.25} parent=0 // pred_check_branch
    %1188 = sbr.rel (0) target = $region17
  $region16: #{basic_rfb_a_forward.25} parent=0 // pred_region
    _
  $region17: #{basic_rfb_a_forward.25} parent=0 // pred_fallthru
    _
  // Predicated region
  $region18: #{basic_rfb_a_forward.25} parent=0 // pred_check
    _
  $region19: #{basic_rfb_a_forward.25} parent=0 // pred_check_branch
    %1190 = sbr.rel (0) target = $region21
  $region20: #{basic_rfb_a_forward.25} parent=0 // pred_region
    _
  $region21: #{basic_rfb_a_forward.25} parent=0 // pred_fallthru
    _

// kernel: basic_rfb_a_forward.26
$region0: #{basic_rfb_a_forward.26}
  #allocation0 [shape = 'u32[]', space=smem, size = 0x4, offset = 0x4, fixed_abs, tag = 'smem constant byte address 0x4 - core index']
  #allocation1 [shape = 'u32[144,128]{1,0:T(1,128)}', space=vmem, size = 0x12000, scoped, tag = 'internal scratch']
  %s0 = inlined_call_operand.vmem [shape: f32[16,144], index: 0, kind: input, shape index: {}]
  %s1 = inlined_call_operand.vmem [shape: f32[16,1], index: 1, kind: input, shape index: {}]
  %s2 = inlined_call_operand.vmem [shape: f32[144,512], index: 2, kind: input, shape index: {}]
  %s3 = inlined_call_operand.vmem [shape: f32[16,512], index: 3, kind: output, shape index: {}]
  %s4 = sld [smem:[#allocation0]]
  $region22: #{basic_rfb_a_forward.26} parent=0
    _
  %s6 = ssub.s32 1, %s4
  %s7 = scalar_select 0, %s6, %s4
  // Predicated region
  $region2: #{basic_rfb_a_forward.26} parent=0 // pred_check
    _
  $region3: #{basic_rfb_a_forward.26} parent=0 // pred_check_branch
    %9 = sbr.rel (0) target = $region5
  $region4: #{basic_rfb_a_forward.26} parent=0 // pred_region
    _
  $region5: #{basic_rfb_a_forward.26} parent=0 // pred_fallthru
    _
  // Predicated region
  $region6: #{basic_rfb_a_forward.26} parent=0 // pred_check
    _
  $region7: #{basic_rfb_a_forward.26} parent=0 // pred_check_branch
    %11 = sbr.rel (0) target = $region9
  $region8: #{basic_rfb_a_forward.26} parent=0 // pred_region
    _
  $region9: #{basic_rfb_a_forward.26} parent=0 // pred_fallthru
    _
  // Predicated region
  $region10: #{basic_rfb_a_forward.26} parent=0 // pred_check
    _
  $region11: #{basic_rfb_a_forward.26} parent=0 // pred_check_branch
    %13 = sbr.rel (0) target = $region13
  $region12: #{basic_rfb_a_forward.26} parent=0 // pred_region
    _
  $region13: #{basic_rfb_a_forward.26} parent=0 // pred_fallthru
    _
  %v14 = vld [vmem:[%s0] sm:$0xff]
  %v15 = vld [vmem:[%s0 + $0x8] sm:$0xff]
  %v16 = vld [vmem:[%s0 + $0x10] sm:$0xff]
  %v17 = vld [vmem:[%s0 + $0x18] sm:$0xff]
  %v18 = vld [vmem:[%s2] sm:$0xff]
  %v19 = vld [vmem:[%s2 + $0x8] sm:$0xff]
  %v20 = vld [vmem:[%s2 + $0x10] sm:$0xff]
  %v21 = vld [vmem:[%s2 + $0x18] sm:$0xff]
  %v22 = vld [vmem:[%s2 + $0x20] sm:$0xff]
  %v23 = vld [vmem:[%s2 + $0x28] sm:$0xff]
  %v24 = vld [vmem:[%s2 + $0x30] sm:$0xff]
  %v25 = vld [vmem:[%s2 + $0x38] sm:$0xff]
  %v26 = vld [vmem:[%s2 + $0x40] sm:$0xff]
  %v27 = vld [vmem:[%s2 + $0x48] sm:$0xff]
  %v28 = vld [vmem:[%s2 + $0x50] sm:$0xff]
  %v29 = vld [vmem:[%s2 + $0x58] sm:$0xff]
  %v30 = vld [vmem:[%s2 + $0x60] sm:$0xff]
  %v31 = vld [vmem:[%s2 + $0x68] sm:$0xff]
  %v32 = vld [vmem:[%s2 + $0x70] sm:$0xff]
  %v33 = vld [vmem:[%s2 + $0x78] sm:$0xff]
  %v34 = vld [vmem:[%s2 + $0x80] sm:$0xff]
  %v35 = vld [vmem:[%s2 + $0x88] sm:$0xff]
  %v36 = vld [vmem:[%s2 + $0x90] sm:$0xff]
  %v37 = vld [vmem:[%s2 + $0x98] sm:$0xff]
  %v38 = vld [vmem:[%s2 + $0xa0] sm:$0xff]
  %v39 = vld [vmem:[%s2 + $0xa8] sm:$0xff]
  %v40 = vld [vmem:[%s2 + $0xb0] sm:$0xff]
  %v41 = vld [vmem:[%s2 + $0xb8] sm:$0xff]
  %v42 = vld [vmem:[%s2 + $0xc0] sm:$0xff]
  %v43 = vld [vmem:[%s2 + $0xc8] sm:$0xff]
  %v44 = vld [vmem:[%s2 + $0xd0] sm:$0xff]
  %v45 = vld [vmem:[%s2 + $0xd8] sm:$0xff]
  %v46 = vld [vmem:[%s2 + $0xe0] sm:$0xff]
  %v47 = vld [vmem:[%s2 + $0xe8] sm:$0xff]
  %v48 = vld [vmem:[%s2 + $0xf0] sm:$0xff]
  %v49 = vld [vmem:[%s2 + $0xf8] sm:$0xff]
  %v50 = vld [vmem:[%s2 + $0x100] sm:$0xff]
  %v51 = vld [vmem:[%s2 + $0x108] sm:$0xff]
  %v52 = vld [vmem:[%s2 + $0x110] sm:$0xff]
  %v53 = vld [vmem:[%s2 + $0x118] sm:$0xff]
  %v54 = vld [vmem:[%s2 + $0x120] sm:$0xff]
  %v55 = vld [vmem:[%s2 + $0x128] sm:$0xff]
  %v56 = vld [vmem:[%s2 + $0x130] sm:$0xff]
  %v57 = vld [vmem:[%s2 + $0x138] sm:$0xff]
  %v58 = vld [vmem:[%s2 + $0x140] sm:$0xff]
  %v59 = vld [vmem:[%s2 + $0x148] sm:$0xff]
  %v60 = vld [vmem:[%s2 + $0x150] sm:$0xff]
  %v61 = vld [vmem:[%s2 + $0x158] sm:$0xff]
  %v62 = vld [vmem:[%s2 + $0x160] sm:$0xff]
  %v63 = vld [vmem:[%s2 + $0x168] sm:$0xff]
  %v64 = vld [vmem:[%s2 + $0x170] sm:$0xff]
  %v65 = vld [vmem:[%s2 + $0x178] sm:$0xff]
  %v66 = vld [vmem:[%s2 + $0x180] sm:$0xff]
  %v67 = vld [vmem:[%s2 + $0x188] sm:$0xff]
  %v68 = vld [vmem:[%s2 + $0x190] sm:$0xff]
  %v69 = vld [vmem:[%s2 + $0x198] sm:$0xff]
  %v70 = vld [vmem:[%s2 + $0x1a0] sm:$0xff]
  %v71 = vld [vmem:[%s2 + $0x1a8] sm:$0xff]
  %v72 = vld [vmem:[%s2 + $0x1b0] sm:$0xff]
  %v73 = vld [vmem:[%s2 + $0x1b8] sm:$0xff]
  %v74 = vld [vmem:[%s2 + $0x1c0] sm:$0xff]
  %v75 = vld [vmem:[%s2 + $0x1c8] sm:$0xff]
  %v76 = vld [vmem:[%s2 + $0x1d0] sm:$0xff]
  %v77 = vld [vmem:[%s2 + $0x1d8] sm:$0xff]
  %v78 = vld [vmem:[%s2 + $0x1e0] sm:$0xff]
  %v79 = vld [vmem:[%s2 + $0x1e8] sm:$0xff]
  %v80 = vld [vmem:[%s2 + $0x1f0] sm:$0xff]
  %v81 = vld [vmem:[%s2 + $0x1f8] sm:$0xff]
  %v82 = vld [vmem:[%s2 + $0x200] sm:$0xff]
  %v83 = vld [vmem:[%s2 + $0x208] sm:$0xff]
  %v84 = vld [vmem:[%s2 + $0x210] sm:$0xff]
  %v85 = vld [vmem:[%s2 + $0x218] sm:$0xff]
  %v86 = vld [vmem:[%s2 + $0x220] sm:$0xff]
  %v87 = vld [vmem:[%s2 + $0x228] sm:$0xff]
  %v88 = vld [vmem:[%s2 + $0x230] sm:$0xff]
  %v89 = vld [vmem:[%s2 + $0x238] sm:$0xff]
  %v90 = vld [vmem:[%s1] sm:$0xff]
  %v91 = vld [vmem:[%s1 + $0x8] sm:$0xff]
  %93 = vset.pattern.permute.xlu0 0
  %94 = vperm.xlu0 %93, %v90
  %v95 = vpop.permute.xlu0 %94
  %98 = vset.pattern.permute.xlu0 0
  %99 = vperm.xlu0 %98, %v91
  %v100 = vpop.permute.xlu0 %99
  %vm102 = vcmask 130048
  %v104 = vsel %vm102, %v15, 0
  %v107 = vsel %vm102, %v17, 0
  %v109 = vand.u32 %v79, 4294901760
  %110 = vmatprep.subr.mxu0 %v109
  %v111 = vand.u32 %v78, 4294901760
  %112 = vmatpush1.msra.mxu0 %v111
  %v113 = vand.u32 %v75, 4294901760
  %114 = vmatprep.subr.mxu0 %v113
  %v115 = vand.u32 %v74, 4294901760
  %116 = vmatpush1.msra.mxu0 %v115
  %v117 = vand.u32 %v71, 4294901760
  %118 = vmatprep.subr.mxu0 %v117
  %v119 = vand.u32 %v70, 4294901760
  %120 = vmatpush1.msra.mxu0 %v119
  %v121 = vand.u32 %v67, 4294901760
  %122 = vmatprep.subr.mxu0 %v121
  %v123 = vand.u32 %v66, 4294901760
  %124 = vmatpush1.msra.mxu0 %v123
  %v125 = vand.u32 %v63, 4294901760
  %126 = vmatprep.subr.mxu0 %v125
  %v127 = vand.u32 %v62, 4294901760
  %128 = vmatpush1.msra.mxu0 %v127
  %v129 = vand.u32 %v59, 4294901760
  %130 = vmatprep.subr.mxu0 %v129
  %v131 = vand.u32 %v58, 4294901760
  %132 = vmatpush1.msra.mxu0 %v131
  %v133 = vand.u32 %v55, 4294901760
  %134 = vmatprep.subr.mxu0 %v133
  %v135 = vand.u32 %v54, 4294901760
  %136 = vmatpush1.msra.mxu0 %v135
  %v137 = vand.u32 %v51, 4294901760
  %138 = vmatprep.subr.mxu0 %v137
  %v139 = vand.u32 %v50, 4294901760
  %140 = vmatpush1.msra.mxu0 %v139
  %v141 = vand.u32 %v47, 4294901760
  %142 = vmatprep.subr.mxu0 %v141
  %v143 = vand.u32 %v46, 4294901760
  %144 = vmatpush1.msra.mxu0 %v143
  %v145 = vand.u32 %v43, 4294901760
  %146 = vmatprep.subr.mxu0 %v145
  %v147 = vand.u32 %v42, 4294901760
  %148 = vmatpush1.msra.mxu0 %v147
  %v149 = vand.u32 %v39, 4294901760
  %150 = vmatprep.subr.mxu0 %v149
  %v151 = vand.u32 %v38, 4294901760
  %152 = vmatpush1.msra.mxu0 %v151
  %v153 = vand.u32 %v35, 4294901760
  %154 = vmatprep.subr.mxu0 %v153
  %v155 = vand.u32 %v34, 4294901760
  %156 = vmatpush1.msra.mxu0 %v155
  %v157 = vand.u32 %v31, 4294901760
  %158 = vmatprep.subr.mxu0 %v157
  %v159 = vand.u32 %v30, 4294901760
  %160 = vmatpush1.msra.mxu0 %v159
  %v161 = vand.u32 %v27, 4294901760
  %162 = vmatprep.subr.mxu0 %v161
  %v163 = vand.u32 %v26, 4294901760
  %164 = vmatpush1.msra.mxu0 %v163
  %v165 = vand.u32 %v23, 4294901760
  %166 = vmatprep.subr.mxu0 %v165
  %v167 = vand.u32 %v22, 4294901760
  %168 = vmatpush1.msra.mxu0 %v167
  %v169 = vand.u32 %v19, 4294901760
  %170 = vmatprep.subr.mxu0 %v169
  %v171 = vand.u32 %v18, 4294901760
  %172 = vmatpush1.msra.mxu0 %v171
  %173 = vmatprep.subr.mxu0 0.0
  %174 = vmatpush2.msra.mxu0 0.0
  %175 = vmatprep.subr.mxu0 0.0
  %176 = vmatpush2.msra.mxu0 0.0
  %177 = vmatprep.subr.mxu0 0.0
  %178 = vmatpush2.msra.mxu0 0.0
  %179 = vmatprep.subr.mxu0 0.0
  %180 = vmatpush2.msra.mxu0 0.0
  %181 = vmatprep.subr.mxu0 0.0
  %182 = vmatpush2.msra.mxu0 0.0
  %183 = vmatprep.subr.mxu0 0.0
  %184 = vmatpush2.msra.mxu0 0.0
  %185 = vmatprep.subr.mxu0 0.0
  %186 = vmatpush2.msra.mxu0 0.0
  %187 = vmatprep.subr.mxu0 0.0
  %188 = vmatpush2.msra.mxu0 0.0
  %189 = vmatprep.subr.mxu0 0.0
  %190 = vmatpush2.msra.mxu0 0.0
  %191 = vmatprep.subr.mxu0 0.0
  %192 = vmatpush2.msra.mxu0 0.0
  %193 = vmatprep.subr.mxu0 0.0
  %194 = vmatpush2.msra.mxu0 0.0
  %195 = vmatprep.subr.mxu0 0.0
  %196 = vmatpush2.msra.mxu0 0.0
  %197 = vmatprep.subr.mxu0 0.0
  %198 = vmatpush2.msra.mxu0 0.0
  %199 = vmatprep.subr.mxu0 0.0
  %200 = vmatpush2.msra.mxu0 0.0
  %v201 = vand.u32 %v87, 4294901760
  %202 = vmatprep.subr.mxu0 %v201
  %v203 = vand.u32 %v86, 4294901760
  %204 = vmatpush2.msra.mxu0 %v203
  %v205 = vand.u32 %v83, 4294901760
  %206 = vmatprep.subr.mxu0 %v205
  %v207 = vand.u32 %v82, 4294901760
  %208 = vmatpush2.msra.mxu0 %v207
  %v209 = vand.u32 %v104, 4294901760
  %v210 = vsub.f32 %v104, %v209
  %v211 = vand.u32 %v210, 4294901760
  %v212 = vsub.f32 %v210, %v211
  %v213 = vand.u32 %v212, 4294901760
  %214 = vmatprep.mubr.f32.mxu0 %v213
  %v215 = vand.u32 %v14, 4294901760
  %v216 = vsub.f32 %v14, %v215
  %v217 = vand.u32 %v216, 4294901760
  %v218 = vsub.f32 %v216, %v217
  %v219 = vand.u32 %v218, 4294901760
  %220 = vmatmul.mubr.f32.gmra.mxu0 %v219
  %v221 = vpop.f32.mrf.mxu0
  %v222 = vadd.f32 %v95, %v221
  %v223 = vpop.f32.mrf.mxu0
  %v224 = vadd.f32 %v95, %v223
  %v225 = vand.u32 %v107, 4294901760
  %v226 = vsub.f32 %v107, %v225
  %v227 = vand.u32 %v226, 4294901760
  %v228 = vsub.f32 %v226, %v227
  %v229 = vand.u32 %v228, 4294901760
  %230 = vmatprep.mubr.f32.mxu0 %v229
  %v231 = vand.u32 %v16, 4294901760
  %v232 = vsub.f32 %v16, %v231
  %v233 = vand.u32 %v232, 4294901760
  %v234 = vsub.f32 %v232, %v233
  %v235 = vand.u32 %v234, 4294901760
  %236 = vmatmul.mubr.f32.gmra.mxu0 %v235
  %v237 = vpop.f32.mrf.mxu0
  %v238 = vadd.f32 %v100, %v237
  %v239 = vpop.f32.mrf.mxu0
  %v240 = vadd.f32 %v100, %v239
  %241 = vdwg.mxu0
  %v242 = vand.u32 %v79, 4294901760
  %v243 = vsub.f32 %v79, %v242
  %v244 = vand.u32 %v243, 4294901760
  %v245 = vsub.f32 %v243, %v244
  %v246 = vand.u32 %v245, 4294901760
  %247 = vmatprep.subr.mxu0 %v246
  %v248 = vand.u32 %v78, 4294901760
  %v249 = vsub.f32 %v78, %v248
  %v250 = vand.u32 %v249, 4294901760
  %v251 = vsub.f32 %v249, %v250
  %v252 = vand.u32 %v251, 4294901760
  %253 = vmatpush1.msra.mxu0 %v252
  %v254 = vand.u32 %v75, 4294901760
  %v255 = vsub.f32 %v75, %v254
  %v256 = vand.u32 %v255, 4294901760
  %v257 = vsub.f32 %v255, %v256
  %v258 = vand.u32 %v257, 4294901760
  %259 = vmatprep.subr.mxu0 %v258
  %v260 = vand.u32 %v74, 4294901760
  %v261 = vsub.f32 %v74, %v260
  %v262 = vand.u32 %v261, 4294901760
  %v263 = vsub.f32 %v261, %v262
  %v264 = vand.u32 %v263, 4294901760
  %265 = vmatpush1.msra.mxu0 %v264
  %v266 = vand.u32 %v71, 4294901760
  %v267 = vsub.f32 %v71, %v266
  %v268 = vand.u32 %v267, 4294901760
  %v269 = vsub.f32 %v267, %v268
  %v270 = vand.u32 %v269, 4294901760
  %271 = vmatprep.subr.mxu0 %v270
  %v272 = vand.u32 %v70, 4294901760
  %v273 = vsub.f32 %v70, %v272
  %v274 = vand.u32 %v273, 4294901760
  %v275 = vsub.f32 %v273, %v274
  %v276 = vand.u32 %v275, 4294901760
  %277 = vmatpush1.msra.mxu0 %v276
  %v278 = vand.u32 %v67, 4294901760
  %v279 = vsub.f32 %v67, %v278
  %v280 = vand.u32 %v279, 4294901760
  %v281 = vsub.f32 %v279, %v280
  %v282 = vand.u32 %v281, 4294901760
  %283 = vmatprep.subr.mxu0 %v282
  %v284 = vand.u32 %v66, 4294901760
  %v285 = vsub.f32 %v66, %v284
  %v286 = vand.u32 %v285, 4294901760
  %v287 = vsub.f32 %v285, %v286
  %v288 = vand.u32 %v287, 4294901760
  %289 = vmatpush1.msra.mxu0 %v288
  %v290 = vand.u32 %v63, 4294901760
  %v291 = vsub.f32 %v63, %v290
  %v292 = vand.u32 %v291, 4294901760
  %v293 = vsub.f32 %v291, %v292
  %v294 = vand.u32 %v293, 4294901760
  %295 = vmatprep.subr.mxu0 %v294
  %v296 = vand.u32 %v62, 4294901760
  %v297 = vsub.f32 %v62, %v296
  %v298 = vand.u32 %v297, 4294901760
  %v299 = vsub.f32 %v297, %v298
  %v300 = vand.u32 %v299, 4294901760
  %301 = vmatpush1.msra.mxu0 %v300
  %v302 = vand.u32 %v59, 4294901760
  %v303 = vsub.f32 %v59, %v302
  %v304 = vand.u32 %v303, 4294901760
  %v305 = vsub.f32 %v303, %v304
  %v306 = vand.u32 %v305, 4294901760
  %307 = vmatprep.subr.mxu0 %v306
  %v308 = vand.u32 %v58, 4294901760
  %v309 = vsub.f32 %v58, %v308
  %v310 = vand.u32 %v309, 4294901760
  %v311 = vsub.f32 %v309, %v310
  %v312 = vand.u32 %v311, 4294901760
  %313 = vmatpush1.msra.mxu0 %v312
  %v314 = vand.u32 %v55, 4294901760
  %v315 = vsub.f32 %v55, %v314
  %v316 = vand.u32 %v315, 4294901760
  %v317 = vsub.f32 %v315, %v316
  %v318 = vand.u32 %v317, 4294901760
  %319 = vmatprep.subr.mxu0 %v318
  %v320 = vand.u32 %v54, 4294901760
  %v321 = vsub.f32 %v54, %v320
  %v322 = vand.u32 %v321, 4294901760
  %v323 = vsub.f32 %v321, %v322
  %v324 = vand.u32 %v323, 4294901760
  %325 = vmatpush1.msra.mxu0 %v324
  %v326 = vand.u32 %v51, 4294901760
  %v327 = vsub.f32 %v51, %v326
  %v328 = vand.u32 %v327, 4294901760
  %v329 = vsub.f32 %v327, %v328
  %v330 = vand.u32 %v329, 4294901760
  %331 = vmatprep.subr.mxu0 %v330
  %v332 = vand.u32 %v50, 4294901760
  %v333 = vsub.f32 %v50, %v332
  %v334 = vand.u32 %v333, 4294901760
  %v335 = vsub.f32 %v333, %v334
  %v336 = vand.u32 %v335, 4294901760
  %337 = vmatpush1.msra.mxu0 %v336
  %v338 = vand.u32 %v47, 4294901760
  %v339 = vsub.f32 %v47, %v338
  %v340 = vand.u32 %v339, 4294901760
  %v341 = vsub.f32 %v339, %v340
  %v342 = vand.u32 %v341, 4294901760
  %343 = vmatprep.subr.mxu0 %v342
  %v344 = vand.u32 %v46, 4294901760
  %v345 = vsub.f32 %v46, %v344
  %v346 = vand.u32 %v345, 4294901760
  %v347 = vsub.f32 %v345, %v346
  %v348 = vand.u32 %v347, 4294901760
  %349 = vmatpush1.msra.mxu0 %v348
  %v350 = vand.u32 %v43, 4294901760
  %v351 = vsub.f32 %v43, %v350
  %v352 = vand.u32 %v351, 4294901760
  %v353 = vsub.f32 %v351, %v352
  %v354 = vand.u32 %v353, 4294901760
  %355 = vmatprep.subr.mxu0 %v354
  %v356 = vand.u32 %v42, 4294901760
  %v357 = vsub.f32 %v42, %v356
  %v358 = vand.u32 %v357, 4294901760
  %v359 = vsub.f32 %v357, %v358
  %v360 = vand.u32 %v359, 4294901760
  %361 = vmatpush1.msra.mxu0 %v360
  %v362 = vand.u32 %v39, 4294901760
  %v363 = vsub.f32 %v39, %v362
  %v364 = vand.u32 %v363, 4294901760
  %v365 = vsub.f32 %v363, %v364
  %v366 = vand.u32 %v365, 4294901760
  %367 = vmatprep.subr.mxu0 %v366
  %v368 = vand.u32 %v38, 4294901760
  %v369 = vsub.f32 %v38, %v368
  %v370 = vand.u32 %v369, 4294901760
  %v371 = vsub.f32 %v369, %v370
  %v372 = vand.u32 %v371, 4294901760
  %373 = vmatpush1.msra.mxu0 %v372
  %v374 = vand.u32 %v35, 4294901760
  %v375 = vsub.f32 %v35, %v374
  %v376 = vand.u32 %v375, 4294901760
  %v377 = vsub.f32 %v375, %v376
  %v378 = vand.u32 %v377, 4294901760
  %379 = vmatprep.subr.mxu0 %v378
  %v380 = vand.u32 %v34, 4294901760
  %v381 = vsub.f32 %v34, %v380
  %v382 = vand.u32 %v381, 4294901760
  %v383 = vsub.f32 %v381, %v382
  %v384 = vand.u32 %v383, 4294901760
  %385 = vmatpush1.msra.mxu0 %v384
  %v386 = vand.u32 %v31, 4294901760
  %v387 = vsub.f32 %v31, %v386
  %v388 = vand.u32 %v387, 4294901760
  %v389 = vsub.f32 %v387, %v388
  %v390 = vand.u32 %v389, 4294901760
  %391 = vmatprep.subr.mxu0 %v390
  %v392 = vand.u32 %v30, 4294901760
  %v393 = vsub.f32 %v30, %v392
  %v394 = vand.u32 %v393, 4294901760
  %v395 = vsub.f32 %v393, %v394
  %v396 = vand.u32 %v395, 4294901760
  %397 = vmatpush1.msra.mxu0 %v396
  %v398 = vand.u32 %v27, 4294901760
  %v399 = vsub.f32 %v27, %v398
  %v400 = vand.u32 %v399, 4294901760
  %v401 = vsub.f32 %v399, %v400
  %v402 = vand.u32 %v401, 4294901760
  %403 = vmatprep.subr.mxu0 %v402
  %v404 = vand.u32 %v26, 4294901760
  %v405 = vsub.f32 %v26, %v404
  %v406 = vand.u32 %v405, 4294901760
  %v407 = vsub.f32 %v405, %v406
  %v408 = vand.u32 %v407, 4294901760
  %409 = vmatpush1.msra.mxu0 %v408
  %v410 = vand.u32 %v23, 4294901760
  %v411 = vsub.f32 %v23, %v410
  %v412 = vand.u32 %v411, 4294901760
  %v413 = vsub.f32 %v411, %v412
  %v414 = vand.u32 %v413, 4294901760
  %415 = vmatprep.subr.mxu0 %v414
  %v416 = vand.u32 %v22, 4294901760
  %v417 = vsub.f32 %v22, %v416
  %v418 = vand.u32 %v417, 4294901760
  %v419 = vsub.f32 %v417, %v418
  %v420 = vand.u32 %v419, 4294901760
  %421 = vmatpush1.msra.mxu0 %v420
  %v422 = vand.u32 %v19, 4294901760
  %v423 = vsub.f32 %v19, %v422
  %v424 = vand.u32 %v423, 4294901760
  %v425 = vsub.f32 %v423, %v424
  %v426 = vand.u32 %v425, 4294901760
  %427 = vmatprep.subr.mxu0 %v426
  %v428 = vand.u32 %v18, 4294901760
  %v429 = vsub.f32 %v18, %v428
  %v430 = vand.u32 %v429, 4294901760
  %v431 = vsub.f32 %v429, %v430
  %v432 = vand.u32 %v431, 4294901760
  %433 = vmatpush1.msra.mxu0 %v432
  %434 = vmatprep.subr.mxu0 0.0
  %435 = vmatpush2.msra.mxu0 0.0
  %436 = vmatprep.subr.mxu0 0.0
  %437 = vmatpush2.msra.mxu0 0.0
  %438 = vmatprep.subr.mxu0 0.0
  %439 = vmatpush2.msra.mxu0 0.0
  %440 = vmatprep.subr.mxu0 0.0
  %441 = vmatpush2.msra.mxu0 0.0
  %442 = vmatprep.subr.mxu0 0.0
  %443 = vmatpush2.msra.mxu0 0.0
  %444 = vmatprep.subr.mxu0 0.0
  %445 = vmatpush2.msra.mxu0 0.0
  %446 = vmatprep.subr.mxu0 0.0
  %447 = vmatpush2.msra.mxu0 0.0
  %448 = vmatprep.subr.mxu0 0.0
  %449 = vmatpush2.msra.mxu0 0.0
  %450 = vmatprep.subr.mxu0 0.0
  %451 = vmatpush2.msra.mxu0 0.0
  %452 = vmatprep.subr.mxu0 0.0
  %453 = vmatpush2.msra.mxu0 0.0
  %454 = vmatprep.subr.mxu0 0.0
  %455 = vmatpush2.msra.mxu0 0.0
  %456 = vmatprep.subr.mxu0 0.0
  %457 = vmatpush2.msra.mxu0 0.0
  %458 = vmatprep.subr.mxu0 0.0
  %459 = vmatpush2.msra.mxu0 0.0
  %460 = vmatprep.subr.mxu0 0.0
  %461 = vmatpush2.msra.mxu0 0.0
  %v462 = vand.u32 %v87, 4294901760
  %v463 = vsub.f32 %v87, %v462
  %v464 = vand.u32 %v463, 4294901760
  %v465 = vsub.f32 %v463, %v464
  %v466 = vand.u32 %v465, 4294901760
  %467 = vmatprep.subr.mxu0 %v466
  %v468 = vand.u32 %v86, 4294901760
  %v469 = vsub.f32 %v86, %v468
  %v470 = vand.u32 %v469, 4294901760
  %v471 = vsub.f32 %v469, %v470
  %v472 = vand.u32 %v471, 4294901760
  %473 = vmatpush2.msra.mxu0 %v472
  %v474 = vand.u32 %v83, 4294901760
  %v475 = vsub.f32 %v83, %v474
  %v476 = vand.u32 %v475, 4294901760
  %v477 = vsub.f32 %v475, %v476
  %v478 = vand.u32 %v477, 4294901760
  %479 = vmatprep.subr.mxu0 %v478
  %v480 = vand.u32 %v82, 4294901760
  %v481 = vsub.f32 %v82, %v480
  %v482 = vand.u32 %v481, 4294901760
  %v483 = vsub.f32 %v481, %v482
  %v484 = vand.u32 %v483, 4294901760
  %485 = vmatpush2.msra.mxu0 %v484
  %v486 = vand.u32 %v104, 4294901760
  %487 = vmatprep.mubr.f32.mxu0 %v486
  %v488 = vand.u32 %v14, 4294901760
  %489 = vmatmul.mubr.f32.gmra.mxu0 %v488
  %v490 = vpop.f32.mrf.mxu0
  %v491 = vadd.f32 %v222, %v490
  %v492 = vpop.f32.mrf.mxu0
  %v493 = vadd.f32 %v224, %v492
  %v494 = vand.u32 %v107, 4294901760
  %495 = vmatprep.mubr.f32.mxu0 %v494
  %v496 = vand.u32 %v16, 4294901760
  %497 = vmatmul.mubr.f32.gmra.mxu0 %v496
  %v498 = vpop.f32.mrf.mxu0
  %v499 = vadd.f32 %v238, %v498
  %v500 = vpop.f32.mrf.mxu0
  %v501 = vadd.f32 %v240, %v500
  %502 = vdwg.mxu0
  %v503 = vand.u32 %v79, 4294901760
  %v504 = vsub.f32 %v79, %v503
  %505 = vmatprep.subr.mxu0 %v504
  %v506 = vand.u32 %v78, 4294901760
  %v507 = vsub.f32 %v78, %v506
  %508 = vmatpush1.msra.mxu0 %v507
  %v509 = vand.u32 %v75, 4294901760
  %v510 = vsub.f32 %v75, %v509
  %511 = vmatprep.subr.mxu0 %v510
  %v512 = vand.u32 %v74, 4294901760
  %v513 = vsub.f32 %v74, %v512
  %514 = vmatpush1.msra.mxu0 %v513
  %v515 = vand.u32 %v71, 4294901760
  %v516 = vsub.f32 %v71, %v515
  %517 = vmatprep.subr.mxu0 %v516
  %v518 = vand.u32 %v70, 4294901760
  %v519 = vsub.f32 %v70, %v518
  %520 = vmatpush1.msra.mxu0 %v519
  %v521 = vand.u32 %v67, 4294901760
  %v522 = vsub.f32 %v67, %v521
  %523 = vmatprep.subr.mxu0 %v522
  %v524 = vand.u32 %v66, 4294901760
  %v525 = vsub.f32 %v66, %v524
  %526 = vmatpush1.msra.mxu0 %v525
  %v527 = vand.u32 %v63, 4294901760
  %v528 = vsub.f32 %v63, %v527
  %529 = vmatprep.subr.mxu0 %v528
  %v530 = vand.u32 %v62, 4294901760
  %v531 = vsub.f32 %v62, %v530
  %532 = vmatpush1.msra.mxu0 %v531
  %v533 = vand.u32 %v59, 4294901760
  %v534 = vsub.f32 %v59, %v533
  %535 = vmatprep.subr.mxu0 %v534
  %v536 = vand.u32 %v58, 4294901760
  %v537 = vsub.f32 %v58, %v536
  %538 = vmatpush1.msra.mxu0 %v537
  %v539 = vand.u32 %v55, 4294901760
  %v540 = vsub.f32 %v55, %v539
  %541 = vmatprep.subr.mxu0 %v540
  %v542 = vand.u32 %v54, 4294901760
  %v543 = vsub.f32 %v54, %v542
  %544 = vmatpush1.msra.mxu0 %v543
  %v545 = vand.u32 %v51, 4294901760
  %v546 = vsub.f32 %v51, %v545
  %547 = vmatprep.subr.mxu0 %v546
  %v548 = vand.u32 %v50, 4294901760
  %v549 = vsub.f32 %v50, %v548
  %550 = vmatpush1.msra.mxu0 %v549
  %v551 = vand.u32 %v47, 4294901760
  %v552 = vsub.f32 %v47, %v551
  %553 = vmatprep.subr.mxu0 %v552
  %v554 = vand.u32 %v46, 4294901760
  %v555 = vsub.f32 %v46, %v554
  %556 = vmatpush1.msra.mxu0 %v555
  %v557 = vand.u32 %v43, 4294901760
  %v558 = vsub.f32 %v43, %v557
  %559 = vmatprep.subr.mxu0 %v558
  %v560 = vand.u32 %v42, 4294901760
  %v561 = vsub.f32 %v42, %v560
  %562 = vmatpush1.msra.mxu0 %v561
  %v563 = vand.u32 %v39, 4294901760
  %v564 = vsub.f32 %v39, %v563
  %565 = vmatprep.subr.mxu0 %v564
  %v566 = vand.u32 %v38, 4294901760
  %v567 = vsub.f32 %v38, %v566
  %568 = vmatpush1.msra.mxu0 %v567
  %v569 = vand.u32 %v35, 4294901760
  %v570 = vsub.f32 %v35, %v569
  %571 = vmatprep.subr.mxu0 %v570
  %v572 = vand.u32 %v34, 4294901760
  %v573 = vsub.f32 %v34, %v572
  %574 = vmatpush1.msra.mxu0 %v573
  %v575 = vand.u32 %v31, 4294901760
  %v576 = vsub.f32 %v31, %v575
  %577 = vmatprep.subr.mxu0 %v576
  %v578 = vand.u32 %v30, 4294901760
  %v579 = vsub.f32 %v30, %v578
  %580 = vmatpush1.msra.mxu0 %v579
  %v581 = vand.u32 %v27, 4294901760
  %v582 = vsub.f32 %v27, %v581
  %583 = vmatprep.subr.mxu0 %v582
  %v584 = vand.u32 %v26, 4294901760
  %v585 = vsub.f32 %v26, %v584
  %586 = vmatpush1.msra.mxu0 %v585
  %v587 = vand.u32 %v23, 4294901760
  %v588 = vsub.f32 %v23, %v587
  %589 = vmatprep.subr.mxu0 %v588
  %v590 = vand.u32 %v22, 4294901760
  %v591 = vsub.f32 %v22, %v590
  %592 = vmatpush1.msra.mxu0 %v591
  %v593 = vand.u32 %v19, 4294901760
  %v594 = vsub.f32 %v19, %v593
  %595 = vmatprep.subr.mxu0 %v594
  %v596 = vand.u32 %v18, 4294901760
  %v597 = vsub.f32 %v18, %v596
  %598 = vmatpush1.msra.mxu0 %v597
  %599 = vmatprep.subr.mxu0 0.0
  %600 = vmatpush2.msra.mxu0 0.0
  %601 = vmatprep.subr.mxu0 0.0
  %602 = vmatpush2.msra.mxu0 0.0
  %603 = vmatprep.subr.mxu0 0.0
  %604 = vmatpush2.msra.mxu0 0.0
  %605 = vmatprep.subr.mxu0 0.0
  %606 = vmatpush2.msra.mxu0 0.0
  %607 = vmatprep.subr.mxu0 0.0
  %608 = vmatpush2.msra.mxu0 0.0
  %609 = vmatprep.subr.mxu0 0.0
  %610 = vmatpush2.msra.mxu0 0.0
  %611 = vmatprep.subr.mxu0 0.0
  %612 = vmatpush2.msra.mxu0 0.0
  %613 = vmatprep.subr.mxu0 0.0
  %614 = vmatpush2.msra.mxu0 0.0
  %615 = vmatprep.subr.mxu0 0.0
  %616 = vmatpush2.msra.mxu0 0.0
  %617 = vmatprep.subr.mxu0 0.0
  %618 = vmatpush2.msra.mxu0 0.0
  %619 = vmatprep.subr.mxu0 0.0
  %620 = vmatpush2.msra.mxu0 0.0
  %621 = vmatprep.subr.mxu0 0.0
  %622 = vmatpush2.msra.mxu0 0.0
  %623 = vmatprep.subr.mxu0 0.0
  %624 = vmatpush2.msra.mxu0 0.0
  %625 = vmatprep.subr.mxu0 0.0
  %626 = vmatpush2.msra.mxu0 0.0
  %v627 = vand.u32 %v87, 4294901760
  %v628 = vsub.f32 %v87, %v627
  %629 = vmatprep.subr.mxu0 %v628
  %v630 = vand.u32 %v86, 4294901760
  %v631 = vsub.f32 %v86, %v630
  %632 = vmatpush2.msra.mxu0 %v631
  %v633 = vand.u32 %v83, 4294901760
  %v634 = vsub.f32 %v83, %v633
  %635 = vmatprep.subr.mxu0 %v634
  %v636 = vand.u32 %v82, 4294901760
  %v637 = vsub.f32 %v82, %v636
  %638 = vmatpush2.msra.mxu0 %v637
  %v639 = vand.u32 %v104, 4294901760
  %v640 = vsub.f32 %v104, %v639
  %641 = vmatprep.mubr.f32.mxu0 %v640
  %v642 = vand.u32 %v14, 4294901760
  %v643 = vsub.f32 %v14, %v642
  %644 = vmatmul.mubr.f32.gmra.mxu0 %v643
  %v645 = vpop.f32.mrf.mxu0
  %v646 = vadd.f32 %v491, %v645
  %v647 = vpop.f32.mrf.mxu0
  %v648 = vadd.f32 %v493, %v647
  %v649 = vand.u32 %v107, 4294901760
  %v650 = vsub.f32 %v107, %v649
  %651 = vmatprep.mubr.f32.mxu0 %v650
  %v652 = vand.u32 %v16, 4294901760
  %v653 = vsub.f32 %v16, %v652
  %654 = vmatmul.mubr.f32.gmra.mxu0 %v653
  %v655 = vpop.f32.mrf.mxu0
  %v656 = vadd.f32 %v499, %v655
  %v657 = vpop.f32.mrf.mxu0
  %v658 = vadd.f32 %v501, %v657
  %659 = vdwg.mxu0
  %v660 = vand.u32 %v79, 4294901760
  %661 = vmatprep.subr.mxu0 %v660
  %v662 = vand.u32 %v78, 4294901760
  %663 = vmatpush1.msra.mxu0 %v662
  %v664 = vand.u32 %v75, 4294901760
  %665 = vmatprep.subr.mxu0 %v664
  %v666 = vand.u32 %v74, 4294901760
  %667 = vmatpush1.msra.mxu0 %v666
  %v668 = vand.u32 %v71, 4294901760
  %669 = vmatprep.subr.mxu0 %v668
  %v670 = vand.u32 %v70, 4294901760
  %671 = vmatpush1.msra.mxu0 %v670
  %v672 = vand.u32 %v67, 4294901760
  %673 = vmatprep.subr.mxu0 %v672
  %v674 = vand.u32 %v66, 4294901760
  %675 = vmatpush1.msra.mxu0 %v674
  %v676 = vand.u32 %v63, 4294901760
  %677 = vmatprep.subr.mxu0 %v676
  %v678 = vand.u32 %v62, 4294901760
  %679 = vmatpush1.msra.mxu0 %v678
  %v680 = vand.u32 %v59, 4294901760
  %681 = vmatprep.subr.mxu0 %v680
  %v682 = vand.u32 %v58, 4294901760
  %683 = vmatpush1.msra.mxu0 %v682
  %v684 = vand.u32 %v55, 4294901760
  %685 = vmatprep.subr.mxu0 %v684
  %v686 = vand.u32 %v54, 4294901760
  %687 = vmatpush1.msra.mxu0 %v686
  %v688 = vand.u32 %v51, 4294901760
  %689 = vmatprep.subr.mxu0 %v688
  %v690 = vand.u32 %v50, 4294901760
  %691 = vmatpush1.msra.mxu0 %v690
  %v692 = vand.u32 %v47, 4294901760
  %693 = vmatprep.subr.mxu0 %v692
  %v694 = vand.u32 %v46, 4294901760
  %695 = vmatpush1.msra.mxu0 %v694
  %v696 = vand.u32 %v43, 4294901760
  %697 = vmatprep.subr.mxu0 %v696
  %v698 = vand.u32 %v42, 4294901760
  %699 = vmatpush1.msra.mxu0 %v698
  %v700 = vand.u32 %v39, 4294901760
  %701 = vmatprep.subr.mxu0 %v700
  %v702 = vand.u32 %v38, 4294901760
  %703 = vmatpush1.msra.mxu0 %v702
  %v704 = vand.u32 %v35, 4294901760
  %705 = vmatprep.subr.mxu0 %v704
  %v706 = vand.u32 %v34, 4294901760
  %707 = vmatpush1.msra.mxu0 %v706
  %v708 = vand.u32 %v31, 4294901760
  %709 = vmatprep.subr.mxu0 %v708
  %v710 = vand.u32 %v30, 4294901760
  %711 = vmatpush1.msra.mxu0 %v710
  %v712 = vand.u32 %v27, 4294901760
  %713 = vmatprep.subr.mxu0 %v712
  %v714 = vand.u32 %v26, 4294901760
  %715 = vmatpush1.msra.mxu0 %v714
  %v716 = vand.u32 %v23, 4294901760
  %717 = vmatprep.subr.mxu0 %v716
  %v718 = vand.u32 %v22, 4294901760
  %719 = vmatpush1.msra.mxu0 %v718
  %v720 = vand.u32 %v19, 4294901760
  %721 = vmatprep.subr.mxu0 %v720
  %v722 = vand.u32 %v18, 4294901760
  %723 = vmatpush1.msra.mxu0 %v722
  %724 = vmatprep.subr.mxu0 0.0
  %725 = vmatpush2.msra.mxu0 0.0
  %726 = vmatprep.subr.mxu0 0.0
  %727 = vmatpush2.msra.mxu0 0.0
  %728 = vmatprep.subr.mxu0 0.0
  %729 = vmatpush2.msra.mxu0 0.0
  %730 = vmatprep.subr.mxu0 0.0
  %731 = vmatpush2.msra.mxu0 0.0
  %732 = vmatprep.subr.mxu0 0.0
  %733 = vmatpush2.msra.mxu0 0.0
  %734 = vmatprep.subr.mxu0 0.0
  %735 = vmatpush2.msra.mxu0 0.0
  %736 = vmatprep.subr.mxu0 0.0
  %737 = vmatpush2.msra.mxu0 0.0
  %738 = vmatprep.subr.mxu0 0.0
  %739 = vmatpush2.msra.mxu0 0.0
  %740 = vmatprep.subr.mxu0 0.0
  %741 = vmatpush2.msra.mxu0 0.0
  %742 = vmatprep.subr.mxu0 0.0
  %743 = vmatpush2.msra.mxu0 0.0
  %744 = vmatprep.subr.mxu0 0.0
  %745 = vmatpush2.msra.mxu0 0.0
  %746 = vmatprep.subr.mxu0 0.0
  %747 = vmatpush2.msra.mxu0 0.0
  %748 = vmatprep.subr.mxu0 0.0
  %749 = vmatpush2.msra.mxu0 0.0
  %750 = vmatprep.subr.mxu0 0.0
  %751 = vmatpush2.msra.mxu0 0.0
  %v752 = vand.u32 %v87, 4294901760
  %753 = vmatprep.subr.mxu0 %v752
  %v754 = vand.u32 %v86, 4294901760
  %755 = vmatpush2.msra.mxu0 %v754
  %v756 = vand.u32 %v83, 4294901760
  %757 = vmatprep.subr.mxu0 %v756
  %v758 = vand.u32 %v82, 4294901760
  %759 = vmatpush2.msra.mxu0 %v758
  %v760 = vand.u32 %v104, 4294901760
  %v761 = vsub.f32 %v104, %v760
  %v762 = vand.u32 %v761, 4294901760
  %763 = vmatprep.mubr.f32.mxu0 %v762
  %v764 = vand.u32 %v14, 4294901760
  %v765 = vsub.f32 %v14, %v764
  %v766 = vand.u32 %v765, 4294901760
  %767 = vmatmul.mubr.f32.gmra.mxu0 %v766
  %v768 = vpop.f32.mrf.mxu0
  %v769 = vadd.f32 %v646, %v768
  %v770 = vpop.f32.mrf.mxu0
  %v771 = vadd.f32 %v648, %v770
  %v772 = vand.u32 %v107, 4294901760
  %v773 = vsub.f32 %v107, %v772
  %v774 = vand.u32 %v773, 4294901760
  %775 = vmatprep.mubr.f32.mxu0 %v774
  %v776 = vand.u32 %v16, 4294901760
  %v777 = vsub.f32 %v16, %v776
  %v778 = vand.u32 %v777, 4294901760
  %779 = vmatmul.mubr.f32.gmra.mxu0 %v778
  %v780 = vpop.f32.mrf.mxu0
  %v781 = vadd.f32 %v656, %v780
  %v782 = vpop.f32.mrf.mxu0
  %v783 = vadd.f32 %v658, %v782
  %784 = vdwg.mxu0
  %v785 = vand.u32 %v79, 4294901760
  %v786 = vsub.f32 %v79, %v785
  %v787 = vand.u32 %v786, 4294901760
  %788 = vmatprep.subr.mxu0 %v787
  %v789 = vand.u32 %v78, 4294901760
  %v790 = vsub.f32 %v78, %v789
  %v791 = vand.u32 %v790, 4294901760
  %792 = vmatpush1.msra.mxu0 %v791
  %v793 = vand.u32 %v75, 4294901760
  %v794 = vsub.f32 %v75, %v793
  %v795 = vand.u32 %v794, 4294901760
  %796 = vmatprep.subr.mxu0 %v795
  %v797 = vand.u32 %v74, 4294901760
  %v798 = vsub.f32 %v74, %v797
  %v799 = vand.u32 %v798, 4294901760
  %800 = vmatpush1.msra.mxu0 %v799
  %v801 = vand.u32 %v71, 4294901760
  %v802 = vsub.f32 %v71, %v801
  %v803 = vand.u32 %v802, 4294901760
  %804 = vmatprep.subr.mxu0 %v803
  %v805 = vand.u32 %v70, 4294901760
  %v806 = vsub.f32 %v70, %v805
  %v807 = vand.u32 %v806, 4294901760
  %808 = vmatpush1.msra.mxu0 %v807
  %v809 = vand.u32 %v67, 4294901760
  %v810 = vsub.f32 %v67, %v809
  %v811 = vand.u32 %v810, 4294901760
  %812 = vmatprep.subr.mxu0 %v811
  %v813 = vand.u32 %v66, 4294901760
  %v814 = vsub.f32 %v66, %v813
  %v815 = vand.u32 %v814, 4294901760
  %816 = vmatpush1.msra.mxu0 %v815
  %v817 = vand.u32 %v63, 4294901760
  %v818 = vsub.f32 %v63, %v817
  %v819 = vand.u32 %v818, 4294901760
  %820 = vmatprep.subr.mxu0 %v819
  %v821 = vand.u32 %v62, 4294901760
  %v822 = vsub.f32 %v62, %v821
  %v823 = vand.u32 %v822, 4294901760
  %824 = vmatpush1.msra.mxu0 %v823
  %v825 = vand.u32 %v59, 4294901760
  %v826 = vsub.f32 %v59, %v825
  %v827 = vand.u32 %v826, 4294901760
  %828 = vmatprep.subr.mxu0 %v827
  %v829 = vand.u32 %v58, 4294901760
  %v830 = vsub.f32 %v58, %v829
  %v831 = vand.u32 %v830, 4294901760
  %832 = vmatpush1.msra.mxu0 %v831
  %v833 = vand.u32 %v55, 4294901760
  %v834 = vsub.f32 %v55, %v833
  %v835 = vand.u32 %v834, 4294901760
  %836 = vmatprep.subr.mxu0 %v835
  %v837 = vand.u32 %v54, 4294901760
  %v838 = vsub.f32 %v54, %v837
  %v839 = vand.u32 %v838, 4294901760
  %840 = vmatpush1.msra.mxu0 %v839
  %v841 = vand.u32 %v51, 4294901760
  %v842 = vsub.f32 %v51, %v841
  %v843 = vand.u32 %v842, 4294901760
  %844 = vmatprep.subr.mxu0 %v843
  %v845 = vand.u32 %v50, 4294901760
  %v846 = vsub.f32 %v50, %v845
  %v847 = vand.u32 %v846, 4294901760
  %848 = vmatpush1.msra.mxu0 %v847
  %v849 = vand.u32 %v47, 4294901760
  %v850 = vsub.f32 %v47, %v849
  %v851 = vand.u32 %v850, 4294901760
  %852 = vmatprep.subr.mxu0 %v851
  %v853 = vand.u32 %v46, 4294901760
  %v854 = vsub.f32 %v46, %v853
  %v855 = vand.u32 %v854, 4294901760
  %856 = vmatpush1.msra.mxu0 %v855
  %v857 = vand.u32 %v43, 4294901760
  %v858 = vsub.f32 %v43, %v857
  %v859 = vand.u32 %v858, 4294901760
  %860 = vmatprep.subr.mxu0 %v859
  %v861 = vand.u32 %v42, 4294901760
  %v862 = vsub.f32 %v42, %v861
  %v863 = vand.u32 %v862, 4294901760
  %864 = vmatpush1.msra.mxu0 %v863
  %v865 = vand.u32 %v39, 4294901760
  %v866 = vsub.f32 %v39, %v865
  %v867 = vand.u32 %v866, 4294901760
  %868 = vmatprep.subr.mxu0 %v867
  %v869 = vand.u32 %v38, 4294901760
  %v870 = vsub.f32 %v38, %v869
  %v871 = vand.u32 %v870, 4294901760
  %872 = vmatpush1.msra.mxu0 %v871
  %v873 = vand.u32 %v35, 4294901760
  %v874 = vsub.f32 %v35, %v873
  %v875 = vand.u32 %v874, 4294901760
  %876 = vmatprep.subr.mxu0 %v875
  %v877 = vand.u32 %v34, 4294901760
  %v878 = vsub.f32 %v34, %v877
  %v879 = vand.u32 %v878, 4294901760
  %880 = vmatpush1.msra.mxu0 %v879
  %v881 = vand.u32 %v31, 4294901760
  %v882 = vsub.f32 %v31, %v881
  %v883 = vand.u32 %v882, 4294901760
  %884 = vmatprep.subr.mxu0 %v883
  %v885 = vand.u32 %v30, 4294901760
  %v886 = vsub.f32 %v30, %v885
  %v887 = vand.u32 %v886, 4294901760
  %888 = vmatpush1.msra.mxu0 %v887
  %v889 = vand.u32 %v27, 4294901760
  %v890 = vsub.f32 %v27, %v889
  %v891 = vand.u32 %v890, 4294901760
  %892 = vmatprep.subr.mxu0 %v891
  %v893 = vand.u32 %v26, 4294901760
  %v894 = vsub.f32 %v26, %v893
  %v895 = vand.u32 %v894, 4294901760
  %896 = vmatpush1.msra.mxu0 %v895
  %v897 = vand.u32 %v23, 4294901760
  %v898 = vsub.f32 %v23, %v897
  %v899 = vand.u32 %v898, 4294901760
  %900 = vmatprep.subr.mxu0 %v899
  %v901 = vand.u32 %v22, 4294901760
  %v902 = vsub.f32 %v22, %v901
  %v903 = vand.u32 %v902, 4294901760
  %904 = vmatpush1.msra.mxu0 %v903
  %v905 = vand.u32 %v19, 4294901760
  %v906 = vsub.f32 %v19, %v905
  %v907 = vand.u32 %v906, 4294901760
  %908 = vmatprep.subr.mxu0 %v907
  %v909 = vand.u32 %v18, 4294901760
  %v910 = vsub.f32 %v18, %v909
  %v911 = vand.u32 %v910, 4294901760
  %912 = vmatpush1.msra.mxu0 %v911
  %913 = vmatprep.subr.mxu0 0.0
  %914 = vmatpush2.msra.mxu0 0.0
  %915 = vmatprep.subr.mxu0 0.0
  %916 = vmatpush2.msra.mxu0 0.0
  %917 = vmatprep.subr.mxu0 0.0
  %918 = vmatpush2.msra.mxu0 0.0
  %919 = vmatprep.subr.mxu0 0.0
  %920 = vmatpush2.msra.mxu0 0.0
  %921 = vmatprep.subr.mxu0 0.0
  %922 = vmatpush2.msra.mxu0 0.0
  %923 = vmatprep.subr.mxu0 0.0
  %924 = vmatpush2.msra.mxu0 0.0
  %925 = vmatprep.subr.mxu0 0.0
  %926 = vmatpush2.msra.mxu0 0.0
  %927 = vmatprep.subr.mxu0 0.0
  %928 = vmatpush2.msra.mxu0 0.0
  %929 = vmatprep.subr.mxu0 0.0
  %930 = vmatpush2.msra.mxu0 0.0
  %931 = vmatprep.subr.mxu0 0.0
  %932 = vmatpush2.msra.mxu0 0.0
  %933 = vmatprep.subr.mxu0 0.0
  %934 = vmatpush2.msra.mxu0 0.0
  %935 = vmatprep.subr.mxu0 0.0
  %936 = vmatpush2.msra.mxu0 0.0
  %937 = vmatprep.subr.mxu0 0.0
  %938 = vmatpush2.msra.mxu0 0.0
  %939 = vmatprep.subr.mxu0 0.0
  %940 = vmatpush2.msra.mxu0 0.0
  %v941 = vand.u32 %v87, 4294901760
  %v942 = vsub.f32 %v87, %v941
  %v943 = vand.u32 %v942, 4294901760
  %944 = vmatprep.subr.mxu0 %v943
  %v945 = vand.u32 %v86, 4294901760
  %v946 = vsub.f32 %v86, %v945
  %v947 = vand.u32 %v946, 4294901760
  %948 = vmatpush2.msra.mxu0 %v947
  %v949 = vand.u32 %v83, 4294901760
  %v950 = vsub.f32 %v83, %v949
  %v951 = vand.u32 %v950, 4294901760
  %952 = vmatprep.subr.mxu0 %v951
  %v953 = vand.u32 %v82, 4294901760
  %v954 = vsub.f32 %v82, %v953
  %v955 = vand.u32 %v954, 4294901760
  %956 = vmatpush2.msra.mxu0 %v955
  %v957 = vand.u32 %v104, 4294901760
  %958 = vmatprep.mubr.f32.mxu0 %v957
  %v959 = vand.u32 %v14, 4294901760
  %960 = vmatmul.mubr.f32.gmra.mxu0 %v959
  %v961 = vpop.f32.mrf.mxu0
  %v962 = vadd.f32 %v769, %v961
  %v963 = vpop.f32.mrf.mxu0
  %v964 = vadd.f32 %v771, %v963
  %v965 = vand.u32 %v107, 4294901760
  %966 = vmatprep.mubr.f32.mxu0 %v965
  %v967 = vand.u32 %v16, 4294901760
  %968 = vmatmul.mubr.f32.gmra.mxu0 %v967
  %v969 = vpop.f32.mrf.mxu0
  %v970 = vadd.f32 %v781, %v969
  %v971 = vpop.f32.mrf.mxu0
  %v972 = vadd.f32 %v783, %v971
  %973 = vdwg.mxu0
  %v974 = vand.u32 %v79, 4294901760
  %975 = vmatprep.subr.mxu0 %v974
  %v976 = vand.u32 %v78, 4294901760
  %977 = vmatpush1.msra.mxu0 %v976
  %v978 = vand.u32 %v75, 4294901760
  %979 = vmatprep.subr.mxu0 %v978
  %v980 = vand.u32 %v74, 4294901760
  %981 = vmatpush1.msra.mxu0 %v980
  %v982 = vand.u32 %v71, 4294901760
  %983 = vmatprep.subr.mxu0 %v982
  %v984 = vand.u32 %v70, 4294901760
  %985 = vmatpush1.msra.mxu0 %v984
  %v986 = vand.u32 %v67, 4294901760
  %987 = vmatprep.subr.mxu0 %v986
  %v988 = vand.u32 %v66, 4294901760
  %989 = vmatpush1.msra.mxu0 %v988
  %v990 = vand.u32 %v63, 4294901760
  %991 = vmatprep.subr.mxu0 %v990
  %v992 = vand.u32 %v62, 4294901760
  %993 = vmatpush1.msra.mxu0 %v992
  %v994 = vand.u32 %v59, 4294901760
  %995 = vmatprep.subr.mxu0 %v994
  %v996 = vand.u32 %v58, 4294901760
  %997 = vmatpush1.msra.mxu0 %v996
  %v998 = vand.u32 %v55, 4294901760
  %999 = vmatprep.subr.mxu0 %v998
  %v1000 = vand.u32 %v54, 4294901760
  %1001 = vmatpush1.msra.mxu0 %v1000
  %v1002 = vand.u32 %v51, 4294901760
  %1003 = vmatprep.subr.mxu0 %v1002
  %v1004 = vand.u32 %v50, 4294901760
  %1005 = vmatpush1.msra.mxu0 %v1004
  %v1006 = vand.u32 %v47, 4294901760
  %1007 = vmatprep.subr.mxu0 %v1006
  %v1008 = vand.u32 %v46, 4294901760
  %1009 = vmatpush1.msra.mxu0 %v1008
  %v1010 = vand.u32 %v43, 4294901760
  %1011 = vmatprep.subr.mxu0 %v1010
  %v1012 = vand.u32 %v42, 4294901760
  %1013 = vmatpush1.msra.mxu0 %v1012
  %v1014 = vand.u32 %v39, 4294901760
  %1015 = vmatprep.subr.mxu0 %v1014
  %v1016 = vand.u32 %v38, 4294901760
  %1017 = vmatpush1.msra.mxu0 %v1016
  %v1018 = vand.u32 %v35, 4294901760
  %1019 = vmatprep.subr.mxu0 %v1018
  %v1020 = vand.u32 %v34, 4294901760
  %1021 = vmatpush1.msra.mxu0 %v1020
  %v1022 = vand.u32 %v31, 4294901760
  %1023 = vmatprep.subr.mxu0 %v1022
  %v1024 = vand.u32 %v30, 4294901760
  %1025 = vmatpush1.msra.mxu0 %v1024
  %v1026 = vand.u32 %v27, 4294901760
  %1027 = vmatprep.subr.mxu0 %v1026
  %v1028 = vand.u32 %v26, 4294901760
  %1029 = vmatpush1.msra.mxu0 %v1028
  %v1030 = vand.u32 %v23, 4294901760
  %1031 = vmatprep.subr.mxu0 %v1030
  %v1032 = vand.u32 %v22, 4294901760
  %1033 = vmatpush1.msra.mxu0 %v1032
  %v1034 = vand.u32 %v19, 4294901760
  %1035 = vmatprep.subr.mxu0 %v1034
  %v1036 = vand.u32 %v18, 4294901760
  %1037 = vmatpush1.msra.mxu0 %v1036
  %1038 = vmatprep.subr.mxu0 0.0
  %1039 = vmatpush2.msra.mxu0 0.0
  %1040 = vmatprep.subr.mxu0 0.0
  %1041 = vmatpush2.msra.mxu0 0.0
  %1042 = vmatprep.subr.mxu0 0.0
  %1043 = vmatpush2.msra.mxu0 0.0
  %1044 = vmatprep.subr.mxu0 0.0
  %1045 = vmatpush2.msra.mxu0 0.0
  %1046 = vmatprep.subr.mxu0 0.0
  %1047 = vmatpush2.msra.mxu0 0.0
  %1048 = vmatprep.subr.mxu0 0.0
  %1049 = vmatpush2.msra.mxu0 0.0
  %1050 = vmatprep.subr.mxu0 0.0
  %1051 = vmatpush2.msra.mxu0 0.0
  %1052 = vmatprep.subr.mxu0 0.0
  %1053 = vmatpush2.msra.mxu0 0.0
  %1054 = vmatprep.subr.mxu0 0.0
  %1055 = vmatpush2.msra.mxu0 0.0
  %1056 = vmatprep.subr.mxu0 0.0
  %1057 = vmatpush2.msra.mxu0 0.0
  %1058 = vmatprep.subr.mxu0 0.0
  %1059 = vmatpush2.msra.mxu0 0.0
  %1060 = vmatprep.subr.mxu0 0.0
  %1061 = vmatpush2.msra.mxu0 0.0
  %1062 = vmatprep.subr.mxu0 0.0
  %1063 = vmatpush2.msra.mxu0 0.0
  %1064 = vmatprep.subr.mxu0 0.0
  %1065 = vmatpush2.msra.mxu0 0.0
  %v1066 = vand.u32 %v87, 4294901760
  %1067 = vmatprep.subr.mxu0 %v1066
  %v1068 = vand.u32 %v86, 4294901760
  %1069 = vmatpush2.msra.mxu0 %v1068
  %v1070 = vand.u32 %v83, 4294901760
  %1071 = vmatprep.subr.mxu0 %v1070
  %v1072 = vand.u32 %v82, 4294901760
  %1073 = vmatpush2.msra.mxu0 %v1072
  %v1074 = vand.u32 %v104, 4294901760
  %1075 = vmatprep.mubr.f32.mxu0 %v1074
  %v1076 = vand.u32 %v14, 4294901760
  %1077 = vmatmul.mubr.f32.gmra.mxu0 %v1076
  %v1078 = vpop.f32.mrf.mxu0
  %v1079 = vadd.f32 %v962, %v1078
  %v1080 = vpop.f32.mrf.mxu0
  %v1081 = vadd.f32 %v964, %v1080
  %v1082 = vand.u32 %v107, 4294901760
  %1083 = vmatprep.mubr.f32.mxu0 %v1082
  %v1084 = vand.u32 %v16, 4294901760
  %1085 = vmatmul.mubr.f32.gmra.mxu0 %v1084
  %v1086 = vpop.f32.mrf.mxu0
  %v1087 = vadd.f32 %v970, %v1086
  %v1088 = vpop.f32.mrf.mxu0
  %v1089 = vadd.f32 %v972, %v1088
  %1090 = vdwg.mxu0
  %v1091 = vand.u32 %v81, 4294901760
  %1092 = vmatprep.subr.mxu0 %v1091
  %v1093 = vand.u32 %v80, 4294901760
  %1094 = vmatpush1.msra.mxu0 %v1093
  %v1095 = vand.u32 %v77, 4294901760
  %1096 = vmatprep.subr.mxu0 %v1095
  %v1097 = vand.u32 %v76, 4294901760
  %1098 = vmatpush1.msra.mxu0 %v1097
  %v1099 = vand.u32 %v73, 4294901760
  %1100 = vmatprep.subr.mxu0 %v1099
  %v1101 = vand.u32 %v72, 4294901760
  %1102 = vmatpush1.msra.mxu0 %v1101
  %v1103 = vand.u32 %v69, 4294901760
  %1104 = vmatprep.subr.mxu0 %v1103
  %v1105 = vand.u32 %v68, 4294901760
  %1106 = vmatpush1.msra.mxu0 %v1105
  %v1107 = vand.u32 %v65, 4294901760
  %1108 = vmatprep.subr.mxu0 %v1107
  %v1109 = vand.u32 %v64, 4294901760
  %1110 = vmatpush1.msra.mxu0 %v1109
  %v1111 = vand.u32 %v61, 4294901760
  %1112 = vmatprep.subr.mxu0 %v1111
  %v1113 = vand.u32 %v60, 4294901760
  %1114 = vmatpush1.msra.mxu0 %v1113
  %v1115 = vand.u32 %v57, 4294901760
  %1116 = vmatprep.subr.mxu0 %v1115
  %v1117 = vand.u32 %v56, 4294901760
  %1118 = vmatpush1.msra.mxu0 %v1117
  %v1119 = vand.u32 %v53, 4294901760
  %1120 = vmatprep.subr.mxu0 %v1119
  %v1121 = vand.u32 %v52, 4294901760
  %1122 = vmatpush1.msra.mxu0 %v1121
  %v1123 = vand.u32 %v49, 4294901760
  %1124 = vmatprep.subr.mxu0 %v1123
  %v1125 = vand.u32 %v48, 4294901760
  %1126 = vmatpush1.msra.mxu0 %v1125
  %v1127 = vand.u32 %v45, 4294901760
  %1128 = vmatprep.subr.mxu0 %v1127
  %v1129 = vand.u32 %v44, 4294901760
  %1130 = vmatpush1.msra.mxu0 %v1129
  %v1131 = vand.u32 %v41, 4294901760
  %1132 = vmatprep.subr.mxu0 %v1131
  %v1133 = vand.u32 %v40, 4294901760
  %1134 = vmatpush1.msra.mxu0 %v1133
  %v1135 = vand.u32 %v37, 4294901760
  %1136 = vmatprep.subr.mxu0 %v1135
  %v1137 = vand.u32 %v36, 4294901760
  %1138 = vmatpush1.msra.mxu0 %v1137
  %v1139 = vand.u32 %v33, 4294901760
  %1140 = vmatprep.subr.mxu0 %v1139
  %v1141 = vand.u32 %v32, 4294901760
  %1142 = vmatpush1.msra.mxu0 %v1141
  %v1143 = vand.u32 %v29, 4294901760
  %1144 = vmatprep.subr.mxu0 %v1143
  %v1145 = vand.u32 %v28, 4294901760
  %1146 = vmatpush1.msra.mxu0 %v1145
  %v1147 = vand.u32 %v25, 4294901760
  %1148 = vmatprep.subr.mxu0 %v1147
  %v1149 = vand.u32 %v24, 4294901760
  %1150 = vmatpush1.msra.mxu0 %v1149
  %v1151 = vand.u32 %v21, 4294901760
  %1152 = vmatprep.subr.mxu0 %v1151
  %v1153 = vand.u32 %v20, 4294901760
  %1154 = vmatpush1.msra.mxu0 %v1153
  %1155 = vmatprep.subr.mxu0 0.0
  %1156 = vmatpush2.msra.mxu0 0.0
  %1157 = vmatprep.subr.mxu0 0.0
  %1158 = vmatpush2.msra.mxu0 0.0
  %1159 = vmatprep.subr.mxu0 0.0
  %1160 = vmatpush2.msra.mxu0 0.0
  %1161 = vmatprep.subr.mxu0 0.0
  %1162 = vmatpush2.msra.mxu0 0.0
  %1163 = vmatprep.subr.mxu0 0.0
  %1164 = vmatpush2.msra.mxu0 0.0
  %1165 = vmatprep.subr.mxu0 0.0
  %1166 = vmatpush2.msra.mxu0 0.0
  %1167 = vmatprep.subr.mxu0 0.0
  %1168 = vmatpush2.msra.mxu0 0.0
  %1169 = vmatprep.subr.mxu0 0.0
  %1170 = vmatpush2.msra.mxu0 0.0
  %1171 = vmatprep.subr.mxu0 0.0
  %1172 = vmatpush2.msra.mxu0 0.0
  %1173 = vmatprep.subr.mxu0 0.0
  %1174 = vmatpush2.msra.mxu0 0.0
  %1175 = vmatprep.subr.mxu0 0.0
  %1176 = vmatpush2.msra.mxu0 0.0
  %1177 = vmatprep.subr.mxu0 0.0
  %1178 = vmatpush2.msra.mxu0 0.0
  %1179 = vmatprep.subr.mxu0 0.0
  %1180 = vmatpush2.msra.mxu0 0.0
  %1181 = vmatprep.subr.mxu0 0.0
  %1182 = vmatpush2.msra.mxu0 0.0
  %v1183 = vand.u32 %v89, 4294901760
  %1184 = vmatprep.subr.mxu0 %v1183
  %v1185 = vand.u32 %v88, 4294901760
  %1186 = vmatpush2.msra.mxu0 %v1185
  %v1187 = vand.u32 %v85, 4294901760
  %1188 = vmatprep.subr.mxu0 %v1187
  %v1189 = vand.u32 %v84, 4294901760
  %1190 = vmatpush2.msra.mxu0 %v1189
  %v1191 = vand.u32 %v104, 4294901760
  %v1192 = vsub.f32 %v104, %v1191
  %v1193 = vand.u32 %v1192, 4294901760
  %v1194 = vsub.f32 %v1192, %v1193
  %v1195 = vand.u32 %v1194, 4294901760
  %1196 = vmatprep.mubr.f32.mxu0 %v1195
  %v1197 = vand.u32 %v14, 4294901760
  %v1198 = vsub.f32 %v14, %v1197
  %v1199 = vand.u32 %v1198, 4294901760
  %v1200 = vsub.f32 %v1198, %v1199
  %v1201 = vand.u32 %v1200, 4294901760
  %1202 = vmatmul.mubr.f32.gmra.mxu0 %v1201
  %v1203 = vpop.f32.mrf.mxu0
  %v1204 = vadd.f32 %v95, %v1203
  %v1205 = vpop.f32.mrf.mxu0
  %v1206 = vadd.f32 %v95, %v1205
  %v1207 = vand.u32 %v107, 4294901760
  %v1208 = vsub.f32 %v107, %v1207
  %v1209 = vand.u32 %v1208, 4294901760
  %v1210 = vsub.f32 %v1208, %v1209
  %v1211 = vand.u32 %v1210, 4294901760
  %1212 = vmatprep.mubr.f32.mxu0 %v1211
  %v1213 = vand.u32 %v16, 4294901760
  %v1214 = vsub.f32 %v16, %v1213
  %v1215 = vand.u32 %v1214, 4294901760
  %v1216 = vsub.f32 %v1214, %v1215
  %v1217 = vand.u32 %v1216, 4294901760
  %1218 = vmatmul.mubr.f32.gmra.mxu0 %v1217
  %v1219 = vpop.f32.mrf.mxu0
  %v1220 = vadd.f32 %v100, %v1219
  %v1221 = vpop.f32.mrf.mxu0
  %v1222 = vadd.f32 %v100, %v1221
  %1223 = vdwg.mxu0
  %v1224 = vand.u32 %v81, 4294901760
  %v1225 = vsub.f32 %v81, %v1224
  %v1226 = vand.u32 %v1225, 4294901760
  %v1227 = vsub.f32 %v1225, %v1226
  %v1228 = vand.u32 %v1227, 4294901760
  %1229 = vmatprep.subr.mxu0 %v1228
  %v1230 = vand.u32 %v80, 4294901760
  %v1231 = vsub.f32 %v80, %v1230
  %v1232 = vand.u32 %v1231, 4294901760
  %v1233 = vsub.f32 %v1231, %v1232
  %v1234 = vand.u32 %v1233, 4294901760
  %1235 = vmatpush1.msra.mxu0 %v1234
  %v1236 = vand.u32 %v77, 4294901760
  %v1237 = vsub.f32 %v77, %v1236
  %v1238 = vand.u32 %v1237, 4294901760
  %v1239 = vsub.f32 %v1237, %v1238
  %v1240 = vand.u32 %v1239, 4294901760
  %1241 = vmatprep.subr.mxu0 %v1240
  %v1242 = vand.u32 %v76, 4294901760
  %v1243 = vsub.f32 %v76, %v1242
  %v1244 = vand.u32 %v1243, 4294901760
  %v1245 = vsub.f32 %v1243, %v1244
  %v1246 = vand.u32 %v1245, 4294901760
  %1247 = vmatpush1.msra.mxu0 %v1246
  %v1248 = vand.u32 %v73, 4294901760
  %v1249 = vsub.f32 %v73, %v1248
  %v1250 = vand.u32 %v1249, 4294901760
  %v1251 = vsub.f32 %v1249, %v1250
  %v1252 = vand.u32 %v1251, 4294901760
  %1253 = vmatprep.subr.mxu0 %v1252
  %v1254 = vand.u32 %v72, 4294901760
  %v1255 = vsub.f32 %v72, %v1254
  %v1256 = vand.u32 %v1255, 4294901760
  %v1257 = vsub.f32 %v1255, %v1256
  %v1258 = vand.u32 %v1257, 4294901760
  %1259 = vmatpush1.msra.mxu0 %v1258
  %v1260 = vand.u32 %v69, 4294901760
  %v1261 = vsub.f32 %v69, %v1260
  %v1262 = vand.u32 %v1261, 4294901760
  %v1263 = vsub.f32 %v1261, %v1262
  %v1264 = vand.u32 %v1263, 4294901760
  %1265 = vmatprep.subr.mxu0 %v1264
  %v1266 = vand.u32 %v68, 4294901760
  %v1267 = vsub.f32 %v68, %v1266
  %v1268 = vand.u32 %v1267, 4294901760
  %v1269 = vsub.f32 %v1267, %v1268
  %v1270 = vand.u32 %v1269, 4294901760
  %1271 = vmatpush1.msra.mxu0 %v1270
  %v1272 = vand.u32 %v65, 4294901760
  %v1273 = vsub.f32 %v65, %v1272
  %v1274 = vand.u32 %v1273, 4294901760
  %v1275 = vsub.f32 %v1273, %v1274
  %v1276 = vand.u32 %v1275, 4294901760
  %1277 = vmatprep.subr.mxu0 %v1276
  %v1278 = vand.u32 %v64, 4294901760
  %v1279 = vsub.f32 %v64, %v1278
  %v1280 = vand.u32 %v1279, 4294901760
  %v1281 = vsub.f32 %v1279, %v1280
  %v1282 = vand.u32 %v1281, 4294901760
  %1283 = vmatpush1.msra.mxu0 %v1282
  %v1284 = vand.u32 %v61, 4294901760
  %v1285 = vsub.f32 %v61, %v1284
  %v1286 = vand.u32 %v1285, 4294901760
  %v1287 = vsub.f32 %v1285, %v1286
  %v1288 = vand.u32 %v1287, 4294901760
  %1289 = vmatprep.subr.mxu0 %v1288
  %v1290 = vand.u32 %v60, 4294901760
  %v1291 = vsub.f32 %v60, %v1290
  %v1292 = vand.u32 %v1291, 4294901760
  %v1293 = vsub.f32 %v1291, %v1292
  %v1294 = vand.u32 %v1293, 4294901760
  %1295 = vmatpush1.msra.mxu0 %v1294
  %v1296 = vand.u32 %v57, 4294901760
  %v1297 = vsub.f32 %v57, %v1296
  %v1298 = vand.u32 %v1297, 4294901760
  %v1299 = vsub.f32 %v1297, %v1298
  %v1300 = vand.u32 %v1299, 4294901760
  %1301 = vmatprep.subr.mxu0 %v1300
  %v1302 = vand.u32 %v56, 4294901760
  %v1303 = vsub.f32 %v56, %v1302
  %v1304 = vand.u32 %v1303, 4294901760
  %v1305 = vsub.f32 %v1303, %v1304
  %v1306 = vand.u32 %v1305, 4294901760
  %1307 = vmatpush1.msra.mxu0 %v1306
  %v1308 = vand.u32 %v53, 4294901760
  %v1309 = vsub.f32 %v53, %v1308
  %v1310 = vand.u32 %v1309, 4294901760
  %v1311 = vsub.f32 %v1309, %v1310
  %v1312 = vand.u32 %v1311, 4294901760
  %1313 = vmatprep.subr.mxu0 %v1312
  %v1314 = vand.u32 %v52, 4294901760
  %v1315 = vsub.f32 %v52, %v1314
  %v1316 = vand.u32 %v1315, 4294901760
  %v1317 = vsub.f32 %v1315, %v1316
  %v1318 = vand.u32 %v1317, 4294901760
  %1319 = vmatpush1.msra.mxu0 %v1318
  %v1320 = vand.u32 %v49, 4294901760
  %v1321 = vsub.f32 %v49, %v1320
  %v1322 = vand.u32 %v1321, 4294901760
  %v1323 = vsub.f32 %v1321, %v1322
  %v1324 = vand.u32 %v1323, 4294901760
  %1325 = vmatprep.subr.mxu0 %v1324
  %v1326 = vand.u32 %v48, 4294901760
  %v1327 = vsub.f32 %v48, %v1326
  %v1328 = vand.u32 %v1327, 4294901760
  %v1329 = vsub.f32 %v1327, %v1328
  %v1330 = vand.u32 %v1329, 4294901760
  %1331 = vmatpush1.msra.mxu0 %v1330
  %v1332 = vand.u32 %v45, 4294901760
  %v1333 = vsub.f32 %v45, %v1332
  %v1334 = vand.u32 %v1333, 4294901760
  %v1335 = vsub.f32 %v1333, %v1334
  %v1336 = vand.u32 %v1335, 4294901760
  %1337 = vmatprep.subr.mxu0 %v1336
  %v1338 = vand.u32 %v44, 4294901760
  %v1339 = vsub.f32 %v44, %v1338
  %v1340 = vand.u32 %v1339, 4294901760
  %v1341 = vsub.f32 %v1339, %v1340
  %v1342 = vand.u32 %v1341, 4294901760
  %1343 = vmatpush1.msra.mxu0 %v1342
  %v1344 = vand.u32 %v41, 4294901760
  %v1345 = vsub.f32 %v41, %v1344
  %v1346 = vand.u32 %v1345, 4294901760
  %v1347 = vsub.f32 %v1345, %v1346
  %v1348 = vand.u32 %v1347, 4294901760
  %1349 = vmatprep.subr.mxu0 %v1348
  %v1350 = vand.u32 %v40, 4294901760
  %v1351 = vsub.f32 %v40, %v1350
  %v1352 = vand.u32 %v1351, 4294901760
  %v1353 = vsub.f32 %v1351, %v1352
  %v1354 = vand.u32 %v1353, 4294901760
  %1355 = vmatpush1.msra.mxu0 %v1354
  %v1356 = vand.u32 %v37, 4294901760
  %v1357 = vsub.f32 %v37, %v1356
  %v1358 = vand.u32 %v1357, 4294901760
  %v1359 = vsub.f32 %v1357, %v1358
  %v1360 = vand.u32 %v1359, 4294901760
  %1361 = vmatprep.subr.mxu0 %v1360
  %v1362 = vand.u32 %v36, 4294901760
  %v1363 = vsub.f32 %v36, %v1362
  %v1364 = vand.u32 %v1363, 4294901760
  %v1365 = vsub.f32 %v1363, %v1364
  %v1366 = vand.u32 %v1365, 4294901760
  %1367 = vmatpush1.msra.mxu0 %v1366
  %v1368 = vand.u32 %v33, 4294901760
  %v1369 = vsub.f32 %v33, %v1368
  %v1370 = vand.u32 %v1369, 4294901760
  %v1371 = vsub.f32 %v1369, %v1370
  %v1372 = vand.u32 %v1371, 4294901760
  %1373 = vmatprep.subr.mxu0 %v1372
  %v1374 = vand.u32 %v32, 4294901760
  %v1375 = vsub.f32 %v32, %v1374
  %v1376 = vand.u32 %v1375, 4294901760
  %v1377 = vsub.f32 %v1375, %v1376
  %v1378 = vand.u32 %v1377, 4294901760
  %1379 = vmatpush1.msra.mxu0 %v1378
  %v1380 = vand.u32 %v29, 4294901760
  %v1381 = vsub.f32 %v29, %v1380
  %v1382 = vand.u32 %v1381, 4294901760
  %v1383 = vsub.f32 %v1381, %v1382
  %v1384 = vand.u32 %v1383, 4294901760
  %1385 = vmatprep.subr.mxu0 %v1384
  %v1386 = vand.u32 %v28, 4294901760
  %v1387 = vsub.f32 %v28, %v1386
  %v1388 = vand.u32 %v1387, 4294901760
  %v1389 = vsub.f32 %v1387, %v1388
  %v1390 = vand.u32 %v1389, 4294901760
  %1391 = vmatpush1.msra.mxu0 %v1390
  %v1392 = vand.u32 %v25, 4294901760
  %v1393 = vsub.f32 %v25, %v1392
  %v1394 = vand.u32 %v1393, 4294901760
  %v1395 = vsub.f32 %v1393, %v1394
  %v1396 = vand.u32 %v1395, 4294901760
  %1397 = vmatprep.subr.mxu0 %v1396
  %v1398 = vand.u32 %v24, 4294901760
  %v1399 = vsub.f32 %v24, %v1398
  %v1400 = vand.u32 %v1399, 4294901760
  %v1401 = vsub.f32 %v1399, %v1400
  %v1402 = vand.u32 %v1401, 4294901760
  %1403 = vmatpush1.msra.mxu0 %v1402
  %v1404 = vand.u32 %v21, 4294901760
  %v1405 = vsub.f32 %v21, %v1404
  %v1406 = vand.u32 %v1405, 4294901760
  %v1407 = vsub.f32 %v1405, %v1406
  %v1408 = vand.u32 %v1407, 4294901760
  %1409 = vmatprep.subr.mxu0 %v1408
  %v1410 = vand.u32 %v20, 4294901760
  %v1411 = vsub.f32 %v20, %v1410
  %v1412 = vand.u32 %v1411, 4294901760
  %v1413 = vsub.f32 %v1411, %v1412
  %v1414 = vand.u32 %v1413, 4294901760
  %1415 = vmatpush1.msra.mxu0 %v1414
  %1416 = vmatprep.subr.mxu0 0.0
  %1417 = vmatpush2.msra.mxu0 0.0
  %1418 = vmatprep.subr.mxu0 0.0
  %1419 = vmatpush2.msra.mxu0 0.0
  %1420 = vmatprep.subr.mxu0 0.0
  %1421 = vmatpush2.msra.mxu0 0.0
  %1422 = vmatprep.subr.mxu0 0.0
  %1423 = vmatpush2.msra.mxu0 0.0
  %1424 = vmatprep.subr.mxu0 0.0
  %1425 = vmatpush2.msra.mxu0 0.0
  %1426 = vmatprep.subr.mxu0 0.0
  %1427 = vmatpush2.msra.mxu0 0.0
  %1428 = vmatprep.subr.mxu0 0.0
  %1429 = vmatpush2.msra.mxu0 0.0
  %1430 = vmatprep.subr.mxu0 0.0
  %1431 = vmatpush2.msra.mxu0 0.0
  %1432 = vmatprep.subr.mxu0 0.0
  %1433 = vmatpush2.msra.mxu0 0.0
  %1434 = vmatprep.subr.mxu0 0.0
  %1435 = vmatpush2.msra.mxu0 0.0
  %1436 = vmatprep.subr.mxu0 0.0
  %1437 = vmatpush2.msra.mxu0 0.0
  %1438 = vmatprep.subr.mxu0 0.0
  %1439 = vmatpush2.msra.mxu0 0.0
  %1440 = vmatprep.subr.mxu0 0.0
  %1441 = vmatpush2.msra.mxu0 0.0
  %1442 = vmatprep.subr.mxu0 0.0
  %1443 = vmatpush2.msra.mxu0 0.0
  %v1444 = vand.u32 %v89, 4294901760
  %v1445 = vsub.f32 %v89, %v1444
  %v1446 = vand.u32 %v1445, 4294901760
  %v1447 = vsub.f32 %v1445, %v1446
  %v1448 = vand.u32 %v1447, 4294901760
  %1449 = vmatprep.subr.mxu0 %v1448
  %v1450 = vand.u32 %v88, 4294901760
  %v1451 = vsub.f32 %v88, %v1450
  %v1452 = vand.u32 %v1451, 4294901760
  %v1453 = vsub.f32 %v1451, %v1452
  %v1454 = vand.u32 %v1453, 4294901760
  %1455 = vmatpush2.msra.mxu0 %v1454
  %v1456 = vand.u32 %v85, 4294901760
  %v1457 = vsub.f32 %v85, %v1456
  %v1458 = vand.u32 %v1457, 4294901760
  %v1459 = vsub.f32 %v1457, %v1458
  %v1460 = vand.u32 %v1459, 4294901760
  %1461 = vmatprep.subr.mxu0 %v1460
  %v1462 = vand.u32 %v84, 4294901760
  %v1463 = vsub.f32 %v84, %v1462
  %v1464 = vand.u32 %v1463, 4294901760
  %v1465 = vsub.f32 %v1463, %v1464
  %v1466 = vand.u32 %v1465, 4294901760
  %1467 = vmatpush2.msra.mxu0 %v1466
  %v1468 = vand.u32 %v104, 4294901760
  %1469 = vmatprep.mubr.f32.mxu0 %v1468
  %v1470 = vand.u32 %v14, 4294901760
  %1471 = vmatmul.mubr.f32.gmra.mxu0 %v1470
  %v1472 = vpop.f32.mrf.mxu0
  %v1473 = vadd.f32 %v1204, %v1472
  %v1474 = vpop.f32.mrf.mxu0
  %v1475 = vadd.f32 %v1206, %v1474
  %v1476 = vand.u32 %v107, 4294901760
  %1477 = vmatprep.mubr.f32.mxu0 %v1476
  %v1478 = vand.u32 %v16, 4294901760
  %1479 = vmatmul.mubr.f32.gmra.mxu0 %v1478
  %v1480 = vpop.f32.mrf.mxu0
  %v1481 = vadd.f32 %v1220, %v1480
  %v1482 = vpop.f32.mrf.mxu0
  %v1483 = vadd.f32 %v1222, %v1482
  %1484 = vdwg.mxu0
  %v1485 = vand.u32 %v81, 4294901760
  %v1486 = vsub.f32 %v81, %v1485
  %1487 = vmatprep.subr.mxu0 %v1486
  %v1488 = vand.u32 %v80, 4294901760
  %v1489 = vsub.f32 %v80, %v1488
  %1490 = vmatpush1.msra.mxu0 %v1489
  %v1491 = vand.u32 %v77, 4294901760
  %v1492 = vsub.f32 %v77, %v1491
  %1493 = vmatprep.subr.mxu0 %v1492
  %v1494 = vand.u32 %v76, 4294901760
  %v1495 = vsub.f32 %v76, %v1494
  %1496 = vmatpush1.msra.mxu0 %v1495
  %v1497 = vand.u32 %v73, 4294901760
  %v1498 = vsub.f32 %v73, %v1497
  %1499 = vmatprep.subr.mxu0 %v1498
  %v1500 = vand.u32 %v72, 4294901760
  %v1501 = vsub.f32 %v72, %v1500
  %1502 = vmatpush1.msra.mxu0 %v1501
  %v1503 = vand.u32 %v69, 4294901760
  %v1504 = vsub.f32 %v69, %v1503
  %1505 = vmatprep.subr.mxu0 %v1504
  %v1506 = vand.u32 %v68, 4294901760
  %v1507 = vsub.f32 %v68, %v1506
  %1508 = vmatpush1.msra.mxu0 %v1507
  %v1509 = vand.u32 %v65, 4294901760
  %v1510 = vsub.f32 %v65, %v1509
  %1511 = vmatprep.subr.mxu0 %v1510
  %v1512 = vand.u32 %v64, 4294901760
  %v1513 = vsub.f32 %v64, %v1512
  %1514 = vmatpush1.msra.mxu0 %v1513
  %v1515 = vand.u32 %v61, 4294901760
  %v1516 = vsub.f32 %v61, %v1515
  %1517 = vmatprep.subr.mxu0 %v1516
  %v1518 = vand.u32 %v60, 4294901760
  %v1519 = vsub.f32 %v60, %v1518
  %1520 = vmatpush1.msra.mxu0 %v1519
  %v1521 = vand.u32 %v57, 4294901760
  %v1522 = vsub.f32 %v57, %v1521
  %1523 = vmatprep.subr.mxu0 %v1522
  %v1524 = vand.u32 %v56, 4294901760
  %v1525 = vsub.f32 %v56, %v1524
  %1526 = vmatpush1.msra.mxu0 %v1525
  %v1527 = vand.u32 %v53, 4294901760
  %v1528 = vsub.f32 %v53, %v1527
  %1529 = vmatprep.subr.mxu0 %v1528
  %v1530 = vand.u32 %v52, 4294901760
  %v1531 = vsub.f32 %v52, %v1530
  %1532 = vmatpush1.msra.mxu0 %v1531
  %v1533 = vand.u32 %v49, 4294901760
  %v1534 = vsub.f32 %v49, %v1533
  %1535 = vmatprep.subr.mxu0 %v1534
  %v1536 = vand.u32 %v48, 4294901760
  %v1537 = vsub.f32 %v48, %v1536
  %1538 = vmatpush1.msra.mxu0 %v1537
  %v1539 = vand.u32 %v45, 4294901760
  %v1540 = vsub.f32 %v45, %v1539
  %1541 = vmatprep.subr.mxu0 %v1540
  %v1542 = vand.u32 %v44, 4294901760
  %v1543 = vsub.f32 %v44, %v1542
  %1544 = vmatpush1.msra.mxu0 %v1543
  %v1545 = vand.u32 %v41, 4294901760
  %v1546 = vsub.f32 %v41, %v1545
  %1547 = vmatprep.subr.mxu0 %v1546
  %v1548 = vand.u32 %v40, 4294901760
  %v1549 = vsub.f32 %v40, %v1548
  %1550 = vmatpush1.msra.mxu0 %v1549
  %v1551 = vand.u32 %v37, 4294901760
  %v1552 = vsub.f32 %v37, %v1551
  %1553 = vmatprep.subr.mxu0 %v1552
  %v1554 = vand.u32 %v36, 4294901760
  %v1555 = vsub.f32 %v36, %v1554
  %1556 = vmatpush1.msra.mxu0 %v1555
  %v1557 = vand.u32 %v33, 4294901760
  %v1558 = vsub.f32 %v33, %v1557
  %1559 = vmatprep.subr.mxu0 %v1558
  %v1560 = vand.u32 %v32, 4294901760
  %v1561 = vsub.f32 %v32, %v1560
  %1562 = vmatpush1.msra.mxu0 %v1561
  %v1563 = vand.u32 %v29, 4294901760
  %v1564 = vsub.f32 %v29, %v1563
  %1565 = vmatprep.subr.mxu0 %v1564
  %v1566 = vand.u32 %v28, 4294901760
  %v1567 = vsub.f32 %v28, %v1566
  %1568 = vmatpush1.msra.mxu0 %v1567
  %v1569 = vand.u32 %v25, 4294901760
  %v1570 = vsub.f32 %v25, %v1569
  %1571 = vmatprep.subr.mxu0 %v1570
  %v1572 = vand.u32 %v24, 4294901760
  %v1573 = vsub.f32 %v24, %v1572
  %1574 = vmatpush1.msra.mxu0 %v1573
  %v1575 = vand.u32 %v21, 4294901760
  %v1576 = vsub.f32 %v21, %v1575
  %1577 = vmatprep.subr.mxu0 %v1576
  %v1578 = vand.u32 %v20, 4294901760
  %v1579 = vsub.f32 %v20, %v1578
  %1580 = vmatpush1.msra.mxu0 %v1579
  %1581 = vmatprep.subr.mxu0 0.0
  %1582 = vmatpush2.msra.mxu0 0.0
  %1583 = vmatprep.subr.mxu0 0.0
  %1584 = vmatpush2.msra.mxu0 0.0
  %1585 = vmatprep.subr.mxu0 0.0
  %1586 = vmatpush2.msra.mxu0 0.0
  %1587 = vmatprep.subr.mxu0 0.0
  %1588 = vmatpush2.msra.mxu0 0.0
  %1589 = vmatprep.subr.mxu0 0.0
  %1590 = vmatpush2.msra.mxu0 0.0
  %1591 = vmatprep.subr.mxu0 0.0
  %1592 = vmatpush2.msra.mxu0 0.0
  %1593 = vmatprep.subr.mxu0 0.0
  %1594 = vmatpush2.msra.mxu0 0.0
  %1595 = vmatprep.subr.mxu0 0.0
  %1596 = vmatpush2.msra.mxu0 0.0
  %1597 = vmatprep.subr.mxu0 0.0
  %1598 = vmatpush2.msra.mxu0 0.0
  %1599 = vmatprep.subr.mxu0 0.0
  %1600 = vmatpush2.msra.mxu0 0.0
  %1601 = vmatprep.subr.mxu0 0.0
  %1602 = vmatpush2.msra.mxu0 0.0
  %1603 = vmatprep.subr.mxu0 0.0
  %1604 = vmatpush2.msra.mxu0 0.0
  %1605 = vmatprep.subr.mxu0 0.0
  %1606 = vmatpush2.msra.mxu0 0.0
  %1607 = vmatprep.subr.mxu0 0.0
  %1608 = vmatpush2.msra.mxu0 0.0
  %v1609 = vand.u32 %v89, 4294901760
  %v1610 = vsub.f32 %v89, %v1609
  %1611 = vmatprep.subr.mxu0 %v1610
  %v1612 = vand.u32 %v88, 4294901760
  %v1613 = vsub.f32 %v88, %v1612
  %1614 = vmatpush2.msra.mxu0 %v1613
  %v1615 = vand.u32 %v85, 4294901760
  %v1616 = vsub.f32 %v85, %v1615
  %1617 = vmatprep.subr.mxu0 %v1616
  %v1618 = vand.u32 %v84, 4294901760
  %v1619 = vsub.f32 %v84, %v1618
  %1620 = vmatpush2.msra.mxu0 %v1619
  %v1621 = vand.u32 %v104, 4294901760
  %v1622 = vsub.f32 %v104, %v1621
  %1623 = vmatprep.mubr.f32.mxu0 %v1622
  %v1624 = vand.u32 %v14, 4294901760
  %v1625 = vsub.f32 %v14, %v1624
  %1626 = vmatmul.mubr.f32.gmra.mxu0 %v1625
  %v1627 = vpop.f32.mrf.mxu0
  %v1628 = vadd.f32 %v1473, %v1627
  %v1629 = vpop.f32.mrf.mxu0
  %v1630 = vadd.f32 %v1475, %v1629
  %v1631 = vand.u32 %v107, 4294901760
  %v1632 = vsub.f32 %v107, %v1631
  %1633 = vmatprep.mubr.f32.mxu0 %v1632
  %v1634 = vand.u32 %v16, 4294901760
  %v1635 = vsub.f32 %v16, %v1634
  %1636 = vmatmul.mubr.f32.gmra.mxu0 %v1635
  %v1637 = vpop.f32.mrf.mxu0
  %v1638 = vadd.f32 %v1481, %v1637
  %v1639 = vpop.f32.mrf.mxu0
  %v1640 = vadd.f32 %v1483, %v1639
  %1641 = vdwg.mxu0
  %v1642 = vand.u32 %v81, 4294901760
  %1643 = vmatprep.subr.mxu0 %v1642
  %v1644 = vand.u32 %v80, 4294901760
  %1645 = vmatpush1.msra.mxu0 %v1644
  %v1646 = vand.u32 %v77, 4294901760
  %1647 = vmatprep.subr.mxu0 %v1646
  %v1648 = vand.u32 %v76, 4294901760
  %1649 = vmatpush1.msra.mxu0 %v1648
  %v1650 = vand.u32 %v73, 4294901760
  %1651 = vmatprep.subr.mxu0 %v1650
  %v1652 = vand.u32 %v72, 4294901760
  %1653 = vmatpush1.msra.mxu0 %v1652
  %v1654 = vand.u32 %v69, 4294901760
  %1655 = vmatprep.subr.mxu0 %v1654
  %v1656 = vand.u32 %v68, 4294901760
  %1657 = vmatpush1.msra.mxu0 %v1656
  %v1658 = vand.u32 %v65, 4294901760
  %1659 = vmatprep.subr.mxu0 %v1658
  %v1660 = vand.u32 %v64, 4294901760
  %1661 = vmatpush1.msra.mxu0 %v1660
  %v1662 = vand.u32 %v61, 4294901760
  %1663 = vmatprep.subr.mxu0 %v1662
  %v1664 = vand.u32 %v60, 4294901760
  %1665 = vmatpush1.msra.mxu0 %v1664
  %v1666 = vand.u32 %v57, 4294901760
  %1667 = vmatprep.subr.mxu0 %v1666
  %v1668 = vand.u32 %v56, 4294901760
  %1669 = vmatpush1.msra.mxu0 %v1668
  %v1670 = vand.u32 %v53, 4294901760
  %1671 = vmatprep.subr.mxu0 %v1670
  %v1672 = vand.u32 %v52, 4294901760
  %1673 = vmatpush1.msra.mxu0 %v1672
  %v1674 = vand.u32 %v49, 4294901760
  %1675 = vmatprep.subr.mxu0 %v1674
  %v1676 = vand.u32 %v48, 4294901760
  %1677 = vmatpush1.msra.mxu0 %v1676
  %v1678 = vand.u32 %v45, 4294901760
  %1679 = vmatprep.subr.mxu0 %v1678
  %v1680 = vand.u32 %v44, 4294901760
  %1681 = vmatpush1.msra.mxu0 %v1680
  %v1682 = vand.u32 %v41, 4294901760
  %1683 = vmatprep.subr.mxu0 %v1682
  %v1684 = vand.u32 %v40, 4294901760
  %1685 = vmatpush1.msra.mxu0 %v1684
  %v1686 = vand.u32 %v37, 4294901760
  %1687 = vmatprep.subr.mxu0 %v1686
  %v1688 = vand.u32 %v36, 4294901760
  %1689 = vmatpush1.msra.mxu0 %v1688
  %v1690 = vand.u32 %v33, 4294901760
  %1691 = vmatprep.subr.mxu0 %v1690
  %v1692 = vand.u32 %v32, 4294901760
  %1693 = vmatpush1.msra.mxu0 %v1692
  %v1694 = vand.u32 %v29, 4294901760
  %1695 = vmatprep.subr.mxu0 %v1694
  %v1696 = vand.u32 %v28, 4294901760
  %1697 = vmatpush1.msra.mxu0 %v1696
  %v1698 = vand.u32 %v25, 4294901760
  %1699 = vmatprep.subr.mxu0 %v1698
  %v1700 = vand.u32 %v24, 4294901760
  %1701 = vmatpush1.msra.mxu0 %v1700
  %v1702 = vand.u32 %v21, 4294901760
  %1703 = vmatprep.subr.mxu0 %v1702
  %v1704 = vand.u32 %v20, 4294901760
  %1705 = vmatpush1.msra.mxu0 %v1704
  %1706 = vmatprep.subr.mxu0 0.0
  %1707 = vmatpush2.msra.mxu0 0.0
  %1708 = vmatprep.subr.mxu0 0.0
  %1709 = vmatpush2.msra.mxu0 0.0
  %1710 = vmatprep.subr.mxu0 0.0
  %1711 = vmatpush2.msra.mxu0 0.0
  %1712 = vmatprep.subr.mxu0 0.0
  %1713 = vmatpush2.msra.mxu0 0.0
  %1714 = vmatprep.subr.mxu0 0.0
  %1715 = vmatpush2.msra.mxu0 0.0
  %1716 = vmatprep.subr.mxu0 0.0
  %1717 = vmatpush2.msra.mxu0 0.0
  %1718 = vmatprep.subr.mxu0 0.0
  %1719 = vmatpush2.msra.mxu0 0.0
  %1720 = vmatprep.subr.mxu0 0.0
  %1721 = vmatpush2.msra.mxu0 0.0
  %1722 = vmatprep.subr.mxu0 0.0
  %1723 = vmatpush2.msra.mxu0 0.0
  %1724 = vmatprep.subr.mxu0 0.0
  %1725 = vmatpush2.msra.mxu0 0.0
  %1726 = vmatprep.subr.mxu0 0.0
  %1727 = vmatpush2.msra.mxu0 0.0
  %1728 = vmatprep.subr.mxu0 0.0
  %1729 = vmatpush2.msra.mxu0 0.0
  %1730 = vmatprep.subr.mxu0 0.0
  %1731 = vmatpush2.msra.mxu0 0.0
  %1732 = vmatprep.subr.mxu0 0.0
  %1733 = vmatpush2.msra.mxu0 0.0
  %v1734 = vand.u32 %v89, 4294901760
  %1735 = vmatprep.subr.mxu0 %v1734
  %v1736 = vand.u32 %v88, 4294901760
  %1737 = vmatpush2.msra.mxu0 %v1736
  %v1738 = vand.u32 %v85, 4294901760
  %1739 = vmatprep.subr.mxu0 %v1738
  %v1740 = vand.u32 %v84, 4294901760
  %1741 = vmatpush2.msra.mxu0 %v1740
  %v1742 = vand.u32 %v104, 4294901760
  %v1743 = vsub.f32 %v104, %v1742
  %v1744 = vand.u32 %v1743, 4294901760
  %1745 = vmatprep.mubr.f32.mxu0 %v1744
  %v1746 = vand.u32 %v14, 4294901760
  %v1747 = vsub.f32 %v14, %v1746
  %v1748 = vand.u32 %v1747, 4294901760
  %1749 = vmatmul.mubr.f32.gmra.mxu0 %v1748
  %v1750 = vpop.f32.mrf.mxu0
  %v1751 = vadd.f32 %v1628, %v1750
  %v1752 = vpop.f32.mrf.mxu0
  %v1753 = vadd.f32 %v1630, %v1752
  %v1754 = vand.u32 %v107, 4294901760
  %v1755 = vsub.f32 %v107, %v1754
  %v1756 = vand.u32 %v1755, 4294901760
  %1757 = vmatprep.mubr.f32.mxu0 %v1756
  %v1758 = vand.u32 %v16, 4294901760
  %v1759 = vsub.f32 %v16, %v1758
  %v1760 = vand.u32 %v1759, 4294901760
  %1761 = vmatmul.mubr.f32.gmra.mxu0 %v1760
  %v1762 = vpop.f32.mrf.mxu0
  %v1763 = vadd.f32 %v1638, %v1762
  %v1764 = vpop.f32.mrf.mxu0
  %v1765 = vadd.f32 %v1640, %v1764
  %1766 = vdwg.mxu0
  %v1767 = vand.u32 %v81, 4294901760
  %v1768 = vsub.f32 %v81, %v1767
  %v1769 = vand.u32 %v1768, 4294901760
  %1770 = vmatprep.subr.mxu0 %v1769
  %v1771 = vand.u32 %v80, 4294901760
  %v1772 = vsub.f32 %v80, %v1771
  %v1773 = vand.u32 %v1772, 4294901760
  %1774 = vmatpush1.msra.mxu0 %v1773
  %v1775 = vand.u32 %v77, 4294901760
  %v1776 = vsub.f32 %v77, %v1775
  %v1777 = vand.u32 %v1776, 4294901760
  %1778 = vmatprep.subr.mxu0 %v1777
  %v1779 = vand.u32 %v76, 4294901760
  %v1780 = vsub.f32 %v76, %v1779
  %v1781 = vand.u32 %v1780, 4294901760
  %1782 = vmatpush1.msra.mxu0 %v1781
  %v1783 = vand.u32 %v73, 4294901760
  %v1784 = vsub.f32 %v73, %v1783
  %v1785 = vand.u32 %v1784, 4294901760
  %1786 = vmatprep.subr.mxu0 %v1785
  %v1787 = vand.u32 %v72, 4294901760
  %v1788 = vsub.f32 %v72, %v1787
  %v1789 = vand.u32 %v1788, 4294901760
  %1790 = vmatpush1.msra.mxu0 %v1789
  %v1791 = vand.u32 %v69, 4294901760
  %v1792 = vsub.f32 %v69, %v1791
  %v1793 = vand.u32 %v1792, 4294901760
  %1794 = vmatprep.subr.mxu0 %v1793
  %v1795 = vand.u32 %v68, 4294901760
  %v1796 = vsub.f32 %v68, %v1795
  %v1797 = vand.u32 %v1796, 4294901760
  %1798 = vmatpush1.msra.mxu0 %v1797
  %v1799 = vand.u32 %v65, 4294901760
  %v1800 = vsub.f32 %v65, %v1799
  %v1801 = vand.u32 %v1800, 4294901760
  %1802 = vmatprep.subr.mxu0 %v1801
  %v1803 = vand.u32 %v64, 4294901760
  %v1804 = vsub.f32 %v64, %v1803
  %v1805 = vand.u32 %v1804, 4294901760
  %1806 = vmatpush1.msra.mxu0 %v1805
  %v1807 = vand.u32 %v61, 4294901760
  %v1808 = vsub.f32 %v61, %v1807
  %v1809 = vand.u32 %v1808, 4294901760
  %1810 = vmatprep.subr.mxu0 %v1809
  %v1811 = vand.u32 %v60, 4294901760
  %v1812 = vsub.f32 %v60, %v1811
  %v1813 = vand.u32 %v1812, 4294901760
  %1814 = vmatpush1.msra.mxu0 %v1813
  %v1815 = vand.u32 %v57, 4294901760
  %v1816 = vsub.f32 %v57, %v1815
  %v1817 = vand.u32 %v1816, 4294901760
  %1818 = vmatprep.subr.mxu0 %v1817
  %v1819 = vand.u32 %v56, 4294901760
  %v1820 = vsub.f32 %v56, %v1819
  %v1821 = vand.u32 %v1820, 4294901760
  %1822 = vmatpush1.msra.mxu0 %v1821
  %v1823 = vand.u32 %v53, 4294901760
  %v1824 = vsub.f32 %v53, %v1823
  %v1825 = vand.u32 %v1824, 4294901760
  %1826 = vmatprep.subr.mxu0 %v1825
  %v1827 = vand.u32 %v52, 4294901760
  %v1828 = vsub.f32 %v52, %v1827
  %v1829 = vand.u32 %v1828, 4294901760
  %1830 = vmatpush1.msra.mxu0 %v1829
  %v1831 = vand.u32 %v49, 4294901760
  %v1832 = vsub.f32 %v49, %v1831
  %v1833 = vand.u32 %v1832, 4294901760
  %1834 = vmatprep.subr.mxu0 %v1833
  %v1835 = vand.u32 %v48, 4294901760
  %v1836 = vsub.f32 %v48, %v1835
  %v1837 = vand.u32 %v1836, 4294901760
  %1838 = vmatpush1.msra.mxu0 %v1837
  %v1839 = vand.u32 %v45, 4294901760
  %v1840 = vsub.f32 %v45, %v1839
  %v1841 = vand.u32 %v1840, 4294901760
  %1842 = vmatprep.subr.mxu0 %v1841
  %v1843 = vand.u32 %v44, 4294901760
  %v1844 = vsub.f32 %v44, %v1843
  %v1845 = vand.u32 %v1844, 4294901760
  %1846 = vmatpush1.msra.mxu0 %v1845
  %v1847 = vand.u32 %v41, 4294901760
  %v1848 = vsub.f32 %v41, %v1847
  %v1849 = vand.u32 %v1848, 4294901760
  %1850 = vmatprep.subr.mxu0 %v1849
  %v1851 = vand.u32 %v40, 4294901760
  %v1852 = vsub.f32 %v40, %v1851
  %v1853 = vand.u32 %v1852, 4294901760
  %1854 = vmatpush1.msra.mxu0 %v1853
  %v1855 = vand.u32 %v37, 4294901760
  %v1856 = vsub.f32 %v37, %v1855
  %v1857 = vand.u32 %v1856, 4294901760
  %1858 = vmatprep.subr.mxu0 %v1857
  %v1859 = vand.u32 %v36, 4294901760
  %v1860 = vsub.f32 %v36, %v1859
  %v1861 = vand.u32 %v1860, 4294901760
  %1862 = vmatpush1.msra.mxu0 %v1861
  %v1863 = vand.u32 %v33, 4294901760
  %v1864 = vsub.f32 %v33, %v1863
  %v1865 = vand.u32 %v1864, 4294901760
  %1866 = vmatprep.subr.mxu0 %v1865
  %v1867 = vand.u32 %v32, 4294901760
  %v1868 = vsub.f32 %v32, %v1867
  %v1869 = vand.u32 %v1868, 4294901760
  %1870 = vmatpush1.msra.mxu0 %v1869
  %v1871 = vand.u32 %v29, 4294901760
  %v1872 = vsub.f32 %v29, %v1871
  %v1873 = vand.u32 %v1872, 4294901760
  %1874 = vmatprep.subr.mxu0 %v1873
  %v1875 = vand.u32 %v28, 4294901760
  %v1876 = vsub.f32 %v28, %v1875
  %v1877 = vand.u32 %v1876, 4294901760
  %1878 = vmatpush1.msra.mxu0 %v1877
  %v1879 = vand.u32 %v25, 4294901760
  %v1880 = vsub.f32 %v25, %v1879
  %v1881 = vand.u32 %v1880, 4294901760
  %1882 = vmatprep.subr.mxu0 %v1881
  %v1883 = vand.u32 %v24, 4294901760
  %v1884 = vsub.f32 %v24, %v1883
  %v1885 = vand.u32 %v1884, 4294901760
  %1886 = vmatpush1.msra.mxu0 %v1885
  %v1887 = vand.u32 %v21, 4294901760
  %v1888 = vsub.f32 %v21, %v1887
  %v1889 = vand.u32 %v1888, 4294901760
  %1890 = vmatprep.subr.mxu0 %v1889
  %v1891 = vand.u32 %v20, 4294901760
  %v1892 = vsub.f32 %v20, %v1891
  %v1893 = vand.u32 %v1892, 4294901760
  %1894 = vmatpush1.msra.mxu0 %v1893
  %1895 = vmatprep.subr.mxu0 0.0
  %1896 = vmatpush2.msra.mxu0 0.0
  %1897 = vmatprep.subr.mxu0 0.0
  %1898 = vmatpush2.msra.mxu0 0.0
  %1899 = vmatprep.subr.mxu0 0.0
  %1900 = vmatpush2.msra.mxu0 0.0
  %1901 = vmatprep.subr.mxu0 0.0
  %1902 = vmatpush2.msra.mxu0 0.0
  %1903 = vmatprep.subr.mxu0 0.0
  %1904 = vmatpush2.msra.mxu0 0.0
  %1905 = vmatprep.subr.mxu0 0.0
  %1906 = vmatpush2.msra.mxu0 0.0
  %1907 = vmatprep.subr.mxu0 0.0
  %1908 = vmatpush2.msra.mxu0 0.0
  %1909 = vmatprep.subr.mxu0 0.0
  %1910 = vmatpush2.msra.mxu0 0.0
  %1911 = vmatprep.subr.mxu0 0.0
  %1912 = vmatpush2.msra.mxu0 0.0
  %1913 = vmatprep.subr.mxu0 0.0
  %1914 = vmatpush2.msra.mxu0 0.0
  %1915 = vmatprep.subr.mxu0 0.0
  %1916 = vmatpush2.msra.mxu0 0.0
  %1917 = vmatprep.subr.mxu0 0.0
  %1918 = vmatpush2.msra.mxu0 0.0
  %1919 = vmatprep.subr.mxu0 0.0
  %1920 = vmatpush2.msra.mxu0 0.0
  %1921 = vmatprep.subr.mxu0 0.0
  %1922 = vmatpush2.msra.mxu0 0.0
  %v1923 = vand.u32 %v89, 4294901760
  %v1924 = vsub.f32 %v89, %v1923
  %v1925 = vand.u32 %v1924, 4294901760
  %1926 = vmatprep.subr.mxu0 %v1925
  %v1927 = vand.u32 %v88, 4294901760
  %v1928 = vsub.f32 %v88, %v1927
  %v1929 = vand.u32 %v1928, 4294901760
  %1930 = vmatpush2.msra.mxu0 %v1929
  %v1931 = vand.u32 %v85, 4294901760
  %v1932 = vsub.f32 %v85, %v1931
  %v1933 = vand.u32 %v1932, 4294901760
  %1934 = vmatprep.subr.mxu0 %v1933
  %v1935 = vand.u32 %v84, 4294901760
  %v1936 = vsub.f32 %v84, %v1935
  %v1937 = vand.u32 %v1936, 4294901760
  %1938 = vmatpush2.msra.mxu0 %v1937
  %v1939 = vand.u32 %v104, 4294901760
  %1940 = vmatprep.mubr.f32.mxu0 %v1939
  %v1941 = vand.u32 %v14, 4294901760
  %1942 = vmatmul.mubr.f32.gmra.mxu0 %v1941
  %v1943 = vpop.f32.mrf.mxu0
  %v1944 = vadd.f32 %v1751, %v1943
  %v1945 = vpop.f32.mrf.mxu0
  %v1946 = vadd.f32 %v1753, %v1945
  %v1947 = vand.u32 %v107, 4294901760
  %1948 = vmatprep.mubr.f32.mxu0 %v1947
  %v1949 = vand.u32 %v16, 4294901760
  %1950 = vmatmul.mubr.f32.gmra.mxu0 %v1949
  %v1951 = vpop.f32.mrf.mxu0
  %v1952 = vadd.f32 %v1763, %v1951
  %v1953 = vpop.f32.mrf.mxu0
  %v1954 = vadd.f32 %v1765, %v1953
  %1955 = vdwg.mxu0
  %v1956 = vand.u32 %v81, 4294901760
  %1957 = vmatprep.subr.mxu0 %v1956
  %v1958 = vand.u32 %v80, 4294901760
  %1959 = vmatpush1.msra.mxu0 %v1958
  %v1960 = vand.u32 %v77, 4294901760
  %1961 = vmatprep.subr.mxu0 %v1960
  %v1962 = vand.u32 %v76, 4294901760
  %1963 = vmatpush1.msra.mxu0 %v1962
  %v1964 = vand.u32 %v73, 4294901760
  %1965 = vmatprep.subr.mxu0 %v1964
  %v1966 = vand.u32 %v72, 4294901760
  %1967 = vmatpush1.msra.mxu0 %v1966
  %v1968 = vand.u32 %v69, 4294901760
  %1969 = vmatprep.subr.mxu0 %v1968
  %v1970 = vand.u32 %v68, 4294901760
  %1971 = vmatpush1.msra.mxu0 %v1970
  %v1972 = vand.u32 %v65, 4294901760
  %1973 = vmatprep.subr.mxu0 %v1972
  %v1974 = vand.u32 %v64, 4294901760
  %1975 = vmatpush1.msra.mxu0 %v1974
  %v1976 = vand.u32 %v61, 4294901760
  %1977 = vmatprep.subr.mxu0 %v1976
  %v1978 = vand.u32 %v60, 4294901760
  %1979 = vmatpush1.msra.mxu0 %v1978
  %v1980 = vand.u32 %v57, 4294901760
  %1981 = vmatprep.subr.mxu0 %v1980
  %v1982 = vand.u32 %v56, 4294901760
  %1983 = vmatpush1.msra.mxu0 %v1982
  %v1984 = vand.u32 %v53, 4294901760
  %1985 = vmatprep.subr.mxu0 %v1984
  %v1986 = vand.u32 %v52, 4294901760
  %1987 = vmatpush1.msra.mxu0 %v1986
  %v1988 = vand.u32 %v49, 4294901760
  %1989 = vmatprep.subr.mxu0 %v1988
  %v1990 = vand.u32 %v48, 4294901760
  %1991 = vmatpush1.msra.mxu0 %v1990
  %v1992 = vand.u32 %v45, 4294901760
  %1993 = vmatprep.subr.mxu0 %v1992
  %v1994 = vand.u32 %v44, 4294901760
  %1995 = vmatpush1.msra.mxu0 %v1994
  %v1996 = vand.u32 %v41, 4294901760
  %1997 = vmatprep.subr.mxu0 %v1996
  %v1998 = vand.u32 %v40, 4294901760
  %1999 = vmatpush1.msra.mxu0 %v1998
  %v2000 = vand.u32 %v37, 4294901760
  %2001 = vmatprep.subr.mxu0 %v2000
  %v2002 = vand.u32 %v36, 4294901760
  %2003 = vmatpush1.msra.mxu0 %v2002
  %v2004 = vand.u32 %v33, 4294901760
  %2005 = vmatprep.subr.mxu0 %v2004
  %v2006 = vand.u32 %v32, 4294901760
  %2007 = vmatpush1.msra.mxu0 %v2006
  %v2008 = vand.u32 %v29, 4294901760
  %2009 = vmatprep.subr.mxu0 %v2008
  %v2010 = vand.u32 %v28, 4294901760
  %2011 = vmatpush1.msra.mxu0 %v2010
  %v2012 = vand.u32 %v25, 4294901760
  %2013 = vmatprep.subr.mxu0 %v2012
  %v2014 = vand.u32 %v24, 4294901760
  %2015 = vmatpush1.msra.mxu0 %v2014
  %v2016 = vand.u32 %v21, 4294901760
  %2017 = vmatprep.subr.mxu0 %v2016
  %v2018 = vand.u32 %v20, 4294901760
  %2019 = vmatpush1.msra.mxu0 %v2018
  %2020 = vmatprep.subr.mxu0 0.0
  %2021 = vmatpush2.msra.mxu0 0.0
  %2022 = vmatprep.subr.mxu0 0.0
  %2023 = vmatpush2.msra.mxu0 0.0
  %2024 = vmatprep.subr.mxu0 0.0
  %2025 = vmatpush2.msra.mxu0 0.0
  %2026 = vmatprep.subr.mxu0 0.0
  %2027 = vmatpush2.msra.mxu0 0.0
  %2028 = vmatprep.subr.mxu0 0.0
  %2029 = vmatpush2.msra.mxu0 0.0
  %2030 = vmatprep.subr.mxu0 0.0
  %2031 = vmatpush2.msra.mxu0 0.0
  %2032 = vmatprep.subr.mxu0 0.0
  %2033 = vmatpush2.msra.mxu0 0.0
  %2034 = vmatprep.subr.mxu0 0.0
  %2035 = vmatpush2.msra.mxu0 0.0
  %2036 = vmatprep.subr.mxu0 0.0
  %2037 = vmatpush2.msra.mxu0 0.0
  %2038 = vmatprep.subr.mxu0 0.0
  %2039 = vmatpush2.msra.mxu0 0.0
  %2040 = vmatprep.subr.mxu0 0.0
  %2041 = vmatpush2.msra.mxu0 0.0
  %2042 = vmatprep.subr.mxu0 0.0
  %2043 = vmatpush2.msra.mxu0 0.0
  %2044 = vmatprep.subr.mxu0 0.0
  %2045 = vmatpush2.msra.mxu0 0.0
  %2046 = vmatprep.subr.mxu0 0.0
  %2047 = vmatpush2.msra.mxu0 0.0
  %v2048 = vand.u32 %v89, 4294901760
  %2049 = vmatprep.subr.mxu0 %v2048
  %v2050 = vand.u32 %v88, 4294901760
  %2051 = vmatpush2.msra.mxu0 %v2050
  %v2052 = vand.u32 %v85, 4294901760
  %2053 = vmatprep.subr.mxu0 %v2052
  %v2054 = vand.u32 %v84, 4294901760
  %2055 = vmatpush2.msra.mxu0 %v2054
  %v2056 = vand.u32 %v104, 4294901760
  %2057 = vmatprep.mubr.f32.mxu0 %v2056
  %v2058 = vand.u32 %v14, 4294901760
  %2059 = vmatmul.mubr.f32.gmra.mxu0 %v2058
  %v2060 = vpop.f32.mrf.mxu0
  %v2061 = vadd.f32 %v1944, %v2060
  %v2062 = vpop.f32.mrf.mxu0
  %v2063 = vadd.f32 %v1946, %v2062
  %v2064 = vand.u32 %v107, 4294901760
  %2065 = vmatprep.mubr.f32.mxu0 %v2064
  %v2066 = vand.u32 %v16, 4294901760
  %2067 = vmatmul.mubr.f32.gmra.mxu0 %v2066
  %v2068 = vpop.f32.mrf.mxu0
  %v2069 = vadd.f32 %v1952, %v2068
  %v2070 = vpop.f32.mrf.mxu0
  %v2071 = vadd.f32 %v1954, %v2070
  %2072 = vdwg.mxu0
  %2073 = vst [vmem:[%s3] sm:$0xff] %v1079
  %2074 = vst [vmem:[%s3 + $0x8] sm:$0xff] %v1081
  %2075 = vst [vmem:[%s3 + $0x10] sm:$0xff] %v2061
  %2076 = vst [vmem:[%s3 + $0x18] sm:$0xff] %v2063
  %2077 = vst [vmem:[%s3 + $0x20] sm:$0xff] %v1087
  %2078 = vst [vmem:[%s3 + $0x28] sm:$0xff] %v1089
  %2079 = vst [vmem:[%s3 + $0x30] sm:$0xff] %v2069
  %2080 = vst [vmem:[%s3 + $0x38] sm:$0xff] %v2071
  // Predicated region
  $region14: #{basic_rfb_a_forward.26} parent=0 // pred_check
    _
  $region15: #{basic_rfb_a_forward.26} parent=0 // pred_check_branch
    %2082 = sbr.rel (0) target = $region17
  $region16: #{basic_rfb_a_forward.26} parent=0 // pred_region
    _
  $region17: #{basic_rfb_a_forward.26} parent=0 // pred_fallthru
    _
  // Predicated region
  $region18: #{basic_rfb_a_forward.26} parent=0 // pred_check
    _
  $region19: #{basic_rfb_a_forward.26} parent=0 // pred_check_branch
    %2084 = sbr.rel (0) target = $region21
  $region20: #{basic_rfb_a_forward.26} parent=0 // pred_region
    _
  $region21: #{basic_rfb_a_forward.26} parent=0 // pred_fallthru
    _

// kernel: basic_rfb_a_forward.27
$region0: #{basic_rfb_a_forward.27}
  #allocation0 [shape = 'u32[]', space=smem, size = 0x4, offset = 0x4, fixed_abs, tag = 'smem constant byte address 0x4 - core index']
  #allocation1 [shape = 'u32[144,128]{1,0:T(1,128)}', space=vmem, size = 0x12000, scoped, tag = 'internal scratch']
  %s0 = inlined_call_operand.vmem [shape: f32[16,144], index: 0, kind: input, shape index: {}]
  %s1 = inlined_call_operand.vmem [shape: f32[16,1], index: 1, kind: input, shape index: {}]
  %s2 = inlined_call_operand.vmem [shape: f32[144,512], index: 2, kind: input, shape index: {}]
  %s3 = inlined_call_operand.vmem [shape: f32[16,512], index: 3, kind: input, shape index: {}]
  %s4 = inlined_call_operand.vmem [shape: f32[16,512], index: 4, kind: output, shape index: {}]
  %s5 = sld [smem:[#allocation0]]
  $region26: #{basic_rfb_a_forward.27} parent=0
    _
  %s7 = ssub.s32 1, %s5
  %s8 = scalar_select 0, %s7, %s5
  // Predicated region
  $region2: #{basic_rfb_a_forward.27} parent=0 // pred_check
    _
  $region3: #{basic_rfb_a_forward.27} parent=0 // pred_check_branch
    %10 = sbr.rel (0) target = $region5
  $region4: #{basic_rfb_a_forward.27} parent=0 // pred_region
    _
  $region5: #{basic_rfb_a_forward.27} parent=0 // pred_fallthru
    _
  // Predicated region
  $region6: #{basic_rfb_a_forward.27} parent=0 // pred_check
    _
  $region7: #{basic_rfb_a_forward.27} parent=0 // pred_check_branch
    %12 = sbr.rel (0) target = $region9
  $region8: #{basic_rfb_a_forward.27} parent=0 // pred_region
    _
  $region9: #{basic_rfb_a_forward.27} parent=0 // pred_fallthru
    _
  // Predicated region
  $region10: #{basic_rfb_a_forward.27} parent=0 // pred_check
    _
  $region11: #{basic_rfb_a_forward.27} parent=0 // pred_check_branch
    %14 = sbr.rel (0) target = $region13
  $region12: #{basic_rfb_a_forward.27} parent=0 // pred_region
    _
  $region13: #{basic_rfb_a_forward.27} parent=0 // pred_fallthru
    _
  // Predicated region
  $region14: #{basic_rfb_a_forward.27} parent=0 // pred_check
    _
  $region15: #{basic_rfb_a_forward.27} parent=0 // pred_check_branch
    %16 = sbr.rel (0) target = $region17
  $region16: #{basic_rfb_a_forward.27} parent=0 // pred_region
    _
  $region17: #{basic_rfb_a_forward.27} parent=0 // pred_fallthru
    _
  %v17 = vld [vmem:[%s0] sm:$0xff]
  %v18 = vld [vmem:[%s0 + $0x8] sm:$0xff]
  %v19 = vld [vmem:[%s0 + $0x10] sm:$0xff]
  %v20 = vld [vmem:[%s0 + $0x18] sm:$0xff]
  %v21 = vld [vmem:[%s2] sm:$0xff]
  %v22 = vld [vmem:[%s2 + $0x8] sm:$0xff]
  %v23 = vld [vmem:[%s2 + $0x10] sm:$0xff]
  %v24 = vld [vmem:[%s2 + $0x18] sm:$0xff]
  %v25 = vld [vmem:[%s2 + $0x20] sm:$0xff]
  %v26 = vld [vmem:[%s2 + $0x28] sm:$0xff]
  %v27 = vld [vmem:[%s2 + $0x30] sm:$0xff]
  %v28 = vld [vmem:[%s2 + $0x38] sm:$0xff]
  %v29 = vld [vmem:[%s2 + $0x40] sm:$0xff]
  %v30 = vld [vmem:[%s2 + $0x48] sm:$0xff]
  %v31 = vld [vmem:[%s2 + $0x50] sm:$0xff]
  %v32 = vld [vmem:[%s2 + $0x58] sm:$0xff]
  %v33 = vld [vmem:[%s2 + $0x60] sm:$0xff]
  %v34 = vld [vmem:[%s2 + $0x68] sm:$0xff]
  %v35 = vld [vmem:[%s2 + $0x70] sm:$0xff]
  %v36 = vld [vmem:[%s2 + $0x78] sm:$0xff]
  %v37 = vld [vmem:[%s2 + $0x80] sm:$0xff]
  %v38 = vld [vmem:[%s2 + $0x88] sm:$0xff]
  %v39 = vld [vmem:[%s2 + $0x90] sm:$0xff]
  %v40 = vld [vmem:[%s2 + $0x98] sm:$0xff]
  %v41 = vld [vmem:[%s2 + $0xa0] sm:$0xff]
  %v42 = vld [vmem:[%s2 + $0xa8] sm:$0xff]
  %v43 = vld [vmem:[%s2 + $0xb0] sm:$0xff]
  %v44 = vld [vmem:[%s2 + $0xb8] sm:$0xff]
  %v45 = vld [vmem:[%s2 + $0xc0] sm:$0xff]
  %v46 = vld [vmem:[%s2 + $0xc8] sm:$0xff]
  %v47 = vld [vmem:[%s2 + $0xd0] sm:$0xff]
  %v48 = vld [vmem:[%s2 + $0xd8] sm:$0xff]
  %v49 = vld [vmem:[%s2 + $0xe0] sm:$0xff]
  %v50 = vld [vmem:[%s2 + $0xe8] sm:$0xff]
  %v51 = vld [vmem:[%s2 + $0xf0] sm:$0xff]
  %v52 = vld [vmem:[%s2 + $0xf8] sm:$0xff]
  %v53 = vld [vmem:[%s2 + $0x100] sm:$0xff]
  %v54 = vld [vmem:[%s2 + $0x108] sm:$0xff]
  %v55 = vld [vmem:[%s2 + $0x110] sm:$0xff]
  %v56 = vld [vmem:[%s2 + $0x118] sm:$0xff]
  %v57 = vld [vmem:[%s2 + $0x120] sm:$0xff]
  %v58 = vld [vmem:[%s2 + $0x128] sm:$0xff]
  %v59 = vld [vmem:[%s2 + $0x130] sm:$0xff]
  %v60 = vld [vmem:[%s2 + $0x138] sm:$0xff]
  %v61 = vld [vmem:[%s2 + $0x140] sm:$0xff]
  %v62 = vld [vmem:[%s2 + $0x148] sm:$0xff]
  %v63 = vld [vmem:[%s2 + $0x150] sm:$0xff]
  %v64 = vld [vmem:[%s2 + $0x158] sm:$0xff]
  %v65 = vld [vmem:[%s2 + $0x160] sm:$0xff]
  %v66 = vld [vmem:[%s2 + $0x168] sm:$0xff]
  %v67 = vld [vmem:[%s2 + $0x170] sm:$0xff]
  %v68 = vld [vmem:[%s2 + $0x178] sm:$0xff]
  %v69 = vld [vmem:[%s2 + $0x180] sm:$0xff]
  %v70 = vld [vmem:[%s2 + $0x188] sm:$0xff]
  %v71 = vld [vmem:[%s2 + $0x190] sm:$0xff]
  %v72 = vld [vmem:[%s2 + $0x198] sm:$0xff]
  %v73 = vld [vmem:[%s2 + $0x1a0] sm:$0xff]
  %v74 = vld [vmem:[%s2 + $0x1a8] sm:$0xff]
  %v75 = vld [vmem:[%s2 + $0x1b0] sm:$0xff]
  %v76 = vld [vmem:[%s2 + $0x1b8] sm:$0xff]
  %v77 = vld [vmem:[%s2 + $0x1c0] sm:$0xff]
  %v78 = vld [vmem:[%s2 + $0x1c8] sm:$0xff]
  %v79 = vld [vmem:[%s2 + $0x1d0] sm:$0xff]
  %v80 = vld [vmem:[%s2 + $0x1d8] sm:$0xff]
  %v81 = vld [vmem:[%s2 + $0x1e0] sm:$0xff]
  %v82 = vld [vmem:[%s2 + $0x1e8] sm:$0xff]
  %v83 = vld [vmem:[%s2 + $0x1f0] sm:$0xff]
  %v84 = vld [vmem:[%s2 + $0x1f8] sm:$0xff]
  %v85 = vld [vmem:[%s2 + $0x200] sm:$0xff]
  %v86 = vld [vmem:[%s2 + $0x208] sm:$0xff]
  %v87 = vld [vmem:[%s2 + $0x210] sm:$0xff]
  %v88 = vld [vmem:[%s2 + $0x218] sm:$0xff]
  %v89 = vld [vmem:[%s2 + $0x220] sm:$0xff]
  %v90 = vld [vmem:[%s2 + $0x228] sm:$0xff]
  %v91 = vld [vmem:[%s2 + $0x230] sm:$0xff]
  %v92 = vld [vmem:[%s2 + $0x238] sm:$0xff]
  %v93 = vld [vmem:[%s1] sm:$0xff]
  %v94 = vld [vmem:[%s1 + $0x8] sm:$0xff]
  %96 = vset.pattern.permute.xlu0 0
  %97 = vperm.xlu0 %96, %v93
  %v98 = vpop.permute.xlu0 %97
  %101 = vset.pattern.permute.xlu0 0
  %102 = vperm.xlu0 %101, %v94
  %v103 = vpop.permute.xlu0 %102
  %vm105 = vcmask 130048
  %v107 = vsel %vm105, %v18, 0
  %v110 = vsel %vm105, %v20, 0
  %v112 = vand.u32 %v82, 4294901760
  %113 = vmatprep.subr.mxu0 %v112
  %v114 = vand.u32 %v81, 4294901760
  %115 = vmatpush1.msra.mxu0 %v114
  %v116 = vand.u32 %v78, 4294901760
  %117 = vmatprep.subr.mxu0 %v116
  %v118 = vand.u32 %v77, 4294901760
  %119 = vmatpush1.msra.mxu0 %v118
  %v120 = vand.u32 %v74, 4294901760
  %121 = vmatprep.subr.mxu0 %v120
  %v122 = vand.u32 %v73, 4294901760
  %123 = vmatpush1.msra.mxu0 %v122
  %v124 = vand.u32 %v70, 4294901760
  %125 = vmatprep.subr.mxu0 %v124
  %v126 = vand.u32 %v69, 4294901760
  %127 = vmatpush1.msra.mxu0 %v126
  %v128 = vand.u32 %v66, 4294901760
  %129 = vmatprep.subr.mxu0 %v128
  %v130 = vand.u32 %v65, 4294901760
  %131 = vmatpush1.msra.mxu0 %v130
  %v132 = vand.u32 %v62, 4294901760
  %133 = vmatprep.subr.mxu0 %v132
  %v134 = vand.u32 %v61, 4294901760
  %135 = vmatpush1.msra.mxu0 %v134
  %v136 = vand.u32 %v58, 4294901760
  %137 = vmatprep.subr.mxu0 %v136
  %v138 = vand.u32 %v57, 4294901760
  %139 = vmatpush1.msra.mxu0 %v138
  %v140 = vand.u32 %v54, 4294901760
  %141 = vmatprep.subr.mxu0 %v140
  %v142 = vand.u32 %v53, 4294901760
  %143 = vmatpush1.msra.mxu0 %v142
  %v144 = vand.u32 %v50, 4294901760
  %145 = vmatprep.subr.mxu0 %v144
  %v146 = vand.u32 %v49, 4294901760
  %147 = vmatpush1.msra.mxu0 %v146
  %v148 = vand.u32 %v46, 4294901760
  %149 = vmatprep.subr.mxu0 %v148
  %v150 = vand.u32 %v45, 4294901760
  %151 = vmatpush1.msra.mxu0 %v150
  %v152 = vand.u32 %v42, 4294901760
  %153 = vmatprep.subr.mxu0 %v152
  %v154 = vand.u32 %v41, 4294901760
  %155 = vmatpush1.msra.mxu0 %v154
  %v156 = vand.u32 %v38, 4294901760
  %157 = vmatprep.subr.mxu0 %v156
  %v158 = vand.u32 %v37, 4294901760
  %159 = vmatpush1.msra.mxu0 %v158
  %v160 = vand.u32 %v34, 4294901760
  %161 = vmatprep.subr.mxu0 %v160
  %v162 = vand.u32 %v33, 4294901760
  %163 = vmatpush1.msra.mxu0 %v162
  %v164 = vand.u32 %v30, 4294901760
  %165 = vmatprep.subr.mxu0 %v164
  %v166 = vand.u32 %v29, 4294901760
  %167 = vmatpush1.msra.mxu0 %v166
  %v168 = vand.u32 %v26, 4294901760
  %169 = vmatprep.subr.mxu0 %v168
  %v170 = vand.u32 %v25, 4294901760
  %171 = vmatpush1.msra.mxu0 %v170
  %v172 = vand.u32 %v22, 4294901760
  %173 = vmatprep.subr.mxu0 %v172
  %v174 = vand.u32 %v21, 4294901760
  %175 = vmatpush1.msra.mxu0 %v174
  %176 = vmatprep.subr.mxu0 0.0
  %177 = vmatpush2.msra.mxu0 0.0
  %178 = vmatprep.subr.mxu0 0.0
  %179 = vmatpush2.msra.mxu0 0.0
  %180 = vmatprep.subr.mxu0 0.0
  %181 = vmatpush2.msra.mxu0 0.0
  %182 = vmatprep.subr.mxu0 0.0
  %183 = vmatpush2.msra.mxu0 0.0
  %184 = vmatprep.subr.mxu0 0.0
  %185 = vmatpush2.msra.mxu0 0.0
  %186 = vmatprep.subr.mxu0 0.0
  %187 = vmatpush2.msra.mxu0 0.0
  %188 = vmatprep.subr.mxu0 0.0
  %189 = vmatpush2.msra.mxu0 0.0
  %190 = vmatprep.subr.mxu0 0.0
  %191 = vmatpush2.msra.mxu0 0.0
  %192 = vmatprep.subr.mxu0 0.0
  %193 = vmatpush2.msra.mxu0 0.0
  %194 = vmatprep.subr.mxu0 0.0
  %195 = vmatpush2.msra.mxu0 0.0
  %196 = vmatprep.subr.mxu0 0.0
  %197 = vmatpush2.msra.mxu0 0.0
  %198 = vmatprep.subr.mxu0 0.0
  %199 = vmatpush2.msra.mxu0 0.0
  %200 = vmatprep.subr.mxu0 0.0
  %201 = vmatpush2.msra.mxu0 0.0
  %202 = vmatprep.subr.mxu0 0.0
  %203 = vmatpush2.msra.mxu0 0.0
  %v204 = vand.u32 %v90, 4294901760
  %205 = vmatprep.subr.mxu0 %v204
  %v206 = vand.u32 %v89, 4294901760
  %207 = vmatpush2.msra.mxu0 %v206
  %v208 = vand.u32 %v86, 4294901760
  %209 = vmatprep.subr.mxu0 %v208
  %v210 = vand.u32 %v85, 4294901760
  %211 = vmatpush2.msra.mxu0 %v210
  %v212 = vand.u32 %v107, 4294901760
  %v213 = vsub.f32 %v107, %v212
  %v214 = vand.u32 %v213, 4294901760
  %v215 = vsub.f32 %v213, %v214
  %v216 = vand.u32 %v215, 4294901760
  %217 = vmatprep.mubr.f32.mxu0 %v216
  %v218 = vand.u32 %v17, 4294901760
  %v219 = vsub.f32 %v17, %v218
  %v220 = vand.u32 %v219, 4294901760
  %v221 = vsub.f32 %v219, %v220
  %v222 = vand.u32 %v221, 4294901760
  %223 = vmatmul.mubr.f32.gmra.mxu0 %v222
  %v224 = vpop.f32.mrf.mxu0
  %v225 = vadd.f32 %v98, %v224
  %v226 = vpop.f32.mrf.mxu0
  %v227 = vadd.f32 %v98, %v226
  %v228 = vand.u32 %v110, 4294901760
  %v229 = vsub.f32 %v110, %v228
  %v230 = vand.u32 %v229, 4294901760
  %v231 = vsub.f32 %v229, %v230
  %v232 = vand.u32 %v231, 4294901760
  %233 = vmatprep.mubr.f32.mxu0 %v232
  %v234 = vand.u32 %v19, 4294901760
  %v235 = vsub.f32 %v19, %v234
  %v236 = vand.u32 %v235, 4294901760
  %v237 = vsub.f32 %v235, %v236
  %v238 = vand.u32 %v237, 4294901760
  %239 = vmatmul.mubr.f32.gmra.mxu0 %v238
  %v240 = vpop.f32.mrf.mxu0
  %v241 = vadd.f32 %v103, %v240
  %v242 = vpop.f32.mrf.mxu0
  %v243 = vadd.f32 %v103, %v242
  %244 = vdwg.mxu0
  %v245 = vand.u32 %v82, 4294901760
  %v246 = vsub.f32 %v82, %v245
  %v247 = vand.u32 %v246, 4294901760
  %v248 = vsub.f32 %v246, %v247
  %v249 = vand.u32 %v248, 4294901760
  %250 = vmatprep.subr.mxu0 %v249
  %v251 = vand.u32 %v81, 4294901760
  %v252 = vsub.f32 %v81, %v251
  %v253 = vand.u32 %v252, 4294901760
  %v254 = vsub.f32 %v252, %v253
  %v255 = vand.u32 %v254, 4294901760
  %256 = vmatpush1.msra.mxu0 %v255
  %v257 = vand.u32 %v78, 4294901760
  %v258 = vsub.f32 %v78, %v257
  %v259 = vand.u32 %v258, 4294901760
  %v260 = vsub.f32 %v258, %v259
  %v261 = vand.u32 %v260, 4294901760
  %262 = vmatprep.subr.mxu0 %v261
  %v263 = vand.u32 %v77, 4294901760
  %v264 = vsub.f32 %v77, %v263
  %v265 = vand.u32 %v264, 4294901760
  %v266 = vsub.f32 %v264, %v265
  %v267 = vand.u32 %v266, 4294901760
  %268 = vmatpush1.msra.mxu0 %v267
  %v269 = vand.u32 %v74, 4294901760
  %v270 = vsub.f32 %v74, %v269
  %v271 = vand.u32 %v270, 4294901760
  %v272 = vsub.f32 %v270, %v271
  %v273 = vand.u32 %v272, 4294901760
  %274 = vmatprep.subr.mxu0 %v273
  %v275 = vand.u32 %v73, 4294901760
  %v276 = vsub.f32 %v73, %v275
  %v277 = vand.u32 %v276, 4294901760
  %v278 = vsub.f32 %v276, %v277
  %v279 = vand.u32 %v278, 4294901760
  %280 = vmatpush1.msra.mxu0 %v279
  %v281 = vand.u32 %v70, 4294901760
  %v282 = vsub.f32 %v70, %v281
  %v283 = vand.u32 %v282, 4294901760
  %v284 = vsub.f32 %v282, %v283
  %v285 = vand.u32 %v284, 4294901760
  %286 = vmatprep.subr.mxu0 %v285
  %v287 = vand.u32 %v69, 4294901760
  %v288 = vsub.f32 %v69, %v287
  %v289 = vand.u32 %v288, 4294901760
  %v290 = vsub.f32 %v288, %v289
  %v291 = vand.u32 %v290, 4294901760
  %292 = vmatpush1.msra.mxu0 %v291
  %v293 = vand.u32 %v66, 4294901760
  %v294 = vsub.f32 %v66, %v293
  %v295 = vand.u32 %v294, 4294901760
  %v296 = vsub.f32 %v294, %v295
  %v297 = vand.u32 %v296, 4294901760
  %298 = vmatprep.subr.mxu0 %v297
  %v299 = vand.u32 %v65, 4294901760
  %v300 = vsub.f32 %v65, %v299
  %v301 = vand.u32 %v300, 4294901760
  %v302 = vsub.f32 %v300, %v301
  %v303 = vand.u32 %v302, 4294901760
  %304 = vmatpush1.msra.mxu0 %v303
  %v305 = vand.u32 %v62, 4294901760
  %v306 = vsub.f32 %v62, %v305
  %v307 = vand.u32 %v306, 4294901760
  %v308 = vsub.f32 %v306, %v307
  %v309 = vand.u32 %v308, 4294901760
  %310 = vmatprep.subr.mxu0 %v309
  %v311 = vand.u32 %v61, 4294901760
  %v312 = vsub.f32 %v61, %v311
  %v313 = vand.u32 %v312, 4294901760
  %v314 = vsub.f32 %v312, %v313
  %v315 = vand.u32 %v314, 4294901760
  %316 = vmatpush1.msra.mxu0 %v315
  %v317 = vand.u32 %v58, 4294901760
  %v318 = vsub.f32 %v58, %v317
  %v319 = vand.u32 %v318, 4294901760
  %v320 = vsub.f32 %v318, %v319
  %v321 = vand.u32 %v320, 4294901760
  %322 = vmatprep.subr.mxu0 %v321
  %v323 = vand.u32 %v57, 4294901760
  %v324 = vsub.f32 %v57, %v323
  %v325 = vand.u32 %v324, 4294901760
  %v326 = vsub.f32 %v324, %v325
  %v327 = vand.u32 %v326, 4294901760
  %328 = vmatpush1.msra.mxu0 %v327
  %v329 = vand.u32 %v54, 4294901760
  %v330 = vsub.f32 %v54, %v329
  %v331 = vand.u32 %v330, 4294901760
  %v332 = vsub.f32 %v330, %v331
  %v333 = vand.u32 %v332, 4294901760
  %334 = vmatprep.subr.mxu0 %v333
  %v335 = vand.u32 %v53, 4294901760
  %v336 = vsub.f32 %v53, %v335
  %v337 = vand.u32 %v336, 4294901760
  %v338 = vsub.f32 %v336, %v337
  %v339 = vand.u32 %v338, 4294901760
  %340 = vmatpush1.msra.mxu0 %v339
  %v341 = vand.u32 %v50, 4294901760
  %v342 = vsub.f32 %v50, %v341
  %v343 = vand.u32 %v342, 4294901760
  %v344 = vsub.f32 %v342, %v343
  %v345 = vand.u32 %v344, 4294901760
  %346 = vmatprep.subr.mxu0 %v345
  %v347 = vand.u32 %v49, 4294901760
  %v348 = vsub.f32 %v49, %v347
  %v349 = vand.u32 %v348, 4294901760
  %v350 = vsub.f32 %v348, %v349
  %v351 = vand.u32 %v350, 4294901760
  %352 = vmatpush1.msra.mxu0 %v351
  %v353 = vand.u32 %v46, 4294901760
  %v354 = vsub.f32 %v46, %v353
  %v355 = vand.u32 %v354, 4294901760
  %v356 = vsub.f32 %v354, %v355
  %v357 = vand.u32 %v356, 4294901760
  %358 = vmatprep.subr.mxu0 %v357
  %v359 = vand.u32 %v45, 4294901760
  %v360 = vsub.f32 %v45, %v359
  %v361 = vand.u32 %v360, 4294901760
  %v362 = vsub.f32 %v360, %v361
  %v363 = vand.u32 %v362, 4294901760
  %364 = vmatpush1.msra.mxu0 %v363
  %v365 = vand.u32 %v42, 4294901760
  %v366 = vsub.f32 %v42, %v365
  %v367 = vand.u32 %v366, 4294901760
  %v368 = vsub.f32 %v366, %v367
  %v369 = vand.u32 %v368, 4294901760
  %370 = vmatprep.subr.mxu0 %v369
  %v371 = vand.u32 %v41, 4294901760
  %v372 = vsub.f32 %v41, %v371
  %v373 = vand.u32 %v372, 4294901760
  %v374 = vsub.f32 %v372, %v373
  %v375 = vand.u32 %v374, 4294901760
  %376 = vmatpush1.msra.mxu0 %v375
  %v377 = vand.u32 %v38, 4294901760
  %v378 = vsub.f32 %v38, %v377
  %v379 = vand.u32 %v378, 4294901760
  %v380 = vsub.f32 %v378, %v379
  %v381 = vand.u32 %v380, 4294901760
  %382 = vmatprep.subr.mxu0 %v381
  %v383 = vand.u32 %v37, 4294901760
  %v384 = vsub.f32 %v37, %v383
  %v385 = vand.u32 %v384, 4294901760
  %v386 = vsub.f32 %v384, %v385
  %v387 = vand.u32 %v386, 4294901760
  %388 = vmatpush1.msra.mxu0 %v387
  %v389 = vand.u32 %v34, 4294901760
  %v390 = vsub.f32 %v34, %v389
  %v391 = vand.u32 %v390, 4294901760
  %v392 = vsub.f32 %v390, %v391
  %v393 = vand.u32 %v392, 4294901760
  %394 = vmatprep.subr.mxu0 %v393
  %v395 = vand.u32 %v33, 4294901760
  %v396 = vsub.f32 %v33, %v395
  %v397 = vand.u32 %v396, 4294901760
  %v398 = vsub.f32 %v396, %v397
  %v399 = vand.u32 %v398, 4294901760
  %400 = vmatpush1.msra.mxu0 %v399
  %v401 = vand.u32 %v30, 4294901760
  %v402 = vsub.f32 %v30, %v401
  %v403 = vand.u32 %v402, 4294901760
  %v404 = vsub.f32 %v402, %v403
  %v405 = vand.u32 %v404, 4294901760
  %406 = vmatprep.subr.mxu0 %v405
  %v407 = vand.u32 %v29, 4294901760
  %v408 = vsub.f32 %v29, %v407
  %v409 = vand.u32 %v408, 4294901760
  %v410 = vsub.f32 %v408, %v409
  %v411 = vand.u32 %v410, 4294901760
  %412 = vmatpush1.msra.mxu0 %v411
  %v413 = vand.u32 %v26, 4294901760
  %v414 = vsub.f32 %v26, %v413
  %v415 = vand.u32 %v414, 4294901760
  %v416 = vsub.f32 %v414, %v415
  %v417 = vand.u32 %v416, 4294901760
  %418 = vmatprep.subr.mxu0 %v417
  %v419 = vand.u32 %v25, 4294901760
  %v420 = vsub.f32 %v25, %v419
  %v421 = vand.u32 %v420, 4294901760
  %v422 = vsub.f32 %v420, %v421
  %v423 = vand.u32 %v422, 4294901760
  %424 = vmatpush1.msra.mxu0 %v423
  %v425 = vand.u32 %v22, 4294901760
  %v426 = vsub.f32 %v22, %v425
  %v427 = vand.u32 %v426, 4294901760
  %v428 = vsub.f32 %v426, %v427
  %v429 = vand.u32 %v428, 4294901760
  %430 = vmatprep.subr.mxu0 %v429
  %v431 = vand.u32 %v21, 4294901760
  %v432 = vsub.f32 %v21, %v431
  %v433 = vand.u32 %v432, 4294901760
  %v434 = vsub.f32 %v432, %v433
  %v435 = vand.u32 %v434, 4294901760
  %436 = vmatpush1.msra.mxu0 %v435
  %437 = vmatprep.subr.mxu0 0.0
  %438 = vmatpush2.msra.mxu0 0.0
  %439 = vmatprep.subr.mxu0 0.0
  %440 = vmatpush2.msra.mxu0 0.0
  %441 = vmatprep.subr.mxu0 0.0
  %442 = vmatpush2.msra.mxu0 0.0
  %443 = vmatprep.subr.mxu0 0.0
  %444 = vmatpush2.msra.mxu0 0.0
  %445 = vmatprep.subr.mxu0 0.0
  %446 = vmatpush2.msra.mxu0 0.0
  %447 = vmatprep.subr.mxu0 0.0
  %448 = vmatpush2.msra.mxu0 0.0
  %449 = vmatprep.subr.mxu0 0.0
  %450 = vmatpush2.msra.mxu0 0.0
  %451 = vmatprep.subr.mxu0 0.0
  %452 = vmatpush2.msra.mxu0 0.0
  %453 = vmatprep.subr.mxu0 0.0
  %454 = vmatpush2.msra.mxu0 0.0
  %455 = vmatprep.subr.mxu0 0.0
  %456 = vmatpush2.msra.mxu0 0.0
  %457 = vmatprep.subr.mxu0 0.0
  %458 = vmatpush2.msra.mxu0 0.0
  %459 = vmatprep.subr.mxu0 0.0
  %460 = vmatpush2.msra.mxu0 0.0
  %461 = vmatprep.subr.mxu0 0.0
  %462 = vmatpush2.msra.mxu0 0.0
  %463 = vmatprep.subr.mxu0 0.0
  %464 = vmatpush2.msra.mxu0 0.0
  %v465 = vand.u32 %v90, 4294901760
  %v466 = vsub.f32 %v90, %v465
  %v467 = vand.u32 %v466, 4294901760
  %v468 = vsub.f32 %v466, %v467
  %v469 = vand.u32 %v468, 4294901760
  %470 = vmatprep.subr.mxu0 %v469
  %v471 = vand.u32 %v89, 4294901760
  %v472 = vsub.f32 %v89, %v471
  %v473 = vand.u32 %v472, 4294901760
  %v474 = vsub.f32 %v472, %v473
  %v475 = vand.u32 %v474, 4294901760
  %476 = vmatpush2.msra.mxu0 %v475
  %v477 = vand.u32 %v86, 4294901760
  %v478 = vsub.f32 %v86, %v477
  %v479 = vand.u32 %v478, 4294901760
  %v480 = vsub.f32 %v478, %v479
  %v481 = vand.u32 %v480, 4294901760
  %482 = vmatprep.subr.mxu0 %v481
  %v483 = vand.u32 %v85, 4294901760
  %v484 = vsub.f32 %v85, %v483
  %v485 = vand.u32 %v484, 4294901760
  %v486 = vsub.f32 %v484, %v485
  %v487 = vand.u32 %v486, 4294901760
  %488 = vmatpush2.msra.mxu0 %v487
  %v489 = vand.u32 %v107, 4294901760
  %490 = vmatprep.mubr.f32.mxu0 %v489
  %v491 = vand.u32 %v17, 4294901760
  %492 = vmatmul.mubr.f32.gmra.mxu0 %v491
  %v493 = vpop.f32.mrf.mxu0
  %v494 = vadd.f32 %v225, %v493
  %v495 = vpop.f32.mrf.mxu0
  %v496 = vadd.f32 %v227, %v495
  %v497 = vand.u32 %v110, 4294901760
  %498 = vmatprep.mubr.f32.mxu0 %v497
  %v499 = vand.u32 %v19, 4294901760
  %500 = vmatmul.mubr.f32.gmra.mxu0 %v499
  %v501 = vpop.f32.mrf.mxu0
  %v502 = vadd.f32 %v241, %v501
  %v503 = vpop.f32.mrf.mxu0
  %v504 = vadd.f32 %v243, %v503
  %505 = vdwg.mxu0
  %v506 = vand.u32 %v82, 4294901760
  %v507 = vsub.f32 %v82, %v506
  %508 = vmatprep.subr.mxu0 %v507
  %v509 = vand.u32 %v81, 4294901760
  %v510 = vsub.f32 %v81, %v509
  %511 = vmatpush1.msra.mxu0 %v510
  %v512 = vand.u32 %v78, 4294901760
  %v513 = vsub.f32 %v78, %v512
  %514 = vmatprep.subr.mxu0 %v513
  %v515 = vand.u32 %v77, 4294901760
  %v516 = vsub.f32 %v77, %v515
  %517 = vmatpush1.msra.mxu0 %v516
  %v518 = vand.u32 %v74, 4294901760
  %v519 = vsub.f32 %v74, %v518
  %520 = vmatprep.subr.mxu0 %v519
  %v521 = vand.u32 %v73, 4294901760
  %v522 = vsub.f32 %v73, %v521
  %523 = vmatpush1.msra.mxu0 %v522
  %v524 = vand.u32 %v70, 4294901760
  %v525 = vsub.f32 %v70, %v524
  %526 = vmatprep.subr.mxu0 %v525
  %v527 = vand.u32 %v69, 4294901760
  %v528 = vsub.f32 %v69, %v527
  %529 = vmatpush1.msra.mxu0 %v528
  %v530 = vand.u32 %v66, 4294901760
  %v531 = vsub.f32 %v66, %v530
  %532 = vmatprep.subr.mxu0 %v531
  %v533 = vand.u32 %v65, 4294901760
  %v534 = vsub.f32 %v65, %v533
  %535 = vmatpush1.msra.mxu0 %v534
  %v536 = vand.u32 %v62, 4294901760
  %v537 = vsub.f32 %v62, %v536
  %538 = vmatprep.subr.mxu0 %v537
  %v539 = vand.u32 %v61, 4294901760
  %v540 = vsub.f32 %v61, %v539
  %541 = vmatpush1.msra.mxu0 %v540
  %v542 = vand.u32 %v58, 4294901760
  %v543 = vsub.f32 %v58, %v542
  %544 = vmatprep.subr.mxu0 %v543
  %v545 = vand.u32 %v57, 4294901760
  %v546 = vsub.f32 %v57, %v545
  %547 = vmatpush1.msra.mxu0 %v546
  %v548 = vand.u32 %v54, 4294901760
  %v549 = vsub.f32 %v54, %v548
  %550 = vmatprep.subr.mxu0 %v549
  %v551 = vand.u32 %v53, 4294901760
  %v552 = vsub.f32 %v53, %v551
  %553 = vmatpush1.msra.mxu0 %v552
  %v554 = vand.u32 %v50, 4294901760
  %v555 = vsub.f32 %v50, %v554
  %556 = vmatprep.subr.mxu0 %v555
  %v557 = vand.u32 %v49, 4294901760
  %v558 = vsub.f32 %v49, %v557
  %559 = vmatpush1.msra.mxu0 %v558
  %v560 = vand.u32 %v46, 4294901760
  %v561 = vsub.f32 %v46, %v560
  %562 = vmatprep.subr.mxu0 %v561
  %v563 = vand.u32 %v45, 4294901760
  %v564 = vsub.f32 %v45, %v563
  %565 = vmatpush1.msra.mxu0 %v564
  %v566 = vand.u32 %v42, 4294901760
  %v567 = vsub.f32 %v42, %v566
  %568 = vmatprep.subr.mxu0 %v567
  %v569 = vand.u32 %v41, 4294901760
  %v570 = vsub.f32 %v41, %v569
  %571 = vmatpush1.msra.mxu0 %v570
  %v572 = vand.u32 %v38, 4294901760
  %v573 = vsub.f32 %v38, %v572
  %574 = vmatprep.subr.mxu0 %v573
  %v575 = vand.u32 %v37, 4294901760
  %v576 = vsub.f32 %v37, %v575
  %577 = vmatpush1.msra.mxu0 %v576
  %v578 = vand.u32 %v34, 4294901760
  %v579 = vsub.f32 %v34, %v578
  %580 = vmatprep.subr.mxu0 %v579
  %v581 = vand.u32 %v33, 4294901760
  %v582 = vsub.f32 %v33, %v581
  %583 = vmatpush1.msra.mxu0 %v582
  %v584 = vand.u32 %v30, 4294901760
  %v585 = vsub.f32 %v30, %v584
  %586 = vmatprep.subr.mxu0 %v585
  %v587 = vand.u32 %v29, 4294901760
  %v588 = vsub.f32 %v29, %v587
  %589 = vmatpush1.msra.mxu0 %v588
  %v590 = vand.u32 %v26, 4294901760
  %v591 = vsub.f32 %v26, %v590
  %592 = vmatprep.subr.mxu0 %v591
  %v593 = vand.u32 %v25, 4294901760
  %v594 = vsub.f32 %v25, %v593
  %595 = vmatpush1.msra.mxu0 %v594
  %v596 = vand.u32 %v22, 4294901760
  %v597 = vsub.f32 %v22, %v596
  %598 = vmatprep.subr.mxu0 %v597
  %v599 = vand.u32 %v21, 4294901760
  %v600 = vsub.f32 %v21, %v599
  %601 = vmatpush1.msra.mxu0 %v600
  %602 = vmatprep.subr.mxu0 0.0
  %603 = vmatpush2.msra.mxu0 0.0
  %604 = vmatprep.subr.mxu0 0.0
  %605 = vmatpush2.msra.mxu0 0.0
  %606 = vmatprep.subr.mxu0 0.0
  %607 = vmatpush2.msra.mxu0 0.0
  %608 = vmatprep.subr.mxu0 0.0
  %609 = vmatpush2.msra.mxu0 0.0
  %610 = vmatprep.subr.mxu0 0.0
  %611 = vmatpush2.msra.mxu0 0.0
  %612 = vmatprep.subr.mxu0 0.0
  %613 = vmatpush2.msra.mxu0 0.0
  %614 = vmatprep.subr.mxu0 0.0
  %615 = vmatpush2.msra.mxu0 0.0
  %616 = vmatprep.subr.mxu0 0.0
  %617 = vmatpush2.msra.mxu0 0.0
  %618 = vmatprep.subr.mxu0 0.0
  %619 = vmatpush2.msra.mxu0 0.0
  %620 = vmatprep.subr.mxu0 0.0
  %621 = vmatpush2.msra.mxu0 0.0
  %622 = vmatprep.subr.mxu0 0.0
  %623 = vmatpush2.msra.mxu0 0.0
  %624 = vmatprep.subr.mxu0 0.0
  %625 = vmatpush2.msra.mxu0 0.0
  %626 = vmatprep.subr.mxu0 0.0
  %627 = vmatpush2.msra.mxu0 0.0
  %628 = vmatprep.subr.mxu0 0.0
  %629 = vmatpush2.msra.mxu0 0.0
  %v630 = vand.u32 %v90, 4294901760
  %v631 = vsub.f32 %v90, %v630
  %632 = vmatprep.subr.mxu0 %v631
  %v633 = vand.u32 %v89, 4294901760
  %v634 = vsub.f32 %v89, %v633
  %635 = vmatpush2.msra.mxu0 %v634
  %v636 = vand.u32 %v86, 4294901760
  %v637 = vsub.f32 %v86, %v636
  %638 = vmatprep.subr.mxu0 %v637
  %v639 = vand.u32 %v85, 4294901760
  %v640 = vsub.f32 %v85, %v639
  %641 = vmatpush2.msra.mxu0 %v640
  %v642 = vand.u32 %v107, 4294901760
  %v643 = vsub.f32 %v107, %v642
  %644 = vmatprep.mubr.f32.mxu0 %v643
  %v645 = vand.u32 %v17, 4294901760
  %v646 = vsub.f32 %v17, %v645
  %647 = vmatmul.mubr.f32.gmra.mxu0 %v646
  %v648 = vpop.f32.mrf.mxu0
  %v649 = vadd.f32 %v494, %v648
  %v650 = vpop.f32.mrf.mxu0
  %v651 = vadd.f32 %v496, %v650
  %v652 = vand.u32 %v110, 4294901760
  %v653 = vsub.f32 %v110, %v652
  %654 = vmatprep.mubr.f32.mxu0 %v653
  %v655 = vand.u32 %v19, 4294901760
  %v656 = vsub.f32 %v19, %v655
  %657 = vmatmul.mubr.f32.gmra.mxu0 %v656
  %v658 = vpop.f32.mrf.mxu0
  %v659 = vadd.f32 %v502, %v658
  %v660 = vpop.f32.mrf.mxu0
  %v661 = vadd.f32 %v504, %v660
  %662 = vdwg.mxu0
  %v663 = vand.u32 %v82, 4294901760
  %664 = vmatprep.subr.mxu0 %v663
  %v665 = vand.u32 %v81, 4294901760
  %666 = vmatpush1.msra.mxu0 %v665
  %v667 = vand.u32 %v78, 4294901760
  %668 = vmatprep.subr.mxu0 %v667
  %v669 = vand.u32 %v77, 4294901760
  %670 = vmatpush1.msra.mxu0 %v669
  %v671 = vand.u32 %v74, 4294901760
  %672 = vmatprep.subr.mxu0 %v671
  %v673 = vand.u32 %v73, 4294901760
  %674 = vmatpush1.msra.mxu0 %v673
  %v675 = vand.u32 %v70, 4294901760
  %676 = vmatprep.subr.mxu0 %v675
  %v677 = vand.u32 %v69, 4294901760
  %678 = vmatpush1.msra.mxu0 %v677
  %v679 = vand.u32 %v66, 4294901760
  %680 = vmatprep.subr.mxu0 %v679
  %v681 = vand.u32 %v65, 4294901760
  %682 = vmatpush1.msra.mxu0 %v681
  %v683 = vand.u32 %v62, 4294901760
  %684 = vmatprep.subr.mxu0 %v683
  %v685 = vand.u32 %v61, 4294901760
  %686 = vmatpush1.msra.mxu0 %v685
  %v687 = vand.u32 %v58, 4294901760
  %688 = vmatprep.subr.mxu0 %v687
  %v689 = vand.u32 %v57, 4294901760
  %690 = vmatpush1.msra.mxu0 %v689
  %v691 = vand.u32 %v54, 4294901760
  %692 = vmatprep.subr.mxu0 %v691
  %v693 = vand.u32 %v53, 4294901760
  %694 = vmatpush1.msra.mxu0 %v693
  %v695 = vand.u32 %v50, 4294901760
  %696 = vmatprep.subr.mxu0 %v695
  %v697 = vand.u32 %v49, 4294901760
  %698 = vmatpush1.msra.mxu0 %v697
  %v699 = vand.u32 %v46, 4294901760
  %700 = vmatprep.subr.mxu0 %v699
  %v701 = vand.u32 %v45, 4294901760
  %702 = vmatpush1.msra.mxu0 %v701
  %v703 = vand.u32 %v42, 4294901760
  %704 = vmatprep.subr.mxu0 %v703
  %v705 = vand.u32 %v41, 4294901760
  %706 = vmatpush1.msra.mxu0 %v705
  %v707 = vand.u32 %v38, 4294901760
  %708 = vmatprep.subr.mxu0 %v707
  %v709 = vand.u32 %v37, 4294901760
  %710 = vmatpush1.msra.mxu0 %v709
  %v711 = vand.u32 %v34, 4294901760
  %712 = vmatprep.subr.mxu0 %v711
  %v713 = vand.u32 %v33, 4294901760
  %714 = vmatpush1.msra.mxu0 %v713
  %v715 = vand.u32 %v30, 4294901760
  %716 = vmatprep.subr.mxu0 %v715
  %v717 = vand.u32 %v29, 4294901760
  %718 = vmatpush1.msra.mxu0 %v717
  %v719 = vand.u32 %v26, 4294901760
  %720 = vmatprep.subr.mxu0 %v719
  %v721 = vand.u32 %v25, 4294901760
  %722 = vmatpush1.msra.mxu0 %v721
  %v723 = vand.u32 %v22, 4294901760
  %724 = vmatprep.subr.mxu0 %v723
  %v725 = vand.u32 %v21, 4294901760
  %726 = vmatpush1.msra.mxu0 %v725
  %727 = vmatprep.subr.mxu0 0.0
  %728 = vmatpush2.msra.mxu0 0.0
  %729 = vmatprep.subr.mxu0 0.0
  %730 = vmatpush2.msra.mxu0 0.0
  %731 = vmatprep.subr.mxu0 0.0
  %732 = vmatpush2.msra.mxu0 0.0
  %733 = vmatprep.subr.mxu0 0.0
  %734 = vmatpush2.msra.mxu0 0.0
  %735 = vmatprep.subr.mxu0 0.0
  %736 = vmatpush2.msra.mxu0 0.0
  %737 = vmatprep.subr.mxu0 0.0
  %738 = vmatpush2.msra.mxu0 0.0
  %739 = vmatprep.subr.mxu0 0.0
  %740 = vmatpush2.msra.mxu0 0.0
  %741 = vmatprep.subr.mxu0 0.0
  %742 = vmatpush2.msra.mxu0 0.0
  %743 = vmatprep.subr.mxu0 0.0
  %744 = vmatpush2.msra.mxu0 0.0
  %745 = vmatprep.subr.mxu0 0.0
  %746 = vmatpush2.msra.mxu0 0.0
  %747 = vmatprep.subr.mxu0 0.0
  %748 = vmatpush2.msra.mxu0 0.0
  %749 = vmatprep.subr.mxu0 0.0
  %750 = vmatpush2.msra.mxu0 0.0
  %751 = vmatprep.subr.mxu0 0.0
  %752 = vmatpush2.msra.mxu0 0.0
  %753 = vmatprep.subr.mxu0 0.0
  %754 = vmatpush2.msra.mxu0 0.0
  %v755 = vand.u32 %v90, 4294901760
  %756 = vmatprep.subr.mxu0 %v755
  %v757 = vand.u32 %v89, 4294901760
  %758 = vmatpush2.msra.mxu0 %v757
  %v759 = vand.u32 %v86, 4294901760
  %760 = vmatprep.subr.mxu0 %v759
  %v761 = vand.u32 %v85, 4294901760
  %762 = vmatpush2.msra.mxu0 %v761
  %v763 = vand.u32 %v107, 4294901760
  %v764 = vsub.f32 %v107, %v763
  %v765 = vand.u32 %v764, 4294901760
  %766 = vmatprep.mubr.f32.mxu0 %v765
  %v767 = vand.u32 %v17, 4294901760
  %v768 = vsub.f32 %v17, %v767
  %v769 = vand.u32 %v768, 4294901760
  %770 = vmatmul.mubr.f32.gmra.mxu0 %v769
  %v771 = vpop.f32.mrf.mxu0
  %v772 = vadd.f32 %v649, %v771
  %v773 = vpop.f32.mrf.mxu0
  %v774 = vadd.f32 %v651, %v773
  %v775 = vand.u32 %v110, 4294901760
  %v776 = vsub.f32 %v110, %v775
  %v777 = vand.u32 %v776, 4294901760
  %778 = vmatprep.mubr.f32.mxu0 %v777
  %v779 = vand.u32 %v19, 4294901760
  %v780 = vsub.f32 %v19, %v779
  %v781 = vand.u32 %v780, 4294901760
  %782 = vmatmul.mubr.f32.gmra.mxu0 %v781
  %v783 = vpop.f32.mrf.mxu0
  %v784 = vadd.f32 %v659, %v783
  %v785 = vpop.f32.mrf.mxu0
  %v786 = vadd.f32 %v661, %v785
  %787 = vdwg.mxu0
  %v788 = vand.u32 %v82, 4294901760
  %v789 = vsub.f32 %v82, %v788
  %v790 = vand.u32 %v789, 4294901760
  %791 = vmatprep.subr.mxu0 %v790
  %v792 = vand.u32 %v81, 4294901760
  %v793 = vsub.f32 %v81, %v792
  %v794 = vand.u32 %v793, 4294901760
  %795 = vmatpush1.msra.mxu0 %v794
  %v796 = vand.u32 %v78, 4294901760
  %v797 = vsub.f32 %v78, %v796
  %v798 = vand.u32 %v797, 4294901760
  %799 = vmatprep.subr.mxu0 %v798
  %v800 = vand.u32 %v77, 4294901760
  %v801 = vsub.f32 %v77, %v800
  %v802 = vand.u32 %v801, 4294901760
  %803 = vmatpush1.msra.mxu0 %v802
  %v804 = vand.u32 %v74, 4294901760
  %v805 = vsub.f32 %v74, %v804
  %v806 = vand.u32 %v805, 4294901760
  %807 = vmatprep.subr.mxu0 %v806
  %v808 = vand.u32 %v73, 4294901760
  %v809 = vsub.f32 %v73, %v808
  %v810 = vand.u32 %v809, 4294901760
  %811 = vmatpush1.msra.mxu0 %v810
  %v812 = vand.u32 %v70, 4294901760
  %v813 = vsub.f32 %v70, %v812
  %v814 = vand.u32 %v813, 4294901760
  %815 = vmatprep.subr.mxu0 %v814
  %v816 = vand.u32 %v69, 4294901760
  %v817 = vsub.f32 %v69, %v816
  %v818 = vand.u32 %v817, 4294901760
  %819 = vmatpush1.msra.mxu0 %v818
  %v820 = vand.u32 %v66, 4294901760
  %v821 = vsub.f32 %v66, %v820
  %v822 = vand.u32 %v821, 4294901760
  %823 = vmatprep.subr.mxu0 %v822
  %v824 = vand.u32 %v65, 4294901760
  %v825 = vsub.f32 %v65, %v824
  %v826 = vand.u32 %v825, 4294901760
  %827 = vmatpush1.msra.mxu0 %v826
  %v828 = vand.u32 %v62, 4294901760
  %v829 = vsub.f32 %v62, %v828
  %v830 = vand.u32 %v829, 4294901760
  %831 = vmatprep.subr.mxu0 %v830
  %v832 = vand.u32 %v61, 4294901760
  %v833 = vsub.f32 %v61, %v832
  %v834 = vand.u32 %v833, 4294901760
  %835 = vmatpush1.msra.mxu0 %v834
  %v836 = vand.u32 %v58, 4294901760
  %v837 = vsub.f32 %v58, %v836
  %v838 = vand.u32 %v837, 4294901760
  %839 = vmatprep.subr.mxu0 %v838
  %v840 = vand.u32 %v57, 4294901760
  %v841 = vsub.f32 %v57, %v840
  %v842 = vand.u32 %v841, 4294901760
  %843 = vmatpush1.msra.mxu0 %v842
  %v844 = vand.u32 %v54, 4294901760
  %v845 = vsub.f32 %v54, %v844
  %v846 = vand.u32 %v845, 4294901760
  %847 = vmatprep.subr.mxu0 %v846
  %v848 = vand.u32 %v53, 4294901760
  %v849 = vsub.f32 %v53, %v848
  %v850 = vand.u32 %v849, 4294901760
  %851 = vmatpush1.msra.mxu0 %v850
  %v852 = vand.u32 %v50, 4294901760
  %v853 = vsub.f32 %v50, %v852
  %v854 = vand.u32 %v853, 4294901760
  %855 = vmatprep.subr.mxu0 %v854
  %v856 = vand.u32 %v49, 4294901760
  %v857 = vsub.f32 %v49, %v856
  %v858 = vand.u32 %v857, 4294901760
  %859 = vmatpush1.msra.mxu0 %v858
  %v860 = vand.u32 %v46, 4294901760
  %v861 = vsub.f32 %v46, %v860
  %v862 = vand.u32 %v861, 4294901760
  %863 = vmatprep.subr.mxu0 %v862
  %v864 = vand.u32 %v45, 4294901760
  %v865 = vsub.f32 %v45, %v864
  %v866 = vand.u32 %v865, 4294901760
  %867 = vmatpush1.msra.mxu0 %v866
  %v868 = vand.u32 %v42, 4294901760
  %v869 = vsub.f32 %v42, %v868
  %v870 = vand.u32 %v869, 4294901760
  %871 = vmatprep.subr.mxu0 %v870
  %v872 = vand.u32 %v41, 4294901760
  %v873 = vsub.f32 %v41, %v872
  %v874 = vand.u32 %v873, 4294901760
  %875 = vmatpush1.msra.mxu0 %v874
  %v876 = vand.u32 %v38, 4294901760
  %v877 = vsub.f32 %v38, %v876
  %v878 = vand.u32 %v877, 4294901760
  %879 = vmatprep.subr.mxu0 %v878
  %v880 = vand.u32 %v37, 4294901760
  %v881 = vsub.f32 %v37, %v880
  %v882 = vand.u32 %v881, 4294901760
  %883 = vmatpush1.msra.mxu0 %v882
  %v884 = vand.u32 %v34, 4294901760
  %v885 = vsub.f32 %v34, %v884
  %v886 = vand.u32 %v885, 4294901760
  %887 = vmatprep.subr.mxu0 %v886
  %v888 = vand.u32 %v33, 4294901760
  %v889 = vsub.f32 %v33, %v888
  %v890 = vand.u32 %v889, 4294901760
  %891 = vmatpush1.msra.mxu0 %v890
  %v892 = vand.u32 %v30, 4294901760
  %v893 = vsub.f32 %v30, %v892
  %v894 = vand.u32 %v893, 4294901760
  %895 = vmatprep.subr.mxu0 %v894
  %v896 = vand.u32 %v29, 4294901760
  %v897 = vsub.f32 %v29, %v896
  %v898 = vand.u32 %v897, 4294901760
  %899 = vmatpush1.msra.mxu0 %v898
  %v900 = vand.u32 %v26, 4294901760
  %v901 = vsub.f32 %v26, %v900
  %v902 = vand.u32 %v901, 4294901760
  %903 = vmatprep.subr.mxu0 %v902
  %v904 = vand.u32 %v25, 4294901760
  %v905 = vsub.f32 %v25, %v904
  %v906 = vand.u32 %v905, 4294901760
  %907 = vmatpush1.msra.mxu0 %v906
  %v908 = vand.u32 %v22, 4294901760
  %v909 = vsub.f32 %v22, %v908
  %v910 = vand.u32 %v909, 4294901760
  %911 = vmatprep.subr.mxu0 %v910
  %v912 = vand.u32 %v21, 4294901760
  %v913 = vsub.f32 %v21, %v912
  %v914 = vand.u32 %v913, 4294901760
  %915 = vmatpush1.msra.mxu0 %v914
  %916 = vmatprep.subr.mxu0 0.0
  %917 = vmatpush2.msra.mxu0 0.0
  %918 = vmatprep.subr.mxu0 0.0
  %919 = vmatpush2.msra.mxu0 0.0
  %920 = vmatprep.subr.mxu0 0.0
  %921 = vmatpush2.msra.mxu0 0.0
  %922 = vmatprep.subr.mxu0 0.0
  %923 = vmatpush2.msra.mxu0 0.0
  %924 = vmatprep.subr.mxu0 0.0
  %925 = vmatpush2.msra.mxu0 0.0
  %926 = vmatprep.subr.mxu0 0.0
  %927 = vmatpush2.msra.mxu0 0.0
  %928 = vmatprep.subr.mxu0 0.0
  %929 = vmatpush2.msra.mxu0 0.0
  %930 = vmatprep.subr.mxu0 0.0
  %931 = vmatpush2.msra.mxu0 0.0
  %932 = vmatprep.subr.mxu0 0.0
  %933 = vmatpush2.msra.mxu0 0.0
  %934 = vmatprep.subr.mxu0 0.0
  %935 = vmatpush2.msra.mxu0 0.0
  %936 = vmatprep.subr.mxu0 0.0
  %937 = vmatpush2.msra.mxu0 0.0
  %938 = vmatprep.subr.mxu0 0.0
  %939 = vmatpush2.msra.mxu0 0.0
  %940 = vmatprep.subr.mxu0 0.0
  %941 = vmatpush2.msra.mxu0 0.0
  %942 = vmatprep.subr.mxu0 0.0
  %943 = vmatpush2.msra.mxu0 0.0
  %v944 = vand.u32 %v90, 4294901760
  %v945 = vsub.f32 %v90, %v944
  %v946 = vand.u32 %v945, 4294901760
  %947 = vmatprep.subr.mxu0 %v946
  %v948 = vand.u32 %v89, 4294901760
  %v949 = vsub.f32 %v89, %v948
  %v950 = vand.u32 %v949, 4294901760
  %951 = vmatpush2.msra.mxu0 %v950
  %v952 = vand.u32 %v86, 4294901760
  %v953 = vsub.f32 %v86, %v952
  %v954 = vand.u32 %v953, 4294901760
  %955 = vmatprep.subr.mxu0 %v954
  %v956 = vand.u32 %v85, 4294901760
  %v957 = vsub.f32 %v85, %v956
  %v958 = vand.u32 %v957, 4294901760
  %959 = vmatpush2.msra.mxu0 %v958
  %v960 = vand.u32 %v107, 4294901760
  %961 = vmatprep.mubr.f32.mxu0 %v960
  %v962 = vand.u32 %v17, 4294901760
  %963 = vmatmul.mubr.f32.gmra.mxu0 %v962
  %v964 = vpop.f32.mrf.mxu0
  %v965 = vadd.f32 %v772, %v964
  %v966 = vpop.f32.mrf.mxu0
  %v967 = vadd.f32 %v774, %v966
  %v968 = vand.u32 %v110, 4294901760
  %969 = vmatprep.mubr.f32.mxu0 %v968
  %v970 = vand.u32 %v19, 4294901760
  %971 = vmatmul.mubr.f32.gmra.mxu0 %v970
  %v972 = vpop.f32.mrf.mxu0
  %v973 = vadd.f32 %v784, %v972
  %v974 = vpop.f32.mrf.mxu0
  %v975 = vadd.f32 %v786, %v974
  %976 = vdwg.mxu0
  %v977 = vand.u32 %v82, 4294901760
  %978 = vmatprep.subr.mxu0 %v977
  %v979 = vand.u32 %v81, 4294901760
  %980 = vmatpush1.msra.mxu0 %v979
  %v981 = vand.u32 %v78, 4294901760
  %982 = vmatprep.subr.mxu0 %v981
  %v983 = vand.u32 %v77, 4294901760
  %984 = vmatpush1.msra.mxu0 %v983
  %v985 = vand.u32 %v74, 4294901760
  %986 = vmatprep.subr.mxu0 %v985
  %v987 = vand.u32 %v73, 4294901760
  %988 = vmatpush1.msra.mxu0 %v987
  %v989 = vand.u32 %v70, 4294901760
  %990 = vmatprep.subr.mxu0 %v989
  %v991 = vand.u32 %v69, 4294901760
  %992 = vmatpush1.msra.mxu0 %v991
  %v993 = vand.u32 %v66, 4294901760
  %994 = vmatprep.subr.mxu0 %v993
  %v995 = vand.u32 %v65, 4294901760
  %996 = vmatpush1.msra.mxu0 %v995
  %v997 = vand.u32 %v62, 4294901760
  %998 = vmatprep.subr.mxu0 %v997
  %v999 = vand.u32 %v61, 4294901760
  %1000 = vmatpush1.msra.mxu0 %v999
  %v1001 = vand.u32 %v58, 4294901760
  %1002 = vmatprep.subr.mxu0 %v1001
  %v1003 = vand.u32 %v57, 4294901760
  %1004 = vmatpush1.msra.mxu0 %v1003
  %v1005 = vand.u32 %v54, 4294901760
  %1006 = vmatprep.subr.mxu0 %v1005
  %v1007 = vand.u32 %v53, 4294901760
  %1008 = vmatpush1.msra.mxu0 %v1007
  %v1009 = vand.u32 %v50, 4294901760
  %1010 = vmatprep.subr.mxu0 %v1009
  %v1011 = vand.u32 %v49, 4294901760
  %1012 = vmatpush1.msra.mxu0 %v1011
  %v1013 = vand.u32 %v46, 4294901760
  %1014 = vmatprep.subr.mxu0 %v1013
  %v1015 = vand.u32 %v45, 4294901760
  %1016 = vmatpush1.msra.mxu0 %v1015
  %v1017 = vand.u32 %v42, 4294901760
  %1018 = vmatprep.subr.mxu0 %v1017
  %v1019 = vand.u32 %v41, 4294901760
  %1020 = vmatpush1.msra.mxu0 %v1019
  %v1021 = vand.u32 %v38, 4294901760
  %1022 = vmatprep.subr.mxu0 %v1021
  %v1023 = vand.u32 %v37, 4294901760
  %1024 = vmatpush1.msra.mxu0 %v1023
  %v1025 = vand.u32 %v34, 4294901760
  %1026 = vmatprep.subr.mxu0 %v1025
  %v1027 = vand.u32 %v33, 4294901760
  %1028 = vmatpush1.msra.mxu0 %v1027
  %v1029 = vand.u32 %v30, 4294901760
  %1030 = vmatprep.subr.mxu0 %v1029
  %v1031 = vand.u32 %v29, 4294901760
  %1032 = vmatpush1.msra.mxu0 %v1031
  %v1033 = vand.u32 %v26, 4294901760
  %1034 = vmatprep.subr.mxu0 %v1033
  %v1035 = vand.u32 %v25, 4294901760
  %1036 = vmatpush1.msra.mxu0 %v1035
  %v1037 = vand.u32 %v22, 4294901760
  %1038 = vmatprep.subr.mxu0 %v1037
  %v1039 = vand.u32 %v21, 4294901760
  %1040 = vmatpush1.msra.mxu0 %v1039
  %1041 = vmatprep.subr.mxu0 0.0
  %1042 = vmatpush2.msra.mxu0 0.0
  %1043 = vmatprep.subr.mxu0 0.0
  %1044 = vmatpush2.msra.mxu0 0.0
  %1045 = vmatprep.subr.mxu0 0.0
  %1046 = vmatpush2.msra.mxu0 0.0
  %1047 = vmatprep.subr.mxu0 0.0
  %1048 = vmatpush2.msra.mxu0 0.0
  %1049 = vmatprep.subr.mxu0 0.0
  %1050 = vmatpush2.msra.mxu0 0.0
  %1051 = vmatprep.subr.mxu0 0.0
  %1052 = vmatpush2.msra.mxu0 0.0
  %1053 = vmatprep.subr.mxu0 0.0
  %1054 = vmatpush2.msra.mxu0 0.0
  %1055 = vmatprep.subr.mxu0 0.0
  %1056 = vmatpush2.msra.mxu0 0.0
  %1057 = vmatprep.subr.mxu0 0.0
  %1058 = vmatpush2.msra.mxu0 0.0
  %1059 = vmatprep.subr.mxu0 0.0
  %1060 = vmatpush2.msra.mxu0 0.0
  %1061 = vmatprep.subr.mxu0 0.0
  %1062 = vmatpush2.msra.mxu0 0.0
  %1063 = vmatprep.subr.mxu0 0.0
  %1064 = vmatpush2.msra.mxu0 0.0
  %1065 = vmatprep.subr.mxu0 0.0
  %1066 = vmatpush2.msra.mxu0 0.0
  %1067 = vmatprep.subr.mxu0 0.0
  %1068 = vmatpush2.msra.mxu0 0.0
  %v1069 = vand.u32 %v90, 4294901760
  %1070 = vmatprep.subr.mxu0 %v1069
  %v1071 = vand.u32 %v89, 4294901760
  %1072 = vmatpush2.msra.mxu0 %v1071
  %v1073 = vand.u32 %v86, 4294901760
  %1074 = vmatprep.subr.mxu0 %v1073
  %v1075 = vand.u32 %v85, 4294901760
  %1076 = vmatpush2.msra.mxu0 %v1075
  %v1077 = vand.u32 %v107, 4294901760
  %1078 = vmatprep.mubr.f32.mxu0 %v1077
  %v1079 = vand.u32 %v17, 4294901760
  %1080 = vmatmul.mubr.f32.gmra.mxu0 %v1079
  %v1081 = vpop.f32.mrf.mxu0
  %v1082 = vadd.f32 %v965, %v1081
  %v1083 = vpop.f32.mrf.mxu0
  %v1084 = vadd.f32 %v967, %v1083
  %v1085 = vand.u32 %v110, 4294901760
  %1086 = vmatprep.mubr.f32.mxu0 %v1085
  %v1087 = vand.u32 %v19, 4294901760
  %1088 = vmatmul.mubr.f32.gmra.mxu0 %v1087
  %v1089 = vpop.f32.mrf.mxu0
  %v1090 = vadd.f32 %v973, %v1089
  %v1091 = vpop.f32.mrf.mxu0
  %v1092 = vadd.f32 %v975, %v1091
  %1093 = vdwg.mxu0
  %v1094 = vand.u32 %v84, 4294901760
  %1095 = vmatprep.subr.mxu0 %v1094
  %v1096 = vand.u32 %v83, 4294901760
  %1097 = vmatpush1.msra.mxu0 %v1096
  %v1098 = vand.u32 %v80, 4294901760
  %1099 = vmatprep.subr.mxu0 %v1098
  %v1100 = vand.u32 %v79, 4294901760
  %1101 = vmatpush1.msra.mxu0 %v1100
  %v1102 = vand.u32 %v76, 4294901760
  %1103 = vmatprep.subr.mxu0 %v1102
  %v1104 = vand.u32 %v75, 4294901760
  %1105 = vmatpush1.msra.mxu0 %v1104
  %v1106 = vand.u32 %v72, 4294901760
  %1107 = vmatprep.subr.mxu0 %v1106
  %v1108 = vand.u32 %v71, 4294901760
  %1109 = vmatpush1.msra.mxu0 %v1108
  %v1110 = vand.u32 %v68, 4294901760
  %1111 = vmatprep.subr.mxu0 %v1110
  %v1112 = vand.u32 %v67, 4294901760
  %1113 = vmatpush1.msra.mxu0 %v1112
  %v1114 = vand.u32 %v64, 4294901760
  %1115 = vmatprep.subr.mxu0 %v1114
  %v1116 = vand.u32 %v63, 4294901760
  %1117 = vmatpush1.msra.mxu0 %v1116
  %v1118 = vand.u32 %v60, 4294901760
  %1119 = vmatprep.subr.mxu0 %v1118
  %v1120 = vand.u32 %v59, 4294901760
  %1121 = vmatpush1.msra.mxu0 %v1120
  %v1122 = vand.u32 %v56, 4294901760
  %1123 = vmatprep.subr.mxu0 %v1122
  %v1124 = vand.u32 %v55, 4294901760
  %1125 = vmatpush1.msra.mxu0 %v1124
  %v1126 = vand.u32 %v52, 4294901760
  %1127 = vmatprep.subr.mxu0 %v1126
  %v1128 = vand.u32 %v51, 4294901760
  %1129 = vmatpush1.msra.mxu0 %v1128
  %v1130 = vand.u32 %v48, 4294901760
  %1131 = vmatprep.subr.mxu0 %v1130
  %v1132 = vand.u32 %v47, 4294901760
  %1133 = vmatpush1.msra.mxu0 %v1132
  %v1134 = vand.u32 %v44, 4294901760
  %1135 = vmatprep.subr.mxu0 %v1134
  %v1136 = vand.u32 %v43, 4294901760
  %1137 = vmatpush1.msra.mxu0 %v1136
  %v1138 = vand.u32 %v40, 4294901760
  %1139 = vmatprep.subr.mxu0 %v1138
  %v1140 = vand.u32 %v39, 4294901760
  %1141 = vmatpush1.msra.mxu0 %v1140
  %v1142 = vand.u32 %v36, 4294901760
  %1143 = vmatprep.subr.mxu0 %v1142
  %v1144 = vand.u32 %v35, 4294901760
  %1145 = vmatpush1.msra.mxu0 %v1144
  %v1146 = vand.u32 %v32, 4294901760
  %1147 = vmatprep.subr.mxu0 %v1146
  %v1148 = vand.u32 %v31, 4294901760
  %1149 = vmatpush1.msra.mxu0 %v1148
  %v1150 = vand.u32 %v28, 4294901760
  %1151 = vmatprep.subr.mxu0 %v1150
  %v1152 = vand.u32 %v27, 4294901760
  %1153 = vmatpush1.msra.mxu0 %v1152
  %v1154 = vand.u32 %v24, 4294901760
  %1155 = vmatprep.subr.mxu0 %v1154
  %v1156 = vand.u32 %v23, 4294901760
  %1157 = vmatpush1.msra.mxu0 %v1156
  %1158 = vmatprep.subr.mxu0 0.0
  %1159 = vmatpush2.msra.mxu0 0.0
  %1160 = vmatprep.subr.mxu0 0.0
  %1161 = vmatpush2.msra.mxu0 0.0
  %1162 = vmatprep.subr.mxu0 0.0
  %1163 = vmatpush2.msra.mxu0 0.0
  %1164 = vmatprep.subr.mxu0 0.0
  %1165 = vmatpush2.msra.mxu0 0.0
  %1166 = vmatprep.subr.mxu0 0.0
  %1167 = vmatpush2.msra.mxu0 0.0
  %1168 = vmatprep.subr.mxu0 0.0
  %1169 = vmatpush2.msra.mxu0 0.0
  %1170 = vmatprep.subr.mxu0 0.0
  %1171 = vmatpush2.msra.mxu0 0.0
  %1172 = vmatprep.subr.mxu0 0.0
  %1173 = vmatpush2.msra.mxu0 0.0
  %1174 = vmatprep.subr.mxu0 0.0
  %1175 = vmatpush2.msra.mxu0 0.0
  %1176 = vmatprep.subr.mxu0 0.0
  %1177 = vmatpush2.msra.mxu0 0.0
  %1178 = vmatprep.subr.mxu0 0.0
  %1179 = vmatpush2.msra.mxu0 0.0
  %1180 = vmatprep.subr.mxu0 0.0
  %1181 = vmatpush2.msra.mxu0 0.0
  %1182 = vmatprep.subr.mxu0 0.0
  %1183 = vmatpush2.msra.mxu0 0.0
  %1184 = vmatprep.subr.mxu0 0.0
  %1185 = vmatpush2.msra.mxu0 0.0
  %v1186 = vand.u32 %v92, 4294901760
  %1187 = vmatprep.subr.mxu0 %v1186
  %v1188 = vand.u32 %v91, 4294901760
  %1189 = vmatpush2.msra.mxu0 %v1188
  %v1190 = vand.u32 %v88, 4294901760
  %1191 = vmatprep.subr.mxu0 %v1190
  %v1192 = vand.u32 %v87, 4294901760
  %1193 = vmatpush2.msra.mxu0 %v1192
  %v1194 = vand.u32 %v107, 4294901760
  %v1195 = vsub.f32 %v107, %v1194
  %v1196 = vand.u32 %v1195, 4294901760
  %v1197 = vsub.f32 %v1195, %v1196
  %v1198 = vand.u32 %v1197, 4294901760
  %1199 = vmatprep.mubr.f32.mxu0 %v1198
  %v1200 = vand.u32 %v17, 4294901760
  %v1201 = vsub.f32 %v17, %v1200
  %v1202 = vand.u32 %v1201, 4294901760
  %v1203 = vsub.f32 %v1201, %v1202
  %v1204 = vand.u32 %v1203, 4294901760
  %1205 = vmatmul.mubr.f32.gmra.mxu0 %v1204
  %v1206 = vpop.f32.mrf.mxu0
  %v1207 = vadd.f32 %v98, %v1206
  %v1208 = vpop.f32.mrf.mxu0
  %v1209 = vadd.f32 %v98, %v1208
  %v1210 = vand.u32 %v110, 4294901760
  %v1211 = vsub.f32 %v110, %v1210
  %v1212 = vand.u32 %v1211, 4294901760
  %v1213 = vsub.f32 %v1211, %v1212
  %v1214 = vand.u32 %v1213, 4294901760
  %1215 = vmatprep.mubr.f32.mxu0 %v1214
  %v1216 = vand.u32 %v19, 4294901760
  %v1217 = vsub.f32 %v19, %v1216
  %v1218 = vand.u32 %v1217, 4294901760
  %v1219 = vsub.f32 %v1217, %v1218
  %v1220 = vand.u32 %v1219, 4294901760
  %1221 = vmatmul.mubr.f32.gmra.mxu0 %v1220
  %v1222 = vpop.f32.mrf.mxu0
  %v1223 = vadd.f32 %v103, %v1222
  %v1224 = vpop.f32.mrf.mxu0
  %v1225 = vadd.f32 %v103, %v1224
  %1226 = vdwg.mxu0
  %v1227 = vand.u32 %v84, 4294901760
  %v1228 = vsub.f32 %v84, %v1227
  %v1229 = vand.u32 %v1228, 4294901760
  %v1230 = vsub.f32 %v1228, %v1229
  %v1231 = vand.u32 %v1230, 4294901760
  %1232 = vmatprep.subr.mxu0 %v1231
  %v1233 = vand.u32 %v83, 4294901760
  %v1234 = vsub.f32 %v83, %v1233
  %v1235 = vand.u32 %v1234, 4294901760
  %v1236 = vsub.f32 %v1234, %v1235
  %v1237 = vand.u32 %v1236, 4294901760
  %1238 = vmatpush1.msra.mxu0 %v1237
  %v1239 = vand.u32 %v80, 4294901760
  %v1240 = vsub.f32 %v80, %v1239
  %v1241 = vand.u32 %v1240, 4294901760
  %v1242 = vsub.f32 %v1240, %v1241
  %v1243 = vand.u32 %v1242, 4294901760
  %1244 = vmatprep.subr.mxu0 %v1243
  %v1245 = vand.u32 %v79, 4294901760
  %v1246 = vsub.f32 %v79, %v1245
  %v1247 = vand.u32 %v1246, 4294901760
  %v1248 = vsub.f32 %v1246, %v1247
  %v1249 = vand.u32 %v1248, 4294901760
  %1250 = vmatpush1.msra.mxu0 %v1249
  %v1251 = vand.u32 %v76, 4294901760
  %v1252 = vsub.f32 %v76, %v1251
  %v1253 = vand.u32 %v1252, 4294901760
  %v1254 = vsub.f32 %v1252, %v1253
  %v1255 = vand.u32 %v1254, 4294901760
  %1256 = vmatprep.subr.mxu0 %v1255
  %v1257 = vand.u32 %v75, 4294901760
  %v1258 = vsub.f32 %v75, %v1257
  %v1259 = vand.u32 %v1258, 4294901760
  %v1260 = vsub.f32 %v1258, %v1259
  %v1261 = vand.u32 %v1260, 4294901760
  %1262 = vmatpush1.msra.mxu0 %v1261
  %v1263 = vand.u32 %v72, 4294901760
  %v1264 = vsub.f32 %v72, %v1263
  %v1265 = vand.u32 %v1264, 4294901760
  %v1266 = vsub.f32 %v1264, %v1265
  %v1267 = vand.u32 %v1266, 4294901760
  %1268 = vmatprep.subr.mxu0 %v1267
  %v1269 = vand.u32 %v71, 4294901760
  %v1270 = vsub.f32 %v71, %v1269
  %v1271 = vand.u32 %v1270, 4294901760
  %v1272 = vsub.f32 %v1270, %v1271
  %v1273 = vand.u32 %v1272, 4294901760
  %1274 = vmatpush1.msra.mxu0 %v1273
  %v1275 = vand.u32 %v68, 4294901760
  %v1276 = vsub.f32 %v68, %v1275
  %v1277 = vand.u32 %v1276, 4294901760
  %v1278 = vsub.f32 %v1276, %v1277
  %v1279 = vand.u32 %v1278, 4294901760
  %1280 = vmatprep.subr.mxu0 %v1279
  %v1281 = vand.u32 %v67, 4294901760
  %v1282 = vsub.f32 %v67, %v1281
  %v1283 = vand.u32 %v1282, 4294901760
  %v1284 = vsub.f32 %v1282, %v1283
  %v1285 = vand.u32 %v1284, 4294901760
  %1286 = vmatpush1.msra.mxu0 %v1285
  %v1287 = vand.u32 %v64, 4294901760
  %v1288 = vsub.f32 %v64, %v1287
  %v1289 = vand.u32 %v1288, 4294901760
  %v1290 = vsub.f32 %v1288, %v1289
  %v1291 = vand.u32 %v1290, 4294901760
  %1292 = vmatprep.subr.mxu0 %v1291
  %v1293 = vand.u32 %v63, 4294901760
  %v1294 = vsub.f32 %v63, %v1293
  %v1295 = vand.u32 %v1294, 4294901760
  %v1296 = vsub.f32 %v1294, %v1295
  %v1297 = vand.u32 %v1296, 4294901760
  %1298 = vmatpush1.msra.mxu0 %v1297
  %v1299 = vand.u32 %v60, 4294901760
  %v1300 = vsub.f32 %v60, %v1299
  %v1301 = vand.u32 %v1300, 4294901760
  %v1302 = vsub.f32 %v1300, %v1301
  %v1303 = vand.u32 %v1302, 4294901760
  %1304 = vmatprep.subr.mxu0 %v1303
  %v1305 = vand.u32 %v59, 4294901760
  %v1306 = vsub.f32 %v59, %v1305
  %v1307 = vand.u32 %v1306, 4294901760
  %v1308 = vsub.f32 %v1306, %v1307
  %v1309 = vand.u32 %v1308, 4294901760
  %1310 = vmatpush1.msra.mxu0 %v1309
  %v1311 = vand.u32 %v56, 4294901760
  %v1312 = vsub.f32 %v56, %v1311
  %v1313 = vand.u32 %v1312, 4294901760
  %v1314 = vsub.f32 %v1312, %v1313
  %v1315 = vand.u32 %v1314, 4294901760
  %1316 = vmatprep.subr.mxu0 %v1315
  %v1317 = vand.u32 %v55, 4294901760
  %v1318 = vsub.f32 %v55, %v1317
  %v1319 = vand.u32 %v1318, 4294901760
  %v1320 = vsub.f32 %v1318, %v1319
  %v1321 = vand.u32 %v1320, 4294901760
  %1322 = vmatpush1.msra.mxu0 %v1321
  %v1323 = vand.u32 %v52, 4294901760
  %v1324 = vsub.f32 %v52, %v1323
  %v1325 = vand.u32 %v1324, 4294901760
  %v1326 = vsub.f32 %v1324, %v1325
  %v1327 = vand.u32 %v1326, 4294901760
  %1328 = vmatprep.subr.mxu0 %v1327
  %v1329 = vand.u32 %v51, 4294901760
  %v1330 = vsub.f32 %v51, %v1329
  %v1331 = vand.u32 %v1330, 4294901760
  %v1332 = vsub.f32 %v1330, %v1331
  %v1333 = vand.u32 %v1332, 4294901760
  %1334 = vmatpush1.msra.mxu0 %v1333
  %v1335 = vand.u32 %v48, 4294901760
  %v1336 = vsub.f32 %v48, %v1335
  %v1337 = vand.u32 %v1336, 4294901760
  %v1338 = vsub.f32 %v1336, %v1337
  %v1339 = vand.u32 %v1338, 4294901760
  %1340 = vmatprep.subr.mxu0 %v1339
  %v1341 = vand.u32 %v47, 4294901760
  %v1342 = vsub.f32 %v47, %v1341
  %v1343 = vand.u32 %v1342, 4294901760
  %v1344 = vsub.f32 %v1342, %v1343
  %v1345 = vand.u32 %v1344, 4294901760
  %1346 = vmatpush1.msra.mxu0 %v1345
  %v1347 = vand.u32 %v44, 4294901760
  %v1348 = vsub.f32 %v44, %v1347
  %v1349 = vand.u32 %v1348, 4294901760
  %v1350 = vsub.f32 %v1348, %v1349
  %v1351 = vand.u32 %v1350, 4294901760
  %1352 = vmatprep.subr.mxu0 %v1351
  %v1353 = vand.u32 %v43, 4294901760
  %v1354 = vsub.f32 %v43, %v1353
  %v1355 = vand.u32 %v1354, 4294901760
  %v1356 = vsub.f32 %v1354, %v1355
  %v1357 = vand.u32 %v1356, 4294901760
  %1358 = vmatpush1.msra.mxu0 %v1357
  %v1359 = vand.u32 %v40, 4294901760
  %v1360 = vsub.f32 %v40, %v1359
  %v1361 = vand.u32 %v1360, 4294901760
  %v1362 = vsub.f32 %v1360, %v1361
  %v1363 = vand.u32 %v1362, 4294901760
  %1364 = vmatprep.subr.mxu0 %v1363
  %v1365 = vand.u32 %v39, 4294901760
  %v1366 = vsub.f32 %v39, %v1365
  %v1367 = vand.u32 %v1366, 4294901760
  %v1368 = vsub.f32 %v1366, %v1367
  %v1369 = vand.u32 %v1368, 4294901760
  %1370 = vmatpush1.msra.mxu0 %v1369
  %v1371 = vand.u32 %v36, 4294901760
  %v1372 = vsub.f32 %v36, %v1371
  %v1373 = vand.u32 %v1372, 4294901760
  %v1374 = vsub.f32 %v1372, %v1373
  %v1375 = vand.u32 %v1374, 4294901760
  %1376 = vmatprep.subr.mxu0 %v1375
  %v1377 = vand.u32 %v35, 4294901760
  %v1378 = vsub.f32 %v35, %v1377
  %v1379 = vand.u32 %v1378, 4294901760
  %v1380 = vsub.f32 %v1378, %v1379
  %v1381 = vand.u32 %v1380, 4294901760
  %1382 = vmatpush1.msra.mxu0 %v1381
  %v1383 = vand.u32 %v32, 4294901760
  %v1384 = vsub.f32 %v32, %v1383
  %v1385 = vand.u32 %v1384, 4294901760
  %v1386 = vsub.f32 %v1384, %v1385
  %v1387 = vand.u32 %v1386, 4294901760
  %1388 = vmatprep.subr.mxu0 %v1387
  %v1389 = vand.u32 %v31, 4294901760
  %v1390 = vsub.f32 %v31, %v1389
  %v1391 = vand.u32 %v1390, 4294901760
  %v1392 = vsub.f32 %v1390, %v1391
  %v1393 = vand.u32 %v1392, 4294901760
  %1394 = vmatpush1.msra.mxu0 %v1393
  %v1395 = vand.u32 %v28, 4294901760
  %v1396 = vsub.f32 %v28, %v1395
  %v1397 = vand.u32 %v1396, 4294901760
  %v1398 = vsub.f32 %v1396, %v1397
  %v1399 = vand.u32 %v1398, 4294901760
  %1400 = vmatprep.subr.mxu0 %v1399
  %v1401 = vand.u32 %v27, 4294901760
  %v1402 = vsub.f32 %v27, %v1401
  %v1403 = vand.u32 %v1402, 4294901760
  %v1404 = vsub.f32 %v1402, %v1403
  %v1405 = vand.u32 %v1404, 4294901760
  %1406 = vmatpush1.msra.mxu0 %v1405
  %v1407 = vand.u32 %v24, 4294901760
  %v1408 = vsub.f32 %v24, %v1407
  %v1409 = vand.u32 %v1408, 4294901760
  %v1410 = vsub.f32 %v1408, %v1409
  %v1411 = vand.u32 %v1410, 4294901760
  %1412 = vmatprep.subr.mxu0 %v1411
  %v1413 = vand.u32 %v23, 4294901760
  %v1414 = vsub.f32 %v23, %v1413
  %v1415 = vand.u32 %v1414, 4294901760
  %v1416 = vsub.f32 %v1414, %v1415
  %v1417 = vand.u32 %v1416, 4294901760
  %1418 = vmatpush1.msra.mxu0 %v1417
  %1419 = vmatprep.subr.mxu0 0.0
  %1420 = vmatpush2.msra.mxu0 0.0
  %1421 = vmatprep.subr.mxu0 0.0
  %1422 = vmatpush2.msra.mxu0 0.0
  %1423 = vmatprep.subr.mxu0 0.0
  %1424 = vmatpush2.msra.mxu0 0.0
  %1425 = vmatprep.subr.mxu0 0.0
  %1426 = vmatpush2.msra.mxu0 0.0
  %1427 = vmatprep.subr.mxu0 0.0
  %1428 = vmatpush2.msra.mxu0 0.0
  %1429 = vmatprep.subr.mxu0 0.0
  %1430 = vmatpush2.msra.mxu0 0.0
  %1431 = vmatprep.subr.mxu0 0.0
  %1432 = vmatpush2.msra.mxu0 0.0
  %1433 = vmatprep.subr.mxu0 0.0
  %1434 = vmatpush2.msra.mxu0 0.0
  %1435 = vmatprep.subr.mxu0 0.0
  %1436 = vmatpush2.msra.mxu0 0.0
  %1437 = vmatprep.subr.mxu0 0.0
  %1438 = vmatpush2.msra.mxu0 0.0
  %1439 = vmatprep.subr.mxu0 0.0
  %1440 = vmatpush2.msra.mxu0 0.0
  %1441 = vmatprep.subr.mxu0 0.0
  %1442 = vmatpush2.msra.mxu0 0.0
  %1443 = vmatprep.subr.mxu0 0.0
  %1444 = vmatpush2.msra.mxu0 0.0
  %1445 = vmatprep.subr.mxu0 0.0
  %1446 = vmatpush2.msra.mxu0 0.0
  %v1447 = vand.u32 %v92, 4294901760
  %v1448 = vsub.f32 %v92, %v1447
  %v1449 = vand.u32 %v1448, 4294901760
  %v1450 = vsub.f32 %v1448, %v1449
  %v1451 = vand.u32 %v1450, 4294901760
  %1452 = vmatprep.subr.mxu0 %v1451
  %v1453 = vand.u32 %v91, 4294901760
  %v1454 = vsub.f32 %v91, %v1453
  %v1455 = vand.u32 %v1454, 4294901760
  %v1456 = vsub.f32 %v1454, %v1455
  %v1457 = vand.u32 %v1456, 4294901760
  %1458 = vmatpush2.msra.mxu0 %v1457
  %v1459 = vand.u32 %v88, 4294901760
  %v1460 = vsub.f32 %v88, %v1459
  %v1461 = vand.u32 %v1460, 4294901760
  %v1462 = vsub.f32 %v1460, %v1461
  %v1463 = vand.u32 %v1462, 4294901760
  %1464 = vmatprep.subr.mxu0 %v1463
  %v1465 = vand.u32 %v87, 4294901760
  %v1466 = vsub.f32 %v87, %v1465
  %v1467 = vand.u32 %v1466, 4294901760
  %v1468 = vsub.f32 %v1466, %v1467
  %v1469 = vand.u32 %v1468, 4294901760
  %1470 = vmatpush2.msra.mxu0 %v1469
  %v1471 = vand.u32 %v107, 4294901760
  %1472 = vmatprep.mubr.f32.mxu0 %v1471
  %v1473 = vand.u32 %v17, 4294901760
  %1474 = vmatmul.mubr.f32.gmra.mxu0 %v1473
  %v1475 = vpop.f32.mrf.mxu0
  %v1476 = vadd.f32 %v1207, %v1475
  %v1477 = vpop.f32.mrf.mxu0
  %v1478 = vadd.f32 %v1209, %v1477
  %v1479 = vand.u32 %v110, 4294901760
  %1480 = vmatprep.mubr.f32.mxu0 %v1479
  %v1481 = vand.u32 %v19, 4294901760
  %1482 = vmatmul.mubr.f32.gmra.mxu0 %v1481
  %v1483 = vpop.f32.mrf.mxu0
  %v1484 = vadd.f32 %v1223, %v1483
  %v1485 = vpop.f32.mrf.mxu0
  %v1486 = vadd.f32 %v1225, %v1485
  %1487 = vdwg.mxu0
  %v1488 = vand.u32 %v84, 4294901760
  %v1489 = vsub.f32 %v84, %v1488
  %1490 = vmatprep.subr.mxu0 %v1489
  %v1491 = vand.u32 %v83, 4294901760
  %v1492 = vsub.f32 %v83, %v1491
  %1493 = vmatpush1.msra.mxu0 %v1492
  %v1494 = vand.u32 %v80, 4294901760
  %v1495 = vsub.f32 %v80, %v1494
  %1496 = vmatprep.subr.mxu0 %v1495
  %v1497 = vand.u32 %v79, 4294901760
  %v1498 = vsub.f32 %v79, %v1497
  %1499 = vmatpush1.msra.mxu0 %v1498
  %v1500 = vand.u32 %v76, 4294901760
  %v1501 = vsub.f32 %v76, %v1500
  %1502 = vmatprep.subr.mxu0 %v1501
  %v1503 = vand.u32 %v75, 4294901760
  %v1504 = vsub.f32 %v75, %v1503
  %1505 = vmatpush1.msra.mxu0 %v1504
  %v1506 = vand.u32 %v72, 4294901760
  %v1507 = vsub.f32 %v72, %v1506
  %1508 = vmatprep.subr.mxu0 %v1507
  %v1509 = vand.u32 %v71, 4294901760
  %v1510 = vsub.f32 %v71, %v1509
  %1511 = vmatpush1.msra.mxu0 %v1510
  %v1512 = vand.u32 %v68, 4294901760
  %v1513 = vsub.f32 %v68, %v1512
  %1514 = vmatprep.subr.mxu0 %v1513
  %v1515 = vand.u32 %v67, 4294901760
  %v1516 = vsub.f32 %v67, %v1515
  %1517 = vmatpush1.msra.mxu0 %v1516
  %v1518 = vand.u32 %v64, 4294901760
  %v1519 = vsub.f32 %v64, %v1518
  %1520 = vmatprep.subr.mxu0 %v1519
  %v1521 = vand.u32 %v63, 4294901760
  %v1522 = vsub.f32 %v63, %v1521
  %1523 = vmatpush1.msra.mxu0 %v1522
  %v1524 = vand.u32 %v60, 4294901760
  %v1525 = vsub.f32 %v60, %v1524
  %1526 = vmatprep.subr.mxu0 %v1525
  %v1527 = vand.u32 %v59, 4294901760
  %v1528 = vsub.f32 %v59, %v1527
  %1529 = vmatpush1.msra.mxu0 %v1528
  %v1530 = vand.u32 %v56, 4294901760
  %v1531 = vsub.f32 %v56, %v1530
  %1532 = vmatprep.subr.mxu0 %v1531
  %v1533 = vand.u32 %v55, 4294901760
  %v1534 = vsub.f32 %v55, %v1533
  %1535 = vmatpush1.msra.mxu0 %v1534
  %v1536 = vand.u32 %v52, 4294901760
  %v1537 = vsub.f32 %v52, %v1536
  %1538 = vmatprep.subr.mxu0 %v1537
  %v1539 = vand.u32 %v51, 4294901760
  %v1540 = vsub.f32 %v51, %v1539
  %1541 = vmatpush1.msra.mxu0 %v1540
  %v1542 = vand.u32 %v48, 4294901760
  %v1543 = vsub.f32 %v48, %v1542
  %1544 = vmatprep.subr.mxu0 %v1543
  %v1545 = vand.u32 %v47, 4294901760
  %v1546 = vsub.f32 %v47, %v1545
  %1547 = vmatpush1.msra.mxu0 %v1546
  %v1548 = vand.u32 %v44, 4294901760
  %v1549 = vsub.f32 %v44, %v1548
  %1550 = vmatprep.subr.mxu0 %v1549
  %v1551 = vand.u32 %v43, 4294901760
  %v1552 = vsub.f32 %v43, %v1551
  %1553 = vmatpush1.msra.mxu0 %v1552
  %v1554 = vand.u32 %v40, 4294901760
  %v1555 = vsub.f32 %v40, %v1554
  %1556 = vmatprep.subr.mxu0 %v1555
  %v1557 = vand.u32 %v39, 4294901760
  %v1558 = vsub.f32 %v39, %v1557
  %1559 = vmatpush1.msra.mxu0 %v1558
  %v1560 = vand.u32 %v36, 4294901760
  %v1561 = vsub.f32 %v36, %v1560
  %1562 = vmatprep.subr.mxu0 %v1561
  %v1563 = vand.u32 %v35, 4294901760
  %v1564 = vsub.f32 %v35, %v1563
  %1565 = vmatpush1.msra.mxu0 %v1564
  %v1566 = vand.u32 %v32, 4294901760
  %v1567 = vsub.f32 %v32, %v1566
  %1568 = vmatprep.subr.mxu0 %v1567
  %v1569 = vand.u32 %v31, 4294901760
  %v1570 = vsub.f32 %v31, %v1569
  %1571 = vmatpush1.msra.mxu0 %v1570
  %v1572 = vand.u32 %v28, 4294901760
  %v1573 = vsub.f32 %v28, %v1572
  %1574 = vmatprep.subr.mxu0 %v1573
  %v1575 = vand.u32 %v27, 4294901760
  %v1576 = vsub.f32 %v27, %v1575
  %1577 = vmatpush1.msra.mxu0 %v1576
  %v1578 = vand.u32 %v24, 4294901760
  %v1579 = vsub.f32 %v24, %v1578
  %1580 = vmatprep.subr.mxu0 %v1579
  %v1581 = vand.u32 %v23, 4294901760
  %v1582 = vsub.f32 %v23, %v1581
  %1583 = vmatpush1.msra.mxu0 %v1582
  %1584 = vmatprep.subr.mxu0 0.0
  %1585 = vmatpush2.msra.mxu0 0.0
  %1586 = vmatprep.subr.mxu0 0.0
  %1587 = vmatpush2.msra.mxu0 0.0
  %1588 = vmatprep.subr.mxu0 0.0
  %1589 = vmatpush2.msra.mxu0 0.0
  %1590 = vmatprep.subr.mxu0 0.0
  %1591 = vmatpush2.msra.mxu0 0.0
  %1592 = vmatprep.subr.mxu0 0.0
  %1593 = vmatpush2.msra.mxu0 0.0
  %1594 = vmatprep.subr.mxu0 0.0
  %1595 = vmatpush2.msra.mxu0 0.0
  %1596 = vmatprep.subr.mxu0 0.0
  %1597 = vmatpush2.msra.mxu0 0.0
  %1598 = vmatprep.subr.mxu0 0.0
  %1599 = vmatpush2.msra.mxu0 0.0
  %1600 = vmatprep.subr.mxu0 0.0
  %1601 = vmatpush2.msra.mxu0 0.0
  %1602 = vmatprep.subr.mxu0 0.0
  %1603 = vmatpush2.msra.mxu0 0.0
  %1604 = vmatprep.subr.mxu0 0.0
  %1605 = vmatpush2.msra.mxu0 0.0
  %1606 = vmatprep.subr.mxu0 0.0
  %1607 = vmatpush2.msra.mxu0 0.0
  %1608 = vmatprep.subr.mxu0 0.0
  %1609 = vmatpush2.msra.mxu0 0.0
  %1610 = vmatprep.subr.mxu0 0.0
  %1611 = vmatpush2.msra.mxu0 0.0
  %v1612 = vand.u32 %v92, 4294901760
  %v1613 = vsub.f32 %v92, %v1612
  %1614 = vmatprep.subr.mxu0 %v1613
  %v1615 = vand.u32 %v91, 4294901760
  %v1616 = vsub.f32 %v91, %v1615
  %1617 = vmatpush2.msra.mxu0 %v1616
  %v1618 = vand.u32 %v88, 4294901760
  %v1619 = vsub.f32 %v88, %v1618
  %1620 = vmatprep.subr.mxu0 %v1619
  %v1621 = vand.u32 %v87, 4294901760
  %v1622 = vsub.f32 %v87, %v1621
  %1623 = vmatpush2.msra.mxu0 %v1622
  %v1624 = vand.u32 %v107, 4294901760
  %v1625 = vsub.f32 %v107, %v1624
  %1626 = vmatprep.mubr.f32.mxu0 %v1625
  %v1627 = vand.u32 %v17, 4294901760
  %v1628 = vsub.f32 %v17, %v1627
  %1629 = vmatmul.mubr.f32.gmra.mxu0 %v1628
  %v1630 = vpop.f32.mrf.mxu0
  %v1631 = vadd.f32 %v1476, %v1630
  %v1632 = vpop.f32.mrf.mxu0
  %v1633 = vadd.f32 %v1478, %v1632
  %v1634 = vand.u32 %v110, 4294901760
  %v1635 = vsub.f32 %v110, %v1634
  %1636 = vmatprep.mubr.f32.mxu0 %v1635
  %v1637 = vand.u32 %v19, 4294901760
  %v1638 = vsub.f32 %v19, %v1637
  %1639 = vmatmul.mubr.f32.gmra.mxu0 %v1638
  %v1640 = vpop.f32.mrf.mxu0
  %v1641 = vadd.f32 %v1484, %v1640
  %v1642 = vpop.f32.mrf.mxu0
  %v1643 = vadd.f32 %v1486, %v1642
  %1644 = vdwg.mxu0
  %v1645 = vand.u32 %v84, 4294901760
  %1646 = vmatprep.subr.mxu0 %v1645
  %v1647 = vand.u32 %v83, 4294901760
  %1648 = vmatpush1.msra.mxu0 %v1647
  %v1649 = vand.u32 %v80, 4294901760
  %1650 = vmatprep.subr.mxu0 %v1649
  %v1651 = vand.u32 %v79, 4294901760
  %1652 = vmatpush1.msra.mxu0 %v1651
  %v1653 = vand.u32 %v76, 4294901760
  %1654 = vmatprep.subr.mxu0 %v1653
  %v1655 = vand.u32 %v75, 4294901760
  %1656 = vmatpush1.msra.mxu0 %v1655
  %v1657 = vand.u32 %v72, 4294901760
  %1658 = vmatprep.subr.mxu0 %v1657
  %v1659 = vand.u32 %v71, 4294901760
  %1660 = vmatpush1.msra.mxu0 %v1659
  %v1661 = vand.u32 %v68, 4294901760
  %1662 = vmatprep.subr.mxu0 %v1661
  %v1663 = vand.u32 %v67, 4294901760
  %1664 = vmatpush1.msra.mxu0 %v1663
  %v1665 = vand.u32 %v64, 4294901760
  %1666 = vmatprep.subr.mxu0 %v1665
  %v1667 = vand.u32 %v63, 4294901760
  %1668 = vmatpush1.msra.mxu0 %v1667
  %v1669 = vand.u32 %v60, 4294901760
  %1670 = vmatprep.subr.mxu0 %v1669
  %v1671 = vand.u32 %v59, 4294901760
  %1672 = vmatpush1.msra.mxu0 %v1671
  %v1673 = vand.u32 %v56, 4294901760
  %1674 = vmatprep.subr.mxu0 %v1673
  %v1675 = vand.u32 %v55, 4294901760
  %1676 = vmatpush1.msra.mxu0 %v1675
  %v1677 = vand.u32 %v52, 4294901760
  %1678 = vmatprep.subr.mxu0 %v1677
  %v1679 = vand.u32 %v51, 4294901760
  %1680 = vmatpush1.msra.mxu0 %v1679
  %v1681 = vand.u32 %v48, 4294901760
  %1682 = vmatprep.subr.mxu0 %v1681
  %v1683 = vand.u32 %v47, 4294901760
  %1684 = vmatpush1.msra.mxu0 %v1683
  %v1685 = vand.u32 %v44, 4294901760
  %1686 = vmatprep.subr.mxu0 %v1685
  %v1687 = vand.u32 %v43, 4294901760
  %1688 = vmatpush1.msra.mxu0 %v1687
  %v1689 = vand.u32 %v40, 4294901760
  %1690 = vmatprep.subr.mxu0 %v1689
  %v1691 = vand.u32 %v39, 4294901760
  %1692 = vmatpush1.msra.mxu0 %v1691
  %v1693 = vand.u32 %v36, 4294901760
  %1694 = vmatprep.subr.mxu0 %v1693
  %v1695 = vand.u32 %v35, 4294901760
  %1696 = vmatpush1.msra.mxu0 %v1695
  %v1697 = vand.u32 %v32, 4294901760
  %1698 = vmatprep.subr.mxu0 %v1697
  %v1699 = vand.u32 %v31, 4294901760
  %1700 = vmatpush1.msra.mxu0 %v1699
  %v1701 = vand.u32 %v28, 4294901760
  %1702 = vmatprep.subr.mxu0 %v1701
  %v1703 = vand.u32 %v27, 4294901760
  %1704 = vmatpush1.msra.mxu0 %v1703
  %v1705 = vand.u32 %v24, 4294901760
  %1706 = vmatprep.subr.mxu0 %v1705
  %v1707 = vand.u32 %v23, 4294901760
  %1708 = vmatpush1.msra.mxu0 %v1707
  %1709 = vmatprep.subr.mxu0 0.0
  %1710 = vmatpush2.msra.mxu0 0.0
  %1711 = vmatprep.subr.mxu0 0.0
  %1712 = vmatpush2.msra.mxu0 0.0
  %1713 = vmatprep.subr.mxu0 0.0
  %1714 = vmatpush2.msra.mxu0 0.0
  %1715 = vmatprep.subr.mxu0 0.0
  %1716 = vmatpush2.msra.mxu0 0.0
  %1717 = vmatprep.subr.mxu0 0.0
  %1718 = vmatpush2.msra.mxu0 0.0
  %1719 = vmatprep.subr.mxu0 0.0
  %1720 = vmatpush2.msra.mxu0 0.0
  %1721 = vmatprep.subr.mxu0 0.0
  %1722 = vmatpush2.msra.mxu0 0.0
  %1723 = vmatprep.subr.mxu0 0.0
  %1724 = vmatpush2.msra.mxu0 0.0
  %1725 = vmatprep.subr.mxu0 0.0
  %1726 = vmatpush2.msra.mxu0 0.0
  %1727 = vmatprep.subr.mxu0 0.0
  %1728 = vmatpush2.msra.mxu0 0.0
  %1729 = vmatprep.subr.mxu0 0.0
  %1730 = vmatpush2.msra.mxu0 0.0
  %1731 = vmatprep.subr.mxu0 0.0
  %1732 = vmatpush2.msra.mxu0 0.0
  %1733 = vmatprep.subr.mxu0 0.0
  %1734 = vmatpush2.msra.mxu0 0.0
  %1735 = vmatprep.subr.mxu0 0.0
  %1736 = vmatpush2.msra.mxu0 0.0
  %v1737 = vand.u32 %v92, 4294901760
  %1738 = vmatprep.subr.mxu0 %v1737
  %v1739 = vand.u32 %v91, 4294901760
  %1740 = vmatpush2.msra.mxu0 %v1739
  %v1741 = vand.u32 %v88, 4294901760
  %1742 = vmatprep.subr.mxu0 %v1741
  %v1743 = vand.u32 %v87, 4294901760
  %1744 = vmatpush2.msra.mxu0 %v1743
  %v1745 = vand.u32 %v107, 4294901760
  %v1746 = vsub.f32 %v107, %v1745
  %v1747 = vand.u32 %v1746, 4294901760
  %1748 = vmatprep.mubr.f32.mxu0 %v1747
  %v1749 = vand.u32 %v17, 4294901760
  %v1750 = vsub.f32 %v17, %v1749
  %v1751 = vand.u32 %v1750, 4294901760
  %1752 = vmatmul.mubr.f32.gmra.mxu0 %v1751
  %v1753 = vpop.f32.mrf.mxu0
  %v1754 = vadd.f32 %v1631, %v1753
  %v1755 = vpop.f32.mrf.mxu0
  %v1756 = vadd.f32 %v1633, %v1755
  %v1757 = vand.u32 %v110, 4294901760
  %v1758 = vsub.f32 %v110, %v1757
  %v1759 = vand.u32 %v1758, 4294901760
  %1760 = vmatprep.mubr.f32.mxu0 %v1759
  %v1761 = vand.u32 %v19, 4294901760
  %v1762 = vsub.f32 %v19, %v1761
  %v1763 = vand.u32 %v1762, 4294901760
  %1764 = vmatmul.mubr.f32.gmra.mxu0 %v1763
  %v1765 = vpop.f32.mrf.mxu0
  %v1766 = vadd.f32 %v1641, %v1765
  %v1767 = vpop.f32.mrf.mxu0
  %v1768 = vadd.f32 %v1643, %v1767
  %1769 = vdwg.mxu0
  %v1770 = vand.u32 %v84, 4294901760
  %v1771 = vsub.f32 %v84, %v1770
  %v1772 = vand.u32 %v1771, 4294901760
  %1773 = vmatprep.subr.mxu0 %v1772
  %v1774 = vand.u32 %v83, 4294901760
  %v1775 = vsub.f32 %v83, %v1774
  %v1776 = vand.u32 %v1775, 4294901760
  %1777 = vmatpush1.msra.mxu0 %v1776
  %v1778 = vand.u32 %v80, 4294901760
  %v1779 = vsub.f32 %v80, %v1778
  %v1780 = vand.u32 %v1779, 4294901760
  %1781 = vmatprep.subr.mxu0 %v1780
  %v1782 = vand.u32 %v79, 4294901760
  %v1783 = vsub.f32 %v79, %v1782
  %v1784 = vand.u32 %v1783, 4294901760
  %1785 = vmatpush1.msra.mxu0 %v1784
  %v1786 = vand.u32 %v76, 4294901760
  %v1787 = vsub.f32 %v76, %v1786
  %v1788 = vand.u32 %v1787, 4294901760
  %1789 = vmatprep.subr.mxu0 %v1788
  %v1790 = vand.u32 %v75, 4294901760
  %v1791 = vsub.f32 %v75, %v1790
  %v1792 = vand.u32 %v1791, 4294901760
  %1793 = vmatpush1.msra.mxu0 %v1792
  %v1794 = vand.u32 %v72, 4294901760
  %v1795 = vsub.f32 %v72, %v1794
  %v1796 = vand.u32 %v1795, 4294901760
  %1797 = vmatprep.subr.mxu0 %v1796
  %v1798 = vand.u32 %v71, 4294901760
  %v1799 = vsub.f32 %v71, %v1798
  %v1800 = vand.u32 %v1799, 4294901760
  %1801 = vmatpush1.msra.mxu0 %v1800
  %v1802 = vand.u32 %v68, 4294901760
  %v1803 = vsub.f32 %v68, %v1802
  %v1804 = vand.u32 %v1803, 4294901760
  %1805 = vmatprep.subr.mxu0 %v1804
  %v1806 = vand.u32 %v67, 4294901760
  %v1807 = vsub.f32 %v67, %v1806
  %v1808 = vand.u32 %v1807, 4294901760
  %1809 = vmatpush1.msra.mxu0 %v1808
  %v1810 = vand.u32 %v64, 4294901760
  %v1811 = vsub.f32 %v64, %v1810
  %v1812 = vand.u32 %v1811, 4294901760
  %1813 = vmatprep.subr.mxu0 %v1812
  %v1814 = vand.u32 %v63, 4294901760
  %v1815 = vsub.f32 %v63, %v1814
  %v1816 = vand.u32 %v1815, 4294901760
  %1817 = vmatpush1.msra.mxu0 %v1816
  %v1818 = vand.u32 %v60, 4294901760
  %v1819 = vsub.f32 %v60, %v1818
  %v1820 = vand.u32 %v1819, 4294901760
  %1821 = vmatprep.subr.mxu0 %v1820
  %v1822 = vand.u32 %v59, 4294901760
  %v1823 = vsub.f32 %v59, %v1822
  %v1824 = vand.u32 %v1823, 4294901760
  %1825 = vmatpush1.msra.mxu0 %v1824
  %v1826 = vand.u32 %v56, 4294901760
  %v1827 = vsub.f32 %v56, %v1826
  %v1828 = vand.u32 %v1827, 4294901760
  %1829 = vmatprep.subr.mxu0 %v1828
  %v1830 = vand.u32 %v55, 4294901760
  %v1831 = vsub.f32 %v55, %v1830
  %v1832 = vand.u32 %v1831, 4294901760
  %1833 = vmatpush1.msra.mxu0 %v1832
  %v1834 = vand.u32 %v52, 4294901760
  %v1835 = vsub.f32 %v52, %v1834
  %v1836 = vand.u32 %v1835, 4294901760
  %1837 = vmatprep.subr.mxu0 %v1836
  %v1838 = vand.u32 %v51, 4294901760
  %v1839 = vsub.f32 %v51, %v1838
  %v1840 = vand.u32 %v1839, 4294901760
  %1841 = vmatpush1.msra.mxu0 %v1840
  %v1842 = vand.u32 %v48, 4294901760
  %v1843 = vsub.f32 %v48, %v1842
  %v1844 = vand.u32 %v1843, 4294901760
  %1845 = vmatprep.subr.mxu0 %v1844
  %v1846 = vand.u32 %v47, 4294901760
  %v1847 = vsub.f32 %v47, %v1846
  %v1848 = vand.u32 %v1847, 4294901760
  %1849 = vmatpush1.msra.mxu0 %v1848
  %v1850 = vand.u32 %v44, 4294901760
  %v1851 = vsub.f32 %v44, %v1850
  %v1852 = vand.u32 %v1851, 4294901760
  %1853 = vmatprep.subr.mxu0 %v1852
  %v1854 = vand.u32 %v43, 4294901760
  %v1855 = vsub.f32 %v43, %v1854
  %v1856 = vand.u32 %v1855, 4294901760
  %1857 = vmatpush1.msra.mxu0 %v1856
  %v1858 = vand.u32 %v40, 4294901760
  %v1859 = vsub.f32 %v40, %v1858
  %v1860 = vand.u32 %v1859, 4294901760
  %1861 = vmatprep.subr.mxu0 %v1860
  %v1862 = vand.u32 %v39, 4294901760
  %v1863 = vsub.f32 %v39, %v1862
  %v1864 = vand.u32 %v1863, 4294901760
  %1865 = vmatpush1.msra.mxu0 %v1864
  %v1866 = vand.u32 %v36, 4294901760
  %v1867 = vsub.f32 %v36, %v1866
  %v1868 = vand.u32 %v1867, 4294901760
  %1869 = vmatprep.subr.mxu0 %v1868
  %v1870 = vand.u32 %v35, 4294901760
  %v1871 = vsub.f32 %v35, %v1870
  %v1872 = vand.u32 %v1871, 4294901760
  %1873 = vmatpush1.msra.mxu0 %v1872
  %v1874 = vand.u32 %v32, 4294901760
  %v1875 = vsub.f32 %v32, %v1874
  %v1876 = vand.u32 %v1875, 4294901760
  %1877 = vmatprep.subr.mxu0 %v1876
  %v1878 = vand.u32 %v31, 4294901760
  %v1879 = vsub.f32 %v31, %v1878
  %v1880 = vand.u32 %v1879, 4294901760
  %1881 = vmatpush1.msra.mxu0 %v1880
  %v1882 = vand.u32 %v28, 4294901760
  %v1883 = vsub.f32 %v28, %v1882
  %v1884 = vand.u32 %v1883, 4294901760
  %1885 = vmatprep.subr.mxu0 %v1884
  %v1886 = vand.u32 %v27, 4294901760
  %v1887 = vsub.f32 %v27, %v1886
  %v1888 = vand.u32 %v1887, 4294901760
  %1889 = vmatpush1.msra.mxu0 %v1888
  %v1890 = vand.u32 %v24, 4294901760
  %v1891 = vsub.f32 %v24, %v1890
  %v1892 = vand.u32 %v1891, 4294901760
  %1893 = vmatprep.subr.mxu0 %v1892
  %v1894 = vand.u32 %v23, 4294901760
  %v1895 = vsub.f32 %v23, %v1894
  %v1896 = vand.u32 %v1895, 4294901760
  %1897 = vmatpush1.msra.mxu0 %v1896
  %1898 = vmatprep.subr.mxu0 0.0
  %1899 = vmatpush2.msra.mxu0 0.0
  %1900 = vmatprep.subr.mxu0 0.0
  %1901 = vmatpush2.msra.mxu0 0.0
  %1902 = vmatprep.subr.mxu0 0.0
  %1903 = vmatpush2.msra.mxu0 0.0
  %1904 = vmatprep.subr.mxu0 0.0
  %1905 = vmatpush2.msra.mxu0 0.0
  %1906 = vmatprep.subr.mxu0 0.0
  %1907 = vmatpush2.msra.mxu0 0.0
  %1908 = vmatprep.subr.mxu0 0.0
  %1909 = vmatpush2.msra.mxu0 0.0
  %1910 = vmatprep.subr.mxu0 0.0
  %1911 = vmatpush2.msra.mxu0 0.0
  %1912 = vmatprep.subr.mxu0 0.0
  %1913 = vmatpush2.msra.mxu0 0.0
  %1914 = vmatprep.subr.mxu0 0.0
  %1915 = vmatpush2.msra.mxu0 0.0
  %1916 = vmatprep.subr.mxu0 0.0
  %1917 = vmatpush2.msra.mxu0 0.0
  %1918 = vmatprep.subr.mxu0 0.0
  %1919 = vmatpush2.msra.mxu0 0.0
  %1920 = vmatprep.subr.mxu0 0.0
  %1921 = vmatpush2.msra.mxu0 0.0
  %1922 = vmatprep.subr.mxu0 0.0
  %1923 = vmatpush2.msra.mxu0 0.0
  %1924 = vmatprep.subr.mxu0 0.0
  %1925 = vmatpush2.msra.mxu0 0.0
  %v1926 = vand.u32 %v92, 4294901760
  %v1927 = vsub.f32 %v92, %v1926
  %v1928 = vand.u32 %v1927, 4294901760
  %1929 = vmatprep.subr.mxu0 %v1928
  %v1930 = vand.u32 %v91, 4294901760
  %v1931 = vsub.f32 %v91, %v1930
  %v1932 = vand.u32 %v1931, 4294901760
  %1933 = vmatpush2.msra.mxu0 %v1932
  %v1934 = vand.u32 %v88, 4294901760
  %v1935 = vsub.f32 %v88, %v1934
  %v1936 = vand.u32 %v1935, 4294901760
  %1937 = vmatprep.subr.mxu0 %v1936
  %v1938 = vand.u32 %v87, 4294901760
  %v1939 = vsub.f32 %v87, %v1938
  %v1940 = vand.u32 %v1939, 4294901760
  %1941 = vmatpush2.msra.mxu0 %v1940
  %v1942 = vand.u32 %v107, 4294901760
  %1943 = vmatprep.mubr.f32.mxu0 %v1942
  %v1944 = vand.u32 %v17, 4294901760
  %1945 = vmatmul.mubr.f32.gmra.mxu0 %v1944
  %v1946 = vpop.f32.mrf.mxu0
  %v1947 = vadd.f32 %v1754, %v1946
  %v1948 = vpop.f32.mrf.mxu0
  %v1949 = vadd.f32 %v1756, %v1948
  %v1950 = vand.u32 %v110, 4294901760
  %1951 = vmatprep.mubr.f32.mxu0 %v1950
  %v1952 = vand.u32 %v19, 4294901760
  %1953 = vmatmul.mubr.f32.gmra.mxu0 %v1952
  %v1954 = vpop.f32.mrf.mxu0
  %v1955 = vadd.f32 %v1766, %v1954
  %v1956 = vpop.f32.mrf.mxu0
  %v1957 = vadd.f32 %v1768, %v1956
  %1958 = vdwg.mxu0
  %v1959 = vand.u32 %v84, 4294901760
  %1960 = vmatprep.subr.mxu0 %v1959
  %v1961 = vand.u32 %v83, 4294901760
  %1962 = vmatpush1.msra.mxu0 %v1961
  %v1963 = vand.u32 %v80, 4294901760
  %1964 = vmatprep.subr.mxu0 %v1963
  %v1965 = vand.u32 %v79, 4294901760
  %1966 = vmatpush1.msra.mxu0 %v1965
  %v1967 = vand.u32 %v76, 4294901760
  %1968 = vmatprep.subr.mxu0 %v1967
  %v1969 = vand.u32 %v75, 4294901760
  %1970 = vmatpush1.msra.mxu0 %v1969
  %v1971 = vand.u32 %v72, 4294901760
  %1972 = vmatprep.subr.mxu0 %v1971
  %v1973 = vand.u32 %v71, 4294901760
  %1974 = vmatpush1.msra.mxu0 %v1973
  %v1975 = vand.u32 %v68, 4294901760
  %1976 = vmatprep.subr.mxu0 %v1975
  %v1977 = vand.u32 %v67, 4294901760
  %1978 = vmatpush1.msra.mxu0 %v1977
  %v1979 = vand.u32 %v64, 4294901760
  %1980 = vmatprep.subr.mxu0 %v1979
  %v1981 = vand.u32 %v63, 4294901760
  %1982 = vmatpush1.msra.mxu0 %v1981
  %v1983 = vand.u32 %v60, 4294901760
  %1984 = vmatprep.subr.mxu0 %v1983
  %v1985 = vand.u32 %v59, 4294901760
  %1986 = vmatpush1.msra.mxu0 %v1985
  %v1987 = vand.u32 %v56, 4294901760
  %1988 = vmatprep.subr.mxu0 %v1987
  %v1989 = vand.u32 %v55, 4294901760
  %1990 = vmatpush1.msra.mxu0 %v1989
  %v1991 = vand.u32 %v52, 4294901760
  %1992 = vmatprep.subr.mxu0 %v1991
  %v1993 = vand.u32 %v51, 4294901760
  %1994 = vmatpush1.msra.mxu0 %v1993
  %v1995 = vand.u32 %v48, 4294901760
  %1996 = vmatprep.subr.mxu0 %v1995
  %v1997 = vand.u32 %v47, 4294901760
  %1998 = vmatpush1.msra.mxu0 %v1997
  %v1999 = vand.u32 %v44, 4294901760
  %2000 = vmatprep.subr.mxu0 %v1999
  %v2001 = vand.u32 %v43, 4294901760
  %2002 = vmatpush1.msra.mxu0 %v2001
  %v2003 = vand.u32 %v40, 4294901760
  %2004 = vmatprep.subr.mxu0 %v2003
  %v2005 = vand.u32 %v39, 4294901760
  %2006 = vmatpush1.msra.mxu0 %v2005
  %v2007 = vand.u32 %v36, 4294901760
  %2008 = vmatprep.subr.mxu0 %v2007
  %v2009 = vand.u32 %v35, 4294901760
  %2010 = vmatpush1.msra.mxu0 %v2009
  %v2011 = vand.u32 %v32, 4294901760
  %2012 = vmatprep.subr.mxu0 %v2011
  %v2013 = vand.u32 %v31, 4294901760
  %2014 = vmatpush1.msra.mxu0 %v2013
  %v2015 = vand.u32 %v28, 4294901760
  %2016 = vmatprep.subr.mxu0 %v2015
  %v2017 = vand.u32 %v27, 4294901760
  %2018 = vmatpush1.msra.mxu0 %v2017
  %v2019 = vand.u32 %v24, 4294901760
  %2020 = vmatprep.subr.mxu0 %v2019
  %v2021 = vand.u32 %v23, 4294901760
  %2022 = vmatpush1.msra.mxu0 %v2021
  %2023 = vmatprep.subr.mxu0 0.0
  %2024 = vmatpush2.msra.mxu0 0.0
  %2025 = vmatprep.subr.mxu0 0.0
  %2026 = vmatpush2.msra.mxu0 0.0
  %2027 = vmatprep.subr.mxu0 0.0
  %2028 = vmatpush2.msra.mxu0 0.0
  %2029 = vmatprep.subr.mxu0 0.0
  %2030 = vmatpush2.msra.mxu0 0.0
  %2031 = vmatprep.subr.mxu0 0.0
  %2032 = vmatpush2.msra.mxu0 0.0
  %2033 = vmatprep.subr.mxu0 0.0
  %2034 = vmatpush2.msra.mxu0 0.0
  %2035 = vmatprep.subr.mxu0 0.0
  %2036 = vmatpush2.msra.mxu0 0.0
  %2037 = vmatprep.subr.mxu0 0.0
  %2038 = vmatpush2.msra.mxu0 0.0
  %2039 = vmatprep.subr.mxu0 0.0
  %2040 = vmatpush2.msra.mxu0 0.0
  %2041 = vmatprep.subr.mxu0 0.0
  %2042 = vmatpush2.msra.mxu0 0.0
  %2043 = vmatprep.subr.mxu0 0.0
  %2044 = vmatpush2.msra.mxu0 0.0
  %2045 = vmatprep.subr.mxu0 0.0
  %2046 = vmatpush2.msra.mxu0 0.0
  %2047 = vmatprep.subr.mxu0 0.0
  %2048 = vmatpush2.msra.mxu0 0.0
  %2049 = vmatprep.subr.mxu0 0.0
  %2050 = vmatpush2.msra.mxu0 0.0
  %v2051 = vand.u32 %v92, 4294901760
  %2052 = vmatprep.subr.mxu0 %v2051
  %v2053 = vand.u32 %v91, 4294901760
  %2054 = vmatpush2.msra.mxu0 %v2053
  %v2055 = vand.u32 %v88, 4294901760
  %2056 = vmatprep.subr.mxu0 %v2055
  %v2057 = vand.u32 %v87, 4294901760
  %2058 = vmatpush2.msra.mxu0 %v2057
  %v2059 = vand.u32 %v107, 4294901760
  %2060 = vmatprep.mubr.f32.mxu0 %v2059
  %v2061 = vand.u32 %v17, 4294901760
  %2062 = vmatmul.mubr.f32.gmra.mxu0 %v2061
  %v2063 = vpop.f32.mrf.mxu0
  %v2064 = vadd.f32 %v1947, %v2063
  %v2065 = vpop.f32.mrf.mxu0
  %v2066 = vadd.f32 %v1949, %v2065
  %v2067 = vand.u32 %v110, 4294901760
  %2068 = vmatprep.mubr.f32.mxu0 %v2067
  %v2069 = vand.u32 %v19, 4294901760
  %2070 = vmatmul.mubr.f32.gmra.mxu0 %v2069
  %v2071 = vpop.f32.mrf.mxu0
  %v2072 = vadd.f32 %v1955, %v2071
  %v2073 = vpop.f32.mrf.mxu0
  %v2074 = vadd.f32 %v1957, %v2073
  %2075 = vdwg.mxu0
  %v2076 = vmul.f32 %v1082, 0.1
  %v2077 = vmul.f32 %v1084, 0.1
  %v2078 = vmul.f32 %v2064, 0.1
  %v2079 = vmul.f32 %v2066, 0.1
  %v2080 = vmul.f32 %v1090, 0.1
  %v2081 = vmul.f32 %v1092, 0.1
  %v2082 = vmul.f32 %v2072, 0.1
  %v2083 = vmul.f32 %v2074, 0.1
  %v2084 = vld [vmem:[%s3] sm:$0xff]
  %v2085 = vld [vmem:[%s3 + $0x8] sm:$0xff]
  %v2086 = vld [vmem:[%s3 + $0x10] sm:$0xff]
  %v2087 = vld [vmem:[%s3 + $0x18] sm:$0xff]
  %v2088 = vld [vmem:[%s3 + $0x20] sm:$0xff]
  %v2089 = vld [vmem:[%s3 + $0x28] sm:$0xff]
  %v2090 = vld [vmem:[%s3 + $0x30] sm:$0xff]
  %v2091 = vld [vmem:[%s3 + $0x38] sm:$0xff]
  %v2092 = vadd.f32 %v2076, %v2084
  %v2093 = vadd.f32 %v2077, %v2085
  %v2094 = vadd.f32 %v2078, %v2086
  %v2095 = vadd.f32 %v2079, %v2087
  %v2096 = vadd.f32 %v2080, %v2088
  %v2097 = vadd.f32 %v2081, %v2089
  %v2098 = vadd.f32 %v2082, %v2090
  %v2099 = vadd.f32 %v2083, %v2091
  %v2100 = vmax.f32 %v2092, 0.0
  %v2101 = vmax.f32 %v2093, 0.0
  %v2102 = vmax.f32 %v2094, 0.0
  %v2103 = vmax.f32 %v2095, 0.0
  %v2104 = vmax.f32 %v2096, 0.0
  %v2105 = vmax.f32 %v2097, 0.0
  %v2106 = vmax.f32 %v2098, 0.0
  %v2107 = vmax.f32 %v2099, 0.0
  %2108 = vst [vmem:[%s4] sm:$0xff] %v2100
  %2109 = vst [vmem:[%s4 + $0x8] sm:$0xff] %v2101
  %2110 = vst [vmem:[%s4 + $0x10] sm:$0xff] %v2102
  %2111 = vst [vmem:[%s4 + $0x18] sm:$0xff] %v2103
  %2112 = vst [vmem:[%s4 + $0x20] sm:$0xff] %v2104
  %2113 = vst [vmem:[%s4 + $0x28] sm:$0xff] %v2105
  %2114 = vst [vmem:[%s4 + $0x30] sm:$0xff] %v2106
  %2115 = vst [vmem:[%s4 + $0x38] sm:$0xff] %v2107
  // Predicated region
  $region18: #{basic_rfb_a_forward.27} parent=0 // pred_check
    _
  $region19: #{basic_rfb_a_forward.27} parent=0 // pred_check_branch
    %2117 = sbr.rel (0) target = $region21
  $region20: #{basic_rfb_a_forward.27} parent=0 // pred_region
    _
  $region21: #{basic_rfb_a_forward.27} parent=0 // pred_fallthru
    _
  // Predicated region
  $region22: #{basic_rfb_a_forward.27} parent=0 // pred_check
    _
  $region23: #{basic_rfb_a_forward.27} parent=0 // pred_check_branch
    %2119 = sbr.rel (0) target = $region25
  $region24: #{basic_rfb_a_forward.27} parent=0 // pred_region
    _
  $region25: #{basic_rfb_a_forward.27} parent=0 // pred_fallthru
    _

</llo_original>
